<compile_context>
chip_gen: v7x
topology: tpu7x:2x2x1
jax: 0.10.0
libtpu: 0.0.40
codegen_flags: <defaults>
</compile_context>

<pallas_src>
import math

import jax
import jax.numpy as jnp
from jax.experimental import pallas as pl
from jax.experimental.pallas import tpu as pltpu

BN_EPS = 1e-5
OUT_P = 128                      # padded width of the final (N=1) layer
B1_P = 384                       # padded width of residual-block-1 hidden (320)
B2_P = 256                       # padded width of residual-block-2 hidden (192)
_SQRT_2_OVER_PI = math.sqrt(2.0 / math.pi)


def _round_up(x, m):
    return (x + m - 1) // m * m


def _gelu_tanh(x):
    # tanh-approximate GELU: 0.5*x*(1 + tanh(sqrt(2/pi)*(x + 0.044715*x^3))).
    # The tanh lowers to the EUP (separate VLIW slot); the erf variant would be
    # a ~20-op VALU polynomial and likely the binding unit for this kernel.
    return 0.5 * x * (1.0 + jnp.tanh(_SQRT_2_OVER_PI * (x + 0.044715 * (x * x * x))))


# --------------------------------------------------------------------------
# Kernel
# --------------------------------------------------------------------------
def mlp_kernel(
    x_ref,
    # input layer: Linear(input, 448) [+ folded BN] + GELU
    w_in, b_in,
    # residual block 1: fused [first-linear || skip] (448 -> 320|320), then 320 -> 320
    w1_fs, b1_fs, w1_b, b1_b,
    # residual block 2: fused [first-linear || skip] (320 -> 192|192), then 192 -> 192
    w2_fs, b2_fs, w2_b, b2_b,
    # final layers: Linear(192, 64) [+BN] + GELU, Linear(64, 1) + Sigmoid
    w_f0, b_f0, w_f1, b_f1,
    out_ref,
):
    x = x_ref[...]                                       # bf16 [TM, IN_P]

    def lin(h, w_ref, b_ref):
        # bf16 operands feed the MXU; accumulate and add the bias in f32.
        # Elementwise stays f32 (v5e has no bf16 VPU/EUP datapath).
        return jnp.dot(h.astype(jnp.bfloat16), w_ref[...],
                       preferred_element_type=jnp.float32) + b_ref[...]

    # input layer (BN folded host-side; Dropout is identity in eval)
    h = _gelu_tanh(jnp.dot(x, w_in[...], preferred_element_type=jnp.float32)
                   + b_in[...])

    # residual block 1: one fused matmul produces both the first-linear and the
    # skip pre-activations; split at the lane-aligned column boundary (384).
    z = lin(h, w1_fs, b1_fs)                             # [TM, 2*B1_P]
    r = _gelu_tanh(z[:, :B1_P])
    r = _gelu_tanh(lin(r, w1_b, b1_b))
    h = r + z[:, B1_P:]                                  # layers(h) + skip(h)

    # residual block 2 (split boundary 256, lane aligned)
    z = lin(h, w2_fs, b2_fs)                             # [TM, 2*B2_P]
    r = _gelu_tanh(z[:, :B2_P])
    r = _gelu_tanh(lin(r, w2_b, b2_b))
    h = r + z[:, B2_P:]

    # final layers
    h = _gelu_tanh(lin(h, w_f0, b_f0))
    logits = lin(h, w_f1, b_f1)                          # [TM, 128], col 0 is real
    out_ref[...] = jax.nn.sigmoid(logits)                # lane-dense store


# --------------------------------------------------------------------------
# Parameter construction (matches BinaryMelodyNet.__init__ / _init_weights)
# --------------------------------------------------------------------------
def _kaiming_linear(key, in_f, out_f):
    """kaiming_normal_(weight, mode='fan_out', nonlinearity='relu') -> std=sqrt(2/out_f);
    bias zeroed by _init_weights. Returned transposed as [in, out]."""
    std = math.sqrt(2.0 / out_f)
    w_t = jax.random.normal(key, (in_f, out_f), jnp.float32) * std
    b = jnp.zeros((out_f,), jnp.float32)
    return w_t, b


def _fold_bn(w_t, b, gamma=None, beta=None, mean=None, var=None, eps=BN_EPS):
    """General eval-mode BatchNorm1d fold into the preceding linear:
         y = gamma * (x @ w_t + b - mean) / sqrt(var + eps) + beta
    Defaults are the module's *init* statistics (gamma=1, beta=0, mean=0, var=1);
    pass a trained checkpoint's running stats / affine params for real weights."""
    out_f = w_t.shape[1]
    gamma = jnp.ones((out_f,), jnp.float32) if gamma is None else gamma
    beta = jnp.zeros((out_f,), jnp.float32) if beta is None else beta
    mean = jnp.zeros((out_f,), jnp.float32) if mean is None else mean
    var = jnp.ones((out_f,), jnp.float32) if var is None else var
    scale = gamma / jnp.sqrt(var + eps)
    return w_t * scale, (b - mean) * scale + beta


def _pad_w(w_t, in_p, out_p):
    in_f, out_f = w_t.shape
    return jnp.zeros((in_p, out_p), jnp.float32).at[:in_f, :out_f].set(w_t)


def _pad_b(b, out_p):
    return jnp.zeros((1, out_p), jnp.float32).at[0, :b.shape[0]].set(b)


def init_params(key, input_size):
    """Returns (kernel_params, ref_params).

    kernel_params: padded (and skip-fused) bf16 weights + f32 biases in kernel
                   argument order.
    ref_params:    unpadded, unfused f32 folded (w_t, b) pairs for the pure-JAX
                   reference (also validates the fused packing in the kernel).
    """
    keys = jax.random.split(key, 9)
    in_p = _round_up(input_size, 128)

    def make(k, in_f, out_f, has_bn):
        w_t, b = _kaiming_linear(k, in_f, out_f)
        return _fold_bn(w_t, b) if has_bn else (w_t, b)

    w_in, b_in = make(keys[0], input_size, 448, True)    # input layer
    w1a, b1a = make(keys[1], 448, 320, True)             # block1 linear a
    w1b, b1b = make(keys[2], 320, 320, True)             # block1 linear b
    w1s, b1s = make(keys[3], 448, 320, False)            # block1 skip
    w2a, b2a = make(keys[4], 320, 192, True)             # block2 linear a
    w2b, b2b = make(keys[5], 192, 192, True)             # block2 linear b
    w2s, b2s = make(keys[6], 320, 192, False)            # block2 skip
    wf0, bf0 = make(keys[7], 192, 64, True)              # final linear 0
    wf1, bf1 = make(keys[8], 64, 1, False)               # final linear 1

    ref_params = [(w_in, b_in), (w1a, b1a), (w1b, b1b), (w1s, b1s),
                  (w2a, b2a), (w2b, b2b), (w2s, b2s), (wf0, bf0), (wf1, bf1)]

    # Fuse each block's first linear with its skip linear along the output axis
    # (they read the same activation) -> a single MXU pass, lane-aligned split.
    w1_fs = jnp.concatenate([_pad_w(w1a, 512, B1_P), _pad_w(w1s, 512, B1_P)], axis=1)
    b1_fs = jnp.concatenate([_pad_b(b1a, B1_P), _pad_b(b1s, B1_P)], axis=1)
    w2_fs = jnp.concatenate([_pad_w(w2a, B1_P, B2_P), _pad_w(w2s, B1_P, B2_P)], axis=1)
    b2_fs = jnp.concatenate([_pad_b(b2a, B2_P), _pad_b(b2s, B2_P)], axis=1)

    padded = [
        (_pad_w(w_in, in_p, 512), _pad_b(b_in, 512)),
        (w1_fs, b1_fs),
        (_pad_w(w1b, B1_P, B1_P), _pad_b(b1b, B1_P)),
        (w2_fs, b2_fs),
        (_pad_w(w2b, B2_P, B2_P), _pad_b(b2b, B2_P)),
        (_pad_w(wf0, B2_P, 128), _pad_b(bf0, 128)),
        (_pad_w(wf1, 128, OUT_P), _pad_b(bf1, OUT_P)),
    ]
    kernel_params = []
    for w_p, b_p in padded:
        kernel_params.append(w_p.astype(jnp.bfloat16))   # MXU-native weights
        kernel_params.append(b_p)                        # f32 bias [1, out_p]
    return kernel_params, ref_params


# --------------------------------------------------------------------------
# Pure-JAX reference (same bf16-matmul / f32-accumulate / tanh-GELU numerics)
# --------------------------------------------------------------------------
def reference_forward(x, ref_params):
    (w_in, b_in), (w1a, b1a), (w1b, b1b), (w1s, b1s), \
        (w2a, b2a), (w2b, b2b), (w2s, b2s), (wf0, bf0), (wf1, bf1) = ref_params

    def lin(h, w, b):
        return jnp.dot(h.astype(jnp.bfloat16), w.astype(jnp.bfloat16),
                       preferred_element_type=jnp.float32) + b

    def lg(h, w, b):
        return _gelu_tanh(lin(h, w, b))

    h = lg(x.astype(jnp.bfloat16), w_in, b_in)
    h = lg(lg(h, w1a, b1a), w1b, b1b) + lin(h, w1s, b1s)
    h = lg(lg(h, w2a, b2a), w2b, b2b) + lin(h, w2s, b2s)
    h = lg(h, wf0, bf0)
    return jax.nn.sigmoid(lin(h, wf1, bf1))


# --------------------------------------------------------------------------
# Wrapper
# --------------------------------------------------------------------------
def binary_melody_net_forward(x, kernel_params, *, block_m=256):
    b, f = x.shape
    in_p = kernel_params[0].shape[0]            # padded input width

    # Minimal batch padding: fix the tile count first, then use the smallest
    # 8-aligned tile covering the batch (b=300 -> 2 tiles of 152 rows instead
    # of 2 x 256).  On v5e/v6e the grid is a serial loop (few tiles = little
    # per-step overhead); on v7x an even tile count lets "parallel" shard the
    # batch tiles across both TensorCores.
    num_tiles = max(1, pl.cdiv(b, block_m))
    tm = _round_up(pl.cdiv(b, num_tiles), 8)
    b_pad = tm * num_tiles

    # bf16 input block: halves activation HBM traffic and feeds the MXU directly.
    x_p = jnp.zeros((b_pad, in_p), jnp.bfloat16).at[:b, :f].set(
        x.astype(jnp.bfloat16))

    in_specs = [pl.BlockSpec((tm, in_p), lambda i: (i, 0))]
    for p in kernel_params:
        # Constant index_map: weights/biases are DMA'd once and stay
        # VMEM-resident across all batch tiles.  (Single-buffering them via
        # pipeline_mode=pl.Buffered(1) would free ~1.8 MiB more VMEM; not
        # needed at current sizes, total footprint is ~5 MiB.)
        in_specs.append(pl.BlockSpec(p.shape, lambda i: (0, 0)))

    # Advisory cost estimate for XLA's scheduler.
    macs = sum(int(w.shape[0]) * int(w.shape[1]) for w in kernel_params[0::2])
    weight_bytes = sum(int(p.size) * p.dtype.itemsize for p in kernel_params)
    cost = pl.CostEstimate(
        flops=2 * b_pad * macs,
        transcendentals=b_pad * 2048,           # 6 GELU layers + sigmoid, padded widths
        bytes_accessed=b_pad * in_p * 2 + b_pad * OUT_P * 4 + weight_bytes,
    )

    out = pl.pallas_call(
        mlp_kernel,
        out_shape=jax.ShapeDtypeStruct((b_pad, OUT_P), jnp.float32),
        grid=(num_tiles,),
        in_specs=in_specs,
        out_specs=pl.BlockSpec((tm, OUT_P), lambda i: (i, 0)),
        compiler_params=pltpu.CompilerParams(
            dimension_semantics=("parallel",),   # v7x: shard batch tiles over 2 TCs
            vmem_limit_bytes=32 * 1024 * 1024,
        ),
        cost_estimate=cost,
    )(x_p, *kernel_params)

    return out[:b, :1]                           # real logit column, real batch rows


# --------------------------------------------------------------------------
if __name__ == "__main__":
    key = jax.random.PRNGKey(0)
    k_params, k_x = jax.random.split(key)

    batch = 300                 # non-multiple of the tile size to exercise padding
    input_size = 64             # small synthetic feature size

    kernel_params, ref_params = init_params(k_params, input_size)
    x = jax.random.normal(k_x, (batch, input_size), dtype=jnp.float32)

    out = jax.block_until_ready(binary_melody_net_forward(x, kernel_params))

    assert out.shape == (batch, 1)
    assert bool(jnp.all((out >= 0.0) & (out <= 1.0)))

    # Cross-check against a pure-JAX reference that uses the same bf16-matmul /
    # f32-accumulate / tanh-GELU numerics (also validates the fused skip packing
    # and the minimal-padding tiling).
    ref = jax.block_until_ready(reference_forward(x, ref_params))
    max_diff = float(jnp.max(jnp.abs(out - ref)))
    assert max_diff < 2e-3, f"kernel vs reference mismatch: {max_diff}"

    print("KERNEL_OK")
</pallas_src>

<mosaic_0001>
module attributes {stable_mosaic.version = 11 : i64} {
  func.func @mlp_kernel(%arg0: i32, %arg1: memref<152x128xbf16, #tpu.memory_space<vmem>>, %arg2: memref<128x512xbf16, #tpu.memory_space<vmem>>, %arg3: memref<1x512xf32, #tpu.memory_space<vmem>>, %arg4: memref<512x768xbf16, #tpu.memory_space<vmem>>, %arg5: memref<1x768xf32, #tpu.memory_space<vmem>>, %arg6: memref<384x384xbf16, #tpu.memory_space<vmem>>, %arg7: memref<1x384xf32, #tpu.memory_space<vmem>>, %arg8: memref<384x512xbf16, #tpu.memory_space<vmem>>, %arg9: memref<1x512xf32, #tpu.memory_space<vmem>>, %arg10: memref<256x256xbf16, #tpu.memory_space<vmem>>, %arg11: memref<1x256xf32, #tpu.memory_space<vmem>>, %arg12: memref<256x128xbf16, #tpu.memory_space<vmem>>, %arg13: memref<1x128xf32, #tpu.memory_space<vmem>>, %arg14: memref<128x128xbf16, #tpu.memory_space<vmem>>, %arg15: memref<1x128xf32, #tpu.memory_space<vmem>>, %arg16: memref<152x128xf32, #tpu.memory_space<vmem>>) attributes {dimension_semantics = [#tpu.dimension_semantics<parallel>], iteration_bounds = array<i64: 2>, scalar_prefetch = 0 : i64, scratch_operands = 0 : i64, tpu.core_type = #tpu.core_type<tc>, window_params = [{transform_indices = @transform_0, window_bounds = array<i64: 152, 128>}, {pipeline_mode = #tpu.pipeline_mode<synchronous>, transform_indices = @transform_1, window_bounds = array<i64: 128, 512>}, {pipeline_mode = #tpu.pipeline_mode<synchronous>, transform_indices = @transform_2, window_bounds = array<i64: 1, 512>}, {pipeline_mode = #tpu.pipeline_mode<synchronous>, transform_indices = @transform_3, window_bounds = array<i64: 512, 768>}, {pipeline_mode = #tpu.pipeline_mode<synchronous>, transform_indices = @transform_4, window_bounds = array<i64: 1, 768>}, {pipeline_mode = #tpu.pipeline_mode<synchronous>, transform_indices = @transform_5, window_bounds = array<i64: 384, 384>}, {pipeline_mode = #tpu.pipeline_mode<synchronous>, transform_indices = @transform_6, window_bounds = array<i64: 1, 384>}, {pipeline_mode = #tpu.pipeline_mode<synchronous>, transform_indices = @transform_7, window_bounds = array<i64: 384, 512>}, {pipeline_mode = #tpu.pipeline_mode<synchronous>, transform_indices = @transform_8, window_bounds = array<i64: 1, 512>}, {pipeline_mode = #tpu.pipeline_mode<synchronous>, transform_indices = @transform_9, window_bounds = array<i64: 256, 256>}, {pipeline_mode = #tpu.pipeline_mode<synchronous>, transform_indices = @transform_10, window_bounds = array<i64: 1, 256>}, {pipeline_mode = #tpu.pipeline_mode<synchronous>, transform_indices = @transform_11, window_bounds = array<i64: 256, 128>}, {pipeline_mode = #tpu.pipeline_mode<synchronous>, transform_indices = @transform_12, window_bounds = array<i64: 1, 128>}, {pipeline_mode = #tpu.pipeline_mode<synchronous>, transform_indices = @transform_13, window_bounds = array<i64: 128, 128>}, {pipeline_mode = #tpu.pipeline_mode<synchronous>, transform_indices = @transform_14, window_bounds = array<i64: 1, 128>}, {transform_indices = @transform_15, window_bounds = array<i64: 152, 128>}]} {
    %c0 = arith.constant 0 : index
    %c0_0 = arith.constant 0 : index
    %0 = vector.load %arg1[%c0, %c0_0] : memref<152x128xbf16, #tpu.memory_space<vmem>>, vector<152x128xbf16>
    %c0_1 = arith.constant 0 : index
    %c0_2 = arith.constant 0 : index
    %1 = vector.load %arg2[%c0_1, %c0_2] : memref<128x512xbf16, #tpu.memory_space<vmem>>, vector<128x512xbf16>
    %cst = arith.constant dense<0.000000e+00> : vector<152x512xf32>
    %2 = tpu.matmul %0, %1, %cst {dimension_numbers = #tpu.dot_dimension_numbers<[1], [0], [0], [1], [0, 0, 1, 1], [], []>} : vector<152x128xbf16>, vector<128x512xbf16>, vector<152x512xf32> -> vector<152x512xf32>
    %c0_3 = arith.constant 0 : index
    %c0_4 = arith.constant 0 : index
    %3 = vector.load %arg3[%c0_3, %c0_4] : memref<1x512xf32, #tpu.memory_space<vmem>>, vector<1x512xf32>
    %4 = vector.broadcast %3 : vector<1x512xf32> to vector<152x512xf32>
    %5 = arith.addf %2, %4 : vector<152x512xf32>
    %cst_5 = arith.constant 5.000000e-01 : f32
    %6 = vector.broadcast %cst_5 : f32 to vector<152x512xf32>
    %7 = arith.mulf %6, %5 : vector<152x512xf32>
    %8 = arith.mulf %5, %5 : vector<152x512xf32>
    %9 = arith.mulf %8, %5 : vector<152x512xf32>
    %cst_6 = arith.constant 4.471500e-02 : f32
    %10 = vector.broadcast %cst_6 : f32 to vector<152x512xf32>
    %11 = arith.mulf %10, %9 : vector<152x512xf32>
    %12 = arith.addf %5, %11 : vector<152x512xf32>
    %cst_7 = arith.constant 0.797884583 : f32
    %13 = vector.broadcast %cst_7 : f32 to vector<152x512xf32>
    %14 = arith.mulf %13, %12 : vector<152x512xf32>
    %15 = math.tanh %14 : vector<152x512xf32>
    %cst_8 = arith.constant 1.000000e+00 : f32
    %16 = vector.broadcast %cst_8 : f32 to vector<152x512xf32>
    %17 = arith.addf %16, %15 : vector<152x512xf32>
    %18 = arith.mulf %7, %17 : vector<152x512xf32>
    %19 = arith.truncf %18 : vector<152x512xf32> to vector<152x512xbf16>
    %c0_9 = arith.constant 0 : index
    %c0_10 = arith.constant 0 : index
    %20 = vector.load %arg4[%c0_9, %c0_10] : memref<512x768xbf16, #tpu.memory_space<vmem>>, vector<512x768xbf16>
    %cst_11 = arith.constant dense<0.000000e+00> : vector<152x768xf32>
    %21 = tpu.matmul %19, %20, %cst_11 {dimension_numbers = #tpu.dot_dimension_numbers<[1], [0], [0], [1], [0, 0, 1, 1], [], []>} : vector<152x512xbf16>, vector<512x768xbf16>, vector<152x768xf32> -> vector<152x768xf32>
    %c0_12 = arith.constant 0 : index
    %c0_13 = arith.constant 0 : index
    %22 = vector.load %arg5[%c0_12, %c0_13] : memref<1x768xf32, #tpu.memory_space<vmem>>, vector<1x768xf32>
    %23 = vector.broadcast %22 : vector<1x768xf32> to vector<152x768xf32>
    %24 = arith.addf %21, %23 : vector<152x768xf32>
    %25 = vector.extract_strided_slice %24 {offsets = [0, 0], sizes = [152, 384], strides = [1, 1]} : vector<152x768xf32> to vector<152x384xf32>
    %cst_14 = arith.constant 5.000000e-01 : f32
    %26 = vector.broadcast %cst_14 : f32 to vector<152x384xf32>
    %27 = arith.mulf %26, %25 : vector<152x384xf32>
    %28 = arith.mulf %25, %25 : vector<152x384xf32>
    %29 = arith.mulf %28, %25 : vector<152x384xf32>
    %cst_15 = arith.constant 4.471500e-02 : f32
    %30 = vector.broadcast %cst_15 : f32 to vector<152x384xf32>
    %31 = arith.mulf %30, %29 : vector<152x384xf32>
    %32 = arith.addf %25, %31 : vector<152x384xf32>
    %cst_16 = arith.constant 0.797884583 : f32
    %33 = vector.broadcast %cst_16 : f32 to vector<152x384xf32>
    %34 = arith.mulf %33, %32 : vector<152x384xf32>
    %35 = math.tanh %34 : vector<152x384xf32>
    %cst_17 = arith.constant 1.000000e+00 : f32
    %36 = vector.broadcast %cst_17 : f32 to vector<152x384xf32>
    %37 = arith.addf %36, %35 : vector<152x384xf32>
    %38 = arith.mulf %27, %37 : vector<152x384xf32>
    %39 = arith.truncf %38 : vector<152x384xf32> to vector<152x384xbf16>
    %c0_18 = arith.constant 0 : index
    %c0_19 = arith.constant 0 : index
    %40 = vector.load %arg6[%c0_18, %c0_19] : memref<384x384xbf16, #tpu.memory_space<vmem>>, vector<384x384xbf16>
    %cst_20 = arith.constant dense<0.000000e+00> : vector<152x384xf32>
    %41 = tpu.matmul %39, %40, %cst_20 {dimension_numbers = #tpu.dot_dimension_numbers<[1], [0], [0], [1], [0, 0, 1, 1], [], []>} : vector<152x384xbf16>, vector<384x384xbf16>, vector<152x384xf32> -> vector<152x384xf32>
    %c0_21 = arith.constant 0 : index
    %c0_22 = arith.constant 0 : index
    %42 = vector.load %arg7[%c0_21, %c0_22] : memref<1x384xf32, #tpu.memory_space<vmem>>, vector<1x384xf32>
    %43 = vector.broadcast %42 : vector<1x384xf32> to vector<152x384xf32>
    %44 = arith.addf %41, %43 : vector<152x384xf32>
    %cst_23 = arith.constant 5.000000e-01 : f32
    %45 = vector.broadcast %cst_23 : f32 to vector<152x384xf32>
    %46 = arith.mulf %45, %44 : vector<152x384xf32>
    %47 = arith.mulf %44, %44 : vector<152x384xf32>
    %48 = arith.mulf %47, %44 : vector<152x384xf32>
    %cst_24 = arith.constant 4.471500e-02 : f32
    %49 = vector.broadcast %cst_24 : f32 to vector<152x384xf32>
    %50 = arith.mulf %49, %48 : vector<152x384xf32>
    %51 = arith.addf %44, %50 : vector<152x384xf32>
    %cst_25 = arith.constant 0.797884583 : f32
    %52 = vector.broadcast %cst_25 : f32 to vector<152x384xf32>
    %53 = arith.mulf %52, %51 : vector<152x384xf32>
    %54 = math.tanh %53 : vector<152x384xf32>
    %cst_26 = arith.constant 1.000000e+00 : f32
    %55 = vector.broadcast %cst_26 : f32 to vector<152x384xf32>
    %56 = arith.addf %55, %54 : vector<152x384xf32>
    %57 = arith.mulf %46, %56 : vector<152x384xf32>
    %58 = vector.extract_strided_slice %24 {offsets = [0, 384], sizes = [152, 384], strides = [1, 1]} : vector<152x768xf32> to vector<152x384xf32>
    %59 = arith.addf %57, %58 : vector<152x384xf32>
    %60 = arith.truncf %59 : vector<152x384xf32> to vector<152x384xbf16>
    %c0_27 = arith.constant 0 : index
    %c0_28 = arith.constant 0 : index
    %61 = vector.load %arg8[%c0_27, %c0_28] : memref<384x512xbf16, #tpu.memory_space<vmem>>, vector<384x512xbf16>
    %cst_29 = arith.constant dense<0.000000e+00> : vector<152x512xf32>
    %62 = tpu.matmul %60, %61, %cst_29 {dimension_numbers = #tpu.dot_dimension_numbers<[1], [0], [0], [1], [0, 0, 1, 1], [], []>} : vector<152x384xbf16>, vector<384x512xbf16>, vector<152x512xf32> -> vector<152x512xf32>
    %c0_30 = arith.constant 0 : index
    %c0_31 = arith.constant 0 : index
    %63 = vector.load %arg9[%c0_30, %c0_31] : memref<1x512xf32, #tpu.memory_space<vmem>>, vector<1x512xf32>
    %64 = vector.broadcast %63 : vector<1x512xf32> to vector<152x512xf32>
    %65 = arith.addf %62, %64 : vector<152x512xf32>
    %66 = vector.extract_strided_slice %65 {offsets = [0, 0], sizes = [152, 256], strides = [1, 1]} : vector<152x512xf32> to vector<152x256xf32>
    %cst_32 = arith.constant 5.000000e-01 : f32
    %67 = vector.broadcast %cst_32 : f32 to vector<152x256xf32>
    %68 = arith.mulf %67, %66 : vector<152x256xf32>
    %69 = arith.mulf %66, %66 : vector<152x256xf32>
    %70 = arith.mulf %69, %66 : vector<152x256xf32>
    %cst_33 = arith.constant 4.471500e-02 : f32
    %71 = vector.broadcast %cst_33 : f32 to vector<152x256xf32>
    %72 = arith.mulf %71, %70 : vector<152x256xf32>
    %73 = arith.addf %66, %72 : vector<152x256xf32>
    %cst_34 = arith.constant 0.797884583 : f32
    %74 = vector.broadcast %cst_34 : f32 to vector<152x256xf32>
    %75 = arith.mulf %74, %73 : vector<152x256xf32>
    %76 = math.tanh %75 : vector<152x256xf32>
    %cst_35 = arith.constant 1.000000e+00 : f32
    %77 = vector.broadcast %cst_35 : f32 to vector<152x256xf32>
    %78 = arith.addf %77, %76 : vector<152x256xf32>
    %79 = arith.mulf %68, %78 : vector<152x256xf32>
    %80 = arith.truncf %79 : vector<152x256xf32> to vector<152x256xbf16>
    %c0_36 = arith.constant 0 : index
    %c0_37 = arith.constant 0 : index
    %81 = vector.load %arg10[%c0_36, %c0_37] : memref<256x256xbf16, #tpu.memory_space<vmem>>, vector<256x256xbf16>
    %cst_38 = arith.constant dense<0.000000e+00> : vector<152x256xf32>
    %82 = tpu.matmul %80, %81, %cst_38 {dimension_numbers = #tpu.dot_dimension_numbers<[1], [0], [0], [1], [0, 0, 1, 1], [], []>} : vector<152x256xbf16>, vector<256x256xbf16>, vector<152x256xf32> -> vector<152x256xf32>
    %c0_39 = arith.constant 0 : index
    %c0_40 = arith.constant 0 : index
    %83 = vector.load %arg11[%c0_39, %c0_40] : memref<1x256xf32, #tpu.memory_space<vmem>>, vector<1x256xf32>
    %84 = vector.broadcast %83 : vector<1x256xf32> to vector<152x256xf32>
    %85 = arith.addf %82, %84 : vector<152x256xf32>
    %cst_41 = arith.constant 5.000000e-01 : f32
    %86 = vector.broadcast %cst_41 : f32 to vector<152x256xf32>
    %87 = arith.mulf %86, %85 : vector<152x256xf32>
    %88 = arith.mulf %85, %85 : vector<152x256xf32>
    %89 = arith.mulf %88, %85 : vector<152x256xf32>
    %cst_42 = arith.constant 4.471500e-02 : f32
    %90 = vector.broadcast %cst_42 : f32 to vector<152x256xf32>
    %91 = arith.mulf %90, %89 : vector<152x256xf32>
    %92 = arith.addf %85, %91 : vector<152x256xf32>
    %cst_43 = arith.constant 0.797884583 : f32
    %93 = vector.broadcast %cst_43 : f32 to vector<152x256xf32>
    %94 = arith.mulf %93, %92 : vector<152x256xf32>
    %95 = math.tanh %94 : vector<152x256xf32>
    %cst_44 = arith.constant 1.000000e+00 : f32
    %96 = vector.broadcast %cst_44 : f32 to vector<152x256xf32>
    %97 = arith.addf %96, %95 : vector<152x256xf32>
    %98 = arith.mulf %87, %97 : vector<152x256xf32>
    %99 = vector.extract_strided_slice %65 {offsets = [0, 256], sizes = [152, 256], strides = [1, 1]} : vector<152x512xf32> to vector<152x256xf32>
    %100 = arith.addf %98, %99 : vector<152x256xf32>
    %101 = arith.truncf %100 : vector<152x256xf32> to vector<152x256xbf16>
    %c0_45 = arith.constant 0 : index
    %c0_46 = arith.constant 0 : index
    %102 = vector.load %arg12[%c0_45, %c0_46] : memref<256x128xbf16, #tpu.memory_space<vmem>>, vector<256x128xbf16>
    %cst_47 = arith.constant dense<0.000000e+00> : vector<152x128xf32>
    %103 = tpu.matmul %101, %102, %cst_47 {dimension_numbers = #tpu.dot_dimension_numbers<[1], [0], [0], [1], [0, 0, 1, 1], [], []>} : vector<152x256xbf16>, vector<256x128xbf16>, vector<152x128xf32> -> vector<152x128xf32>
    %c0_48 = arith.constant 0 : index
    %c0_49 = arith.constant 0 : index
    %104 = vector.load %arg13[%c0_48, %c0_49] : memref<1x128xf32, #tpu.memory_space<vmem>>, vector<1x128xf32>
    %105 = vector.broadcast %104 : vector<1x128xf32> to vector<152x128xf32>
    %106 = arith.addf %103, %105 : vector<152x128xf32>
    %cst_50 = arith.constant 5.000000e-01 : f32
    %107 = vector.broadcast %cst_50 : f32 to vector<152x128xf32>
    %108 = arith.mulf %107, %106 : vector<152x128xf32>
    %109 = arith.mulf %106, %106 : vector<152x128xf32>
    %110 = arith.mulf %109, %106 : vector<152x128xf32>
    %cst_51 = arith.constant 4.471500e-02 : f32
    %111 = vector.broadcast %cst_51 : f32 to vector<152x128xf32>
    %112 = arith.mulf %111, %110 : vector<152x128xf32>
    %113 = arith.addf %106, %112 : vector<152x128xf32>
    %cst_52 = arith.constant 0.797884583 : f32
    %114 = vector.broadcast %cst_52 : f32 to vector<152x128xf32>
    %115 = arith.mulf %114, %113 : vector<152x128xf32>
    %116 = math.tanh %115 : vector<152x128xf32>
    %cst_53 = arith.constant 1.000000e+00 : f32
    %117 = vector.broadcast %cst_53 : f32 to vector<152x128xf32>
    %118 = arith.addf %117, %116 : vector<152x128xf32>
    %119 = arith.mulf %108, %118 : vector<152x128xf32>
    %120 = arith.truncf %119 : vector<152x128xf32> to vector<152x128xbf16>
    %c0_54 = arith.constant 0 : index
    %c0_55 = arith.constant 0 : index
    %121 = vector.load %arg14[%c0_54, %c0_55] : memref<128x128xbf16, #tpu.memory_space<vmem>>, vector<128x128xbf16>
    %cst_56 = arith.constant dense<0.000000e+00> : vector<152x128xf32>
    %122 = tpu.matmul %120, %121, %cst_56 {dimension_numbers = #tpu.dot_dimension_numbers<[1], [0], [0], [1], [0, 0, 1, 1], [], []>} : vector<152x128xbf16>, vector<128x128xbf16>, vector<152x128xf32> -> vector<152x128xf32>
    %c0_57 = arith.constant 0 : index
    %c0_58 = arith.constant 0 : index
    %123 = vector.load %arg15[%c0_57, %c0_58] : memref<1x128xf32, #tpu.memory_space<vmem>>, vector<1x128xf32>
    %124 = vector.broadcast %123 : vector<1x128xf32> to vector<152x128xf32>
    %125 = arith.addf %122, %124 : vector<152x128xf32>
    %126 = arith.negf %125 : vector<152x128xf32>
    %127 = math.exp %126 : vector<152x128xf32>
    %cst_59 = arith.constant 1.000000e+00 : f32
    %128 = vector.broadcast %cst_59 : f32 to vector<152x128xf32>
    %129 = arith.addf %128, %127 : vector<152x128xf32>
    %130 = arith.divf %128, %129 : vector<152x128xf32>
    %c0_60 = arith.constant 0 : index
    %c0_61 = arith.constant 0 : index
    %131 = vector.load %arg16[%c0_60, %c0_61] : memref<152x128xf32, #tpu.memory_space<vmem>>, vector<152x128xf32>
    tpu.vector_store %arg16[%c0_60, %c0_61], %130 {strides = array<i32>} : memref<152x128xf32, #tpu.memory_space<vmem>>, vector<152x128xf32>,
    return
  }
  func.func @transform_0(%arg0: i32) -> (i32, i32) {
    %c0_i32 = arith.constant 0 : i32
    %c0_i32_0 = arith.constant 0 : i32
    return %arg0, %c0_i32 : i32, i32
  }
  func.func @transform_1(%arg0: i32) -> (i32, i32) {
    %c0_i32 = arith.constant 0 : i32
    %c0_i32_0 = arith.constant 0 : i32
    %c0_i32_1 = arith.constant 0 : i32
    return %c0_i32, %c0_i32_0 : i32, i32
  }
  func.func @transform_2(%arg0: i32) -> (i32, i32) {
    %c0_i32 = arith.constant 0 : i32
    %c0_i32_0 = arith.constant 0 : i32
    %c0_i32_1 = arith.constant 0 : i32
    return %c0_i32, %c0_i32_0 : i32, i32
  }
  func.func @transform_3(%arg0: i32) -> (i32, i32) {
    %c0_i32 = arith.constant 0 : i32
    %c0_i32_0 = arith.constant 0 : i32
    %c0_i32_1 = arith.constant 0 : i32
    return %c0_i32, %c0_i32_0 : i32, i32
  }
  func.func @transform_4(%arg0: i32) -> (i32, i32) {
    %c0_i32 = arith.constant 0 : i32
    %c0_i32_0 = arith.constant 0 : i32
    %c0_i32_1 = arith.constant 0 : i32
    return %c0_i32, %c0_i32_0 : i32, i32
  }
  func.func @transform_5(%arg0: i32) -> (i32, i32) {
    %c0_i32 = arith.constant 0 : i32
    %c0_i32_0 = arith.constant 0 : i32
    %c0_i32_1 = arith.constant 0 : i32
    return %c0_i32, %c0_i32_0 : i32, i32
  }
  func.func @transform_6(%arg0: i32) -> (i32, i32) {
    %c0_i32 = arith.constant 0 : i32
    %c0_i32_0 = arith.constant 0 : i32
    %c0_i32_1 = arith.constant 0 : i32
    return %c0_i32, %c0_i32_0 : i32, i32
  }
  func.func @transform_7(%arg0: i32) -> (i32, i32) {
    %c0_i32 = arith.constant 0 : i32
    %c0_i32_0 = arith.constant 0 : i32
    %c0_i32_1 = arith.constant 0 : i32
    return %c0_i32, %c0_i32_0 : i32, i32
  }
  func.func @transform_8(%arg0: i32) -> (i32, i32) {
    %c0_i32 = arith.constant 0 : i32
    %c0_i32_0 = arith.constant 0 : i32
    %c0_i32_1 = arith.constant 0 : i32
    return %c0_i32, %c0_i32_0 : i32, i32
  }
  func.func @transform_9(%arg0: i32) -> (i32, i32) {
    %c0_i32 = arith.constant 0 : i32
    %c0_i32_0 = arith.constant 0 : i32
    %c0_i32_1 = arith.constant 0 : i32
    return %c0_i32, %c0_i32_0 : i32, i32
  }
  func.func @transform_10(%arg0: i32) -> (i32, i32) {
    %c0_i32 = arith.constant 0 : i32
    %c0_i32_0 = arith.constant 0 : i32
    %c0_i32_1 = arith.constant 0 : i32
    return %c0_i32, %c0_i32_0 : i32, i32
  }
  func.func @transform_11(%arg0: i32) -> (i32, i32) {
    %c0_i32 = arith.constant 0 : i32
    %c0_i32_0 = arith.constant 0 : i32
    %c0_i32_1 = arith.constant 0 : i32
    return %c0_i32, %c0_i32_0 : i32, i32
  }
  func.func @transform_12(%arg0: i32) -> (i32, i32) {
    %c0_i32 = arith.constant 0 : i32
    %c0_i32_0 = arith.constant 0 : i32
    %c0_i32_1 = arith.constant 0 : i32
    return %c0_i32, %c0_i32_0 : i32, i32
  }
  func.func @transform_13(%arg0: i32) -> (i32, i32) {
    %c0_i32 = arith.constant 0 : i32
    %c0_i32_0 = arith.constant 0 : i32
    %c0_i32_1 = arith.constant 0 : i32
    return %c0_i32, %c0_i32_0 : i32, i32
  }
  func.func @transform_14(%arg0: i32) -> (i32, i32) {
    %c0_i32 = arith.constant 0 : i32
    %c0_i32_0 = arith.constant 0 : i32
    %c0_i32_1 = arith.constant 0 : i32
    return %c0_i32, %c0_i32_0 : i32, i32
  }
  func.func @transform_15(%arg0: i32) -> (i32, i32) {
    %c0_i32 = arith.constant 0 : i32
    %c0_i32_0 = arith.constant 0 : i32
    return %arg0, %c0_i32 : i32, i32
  }
}

</mosaic_0001>

<llo_original>
// kernel: tpu_custom_call.1
$region0: #{tpu_custom_call.1}
  #allocation0 [shape = 'u32[]', space=smem, size = 0x4, offset = 0x4, fixed_abs, tag = 'smem constant byte address 0x4 - core index']
  #allocation1 [shape = 'u32[144,128]{1,0:T(1,128)}', space=vmem, size = 0x12000, scoped, tag = 'internal scratch']
  %s0 = inlined_call_operand.hbm [shape: bf16[304,128], index: 0, kind: input, shape index: {}]
  %s1 = inlined_call_operand.hbm [shape: bf16[128,512], index: 1, kind: input, shape index: {}]
  %s2 = inlined_call_operand.vmem [shape: f32[1,512], index: 2, kind: input, shape index: {}]
  %s3 = inlined_call_operand.hbm [shape: bf16[512,768], index: 3, kind: input, shape index: {}]
  %s4 = inlined_call_operand.vmem [shape: f32[1,768], index: 4, kind: input, shape index: {}]
  %s5 = inlined_call_operand.hbm [shape: bf16[384,384], index: 5, kind: input, shape index: {}]
  %s6 = inlined_call_operand.vmem [shape: f32[1,384], index: 6, kind: input, shape index: {}]
  %s7 = inlined_call_operand.hbm [shape: bf16[384,512], index: 7, kind: input, shape index: {}]
  %s8 = inlined_call_operand.vmem [shape: f32[1,512], index: 8, kind: input, shape index: {}]
  %s9 = inlined_call_operand.hbm [shape: bf16[256,256], index: 9, kind: input, shape index: {}]
  %s10 = inlined_call_operand.vmem [shape: f32[1,256], index: 10, kind: input, shape index: {}]
  %s11 = inlined_call_operand.hbm [shape: bf16[256,128], index: 11, kind: input, shape index: {}]
  %s12 = inlined_call_operand.vmem [shape: f32[1,128], index: 12, kind: input, shape index: {}]
  %s13 = inlined_call_operand.hbm [shape: bf16[128,128], index: 13, kind: input, shape index: {}]
  %s14 = inlined_call_operand.vmem [shape: f32[1,128], index: 14, kind: input, shape index: {}]
  %s15 = inlined_call_operand.hbm [shape: f32[304,128], index: 15, kind: output, shape index: {}]
  %s16 = sld [smem:[#allocation0]]
  $region125: #{tpu_custom_call.1} parent=0
    _
  %s18 = ssub.s32 1, %s16
  %s19 = scalar_select 0, %s18, %s16
  $region1: #{tpu_custom_call.1} parent=0
    #allocation2 [shape = 'u8[77824]{0}', space=vmem, size = 0x13000, scoped, tag = 'input window, operand 0']
    #allocation3 [shape = 's32[2]{0}', space=sflag, size = 0x8, scoped, tag = 'scoped memory for tpu_custom_call.1']
    #allocation4 [shape = 's32[2]{0}', space=sflag, size = 0x8, scoped, tag = 'scoped memory for tpu_custom_call.1']
    #allocation5 [shape = 'u8[131072]{0}', space=vmem, size = 0x20000, scoped, tag = 'input window, operand 1, single buffered']
    #allocation6 [shape = 's32[1]{0}', space=sflag, size = 0x4, scoped, tag = 'scoped memory for tpu_custom_call.1']
    #allocation7 [shape = 'u8[786432]{0}', space=vmem, size = 0xc0000, scoped, tag = 'input window, operand 3, single buffered']
    #allocation8 [shape = 'u8[294912]{0}', space=vmem, size = 0x48000, scoped, tag = 'input window, operand 5, single buffered']
    #allocation9 [shape = 's32[1]{0}', space=sflag, size = 0x4, scoped, tag = 'scoped memory for tpu_custom_call.1']
    #allocation10 [shape = 'u8[393216]{0}', space=vmem, size = 0x60000, scoped, tag = 'input window, operand 7, single buffered']
    #allocation11 [shape = 'u8[131072]{0}', space=vmem, size = 0x20000, scoped, tag = 'input window, operand 9, single buffered']
    #allocation12 [shape = 's32[1]{0}', space=sflag, size = 0x4, scoped, tag = 'scoped memory for tpu_custom_call.1']
    #allocation13 [shape = 'u8[65536]{0}', space=vmem, size = 0x10000, scoped, tag = 'input window, operand 11, single buffered']
    #allocation14 [shape = 'u8[32768]{0}', space=vmem, size = 0x8000, scoped, tag = 'input window, operand 13, single buffered']
    #allocation15 [shape = 's32[1]{0}', space=sflag, size = 0x4, scoped, tag = 'scoped memory for tpu_custom_call.1']
    #allocation16 [shape = 'u8[155648]{0}', space=vmem, size = 0x26000, scoped, tag = 'output window, operand 0']
    %20 = vsyncpa [#allocation3], 0
    %s21 = scalar_lea.sflag [#allocation3], 1
    %22 = vsyncpa %s21, 0
    %23 = vsyncpa [#allocation6], 0
    %24 = vsyncpa [#allocation9], 0
    %25 = vsyncpa [#allocation12], 0
    %26 = vsyncpa [#allocation15], 0
    %27 = vsyncpa [#allocation4], 0
    %s28 = scalar_lea.sflag [#allocation4], 1
    %29 = vsyncpa %s28, 0
    loop: start=0, step=1, limit=4
    $region2: #{tpu_custom_call.1} parent=1 // loop_pre_header
      _
    $region3: #{tpu_custom_call.1} parent=1 // loop_header
      %s31 = sphi 0, %s35
      %p32 = scmp.ge.s32.totalorder %s31, 4
      %s41 = sphi 0, %s43
      %s44 = sphi 0, %s41
      %s45 = sphi 0, %s44
      %s61 = sphi 0, %s45
      %s65 = sphi 0, %s65
      %s67 = sphi 0, %s65
      %s68 = sphi 0, %s67
      %s82 = sphi 0, %s68
      %s86 = sphi 0, %s86
      %s88 = sphi 0, %s86
      %s89 = sphi 0, %s88
      %s103 = sphi 0, %s89
      %s107 = sphi 0, %s107
      %s109 = sphi 0, %s107
      %s110 = sphi 0, %s109
      %s124 = sphi 0, %s110
      %s128 = sphi 0, %s128
      %s130 = sphi 0, %s128
      %s131 = sphi 0, %s130
      %s145 = sphi 0, %s131
      %s149 = sphi 0, %s149
      %s151 = sphi 0, %s149
      %s152 = sphi 0, %s151
      %s166 = sphi 0, %s152
      %s170 = sphi 0, %s170
      %s172 = sphi 0, %s170
      %s173 = sphi 0, %s172
      %s187 = sphi 0, %s173
      %s191 = sphi 0, %s191
      %s193 = sphi 0, %s191
      %s194 = sphi 0, %s193
      %s208 = sphi 0, %s194
      %s212 = sphi 0, %s212
      %s214 = sphi 0, %s212
      %s215 = sphi 0, %s214
      %s229 = sphi 0, %s215
      %s233 = sphi 0, %s233
      %s235 = sphi 0, %s233
      %s236 = sphi 0, %s235
      %s250 = sphi 0, %s236
      %s254 = sphi 0, %s254
      %s256 = sphi 0, %s254
      %s257 = sphi 0, %s256
      %s271 = sphi 0, %s257
      %s275 = sphi 0, %s275
      %s277 = sphi 0, %s275
      %s278 = sphi 0, %s277
      %s292 = sphi 0, %s278
      %s296 = sphi 0, %s296
      %s298 = sphi 0, %s296
      %s299 = sphi 0, %s298
      %s313 = sphi 0, %s299
      %s317 = sphi 0, %s317
      %s319 = sphi 0, %s317
      %s320 = sphi 0, %s319
      %s334 = sphi 0, %s320
      %s338 = sphi 0, %s338
      %s340 = sphi 0, %s338
      %s341 = sphi 0, %s340
      %s355 = sphi 0, %s341
      %s361 = sphi 0, %s363
      %s364 = sphi 0, %s361
      %s365 = sphi 0, %s364
      %s381 = sphi 0, %s365
    $region4: #{tpu_custom_call.1} parent=1 // loop_header_branch
      %34 = sbr.rel (%p32) target = $region8
    $region5: #{tpu_custom_call.1} parent=1 // loop_body
      %s36 = ssub.s32 %s31, 1
      %s37 = ssub.s32 %s31, 2
      %s38 = sadd.s32 %s31, 1
      %s39 = ssub.s32 %s31, %s38
      %p40 = scmp.eq.s32.totalorder %s39, 0
      %s42 = sadd.s32 %s41, 1
      %s43 = scalar_select %p40, %s41, %s42
      %p46 = pneg %p40
      %p47 = scmp.eq.s32.totalorder %s31, 1
      %p48 = por %p46, %p47
      %p49 = scmp.ne.s32.totalorder %s41, %s44
      %p50 = scmp.eq.s32.totalorder %s31, 0
      %p51 = por %p49, %p50
      %p52 = scmp.ne.s32.totalorder %s41, %s44
      %p53 = scmp.eq.s32.totalorder %s36, 1
      %p54 = por %p52, %p53
      %p55 = scmp.ne.s32.totalorder %s44, %s45
      %p56 = scmp.eq.s32.totalorder %s36, 0
      %p57 = por %p55, %p56
      %p58 = scmp.ne.s32.totalorder %s44, %s45
      %p59 = scmp.eq.s32.totalorder %s37, 1
      %p60 = por %p58, %p59
      %p62 = scmp.ne.s32.totalorder %s45, %s61
      %p63 = scmp.eq.s32.totalorder %s37, 0
      %p64 = por %p62, %p63
      %s66 = sadd.s32 %s65, 1
      %p69 = scmp.eq.s32.totalorder %s31, 1
      %p70 = scmp.ne.s32.totalorder %s65, %s67
      %p71 = scmp.eq.s32.totalorder %s31, 0
      %p72 = por %p70, %p71
      %p73 = scmp.ne.s32.totalorder %s65, %s67
      %p74 = scmp.eq.s32.totalorder %s36, 1
      %p75 = por %p73, %p74
      %p76 = scmp.ne.s32.totalorder %s67, %s68
      %p77 = scmp.eq.s32.totalorder %s36, 0
      %p78 = por %p76, %p77
      %p79 = scmp.ne.s32.totalorder %s67, %s68
      %p80 = scmp.eq.s32.totalorder %s37, 1
      %p81 = por %p79, %p80
      %p83 = scmp.ne.s32.totalorder %s68, %s82
      %p84 = scmp.eq.s32.totalorder %s37, 0
      %p85 = por %p83, %p84
      %s87 = sadd.s32 %s86, 1
      %p90 = scmp.eq.s32.totalorder %s31, 1
      %p91 = scmp.ne.s32.totalorder %s86, %s88
      %p92 = scmp.eq.s32.totalorder %s31, 0
      %p93 = por %p91, %p92
      %p94 = scmp.ne.s32.totalorder %s86, %s88
      %p95 = scmp.eq.s32.totalorder %s36, 1
      %p96 = por %p94, %p95
      %p97 = scmp.ne.s32.totalorder %s88, %s89
      %p98 = scmp.eq.s32.totalorder %s36, 0
      %p99 = por %p97, %p98
      %p100 = scmp.ne.s32.totalorder %s88, %s89
      %p101 = scmp.eq.s32.totalorder %s37, 1
      %p102 = por %p100, %p101
      %p104 = scmp.ne.s32.totalorder %s89, %s103
      %p105 = scmp.eq.s32.totalorder %s37, 0
      %p106 = por %p104, %p105
      %s108 = sadd.s32 %s107, 1
      %p111 = scmp.eq.s32.totalorder %s31, 1
      %p112 = scmp.ne.s32.totalorder %s107, %s109
      %p113 = scmp.eq.s32.totalorder %s31, 0
      %p114 = por %p112, %p113
      %p115 = scmp.ne.s32.totalorder %s107, %s109
      %p116 = scmp.eq.s32.totalorder %s36, 1
      %p117 = por %p115, %p116
      %p118 = scmp.ne.s32.totalorder %s109, %s110
      %p119 = scmp.eq.s32.totalorder %s36, 0
      %p120 = por %p118, %p119
      %p121 = scmp.ne.s32.totalorder %s109, %s110
      %p122 = scmp.eq.s32.totalorder %s37, 1
      %p123 = por %p121, %p122
      %p125 = scmp.ne.s32.totalorder %s110, %s124
      %p126 = scmp.eq.s32.totalorder %s37, 0
      %p127 = por %p125, %p126
      %s129 = sadd.s32 %s128, 1
      %p132 = scmp.eq.s32.totalorder %s31, 1
      %p133 = scmp.ne.s32.totalorder %s128, %s130
      %p134 = scmp.eq.s32.totalorder %s31, 0
      %p135 = por %p133, %p134
      %p136 = scmp.ne.s32.totalorder %s128, %s130
      %p137 = scmp.eq.s32.totalorder %s36, 1
      %p138 = por %p136, %p137
      %p139 = scmp.ne.s32.totalorder %s130, %s131
      %p140 = scmp.eq.s32.totalorder %s36, 0
      %p141 = por %p139, %p140
      %p142 = scmp.ne.s32.totalorder %s130, %s131
      %p143 = scmp.eq.s32.totalorder %s37, 1
      %p144 = por %p142, %p143
      %p146 = scmp.ne.s32.totalorder %s131, %s145
      %p147 = scmp.eq.s32.totalorder %s37, 0
      %p148 = por %p146, %p147
      %s150 = sadd.s32 %s149, 1
      %p153 = scmp.eq.s32.totalorder %s31, 1
      %p154 = scmp.ne.s32.totalorder %s149, %s151
      %p155 = scmp.eq.s32.totalorder %s31, 0
      %p156 = por %p154, %p155
      %p157 = scmp.ne.s32.totalorder %s149, %s151
      %p158 = scmp.eq.s32.totalorder %s36, 1
      %p159 = por %p157, %p158
      %p160 = scmp.ne.s32.totalorder %s151, %s152
      %p161 = scmp.eq.s32.totalorder %s36, 0
      %p162 = por %p160, %p161
      %p163 = scmp.ne.s32.totalorder %s151, %s152
      %p164 = scmp.eq.s32.totalorder %s37, 1
      %p165 = por %p163, %p164
      %p167 = scmp.ne.s32.totalorder %s152, %s166
      %p168 = scmp.eq.s32.totalorder %s37, 0
      %p169 = por %p167, %p168
      %s171 = sadd.s32 %s170, 1
      %p174 = scmp.eq.s32.totalorder %s31, 1
      %p175 = scmp.ne.s32.totalorder %s170, %s172
      %p176 = scmp.eq.s32.totalorder %s31, 0
      %p177 = por %p175, %p176
      %p178 = scmp.ne.s32.totalorder %s170, %s172
      %p179 = scmp.eq.s32.totalorder %s36, 1
      %p180 = por %p178, %p179
      %p181 = scmp.ne.s32.totalorder %s172, %s173
      %p182 = scmp.eq.s32.totalorder %s36, 0
      %p183 = por %p181, %p182
      %p184 = scmp.ne.s32.totalorder %s172, %s173
      %p185 = scmp.eq.s32.totalorder %s37, 1
      %p186 = por %p184, %p185
      %p188 = scmp.ne.s32.totalorder %s173, %s187
      %p189 = scmp.eq.s32.totalorder %s37, 0
      %p190 = por %p188, %p189
      %s192 = sadd.s32 %s191, 1
      %p195 = scmp.eq.s32.totalorder %s31, 1
      %p196 = scmp.ne.s32.totalorder %s191, %s193
      %p197 = scmp.eq.s32.totalorder %s31, 0
      %p198 = por %p196, %p197
      %p199 = scmp.ne.s32.totalorder %s191, %s193
      %p200 = scmp.eq.s32.totalorder %s36, 1
      %p201 = por %p199, %p200
      %p202 = scmp.ne.s32.totalorder %s193, %s194
      %p203 = scmp.eq.s32.totalorder %s36, 0
      %p204 = por %p202, %p203
      %p205 = scmp.ne.s32.totalorder %s193, %s194
      %p206 = scmp.eq.s32.totalorder %s37, 1
      %p207 = por %p205, %p206
      %p209 = scmp.ne.s32.totalorder %s194, %s208
      %p210 = scmp.eq.s32.totalorder %s37, 0
      %p211 = por %p209, %p210
      %s213 = sadd.s32 %s212, 1
      %p216 = scmp.eq.s32.totalorder %s31, 1
      %p217 = scmp.ne.s32.totalorder %s212, %s214
      %p218 = scmp.eq.s32.totalorder %s31, 0
      %p219 = por %p217, %p218
      %p220 = scmp.ne.s32.totalorder %s212, %s214
      %p221 = scmp.eq.s32.totalorder %s36, 1
      %p222 = por %p220, %p221
      %p223 = scmp.ne.s32.totalorder %s214, %s215
      %p224 = scmp.eq.s32.totalorder %s36, 0
      %p225 = por %p223, %p224
      %p226 = scmp.ne.s32.totalorder %s214, %s215
      %p227 = scmp.eq.s32.totalorder %s37, 1
      %p228 = por %p226, %p227
      %p230 = scmp.ne.s32.totalorder %s215, %s229
      %p231 = scmp.eq.s32.totalorder %s37, 0
      %p232 = por %p230, %p231
      %s234 = sadd.s32 %s233, 1
      %p237 = scmp.eq.s32.totalorder %s31, 1
      %p238 = scmp.ne.s32.totalorder %s233, %s235
      %p239 = scmp.eq.s32.totalorder %s31, 0
      %p240 = por %p238, %p239
      %p241 = scmp.ne.s32.totalorder %s233, %s235
      %p242 = scmp.eq.s32.totalorder %s36, 1
      %p243 = por %p241, %p242
      %p244 = scmp.ne.s32.totalorder %s235, %s236
      %p245 = scmp.eq.s32.totalorder %s36, 0
      %p246 = por %p244, %p245
      %p247 = scmp.ne.s32.totalorder %s235, %s236
      %p248 = scmp.eq.s32.totalorder %s37, 1
      %p249 = por %p247, %p248
      %p251 = scmp.ne.s32.totalorder %s236, %s250
      %p252 = scmp.eq.s32.totalorder %s37, 0
      %p253 = por %p251, %p252
      %s255 = sadd.s32 %s254, 1
      %p258 = scmp.eq.s32.totalorder %s31, 1
      %p259 = scmp.ne.s32.totalorder %s254, %s256
      %p260 = scmp.eq.s32.totalorder %s31, 0
      %p261 = por %p259, %p260
      %p262 = scmp.ne.s32.totalorder %s254, %s256
      %p263 = scmp.eq.s32.totalorder %s36, 1
      %p264 = por %p262, %p263
      %p265 = scmp.ne.s32.totalorder %s256, %s257
      %p266 = scmp.eq.s32.totalorder %s36, 0
      %p267 = por %p265, %p266
      %p268 = scmp.ne.s32.totalorder %s256, %s257
      %p269 = scmp.eq.s32.totalorder %s37, 1
      %p270 = por %p268, %p269
      %p272 = scmp.ne.s32.totalorder %s257, %s271
      %p273 = scmp.eq.s32.totalorder %s37, 0
      %p274 = por %p272, %p273
      %s276 = sadd.s32 %s275, 1
      %p279 = scmp.eq.s32.totalorder %s31, 1
      %p280 = scmp.ne.s32.totalorder %s275, %s277
      %p281 = scmp.eq.s32.totalorder %s31, 0
      %p282 = por %p280, %p281
      %p283 = scmp.ne.s32.totalorder %s275, %s277
      %p284 = scmp.eq.s32.totalorder %s36, 1
      %p285 = por %p283, %p284
      %p286 = scmp.ne.s32.totalorder %s277, %s278
      %p287 = scmp.eq.s32.totalorder %s36, 0
      %p288 = por %p286, %p287
      %p289 = scmp.ne.s32.totalorder %s277, %s278
      %p290 = scmp.eq.s32.totalorder %s37, 1
      %p291 = por %p289, %p290
      %p293 = scmp.ne.s32.totalorder %s278, %s292
      %p294 = scmp.eq.s32.totalorder %s37, 0
      %p295 = por %p293, %p294
      %s297 = sadd.s32 %s296, 1
      %p300 = scmp.eq.s32.totalorder %s31, 1
      %p301 = scmp.ne.s32.totalorder %s296, %s298
      %p302 = scmp.eq.s32.totalorder %s31, 0
      %p303 = por %p301, %p302
      %p304 = scmp.ne.s32.totalorder %s296, %s298
      %p305 = scmp.eq.s32.totalorder %s36, 1
      %p306 = por %p304, %p305
      %p307 = scmp.ne.s32.totalorder %s298, %s299
      %p308 = scmp.eq.s32.totalorder %s36, 0
      %p309 = por %p307, %p308
      %p310 = scmp.ne.s32.totalorder %s298, %s299
      %p311 = scmp.eq.s32.totalorder %s37, 1
      %p312 = por %p310, %p311
      %p314 = scmp.ne.s32.totalorder %s299, %s313
      %p315 = scmp.eq.s32.totalorder %s37, 0
      %p316 = por %p314, %p315
      %s318 = sadd.s32 %s317, 1
      %p321 = scmp.eq.s32.totalorder %s31, 1
      %p322 = scmp.ne.s32.totalorder %s317, %s319
      %p323 = scmp.eq.s32.totalorder %s31, 0
      %p324 = por %p322, %p323
      %p325 = scmp.ne.s32.totalorder %s317, %s319
      %p326 = scmp.eq.s32.totalorder %s36, 1
      %p327 = por %p325, %p326
      %p328 = scmp.ne.s32.totalorder %s319, %s320
      %p329 = scmp.eq.s32.totalorder %s36, 0
      %p330 = por %p328, %p329
      %p331 = scmp.ne.s32.totalorder %s319, %s320
      %p332 = scmp.eq.s32.totalorder %s37, 1
      %p333 = por %p331, %p332
      %p335 = scmp.ne.s32.totalorder %s320, %s334
      %p336 = scmp.eq.s32.totalorder %s37, 0
      %p337 = por %p335, %p336
      %s339 = sadd.s32 %s338, 1
      %p342 = scmp.eq.s32.totalorder %s31, 1
      %p343 = scmp.ne.s32.totalorder %s338, %s340
      %p344 = scmp.eq.s32.totalorder %s31, 0
      %p345 = por %p343, %p344
      %p346 = scmp.ne.s32.totalorder %s338, %s340
      %p347 = scmp.eq.s32.totalorder %s36, 1
      %p348 = por %p346, %p347
      %p349 = scmp.ne.s32.totalorder %s340, %s341
      %p350 = scmp.eq.s32.totalorder %s36, 0
      %p351 = por %p349, %p350
      %p352 = scmp.ne.s32.totalorder %s340, %s341
      %p353 = scmp.eq.s32.totalorder %s37, 1
      %p354 = por %p352, %p353
      %p356 = scmp.ne.s32.totalorder %s341, %s355
      %p357 = scmp.eq.s32.totalorder %s37, 0
      %p358 = por %p356, %p357
      %s359 = ssub.s32 %s31, %s38
      %p360 = scmp.eq.s32.totalorder %s359, 0
      %s362 = sadd.s32 %s361, 1
      %s363 = scalar_select %p360, %s361, %s362
      %p366 = pneg %p360
      %p367 = scmp.eq.s32.totalorder %s31, 1
      %p368 = por %p366, %p367
      %p369 = scmp.ne.s32.totalorder %s361, %s364
      %p370 = scmp.eq.s32.totalorder %s31, 0
      %p371 = por %p369, %p370
      %p372 = scmp.ne.s32.totalorder %s361, %s364
      %p373 = scmp.eq.s32.totalorder %s36, 1
      %p374 = por %p372, %p373
      %p375 = scmp.ne.s32.totalorder %s364, %s365
      %p376 = scmp.eq.s32.totalorder %s36, 0
      %p377 = por %p375, %p376
      %p378 = scmp.ne.s32.totalorder %s364, %s365
      %p379 = scmp.eq.s32.totalorder %s37, 1
      %p380 = por %p378, %p379
      %p382 = scmp.ne.s32.totalorder %s365, %s381
      %p383 = scmp.eq.s32.totalorder %s37, 0
      %p384 = por %p382, %p383
      %p385 = scmp.le.s32.totalorder 1, %s31
      %p386 = scmp.lt.s32.totalorder %s31, 3
      %p387 = pnand %p385, %p386
      %p388 = pneg %p387
      // Predicated region
      $region9: #{tpu_custom_call.1} parent=5 // pred_check
        _
      $region10: #{tpu_custom_call.1} parent=5 // pred_check_branch
        %390 = sbr.rel (%p387) target = $region12
      $region11: #{tpu_custom_call.1} parent=5 // pred_region
        %s391 = ssub.s32 %s31, 1
        // Predicated region
        $region13: #{tpu_custom_call.1} parent=11 // pred_check
          %p392 = pneg %p78
        $region14: #{tpu_custom_call.1} parent=11 // pred_check_branch
          %394 = sbr.rel (%p392) target = $region16
        $region15: #{tpu_custom_call.1} parent=11 // pred_region
          %s396 = ssub.s32 4096, 4096
          %397 = vsyncadd [#allocation6], %s396
          %s398 = sshll.u32 [#allocation5], 4
          %s399 = int_to_ptr.vmem [resolvable:$true] %s398
          %404 = dma.hbm_to_vmem [thread:$0]  %s1, 4096, %s399, [#allocation6], 256, 256, 16
        $region16: #{tpu_custom_call.1} parent=11 // pred_fallthru
          _
        // Predicated region
        $region17: #{tpu_custom_call.1} parent=11 // pred_check
          %p405 = pneg %p99
        $region18: #{tpu_custom_call.1} parent=11 // pred_check_branch
          %407 = sbr.rel (%p405) target = $region20
        $region19: #{tpu_custom_call.1} parent=11 // pred_region
          _
        $region20: #{tpu_custom_call.1} parent=11 // pred_fallthru
          _
        // Predicated region
        $region21: #{tpu_custom_call.1} parent=11 // pred_check
          %p408 = pneg %p120
        $region22: #{tpu_custom_call.1} parent=11 // pred_check_branch
          %410 = sbr.rel (%p408) target = $region24
        $region23: #{tpu_custom_call.1} parent=11 // pred_region
          %s412 = ssub.s32 24576, 24576
          %413 = vsyncadd [#allocation6], %s412
          %s414 = sshll.u32 [#allocation7], 4
          %s415 = int_to_ptr.vmem [resolvable:$true] %s414
          %420 = dma.hbm_to_vmem [thread:$0]  %s3, 24576, %s415, [#allocation6], 384, 384, 24
        $region24: #{tpu_custom_call.1} parent=11 // pred_fallthru
          _
        // Predicated region
        $region25: #{tpu_custom_call.1} parent=11 // pred_check
          %p421 = pneg %p141
        $region26: #{tpu_custom_call.1} parent=11 // pred_check_branch
          %423 = sbr.rel (%p421) target = $region28
        $region27: #{tpu_custom_call.1} parent=11 // pred_region
          _
        $region28: #{tpu_custom_call.1} parent=11 // pred_fallthru
          _
        // Predicated region
        $region29: #{tpu_custom_call.1} parent=11 // pred_check
          %p424 = pneg %p162
        $region30: #{tpu_custom_call.1} parent=11 // pred_check_branch
          %426 = sbr.rel (%p424) target = $region32
        $region31: #{tpu_custom_call.1} parent=11 // pred_region
          %s428 = ssub.s32 9216, 9216
          %429 = vsyncadd [#allocation9], %s428
          %s430 = sshll.u32 [#allocation8], 4
          %s431 = int_to_ptr.vmem [resolvable:$true] %s430
          %436 = dma.hbm_to_vmem [thread:$0]  %s5, 9216, %s431, [#allocation9], 192, 192, 12
        $region32: #{tpu_custom_call.1} parent=11 // pred_fallthru
          _
        // Predicated region
        $region33: #{tpu_custom_call.1} parent=11 // pred_check
          %p437 = pneg %p183
        $region34: #{tpu_custom_call.1} parent=11 // pred_check_branch
          %439 = sbr.rel (%p437) target = $region36
        $region35: #{tpu_custom_call.1} parent=11 // pred_region
          _
        $region36: #{tpu_custom_call.1} parent=11 // pred_fallthru
          _
        // Predicated region
        $region37: #{tpu_custom_call.1} parent=11 // pred_check
          %p440 = pneg %p204
        $region38: #{tpu_custom_call.1} parent=11 // pred_check_branch
          %442 = sbr.rel (%p440) target = $region40
        $region39: #{tpu_custom_call.1} parent=11 // pred_region
          %s444 = ssub.s32 12288, 12288
          %445 = vsyncadd [#allocation9], %s444
          %s446 = sshll.u32 [#allocation10], 4
          %s447 = int_to_ptr.vmem [resolvable:$true] %s446
          %452 = dma.hbm_to_vmem [thread:$0]  %s7, 12288, %s447, [#allocation9], 256, 256, 16
        $region40: #{tpu_custom_call.1} parent=11 // pred_fallthru
          _
        // Predicated region
        $region41: #{tpu_custom_call.1} parent=11 // pred_check
          %p453 = pneg %p225
        $region42: #{tpu_custom_call.1} parent=11 // pred_check_branch
          %455 = sbr.rel (%p453) target = $region44
        $region43: #{tpu_custom_call.1} parent=11 // pred_region
          _
        $region44: #{tpu_custom_call.1} parent=11 // pred_fallthru
          _
        // Predicated region
        $region45: #{tpu_custom_call.1} parent=11 // pred_check
          %p456 = pneg %p246
        $region46: #{tpu_custom_call.1} parent=11 // pred_check_branch
          %458 = sbr.rel (%p456) target = $region48
        $region47: #{tpu_custom_call.1} parent=11 // pred_region
          %s460 = ssub.s32 4096, 4096
          %461 = vsyncadd [#allocation12], %s460
          %s462 = sshll.u32 [#allocation11], 4
          %s463 = int_to_ptr.vmem [resolvable:$true] %s462
          %468 = dma.hbm_to_vmem [thread:$0]  %s9, 4096, %s463, [#allocation12], 128, 128, 8
        $region48: #{tpu_custom_call.1} parent=11 // pred_fallthru
          _
        // Predicated region
        $region49: #{tpu_custom_call.1} parent=11 // pred_check
          %p469 = pneg %p267
        $region50: #{tpu_custom_call.1} parent=11 // pred_check_branch
          %471 = sbr.rel (%p469) target = $region52
        $region51: #{tpu_custom_call.1} parent=11 // pred_region
          _
        $region52: #{tpu_custom_call.1} parent=11 // pred_fallthru
          _
        // Predicated region
        $region53: #{tpu_custom_call.1} parent=11 // pred_check
          %p472 = pneg %p288
        $region54: #{tpu_custom_call.1} parent=11 // pred_check_branch
          %474 = sbr.rel (%p472) target = $region56
        $region55: #{tpu_custom_call.1} parent=11 // pred_region
          %s476 = ssub.s32 2048, 2048
          %477 = vsyncadd [#allocation12], %s476
          %s478 = sshll.u32 [#allocation13], 4
          %s479 = int_to_ptr.vmem [resolvable:$true] %s478
          %484 = dma.hbm_to_vmem [thread:$0]  %s11, 2048, %s479, [#allocation12], 64, 64, 4
        $region56: #{tpu_custom_call.1} parent=11 // pred_fallthru
          _
        // Predicated region
        $region57: #{tpu_custom_call.1} parent=11 // pred_check
          %p485 = pneg %p309
        $region58: #{tpu_custom_call.1} parent=11 // pred_check_branch
          %487 = sbr.rel (%p485) target = $region60
        $region59: #{tpu_custom_call.1} parent=11 // pred_region
          _
        $region60: #{tpu_custom_call.1} parent=11 // pred_fallthru
          _
        // Predicated region
        $region61: #{tpu_custom_call.1} parent=11 // pred_check
          %p488 = pneg %p330
        $region62: #{tpu_custom_call.1} parent=11 // pred_check_branch
          %490 = sbr.rel (%p488) target = $region64
        $region63: #{tpu_custom_call.1} parent=11 // pred_region
          %s492 = ssub.s32 1024, 1024
          %493 = vsyncadd [#allocation15], %s492
          %s494 = sshll.u32 [#allocation14], 4
          %s495 = int_to_ptr.vmem [resolvable:$true] %s494
          %500 = dma.hbm_to_vmem [thread:$0]  %s13, 1024, %s495, [#allocation15], 64, 64, 4
        $region64: #{tpu_custom_call.1} parent=11 // pred_fallthru
          _
        // Predicated region
        $region65: #{tpu_custom_call.1} parent=11 // pred_check
          %p501 = pneg %p351
        $region66: #{tpu_custom_call.1} parent=11 // pred_check_branch
          %503 = sbr.rel (%p501) target = $region68
        $region67: #{tpu_custom_call.1} parent=11 // pred_region
          _
        $region68: #{tpu_custom_call.1} parent=11 // pred_fallthru
          _
      $region12: #{tpu_custom_call.1} parent=5 // pred_fallthru
        _
      %p504 = scmp.lt.s32.totalorder %s31, 2
      // Predicated region
      $region69: #{tpu_custom_call.1} parent=5 // pred_check
        %p505 = pneg %p504
      $region70: #{tpu_custom_call.1} parent=5 // pred_check_branch
        %507 = sbr.rel (%p505) target = $region72
      $region71: #{tpu_custom_call.1} parent=5 // pred_region
        // Predicated region
        $region73: #{tpu_custom_call.1} parent=71 // pred_check
          %p508 = pneg %p51
        $region74: #{tpu_custom_call.1} parent=71 // pred_check_branch
          %510 = sbr.rel (%p508) target = $region76
        $region75: #{tpu_custom_call.1} parent=71 // pred_region
          %s511 = sand.u32 %s41, 1
          %s512 = scalar_lea.sflag [#allocation3], %s511
          %s513 = sand.u32 %s41, 1
          %s514 = smul.addr %s513, 76
          %s515 = scalar_lea.vmem [#allocation2], %s514
          %s516 = smul.u32 19, %s31
          %s518 = ssub.s32 1216, 1216
          %519 = vsyncadd %s512, %s518
          %s520 = smul.addr %s516, 64
          %s521 = scalar_lea.hbm %s0, %s520
          %s522 = sshll.u32 %s515, 4
          %s523 = int_to_ptr.vmem [resolvable:$true] %s522
          %528 = dma.hbm_to_vmem [thread:$0]  %s521, 1216, %s523, %s512, 64, 64, 4
        $region76: #{tpu_custom_call.1} parent=71 // pred_fallthru
          _
      $region72: #{tpu_custom_call.1} parent=5 // pred_fallthru
        _
      %p529 = scmp.le.s32.totalorder 1, %s31
      %p530 = scmp.lt.s32.totalorder %s31, 3
      %p531 = pnand %p529, %p530
      %p532 = pneg %p531
      // Predicated region
      $region77: #{tpu_custom_call.1} parent=5 // pred_check
        _
      $region78: #{tpu_custom_call.1} parent=5 // pred_check_branch
        %534 = sbr.rel (%p531) target = $region80
      $region79: #{tpu_custom_call.1} parent=5 // pred_region
        %s535 = ssub.s32 %s31, 1
        %s536 = sand.u32 %s44, 1
        %s537 = scalar_lea.sflag [#allocation3], %s536
        %s538 = sand.u32 %s44, 1
        %s539 = smul.addr %s538, 76
        %s540 = scalar_lea.vmem [#allocation2], %s539
        // Predicated region
        $region81: #{tpu_custom_call.1} parent=79 // pred_check
          %p541 = pneg %p57
        $region82: #{tpu_custom_call.1} parent=79 // pred_check_branch
          %543 = sbr.rel (%p541) target = $region84
        $region83: #{tpu_custom_call.1} parent=79 // pred_region
          %544 = dma.done %s537, 1216
        $region84: #{tpu_custom_call.1} parent=79 // pred_fallthru
          _
        // Predicated region
        $region85: #{tpu_custom_call.1} parent=79 // pred_check
          %p545 = pneg %p78
        $region86: #{tpu_custom_call.1} parent=79 // pred_check_branch
          %547 = sbr.rel (%p545) target = $region88
        $region87: #{tpu_custom_call.1} parent=79 // pred_region
          %548 = dma.done [#allocation6], 4096
        $region88: #{tpu_custom_call.1} parent=79 // pred_fallthru
          _
        // Predicated region
        $region89: #{tpu_custom_call.1} parent=79 // pred_check
          %p549 = pneg %p120
        $region90: #{tpu_custom_call.1} parent=79 // pred_check_branch
          %551 = sbr.rel (%p549) target = $region92
        $region91: #{tpu_custom_call.1} parent=79 // pred_region
          %552 = dma.done [#allocation6], 24576
        $region92: #{tpu_custom_call.1} parent=79 // pred_fallthru
          _
        // Predicated region
        $region93: #{tpu_custom_call.1} parent=79 // pred_check
          %p553 = pneg %p162
        $region94: #{tpu_custom_call.1} parent=79 // pred_check_branch
          %555 = sbr.rel (%p553) target = $region96
        $region95: #{tpu_custom_call.1} parent=79 // pred_region
          %556 = dma.done [#allocation9], 9216
        $region96: #{tpu_custom_call.1} parent=79 // pred_fallthru
          _
        // Predicated region
        $region97: #{tpu_custom_call.1} parent=79 // pred_check
          %p557 = pneg %p204
        $region98: #{tpu_custom_call.1} parent=79 // pred_check_branch
          %559 = sbr.rel (%p557) target = $region100
        $region99: #{tpu_custom_call.1} parent=79 // pred_region
          %560 = dma.done [#allocation9], 12288
        $region100: #{tpu_custom_call.1} parent=79 // pred_fallthru
          _
        // Predicated region
        $region101: #{tpu_custom_call.1} parent=79 // pred_check
          %p561 = pneg %p246
        $region102: #{tpu_custom_call.1} parent=79 // pred_check_branch
          %563 = sbr.rel (%p561) target = $region104
        $region103: #{tpu_custom_call.1} parent=79 // pred_region
          %564 = dma.done [#allocation12], 4096
        $region104: #{tpu_custom_call.1} parent=79 // pred_fallthru
          _
        // Predicated region
        $region105: #{tpu_custom_call.1} parent=79 // pred_check
          %p565 = pneg %p288
        $region106: #{tpu_custom_call.1} parent=79 // pred_check_branch
          %567 = sbr.rel (%p565) target = $region108
        $region107: #{tpu_custom_call.1} parent=79 // pred_region
          %568 = dma.done [#allocation12], 2048
        $region108: #{tpu_custom_call.1} parent=79 // pred_fallthru
          _
        // Predicated region
        $region109: #{tpu_custom_call.1} parent=79 // pred_check
          %p569 = pneg %p330
        $region110: #{tpu_custom_call.1} parent=79 // pred_check_branch
          %571 = sbr.rel (%p569) target = $region112
        $region111: #{tpu_custom_call.1} parent=79 // pred_region
          %572 = dma.done [#allocation15], 1024
        $region112: #{tpu_custom_call.1} parent=79 // pred_fallthru
          _
        %s573 = sand.u32 %s44, 1
        %s574 = scalar_lea.sflag [#allocation3], %s573
        %s575 = sand.u32 %s44, 1
        %s576 = smul.addr %s575, 76
        %s577 = scalar_lea.vmem [#allocation2], %s576
        %p578 = pneg %p57
        %p579 = pneg %p54
        %p580 = pneg %p78
        %p581 = pneg %p75
        %p582 = pneg %p99
        %p583 = pneg %p96
        %p584 = pneg %p120
        %p585 = pneg %p117
        %p586 = pneg %p141
        %p587 = pneg %p138
        %p588 = pneg %p162
        %p589 = pneg %p159
        %p590 = pneg %p183
        %p591 = pneg %p180
        %p592 = pneg %p204
        %p593 = pneg %p201
        %p594 = pneg %p225
        %p595 = pneg %p222
        %p596 = pneg %p246
        %p597 = pneg %p243
        %p598 = pneg %p267
        %p599 = pneg %p264
        %p600 = pneg %p288
        %p601 = pneg %p285
        %p602 = pneg %p309
        %p603 = pneg %p306
        %p604 = pneg %p330
        %p605 = pneg %p327
        %p606 = pneg %p351
        %p607 = pneg %p348
        %p608 = pneg %p377
        %p609 = pneg %p374
        %s610 = sand.u32 %s364, 1
        %s611 = scalar_lea.sflag [#allocation4], %s610
        %s612 = sand.u32 %s364, 1
        %s613 = smul.addr %s612, 152
        %s614 = scalar_lea.vmem [#allocation16], %s613
        %s615 = smul.u32 19, %s36
        %s616 = smul.u32 19, %s36
        %v618 = vld [vmem:[%s540] sm:$0xf]
        %v619 = vld [vmem:[%s540 + $0x4] sm:$0xf]
        %v620 = vld [vmem:[%s540 + $0x8] sm:$0xf]
        %v621 = vld [vmem:[%s540 + $0xc] sm:$0xf]
        %v622 = vld [vmem:[%s540 + $0x10] sm:$0xf]
        %v623 = vld [vmem:[%s540 + $0x14] sm:$0xf]
        %v624 = vld [vmem:[%s540 + $0x18] sm:$0xf]
        %v625 = vld [vmem:[%s540 + $0x1c] sm:$0xf]
        %v626 = vld [vmem:[%s540 + $0x20] sm:$0xf]
        %v627 = vld [vmem:[%s540 + $0x24] sm:$0xf]
        %v628 = vld [vmem:[%s540 + $0x28] sm:$0xf]
        %v629 = vld [vmem:[%s540 + $0x2c] sm:$0xf]
        %v630 = vld [vmem:[%s540 + $0x30] sm:$0xf]
        %v631 = vld [vmem:[%s540 + $0x34] sm:$0xf]
        %v632 = vld [vmem:[%s540 + $0x38] sm:$0xf]
        %v633 = vld [vmem:[%s540 + $0x3c] sm:$0xf]
        %v634 = vld [vmem:[%s540 + $0x40] sm:$0xf]
        %v635 = vld [vmem:[%s540 + $0x44] sm:$0xf]
        %v636 = vld [vmem:[%s540 + $0x48] sm:$0xf]
        %v637 = vld [vmem:[#allocation5] sm:$0xff]
        %v638 = vld [vmem:[#allocation5 + $0x8] sm:$0xff]
        %v639 = vld [vmem:[#allocation5 + $0x10] sm:$0xff]
        %v640 = vld [vmem:[#allocation5 + $0x18] sm:$0xff]
        %v641 = vld [vmem:[#allocation5 + $0x20] sm:$0xff]
        %v642 = vld [vmem:[#allocation5 + $0x28] sm:$0xff]
        %v643 = vld [vmem:[#allocation5 + $0x30] sm:$0xff]
        %v644 = vld [vmem:[#allocation5 + $0x38] sm:$0xff]
        %v645 = vld [vmem:[#allocation5 + $0x40] sm:$0xff]
        %v646 = vld [vmem:[#allocation5 + $0x48] sm:$0xff]
        %v647 = vld [vmem:[#allocation5 + $0x50] sm:$0xff]
        %v648 = vld [vmem:[#allocation5 + $0x58] sm:$0xff]
        %v649 = vld [vmem:[#allocation5 + $0x60] sm:$0xff]
        %v650 = vld [vmem:[#allocation5 + $0x68] sm:$0xff]
        %v651 = vld [vmem:[#allocation5 + $0x70] sm:$0xff]
        %v652 = vld [vmem:[#allocation5 + $0x78] sm:$0xff]
        %v653 = vld [vmem:[#allocation5 + $0x80] sm:$0xff]
        %v654 = vld [vmem:[#allocation5 + $0x88] sm:$0xff]
        %v655 = vld [vmem:[#allocation5 + $0x90] sm:$0xff]
        %v656 = vld [vmem:[#allocation5 + $0x98] sm:$0xff]
        %v657 = vld [vmem:[#allocation5 + $0xa0] sm:$0xff]
        %v658 = vld [vmem:[#allocation5 + $0xa8] sm:$0xff]
        %v659 = vld [vmem:[#allocation5 + $0xb0] sm:$0xff]
        %v660 = vld [vmem:[#allocation5 + $0xb8] sm:$0xff]
        %v661 = vld [vmem:[#allocation5 + $0xc0] sm:$0xff]
        %v662 = vld [vmem:[#allocation5 + $0xc8] sm:$0xff]
        %v663 = vld [vmem:[#allocation5 + $0xd0] sm:$0xff]
        %v664 = vld [vmem:[#allocation5 + $0xd8] sm:$0xff]
        %v665 = vld [vmem:[#allocation5 + $0xe0] sm:$0xff]
        %v666 = vld [vmem:[#allocation5 + $0xe8] sm:$0xff]
        %v667 = vld [vmem:[#allocation5 + $0xf0] sm:$0xff]
        %v668 = vld [vmem:[#allocation5 + $0xf8] sm:$0xff]
        %v669 = vld [vmem:[%s2] sm:$0xf]
        %v671 = vlaneseq
        %v672 = vshrl.u32 %v671, 7
        %v673 = vsub.s32 0, %v672
        %v674 = vrot.slane %v669, %v673
        %v675 = vlaneseq
        %v676 = vshrl.u32 %v675, 7
        %v677 = vsub.s32 1, %v676
        %v678 = vrot.slane %v669, %v677
        %v679 = vlaneseq
        %v680 = vshrl.u32 %v679, 7
        %v681 = vsub.s32 2, %v680
        %v682 = vrot.slane %v669, %v681
        %v683 = vlaneseq
        %v684 = vshrl.u32 %v683, 7
        %v685 = vsub.s32 3, %v684
        %v686 = vrot.slane %v669, %v685
        %v710 = vunpack.c.l.b16 %v618
        %v711 = vunpack.c.l.b16 %v619
        %v712 = vunpack.c.l.b16 %v620
        %v713 = vunpack.c.l.b16 %v621
        %v714 = vunpack.c.l.b16 %v622
        %v715 = vunpack.c.l.b16 %v623
        %v716 = vunpack.c.l.b16 %v624
        %v717 = vunpack.c.l.b16 %v625
        %v718 = vunpack.c.l.b16 %v626
        %v719 = vunpack.c.l.b16 %v627
        %v720 = vunpack.c.l.b16 %v628
        %v721 = vunpack.c.l.b16 %v629
        %v722 = vunpack.c.l.b16 %v630
        %v723 = vunpack.c.l.b16 %v631
        %v724 = vunpack.c.l.b16 %v632
        %v725 = vunpack.c.l.b16 %v633
        %v726 = vunpack.c.l.b16 %v634
        %v727 = vunpack.c.l.b16 %v635
        %v728 = vunpack.c.l.b16 %v636
        %v729 = vpack.c.b16 %v711, %v710
        %v730 = vpack.c.b16 %v713, %v712
        %v731 = vpack.c.b16 %v715, %v714
        %v732 = vpack.c.b16 %v717, %v716
        %v733 = vpack.c.b16 %v719, %v718
        %v734 = vpack.c.b16 %v721, %v720
        %v735 = vpack.c.b16 %v723, %v722
        %v736 = vpack.c.b16 %v725, %v724
        %v737 = vpack.c.b16 %v727, %v726
        %v738 = vpack.c.b16 %v728, %v728
        %v781 = vunpack.c.l.b16 %v637
        %v782 = vunpack.c.h.b16 %v637
        %v783 = vunpack.c.l.b16 %v638
        %v784 = vunpack.c.h.b16 %v638
        %v785 = vunpack.c.l.b16 %v639
        %v786 = vunpack.c.h.b16 %v639
        %v787 = vunpack.c.l.b16 %v640
        %v788 = vunpack.c.h.b16 %v640
        %v789 = vunpack.c.l.b16 %v641
        %v790 = vunpack.c.h.b16 %v641
        %v791 = vunpack.c.l.b16 %v642
        %v792 = vunpack.c.h.b16 %v642
        %v793 = vunpack.c.l.b16 %v643
        %v794 = vunpack.c.h.b16 %v643
        %v795 = vunpack.c.l.b16 %v644
        %v796 = vunpack.c.h.b16 %v644
        %v797 = vunpack.c.l.b16 %v645
        %v798 = vunpack.c.h.b16 %v645
        %v799 = vunpack.c.l.b16 %v646
        %v800 = vunpack.c.h.b16 %v646
        %v801 = vunpack.c.l.b16 %v647
        %v802 = vunpack.c.h.b16 %v647
        %v803 = vunpack.c.l.b16 %v648
        %v804 = vunpack.c.h.b16 %v648
        %v805 = vunpack.c.l.b16 %v649
        %v806 = vunpack.c.h.b16 %v649
        %v807 = vunpack.c.l.b16 %v650
        %v808 = vunpack.c.h.b16 %v650
        %v809 = vunpack.c.l.b16 %v651
        %v810 = vunpack.c.h.b16 %v651
        %v811 = vunpack.c.l.b16 %v652
        %v812 = vunpack.c.h.b16 %v652
        %v813 = vunpack.c.l.b16 %v653
        %v814 = vunpack.c.h.b16 %v653
        %v815 = vunpack.c.l.b16 %v654
        %v816 = vunpack.c.h.b16 %v654
        %v817 = vunpack.c.l.b16 %v655
        %v818 = vunpack.c.h.b16 %v655
        %v819 = vunpack.c.l.b16 %v656
        %v820 = vunpack.c.h.b16 %v656
        %v821 = vunpack.c.l.b16 %v657
        %v822 = vunpack.c.h.b16 %v657
        %v823 = vunpack.c.l.b16 %v658
        %v824 = vunpack.c.h.b16 %v658
        %v825 = vunpack.c.l.b16 %v659
        %v826 = vunpack.c.h.b16 %v659
        %v827 = vunpack.c.l.b16 %v660
        %v828 = vunpack.c.h.b16 %v660
        %v829 = vunpack.c.l.b16 %v661
        %v830 = vunpack.c.h.b16 %v661
        %v831 = vunpack.c.l.b16 %v662
        %v832 = vunpack.c.h.b16 %v662
        %v833 = vunpack.c.l.b16 %v663
        %v834 = vunpack.c.h.b16 %v663
        %v835 = vunpack.c.l.b16 %v664
        %v836 = vunpack.c.h.b16 %v664
        %v837 = vunpack.c.l.b16 %v665
        %v838 = vunpack.c.h.b16 %v665
        %v839 = vunpack.c.l.b16 %v666
        %v840 = vunpack.c.h.b16 %v666
        %v841 = vunpack.c.l.b16 %v667
        %v842 = vunpack.c.h.b16 %v667
        %v843 = vunpack.c.l.b16 %v668
        %v844 = vunpack.c.h.b16 %v668
        %v845 = vpack.c.b16 %v785, %v781
        %v846 = vpack.c.b16 %v786, %v782
        %v847 = vpack.c.b16 %v787, %v783
        %v848 = vpack.c.b16 %v788, %v784
        %v849 = vpack.c.b16 %v793, %v789
        %v850 = vpack.c.b16 %v794, %v790
        %v851 = vpack.c.b16 %v795, %v791
        %v852 = vpack.c.b16 %v796, %v792
        %v853 = vpack.c.b16 %v801, %v797
        %v854 = vpack.c.b16 %v802, %v798
        %v855 = vpack.c.b16 %v803, %v799
        %v856 = vpack.c.b16 %v804, %v800
        %v857 = vpack.c.b16 %v809, %v805
        %v858 = vpack.c.b16 %v810, %v806
        %v859 = vpack.c.b16 %v811, %v807
        %v860 = vpack.c.b16 %v812, %v808
        %v861 = vpack.c.b16 %v817, %v813
        %v862 = vpack.c.b16 %v818, %v814
        %v863 = vpack.c.b16 %v819, %v815
        %v864 = vpack.c.b16 %v820, %v816
        %v865 = vpack.c.b16 %v825, %v821
        %v866 = vpack.c.b16 %v826, %v822
        %v867 = vpack.c.b16 %v827, %v823
        %v868 = vpack.c.b16 %v828, %v824
        %v869 = vpack.c.b16 %v833, %v829
        %v870 = vpack.c.b16 %v834, %v830
        %v871 = vpack.c.b16 %v835, %v831
        %v872 = vpack.c.b16 %v836, %v832
        %v873 = vpack.c.b16 %v841, %v837
        %v874 = vpack.c.b16 %v842, %v838
        %v875 = vpack.c.b16 %v843, %v839
        %v876 = vpack.c.b16 %v844, %v840
        %909 = vmatprep.subr.bf16.mxu0 %v846
        %910 = vmatpush1.bf16.msra.mxu0 %v845
        %911 = vmatprep.subr.bf16.mxu0 %v850
        %912 = vmatpush1.bf16.msra.mxu0 %v849
        %913 = vmatprep.subr.bf16.mxu0 %v854
        %914 = vmatpush1.bf16.msra.mxu0 %v853
        %915 = vmatprep.subr.bf16.mxu0 %v858
        %916 = vmatpush1.bf16.msra.mxu0 %v857
        %917 = vmatprep.subr.bf16.mxu0 %v862
        %918 = vmatpush1.bf16.msra.mxu0 %v861
        %919 = vmatprep.subr.bf16.mxu0 %v866
        %920 = vmatpush1.bf16.msra.mxu0 %v865
        %921 = vmatprep.subr.bf16.mxu0 %v870
        %922 = vmatpush1.bf16.msra.mxu0 %v869
        %923 = vmatprep.subr.bf16.mxu0 %v874
        %924 = vmatpush1.bf16.msra.mxu0 %v873
        %925 = vmatprep.subr.bf16.mxu0 0
        %926 = vmatpush1.bf16.msra.mxu0 0
        %927 = vmatprep.subr.bf16.mxu0 0
        %928 = vmatpush1.bf16.msra.mxu0 0
        %929 = vmatprep.subr.bf16.mxu0 0
        %930 = vmatpush1.bf16.msra.mxu0 0
        %931 = vmatprep.subr.bf16.mxu0 0
        %932 = vmatpush1.bf16.msra.mxu0 0
        %933 = vmatprep.subr.bf16.mxu0 0
        %934 = vmatpush1.bf16.msra.mxu0 0
        %935 = vmatprep.subr.bf16.mxu0 0
        %936 = vmatpush1.bf16.msra.mxu0 0
        %937 = vmatprep.subr.bf16.mxu0 0
        %938 = vmatpush1.bf16.msra.mxu0 0
        %939 = vmatprep.subr.bf16.mxu0 0
        %940 = vmatpush1.bf16.msra.mxu0 0
        %941 = vmatprep.mubr.bf16.mxu0 0
        %942 = vmatmul.mubr.bf16.gmra.mrb[0].mxu0 %v729
        %v943 = vpop.f32.mrb[0].mxu0
        %v944 = vadd.f32 %v674, %v943
        %v945 = vpop.f32.mrb[0].mxu0
        %v946 = vadd.f32 %v678, %v945
        %v947 = vpop.f32.mrb[0].mxu0
        %v948 = vadd.f32 %v674, %v947
        %v949 = vpop.f32.mrb[0].mxu0
        %v950 = vadd.f32 %v678, %v949
        %951 = vmatprep.mubr.bf16.mxu0 0
        %952 = vmatmul.mubr.bf16.gmra.mrb[0].mxu0 %v730
        %v953 = vpop.f32.mrb[0].mxu0
        %v954 = vadd.f32 %v674, %v953
        %v955 = vpop.f32.mrb[0].mxu0
        %v956 = vadd.f32 %v678, %v955
        %v957 = vpop.f32.mrb[0].mxu0
        %v958 = vadd.f32 %v674, %v957
        %v959 = vpop.f32.mrb[0].mxu0
        %v960 = vadd.f32 %v678, %v959
        %961 = vmatprep.mubr.bf16.mxu0 0
        %962 = vmatmul.mubr.bf16.gmra.mrb[0].mxu0 %v731
        %v963 = vpop.f32.mrb[0].mxu0
        %v964 = vadd.f32 %v674, %v963
        %v965 = vpop.f32.mrb[0].mxu0
        %v966 = vadd.f32 %v678, %v965
        %v967 = vpop.f32.mrb[0].mxu0
        %v968 = vadd.f32 %v674, %v967
        %v969 = vpop.f32.mrb[0].mxu0
        %v970 = vadd.f32 %v678, %v969
        %971 = vmatprep.mubr.bf16.mxu0 0
        %972 = vmatmul.mubr.bf16.gmra.mrb[0].mxu0 %v732
        %v973 = vpop.f32.mrb[0].mxu0
        %v974 = vadd.f32 %v674, %v973
        %v975 = vpop.f32.mrb[0].mxu0
        %v976 = vadd.f32 %v678, %v975
        %v977 = vpop.f32.mrb[0].mxu0
        %v978 = vadd.f32 %v674, %v977
        %v979 = vpop.f32.mrb[0].mxu0
        %v980 = vadd.f32 %v678, %v979
        %981 = vmatprep.mubr.bf16.mxu0 0
        %982 = vmatmul.mubr.bf16.gmra.mrb[0].mxu0 %v733
        %v983 = vpop.f32.mrb[0].mxu0
        %v984 = vadd.f32 %v674, %v983
        %v985 = vpop.f32.mrb[0].mxu0
        %v986 = vadd.f32 %v678, %v985
        %v987 = vpop.f32.mrb[0].mxu0
        %v988 = vadd.f32 %v674, %v987
        %v989 = vpop.f32.mrb[0].mxu0
        %v990 = vadd.f32 %v678, %v989
        %991 = vmatprep.mubr.bf16.mxu0 0
        %992 = vmatmul.mubr.bf16.gmra.mrb[0].mxu0 %v734
        %v993 = vpop.f32.mrb[0].mxu0
        %v994 = vadd.f32 %v674, %v993
        %v995 = vpop.f32.mrb[0].mxu0
        %v996 = vadd.f32 %v678, %v995
        %v997 = vpop.f32.mrb[0].mxu0
        %v998 = vadd.f32 %v674, %v997
        %v999 = vpop.f32.mrb[0].mxu0
        %v1000 = vadd.f32 %v678, %v999
        %1001 = vmatprep.mubr.bf16.mxu0 0
        %1002 = vmatmul.mubr.bf16.gmra.mrb[0].mxu0 %v735
        %v1003 = vpop.f32.mrb[0].mxu0
        %v1004 = vadd.f32 %v674, %v1003
        %v1005 = vpop.f32.mrb[0].mxu0
        %v1006 = vadd.f32 %v678, %v1005
        %v1007 = vpop.f32.mrb[0].mxu0
        %v1008 = vadd.f32 %v674, %v1007
        %v1009 = vpop.f32.mrb[0].mxu0
        %v1010 = vadd.f32 %v678, %v1009
        %1011 = vmatprep.mubr.bf16.mxu0 0
        %1012 = vmatmul.mubr.bf16.gmra.mrb[0].mxu0 %v736
        %v1013 = vpop.f32.mrb[0].mxu0
        %v1014 = vadd.f32 %v674, %v1013
        %v1015 = vpop.f32.mrb[0].mxu0
        %v1016 = vadd.f32 %v678, %v1015
        %v1017 = vpop.f32.mrb[0].mxu0
        %v1018 = vadd.f32 %v674, %v1017
        %v1019 = vpop.f32.mrb[0].mxu0
        %v1020 = vadd.f32 %v678, %v1019
        %1021 = vmatprep.mubr.bf16.mxu0 0
        %1022 = vmatmul.mubr.bf16.gmra.mrb[0].mxu0 %v737
        %v1023 = vpop.f32.mrb[0].mxu0
        %v1024 = vadd.f32 %v674, %v1023
        %v1025 = vpop.f32.mrb[0].mxu0
        %v1026 = vadd.f32 %v678, %v1025
        %v1027 = vpop.f32.mrb[0].mxu0
        %v1028 = vadd.f32 %v674, %v1027
        %v1029 = vpop.f32.mrb[0].mxu0
        %v1030 = vadd.f32 %v678, %v1029
        %1031 = vmatprep.mubr.bf16.mxu0 0
        %1032 = vmatmul.mubr.bf16.gmra.mrb[0].mxu0 %v738
        %v1033 = vpop.f32.mrb[0].mxu0
        %v1034 = vadd.f32 %v674, %v1033
        %v1035 = vpop.f32.mrb[0].mxu0
        %v1036 = vadd.f32 %v678, %v1035
        %v1037 = vpop.f32.mrb[0].mxu0
        %v1038 = vpop.f32.mrb[0].mxu0
        %1039 = vdwg.mxu0
        %1040 = vmatprep.subr.bf16.mxu0 %v848
        %1041 = vmatpush1.bf16.msra.mxu0 %v847
        %1042 = vmatprep.subr.bf16.mxu0 %v852
        %1043 = vmatpush1.bf16.msra.mxu0 %v851
        %1044 = vmatprep.subr.bf16.mxu0 %v856
        %1045 = vmatpush1.bf16.msra.mxu0 %v855
        %1046 = vmatprep.subr.bf16.mxu0 %v860
        %1047 = vmatpush1.bf16.msra.mxu0 %v859
        %1048 = vmatprep.subr.bf16.mxu0 %v864
        %1049 = vmatpush1.bf16.msra.mxu0 %v863
        %1050 = vmatprep.subr.bf16.mxu0 %v868
        %1051 = vmatpush1.bf16.msra.mxu0 %v867
        %1052 = vmatprep.subr.bf16.mxu0 %v872
        %1053 = vmatpush1.bf16.msra.mxu0 %v871
        %1054 = vmatprep.subr.bf16.mxu0 %v876
        %1055 = vmatpush1.bf16.msra.mxu0 %v875
        %1056 = vmatprep.subr.bf16.mxu0 0
        %1057 = vmatpush1.bf16.msra.mxu0 0
        %1058 = vmatprep.subr.bf16.mxu0 0
        %1059 = vmatpush1.bf16.msra.mxu0 0
        %1060 = vmatprep.subr.bf16.mxu0 0
        %1061 = vmatpush1.bf16.msra.mxu0 0
        %1062 = vmatprep.subr.bf16.mxu0 0
        %1063 = vmatpush1.bf16.msra.mxu0 0
        %1064 = vmatprep.subr.bf16.mxu0 0
        %1065 = vmatpush1.bf16.msra.mxu0 0
        %1066 = vmatprep.subr.bf16.mxu0 0
        %1067 = vmatpush1.bf16.msra.mxu0 0
        %1068 = vmatprep.subr.bf16.mxu0 0
        %1069 = vmatpush1.bf16.msra.mxu0 0
        %1070 = vmatprep.subr.bf16.mxu0 0
        %1071 = vmatpush1.bf16.msra.mxu0 0
        %1072 = vmatprep.mubr.bf16.mxu0 0
        %1073 = vmatmul.mubr.bf16.gmra.mrb[0].mxu0 %v729
        %v1074 = vpop.f32.mrb[0].mxu0
        %v1075 = vadd.f32 %v682, %v1074
        %v1076 = vpop.f32.mrb[0].mxu0
        %v1077 = vadd.f32 %v686, %v1076
        %v1078 = vpop.f32.mrb[0].mxu0
        %v1079 = vadd.f32 %v682, %v1078
        %v1080 = vpop.f32.mrb[0].mxu0
        %v1081 = vadd.f32 %v686, %v1080
        %1082 = vmatprep.mubr.bf16.mxu0 0
        %1083 = vmatmul.mubr.bf16.gmra.mrb[0].mxu0 %v730
        %v1084 = vpop.f32.mrb[0].mxu0
        %v1085 = vadd.f32 %v682, %v1084
        %v1086 = vpop.f32.mrb[0].mxu0
        %v1087 = vadd.f32 %v686, %v1086
        %v1088 = vpop.f32.mrb[0].mxu0
        %v1089 = vadd.f32 %v682, %v1088
        %v1090 = vpop.f32.mrb[0].mxu0
        %v1091 = vadd.f32 %v686, %v1090
        %1092 = vmatprep.mubr.bf16.mxu0 0
        %1093 = vmatmul.mubr.bf16.gmra.mrb[0].mxu0 %v731
        %v1094 = vpop.f32.mrb[0].mxu0
        %v1095 = vadd.f32 %v682, %v1094
        %v1096 = vpop.f32.mrb[0].mxu0
        %v1097 = vadd.f32 %v686, %v1096
        %v1098 = vpop.f32.mrb[0].mxu0
        %v1099 = vadd.f32 %v682, %v1098
        %v1100 = vpop.f32.mrb[0].mxu0
        %v1101 = vadd.f32 %v686, %v1100
        %1102 = vmatprep.mubr.bf16.mxu0 0
        %1103 = vmatmul.mubr.bf16.gmra.mrb[0].mxu0 %v732
        %v1104 = vpop.f32.mrb[0].mxu0
        %v1105 = vadd.f32 %v682, %v1104
        %v1106 = vpop.f32.mrb[0].mxu0
        %v1107 = vadd.f32 %v686, %v1106
        %v1108 = vpop.f32.mrb[0].mxu0
        %v1109 = vadd.f32 %v682, %v1108
        %v1110 = vpop.f32.mrb[0].mxu0
        %v1111 = vadd.f32 %v686, %v1110
        %1112 = vmatprep.mubr.bf16.mxu0 0
        %1113 = vmatmul.mubr.bf16.gmra.mrb[0].mxu0 %v733
        %v1114 = vpop.f32.mrb[0].mxu0
        %v1115 = vadd.f32 %v682, %v1114
        %v1116 = vpop.f32.mrb[0].mxu0
        %v1117 = vadd.f32 %v686, %v1116
        %v1118 = vpop.f32.mrb[0].mxu0
        %v1119 = vadd.f32 %v682, %v1118
        %v1120 = vpop.f32.mrb[0].mxu0
        %v1121 = vadd.f32 %v686, %v1120
        %1122 = vmatprep.mubr.bf16.mxu0 0
        %1123 = vmatmul.mubr.bf16.gmra.mrb[0].mxu0 %v734
        %v1124 = vpop.f32.mrb[0].mxu0
        %v1125 = vadd.f32 %v682, %v1124
        %v1126 = vpop.f32.mrb[0].mxu0
        %v1127 = vadd.f32 %v686, %v1126
        %v1128 = vpop.f32.mrb[0].mxu0
        %v1129 = vadd.f32 %v682, %v1128
        %v1130 = vpop.f32.mrb[0].mxu0
        %v1131 = vadd.f32 %v686, %v1130
        %1132 = vmatprep.mubr.bf16.mxu0 0
        %1133 = vmatmul.mubr.bf16.gmra.mrb[0].mxu0 %v735
        %v1134 = vpop.f32.mrb[0].mxu0
        %v1135 = vadd.f32 %v682, %v1134
        %v1136 = vpop.f32.mrb[0].mxu0
        %v1137 = vadd.f32 %v686, %v1136
        %v1138 = vpop.f32.mrb[0].mxu0
        %v1139 = vadd.f32 %v682, %v1138
        %v1140 = vpop.f32.mrb[0].mxu0
        %v1141 = vadd.f32 %v686, %v1140
        %1142 = vmatprep.mubr.bf16.mxu0 0
        %1143 = vmatmul.mubr.bf16.gmra.mrb[0].mxu0 %v736
        %v1144 = vpop.f32.mrb[0].mxu0
        %v1145 = vadd.f32 %v682, %v1144
        %v1146 = vpop.f32.mrb[0].mxu0
        %v1147 = vadd.f32 %v686, %v1146
        %v1148 = vpop.f32.mrb[0].mxu0
        %v1149 = vadd.f32 %v682, %v1148
        %v1150 = vpop.f32.mrb[0].mxu0
        %v1151 = vadd.f32 %v686, %v1150
        %1152 = vmatprep.mubr.bf16.mxu0 0
        %1153 = vmatmul.mubr.bf16.gmra.mrb[0].mxu0 %v737
        %v1154 = vpop.f32.mrb[0].mxu0
        %v1155 = vadd.f32 %v682, %v1154
        %v1156 = vpop.f32.mrb[0].mxu0
        %v1157 = vadd.f32 %v686, %v1156
        %v1158 = vpop.f32.mrb[0].mxu0
        %v1159 = vadd.f32 %v682, %v1158
        %v1160 = vpop.f32.mrb[0].mxu0
        %v1161 = vadd.f32 %v686, %v1160
        %1162 = vmatprep.mubr.bf16.mxu0 0
        %1163 = vmatmul.mubr.bf16.gmra.mrb[0].mxu0 %v738
        %v1164 = vpop.f32.mrb[0].mxu0
        %v1165 = vadd.f32 %v682, %v1164
        %v1166 = vpop.f32.mrb[0].mxu0
        %v1167 = vadd.f32 %v686, %v1166
        %v1168 = vpop.f32.mrb[0].mxu0
        %v1169 = vpop.f32.mrb[0].mxu0
        %1170 = vdwg.mxu0
        %v1171 = vmul.f32 %v944, 0.5
        %v1172 = vmul.f32 %v946, 0.5
        %v1173 = vmul.f32 %v1075, 0.5
        %v1174 = vmul.f32 %v1077, 0.5
        %v1175 = vmul.f32 %v948, 0.5
        %v1176 = vmul.f32 %v950, 0.5
        %v1177 = vmul.f32 %v1079, 0.5
        %v1178 = vmul.f32 %v1081, 0.5
        %v1179 = vmul.f32 %v954, 0.5
        %v1180 = vmul.f32 %v956, 0.5
        %v1181 = vmul.f32 %v1085, 0.5
        %v1182 = vmul.f32 %v1087, 0.5
        %v1183 = vmul.f32 %v958, 0.5
        %v1184 = vmul.f32 %v960, 0.5
        %v1185 = vmul.f32 %v1089, 0.5
        %v1186 = vmul.f32 %v1091, 0.5
        %v1187 = vmul.f32 %v964, 0.5
        %v1188 = vmul.f32 %v966, 0.5
        %v1189 = vmul.f32 %v1095, 0.5
        %v1190 = vmul.f32 %v1097, 0.5
        %v1191 = vmul.f32 %v968, 0.5
        %v1192 = vmul.f32 %v970, 0.5
        %v1193 = vmul.f32 %v1099, 0.5
        %v1194 = vmul.f32 %v1101, 0.5
        %v1195 = vmul.f32 %v974, 0.5
        %v1196 = vmul.f32 %v976, 0.5
        %v1197 = vmul.f32 %v1105, 0.5
        %v1198 = vmul.f32 %v1107, 0.5
        %v1199 = vmul.f32 %v978, 0.5
        %v1200 = vmul.f32 %v980, 0.5
        %v1201 = vmul.f32 %v1109, 0.5
        %v1202 = vmul.f32 %v1111, 0.5
        %v1203 = vmul.f32 %v984, 0.5
        %v1204 = vmul.f32 %v986, 0.5
        %v1205 = vmul.f32 %v1115, 0.5
        %v1206 = vmul.f32 %v1117, 0.5
        %v1207 = vmul.f32 %v988, 0.5
        %v1208 = vmul.f32 %v990, 0.5
        %v1209 = vmul.f32 %v1119, 0.5
        %v1210 = vmul.f32 %v1121, 0.5
        %v1211 = vmul.f32 %v994, 0.5
        %v1212 = vmul.f32 %v996, 0.5
        %v1213 = vmul.f32 %v1125, 0.5
        %v1214 = vmul.f32 %v1127, 0.5
        %v1215 = vmul.f32 %v998, 0.5
        %v1216 = vmul.f32 %v1000, 0.5
        %v1217 = vmul.f32 %v1129, 0.5
        %v1218 = vmul.f32 %v1131, 0.5
        %v1219 = vmul.f32 %v1004, 0.5
        %v1220 = vmul.f32 %v1006, 0.5
        %v1221 = vmul.f32 %v1135, 0.5
        %v1222 = vmul.f32 %v1137, 0.5
        %v1223 = vmul.f32 %v1008, 0.5
        %v1224 = vmul.f32 %v1010, 0.5
        %v1225 = vmul.f32 %v1139, 0.5
        %v1226 = vmul.f32 %v1141, 0.5
        %v1227 = vmul.f32 %v1014, 0.5
        %v1228 = vmul.f32 %v1016, 0.5
        %v1229 = vmul.f32 %v1145, 0.5
        %v1230 = vmul.f32 %v1147, 0.5
        %v1231 = vmul.f32 %v1018, 0.5
        %v1232 = vmul.f32 %v1020, 0.5
        %v1233 = vmul.f32 %v1149, 0.5
        %v1234 = vmul.f32 %v1151, 0.5
        %v1235 = vmul.f32 %v1024, 0.5
        %v1236 = vmul.f32 %v1026, 0.5
        %v1237 = vmul.f32 %v1155, 0.5
        %v1238 = vmul.f32 %v1157, 0.5
        %v1239 = vmul.f32 %v1028, 0.5
        %v1240 = vmul.f32 %v1030, 0.5
        %v1241 = vmul.f32 %v1159, 0.5
        %v1242 = vmul.f32 %v1161, 0.5
        %v1243 = vmul.f32 %v1034, 0.5
        %v1244 = vmul.f32 %v1036, 0.5
        %v1245 = vmul.f32 %v1165, 0.5
        %v1246 = vmul.f32 %v1167, 0.5
        %v1247 = vmul.f32 %v944, %v944
        %v1248 = vmul.f32 %v946, %v946
        %v1249 = vmul.f32 %v1075, %v1075
        %v1250 = vmul.f32 %v1077, %v1077
        %v1251 = vmul.f32 %v948, %v948
        %v1252 = vmul.f32 %v950, %v950
        %v1253 = vmul.f32 %v1079, %v1079
        %v1254 = vmul.f32 %v1081, %v1081
        %v1255 = vmul.f32 %v954, %v954
        %v1256 = vmul.f32 %v956, %v956
        %v1257 = vmul.f32 %v1085, %v1085
        %v1258 = vmul.f32 %v1087, %v1087
        %v1259 = vmul.f32 %v958, %v958
        %v1260 = vmul.f32 %v960, %v960
        %v1261 = vmul.f32 %v1089, %v1089
        %v1262 = vmul.f32 %v1091, %v1091
        %v1263 = vmul.f32 %v964, %v964
        %v1264 = vmul.f32 %v966, %v966
        %v1265 = vmul.f32 %v1095, %v1095
        %v1266 = vmul.f32 %v1097, %v1097
        %v1267 = vmul.f32 %v968, %v968
        %v1268 = vmul.f32 %v970, %v970
        %v1269 = vmul.f32 %v1099, %v1099
        %v1270 = vmul.f32 %v1101, %v1101
        %v1271 = vmul.f32 %v974, %v974
        %v1272 = vmul.f32 %v976, %v976
        %v1273 = vmul.f32 %v1105, %v1105
        %v1274 = vmul.f32 %v1107, %v1107
        %v1275 = vmul.f32 %v978, %v978
        %v1276 = vmul.f32 %v980, %v980
        %v1277 = vmul.f32 %v1109, %v1109
        %v1278 = vmul.f32 %v1111, %v1111
        %v1279 = vmul.f32 %v984, %v984
        %v1280 = vmul.f32 %v986, %v986
        %v1281 = vmul.f32 %v1115, %v1115
        %v1282 = vmul.f32 %v1117, %v1117
        %v1283 = vmul.f32 %v988, %v988
        %v1284 = vmul.f32 %v990, %v990
        %v1285 = vmul.f32 %v1119, %v1119
        %v1286 = vmul.f32 %v1121, %v1121
        %v1287 = vmul.f32 %v994, %v994
        %v1288 = vmul.f32 %v996, %v996
        %v1289 = vmul.f32 %v1125, %v1125
        %v1290 = vmul.f32 %v1127, %v1127
        %v1291 = vmul.f32 %v998, %v998
        %v1292 = vmul.f32 %v1000, %v1000
        %v1293 = vmul.f32 %v1129, %v1129
        %v1294 = vmul.f32 %v1131, %v1131
        %v1295 = vmul.f32 %v1004, %v1004
        %v1296 = vmul.f32 %v1006, %v1006
        %v1297 = vmul.f32 %v1135, %v1135
        %v1298 = vmul.f32 %v1137, %v1137
        %v1299 = vmul.f32 %v1008, %v1008
        %v1300 = vmul.f32 %v1010, %v1010
        %v1301 = vmul.f32 %v1139, %v1139
        %v1302 = vmul.f32 %v1141, %v1141
        %v1303 = vmul.f32 %v1014, %v1014
        %v1304 = vmul.f32 %v1016, %v1016
        %v1305 = vmul.f32 %v1145, %v1145
        %v1306 = vmul.f32 %v1147, %v1147
        %v1307 = vmul.f32 %v1018, %v1018
        %v1308 = vmul.f32 %v1020, %v1020
        %v1309 = vmul.f32 %v1149, %v1149
        %v1310 = vmul.f32 %v1151, %v1151
        %v1311 = vmul.f32 %v1024, %v1024
        %v1312 = vmul.f32 %v1026, %v1026
        %v1313 = vmul.f32 %v1155, %v1155
        %v1314 = vmul.f32 %v1157, %v1157
        %v1315 = vmul.f32 %v1028, %v1028
        %v1316 = vmul.f32 %v1030, %v1030
        %v1317 = vmul.f32 %v1159, %v1159
        %v1318 = vmul.f32 %v1161, %v1161
        %v1319 = vmul.f32 %v1034, %v1034
        %v1320 = vmul.f32 %v1036, %v1036
        %v1321 = vmul.f32 %v1165, %v1165
        %v1322 = vmul.f32 %v1167, %v1167
        %v1323 = vmul.f32 %v1247, %v944
        %v1324 = vmul.f32 %v1248, %v946
        %v1325 = vmul.f32 %v1249, %v1075
        %v1326 = vmul.f32 %v1250, %v1077
        %v1327 = vmul.f32 %v1251, %v948
        %v1328 = vmul.f32 %v1252, %v950
        %v1329 = vmul.f32 %v1253, %v1079
        %v1330 = vmul.f32 %v1254, %v1081
        %v1331 = vmul.f32 %v1255, %v954
        %v1332 = vmul.f32 %v1256, %v956
        %v1333 = vmul.f32 %v1257, %v1085
        %v1334 = vmul.f32 %v1258, %v1087
        %v1335 = vmul.f32 %v1259, %v958
        %v1336 = vmul.f32 %v1260, %v960
        %v1337 = vmul.f32 %v1261, %v1089
        %v1338 = vmul.f32 %v1262, %v1091
        %v1339 = vmul.f32 %v1263, %v964
        %v1340 = vmul.f32 %v1264, %v966
        %v1341 = vmul.f32 %v1265, %v1095
        %v1342 = vmul.f32 %v1266, %v1097
        %v1343 = vmul.f32 %v1267, %v968
        %v1344 = vmul.f32 %v1268, %v970
        %v1345 = vmul.f32 %v1269, %v1099
        %v1346 = vmul.f32 %v1270, %v1101
        %v1347 = vmul.f32 %v1271, %v974
        %v1348 = vmul.f32 %v1272, %v976
        %v1349 = vmul.f32 %v1273, %v1105
        %v1350 = vmul.f32 %v1274, %v1107
        %v1351 = vmul.f32 %v1275, %v978
        %v1352 = vmul.f32 %v1276, %v980
        %v1353 = vmul.f32 %v1277, %v1109
        %v1354 = vmul.f32 %v1278, %v1111
        %v1355 = vmul.f32 %v1279, %v984
        %v1356 = vmul.f32 %v1280, %v986
        %v1357 = vmul.f32 %v1281, %v1115
        %v1358 = vmul.f32 %v1282, %v1117
        %v1359 = vmul.f32 %v1283, %v988
        %v1360 = vmul.f32 %v1284, %v990
        %v1361 = vmul.f32 %v1285, %v1119
        %v1362 = vmul.f32 %v1286, %v1121
        %v1363 = vmul.f32 %v1287, %v994
        %v1364 = vmul.f32 %v1288, %v996
        %v1365 = vmul.f32 %v1289, %v1125
        %v1366 = vmul.f32 %v1290, %v1127
        %v1367 = vmul.f32 %v1291, %v998
        %v1368 = vmul.f32 %v1292, %v1000
        %v1369 = vmul.f32 %v1293, %v1129
        %v1370 = vmul.f32 %v1294, %v1131
        %v1371 = vmul.f32 %v1295, %v1004
        %v1372 = vmul.f32 %v1296, %v1006
        %v1373 = vmul.f32 %v1297, %v1135
        %v1374 = vmul.f32 %v1298, %v1137
        %v1375 = vmul.f32 %v1299, %v1008
        %v1376 = vmul.f32 %v1300, %v1010
        %v1377 = vmul.f32 %v1301, %v1139
        %v1378 = vmul.f32 %v1302, %v1141
        %v1379 = vmul.f32 %v1303, %v1014
        %v1380 = vmul.f32 %v1304, %v1016
        %v1381 = vmul.f32 %v1305, %v1145
        %v1382 = vmul.f32 %v1306, %v1147
        %v1383 = vmul.f32 %v1307, %v1018
        %v1384 = vmul.f32 %v1308, %v1020
        %v1385 = vmul.f32 %v1309, %v1149
        %v1386 = vmul.f32 %v1310, %v1151
        %v1387 = vmul.f32 %v1311, %v1024
        %v1388 = vmul.f32 %v1312, %v1026
        %v1389 = vmul.f32 %v1313, %v1155
        %v1390 = vmul.f32 %v1314, %v1157
        %v1391 = vmul.f32 %v1315, %v1028
        %v1392 = vmul.f32 %v1316, %v1030
        %v1393 = vmul.f32 %v1317, %v1159
        %v1394 = vmul.f32 %v1318, %v1161
        %v1395 = vmul.f32 %v1319, %v1034
        %v1396 = vmul.f32 %v1320, %v1036
        %v1397 = vmul.f32 %v1321, %v1165
        %v1398 = vmul.f32 %v1322, %v1167
        %v1399 = vmul.f32 %v1323, 0.044715
        %v1400 = vmul.f32 %v1324, 0.044715
        %v1401 = vmul.f32 %v1325, 0.044715
        %v1402 = vmul.f32 %v1326, 0.044715
        %v1403 = vmul.f32 %v1327, 0.044715
        %v1404 = vmul.f32 %v1328, 0.044715
        %v1405 = vmul.f32 %v1329, 0.044715
        %v1406 = vmul.f32 %v1330, 0.044715
        %v1407 = vmul.f32 %v1331, 0.044715
        %v1408 = vmul.f32 %v1332, 0.044715
        %v1409 = vmul.f32 %v1333, 0.044715
        %v1410 = vmul.f32 %v1334, 0.044715
        %v1411 = vmul.f32 %v1335, 0.044715
        %v1412 = vmul.f32 %v1336, 0.044715
        %v1413 = vmul.f32 %v1337, 0.044715
        %v1414 = vmul.f32 %v1338, 0.044715
        %v1415 = vmul.f32 %v1339, 0.044715
        %v1416 = vmul.f32 %v1340, 0.044715
        %v1417 = vmul.f32 %v1341, 0.044715
        %v1418 = vmul.f32 %v1342, 0.044715
        %v1419 = vmul.f32 %v1343, 0.044715
        %v1420 = vmul.f32 %v1344, 0.044715
        %v1421 = vmul.f32 %v1345, 0.044715
        %v1422 = vmul.f32 %v1346, 0.044715
        %v1423 = vmul.f32 %v1347, 0.044715
        %v1424 = vmul.f32 %v1348, 0.044715
        %v1425 = vmul.f32 %v1349, 0.044715
        %v1426 = vmul.f32 %v1350, 0.044715
        %v1427 = vmul.f32 %v1351, 0.044715
        %v1428 = vmul.f32 %v1352, 0.044715
        %v1429 = vmul.f32 %v1353, 0.044715
        %v1430 = vmul.f32 %v1354, 0.044715
        %v1431 = vmul.f32 %v1355, 0.044715
        %v1432 = vmul.f32 %v1356, 0.044715
        %v1433 = vmul.f32 %v1357, 0.044715
        %v1434 = vmul.f32 %v1358, 0.044715
        %v1435 = vmul.f32 %v1359, 0.044715
        %v1436 = vmul.f32 %v1360, 0.044715
        %v1437 = vmul.f32 %v1361, 0.044715
        %v1438 = vmul.f32 %v1362, 0.044715
        %v1439 = vmul.f32 %v1363, 0.044715
        %v1440 = vmul.f32 %v1364, 0.044715
        %v1441 = vmul.f32 %v1365, 0.044715
        %v1442 = vmul.f32 %v1366, 0.044715
        %v1443 = vmul.f32 %v1367, 0.044715
        %v1444 = vmul.f32 %v1368, 0.044715
        %v1445 = vmul.f32 %v1369, 0.044715
        %v1446 = vmul.f32 %v1370, 0.044715
        %v1447 = vmul.f32 %v1371, 0.044715
        %v1448 = vmul.f32 %v1372, 0.044715
        %v1449 = vmul.f32 %v1373, 0.044715
        %v1450 = vmul.f32 %v1374, 0.044715
        %v1451 = vmul.f32 %v1375, 0.044715
        %v1452 = vmul.f32 %v1376, 0.044715
        %v1453 = vmul.f32 %v1377, 0.044715
        %v1454 = vmul.f32 %v1378, 0.044715
        %v1455 = vmul.f32 %v1379, 0.044715
        %v1456 = vmul.f32 %v1380, 0.044715
        %v1457 = vmul.f32 %v1381, 0.044715
        %v1458 = vmul.f32 %v1382, 0.044715
        %v1459 = vmul.f32 %v1383, 0.044715
        %v1460 = vmul.f32 %v1384, 0.044715
        %v1461 = vmul.f32 %v1385, 0.044715
        %v1462 = vmul.f32 %v1386, 0.044715
        %v1463 = vmul.f32 %v1387, 0.044715
        %v1464 = vmul.f32 %v1388, 0.044715
        %v1465 = vmul.f32 %v1389, 0.044715
        %v1466 = vmul.f32 %v1390, 0.044715
        %v1467 = vmul.f32 %v1391, 0.044715
        %v1468 = vmul.f32 %v1392, 0.044715
        %v1469 = vmul.f32 %v1393, 0.044715
        %v1470 = vmul.f32 %v1394, 0.044715
        %v1471 = vmul.f32 %v1395, 0.044715
        %v1472 = vmul.f32 %v1396, 0.044715
        %v1473 = vmul.f32 %v1397, 0.044715
        %v1474 = vmul.f32 %v1398, 0.044715
        %v1475 = vadd.f32 %v944, %v1399
        %v1476 = vadd.f32 %v946, %v1400
        %v1477 = vadd.f32 %v1075, %v1401
        %v1478 = vadd.f32 %v1077, %v1402
        %v1479 = vadd.f32 %v948, %v1403
        %v1480 = vadd.f32 %v950, %v1404
        %v1481 = vadd.f32 %v1079, %v1405
        %v1482 = vadd.f32 %v1081, %v1406
        %v1483 = vadd.f32 %v954, %v1407
        %v1484 = vadd.f32 %v956, %v1408
        %v1485 = vadd.f32 %v1085, %v1409
        %v1486 = vadd.f32 %v1087, %v1410
        %v1487 = vadd.f32 %v958, %v1411
        %v1488 = vadd.f32 %v960, %v1412
        %v1489 = vadd.f32 %v1089, %v1413
        %v1490 = vadd.f32 %v1091, %v1414
        %v1491 = vadd.f32 %v964, %v1415
        %v1492 = vadd.f32 %v966, %v1416
        %v1493 = vadd.f32 %v1095, %v1417
        %v1494 = vadd.f32 %v1097, %v1418
        %v1495 = vadd.f32 %v968, %v1419
        %v1496 = vadd.f32 %v970, %v1420
        %v1497 = vadd.f32 %v1099, %v1421
        %v1498 = vadd.f32 %v1101, %v1422
        %v1499 = vadd.f32 %v974, %v1423
        %v1500 = vadd.f32 %v976, %v1424
        %v1501 = vadd.f32 %v1105, %v1425
        %v1502 = vadd.f32 %v1107, %v1426
        %v1503 = vadd.f32 %v978, %v1427
        %v1504 = vadd.f32 %v980, %v1428
        %v1505 = vadd.f32 %v1109, %v1429
        %v1506 = vadd.f32 %v1111, %v1430
        %v1507 = vadd.f32 %v984, %v1431
        %v1508 = vadd.f32 %v986, %v1432
        %v1509 = vadd.f32 %v1115, %v1433
        %v1510 = vadd.f32 %v1117, %v1434
        %v1511 = vadd.f32 %v988, %v1435
        %v1512 = vadd.f32 %v990, %v1436
        %v1513 = vadd.f32 %v1119, %v1437
        %v1514 = vadd.f32 %v1121, %v1438
        %v1515 = vadd.f32 %v994, %v1439
        %v1516 = vadd.f32 %v996, %v1440
        %v1517 = vadd.f32 %v1125, %v1441
        %v1518 = vadd.f32 %v1127, %v1442
        %v1519 = vadd.f32 %v998, %v1443
        %v1520 = vadd.f32 %v1000, %v1444
        %v1521 = vadd.f32 %v1129, %v1445
        %v1522 = vadd.f32 %v1131, %v1446
        %v1523 = vadd.f32 %v1004, %v1447
        %v1524 = vadd.f32 %v1006, %v1448
        %v1525 = vadd.f32 %v1135, %v1449
        %v1526 = vadd.f32 %v1137, %v1450
        %v1527 = vadd.f32 %v1008, %v1451
        %v1528 = vadd.f32 %v1010, %v1452
        %v1529 = vadd.f32 %v1139, %v1453
        %v1530 = vadd.f32 %v1141, %v1454
        %v1531 = vadd.f32 %v1014, %v1455
        %v1532 = vadd.f32 %v1016, %v1456
        %v1533 = vadd.f32 %v1145, %v1457
        %v1534 = vadd.f32 %v1147, %v1458
        %v1535 = vadd.f32 %v1018, %v1459
        %v1536 = vadd.f32 %v1020, %v1460
        %v1537 = vadd.f32 %v1149, %v1461
        %v1538 = vadd.f32 %v1151, %v1462
        %v1539 = vadd.f32 %v1024, %v1463
        %v1540 = vadd.f32 %v1026, %v1464
        %v1541 = vadd.f32 %v1155, %v1465
        %v1542 = vadd.f32 %v1157, %v1466
        %v1543 = vadd.f32 %v1028, %v1467
        %v1544 = vadd.f32 %v1030, %v1468
        %v1545 = vadd.f32 %v1159, %v1469
        %v1546 = vadd.f32 %v1161, %v1470
        %v1547 = vadd.f32 %v1034, %v1471
        %v1548 = vadd.f32 %v1036, %v1472
        %v1549 = vadd.f32 %v1165, %v1473
        %v1550 = vadd.f32 %v1167, %v1474
        %v1551 = vmul.f32 %v1475, 0.7978846
        %v1552 = vmul.f32 %v1476, 0.7978846
        %v1553 = vmul.f32 %v1477, 0.7978846
        %v1554 = vmul.f32 %v1478, 0.7978846
        %v1555 = vmul.f32 %v1479, 0.7978846
        %v1556 = vmul.f32 %v1480, 0.7978846
        %v1557 = vmul.f32 %v1481, 0.7978846
        %v1558 = vmul.f32 %v1482, 0.7978846
        %v1559 = vmul.f32 %v1483, 0.7978846
        %v1560 = vmul.f32 %v1484, 0.7978846
        %v1561 = vmul.f32 %v1485, 0.7978846
        %v1562 = vmul.f32 %v1486, 0.7978846
        %v1563 = vmul.f32 %v1487, 0.7978846
        %v1564 = vmul.f32 %v1488, 0.7978846
        %v1565 = vmul.f32 %v1489, 0.7978846
        %v1566 = vmul.f32 %v1490, 0.7978846
        %v1567 = vmul.f32 %v1491, 0.7978846
        %v1568 = vmul.f32 %v1492, 0.7978846
        %v1569 = vmul.f32 %v1493, 0.7978846
        %v1570 = vmul.f32 %v1494, 0.7978846
        %v1571 = vmul.f32 %v1495, 0.7978846
        %v1572 = vmul.f32 %v1496, 0.7978846
        %v1573 = vmul.f32 %v1497, 0.7978846
        %v1574 = vmul.f32 %v1498, 0.7978846
        %v1575 = vmul.f32 %v1499, 0.7978846
        %v1576 = vmul.f32 %v1500, 0.7978846
        %v1577 = vmul.f32 %v1501, 0.7978846
        %v1578 = vmul.f32 %v1502, 0.7978846
        %v1579 = vmul.f32 %v1503, 0.7978846
        %v1580 = vmul.f32 %v1504, 0.7978846
        %v1581 = vmul.f32 %v1505, 0.7978846
        %v1582 = vmul.f32 %v1506, 0.7978846
        %v1583 = vmul.f32 %v1507, 0.7978846
        %v1584 = vmul.f32 %v1508, 0.7978846
        %v1585 = vmul.f32 %v1509, 0.7978846
        %v1586 = vmul.f32 %v1510, 0.7978846
        %v1587 = vmul.f32 %v1511, 0.7978846
        %v1588 = vmul.f32 %v1512, 0.7978846
        %v1589 = vmul.f32 %v1513, 0.7978846
        %v1590 = vmul.f32 %v1514, 0.7978846
        %v1591 = vmul.f32 %v1515, 0.7978846
        %v1592 = vmul.f32 %v1516, 0.7978846
        %v1593 = vmul.f32 %v1517, 0.7978846
        %v1594 = vmul.f32 %v1518, 0.7978846
        %v1595 = vmul.f32 %v1519, 0.7978846
        %v1596 = vmul.f32 %v1520, 0.7978846
        %v1597 = vmul.f32 %v1521, 0.7978846
        %v1598 = vmul.f32 %v1522, 0.7978846
        %v1599 = vmul.f32 %v1523, 0.7978846
        %v1600 = vmul.f32 %v1524, 0.7978846
        %v1601 = vmul.f32 %v1525, 0.7978846
        %v1602 = vmul.f32 %v1526, 0.7978846
        %v1603 = vmul.f32 %v1527, 0.7978846
        %v1604 = vmul.f32 %v1528, 0.7978846
        %v1605 = vmul.f32 %v1529, 0.7978846
        %v1606 = vmul.f32 %v1530, 0.7978846
        %v1607 = vmul.f32 %v1531, 0.7978846
        %v1608 = vmul.f32 %v1532, 0.7978846
        %v1609 = vmul.f32 %v1533, 0.7978846
        %v1610 = vmul.f32 %v1534, 0.7978846
        %v1611 = vmul.f32 %v1535, 0.7978846
        %v1612 = vmul.f32 %v1536, 0.7978846
        %v1613 = vmul.f32 %v1537, 0.7978846
        %v1614 = vmul.f32 %v1538, 0.7978846
        %v1615 = vmul.f32 %v1539, 0.7978846
        %v1616 = vmul.f32 %v1540, 0.7978846
        %v1617 = vmul.f32 %v1541, 0.7978846
        %v1618 = vmul.f32 %v1542, 0.7978846
        %v1619 = vmul.f32 %v1543, 0.7978846
        %v1620 = vmul.f32 %v1544, 0.7978846
        %v1621 = vmul.f32 %v1545, 0.7978846
        %v1622 = vmul.f32 %v1546, 0.7978846
        %v1623 = vmul.f32 %v1547, 0.7978846
        %v1624 = vmul.f32 %v1548, 0.7978846
        %v1625 = vmul.f32 %v1549, 0.7978846
        %v1626 = vmul.f32 %v1550, 0.7978846
        %v1627 = vtanh.pop %v1551
        %v1628 = vtanh.pop %v1552
        %v1629 = vtanh.pop %v1553
        %v1630 = vtanh.pop %v1554
        %v1631 = vtanh.pop %v1555
        %v1632 = vtanh.pop %v1556
        %v1633 = vtanh.pop %v1557
        %v1634 = vtanh.pop %v1558
        %v1635 = vtanh.pop %v1559
        %v1636 = vtanh.pop %v1560
        %v1637 = vtanh.pop %v1561
        %v1638 = vtanh.pop %v1562
        %v1639 = vtanh.pop %v1563
        %v1640 = vtanh.pop %v1564
        %v1641 = vtanh.pop %v1565
        %v1642 = vtanh.pop %v1566
        %v1643 = vtanh.pop %v1567
        %v1644 = vtanh.pop %v1568
        %v1645 = vtanh.pop %v1569
        %v1646 = vtanh.pop %v1570
        %v1647 = vtanh.pop %v1571
        %v1648 = vtanh.pop %v1572
        %v1649 = vtanh.pop %v1573
        %v1650 = vtanh.pop %v1574
        %v1651 = vtanh.pop %v1575
        %v1652 = vtanh.pop %v1576
        %v1653 = vtanh.pop %v1577
        %v1654 = vtanh.pop %v1578
        %v1655 = vtanh.pop %v1579
        %v1656 = vtanh.pop %v1580
        %v1657 = vtanh.pop %v1581
        %v1658 = vtanh.pop %v1582
        %v1659 = vtanh.pop %v1583
        %v1660 = vtanh.pop %v1584
        %v1661 = vtanh.pop %v1585
        %v1662 = vtanh.pop %v1586
        %v1663 = vtanh.pop %v1587
        %v1664 = vtanh.pop %v1588
        %v1665 = vtanh.pop %v1589
        %v1666 = vtanh.pop %v1590
        %v1667 = vtanh.pop %v1591
        %v1668 = vtanh.pop %v1592
        %v1669 = vtanh.pop %v1593
        %v1670 = vtanh.pop %v1594
        %v1671 = vtanh.pop %v1595
        %v1672 = vtanh.pop %v1596
        %v1673 = vtanh.pop %v1597
        %v1674 = vtanh.pop %v1598
        %v1675 = vtanh.pop %v1599
        %v1676 = vtanh.pop %v1600
        %v1677 = vtanh.pop %v1601
        %v1678 = vtanh.pop %v1602
        %v1679 = vtanh.pop %v1603
        %v1680 = vtanh.pop %v1604
        %v1681 = vtanh.pop %v1605
        %v1682 = vtanh.pop %v1606
        %v1683 = vtanh.pop %v1607
        %v1684 = vtanh.pop %v1608
        %v1685 = vtanh.pop %v1609
        %v1686 = vtanh.pop %v1610
        %v1687 = vtanh.pop %v1611
        %v1688 = vtanh.pop %v1612
        %v1689 = vtanh.pop %v1613
        %v1690 = vtanh.pop %v1614
        %v1691 = vtanh.pop %v1615
        %v1692 = vtanh.pop %v1616
        %v1693 = vtanh.pop %v1617
        %v1694 = vtanh.pop %v1618
        %v1695 = vtanh.pop %v1619
        %v1696 = vtanh.pop %v1620
        %v1697 = vtanh.pop %v1621
        %v1698 = vtanh.pop %v1622
        %v1699 = vtanh.pop %v1623
        %v1700 = vtanh.pop %v1624
        %v1701 = vtanh.pop %v1625
        %v1702 = vtanh.pop %v1626
        %v1703 = vadd.f32 %v1627, 1.0
        %v1704 = vadd.f32 %v1628, 1.0
        %v1705 = vadd.f32 %v1629, 1.0
        %v1706 = vadd.f32 %v1630, 1.0
        %v1707 = vadd.f32 %v1631, 1.0
        %v1708 = vadd.f32 %v1632, 1.0
        %v1709 = vadd.f32 %v1633, 1.0
        %v1710 = vadd.f32 %v1634, 1.0
        %v1711 = vadd.f32 %v1635, 1.0
        %v1712 = vadd.f32 %v1636, 1.0
        %v1713 = vadd.f32 %v1637, 1.0
        %v1714 = vadd.f32 %v1638, 1.0
        %v1715 = vadd.f32 %v1639, 1.0
        %v1716 = vadd.f32 %v1640, 1.0
        %v1717 = vadd.f32 %v1641, 1.0
        %v1718 = vadd.f32 %v1642, 1.0
        %v1719 = vadd.f32 %v1643, 1.0
        %v1720 = vadd.f32 %v1644, 1.0
        %v1721 = vadd.f32 %v1645, 1.0
        %v1722 = vadd.f32 %v1646, 1.0
        %v1723 = vadd.f32 %v1647, 1.0
        %v1724 = vadd.f32 %v1648, 1.0
        %v1725 = vadd.f32 %v1649, 1.0
        %v1726 = vadd.f32 %v1650, 1.0
        %v1727 = vadd.f32 %v1651, 1.0
        %v1728 = vadd.f32 %v1652, 1.0
        %v1729 = vadd.f32 %v1653, 1.0
        %v1730 = vadd.f32 %v1654, 1.0
        %v1731 = vadd.f32 %v1655, 1.0
        %v1732 = vadd.f32 %v1656, 1.0
        %v1733 = vadd.f32 %v1657, 1.0
        %v1734 = vadd.f32 %v1658, 1.0
        %v1735 = vadd.f32 %v1659, 1.0
        %v1736 = vadd.f32 %v1660, 1.0
        %v1737 = vadd.f32 %v1661, 1.0
        %v1738 = vadd.f32 %v1662, 1.0
        %v1739 = vadd.f32 %v1663, 1.0
        %v1740 = vadd.f32 %v1664, 1.0
        %v1741 = vadd.f32 %v1665, 1.0
        %v1742 = vadd.f32 %v1666, 1.0
        %v1743 = vadd.f32 %v1667, 1.0
        %v1744 = vadd.f32 %v1668, 1.0
        %v1745 = vadd.f32 %v1669, 1.0
        %v1746 = vadd.f32 %v1670, 1.0
        %v1747 = vadd.f32 %v1671, 1.0
        %v1748 = vadd.f32 %v1672, 1.0
        %v1749 = vadd.f32 %v1673, 1.0
        %v1750 = vadd.f32 %v1674, 1.0
        %v1751 = vadd.f32 %v1675, 1.0
        %v1752 = vadd.f32 %v1676, 1.0
        %v1753 = vadd.f32 %v1677, 1.0
        %v1754 = vadd.f32 %v1678, 1.0
        %v1755 = vadd.f32 %v1679, 1.0
        %v1756 = vadd.f32 %v1680, 1.0
        %v1757 = vadd.f32 %v1681, 1.0
        %v1758 = vadd.f32 %v1682, 1.0
        %v1759 = vadd.f32 %v1683, 1.0
        %v1760 = vadd.f32 %v1684, 1.0
        %v1761 = vadd.f32 %v1685, 1.0
        %v1762 = vadd.f32 %v1686, 1.0
        %v1763 = vadd.f32 %v1687, 1.0
        %v1764 = vadd.f32 %v1688, 1.0
        %v1765 = vadd.f32 %v1689, 1.0
        %v1766 = vadd.f32 %v1690, 1.0
        %v1767 = vadd.f32 %v1691, 1.0
        %v1768 = vadd.f32 %v1692, 1.0
        %v1769 = vadd.f32 %v1693, 1.0
        %v1770 = vadd.f32 %v1694, 1.0
        %v1771 = vadd.f32 %v1695, 1.0
        %v1772 = vadd.f32 %v1696, 1.0
        %v1773 = vadd.f32 %v1697, 1.0
        %v1774 = vadd.f32 %v1698, 1.0
        %v1775 = vadd.f32 %v1699, 1.0
        %v1776 = vadd.f32 %v1700, 1.0
        %v1777 = vadd.f32 %v1701, 1.0
        %v1778 = vadd.f32 %v1702, 1.0
        %v1779 = vmul.f32 %v1171, %v1703
        %v1780 = vmul.f32 %v1172, %v1704
        %v1781 = vmul.f32 %v1173, %v1705
        %v1782 = vmul.f32 %v1174, %v1706
        %v1783 = vmul.f32 %v1175, %v1707
        %v1784 = vmul.f32 %v1176, %v1708
        %v1785 = vmul.f32 %v1177, %v1709
        %v1786 = vmul.f32 %v1178, %v1710
        %v1787 = vmul.f32 %v1179, %v1711
        %v1788 = vmul.f32 %v1180, %v1712
        %v1789 = vmul.f32 %v1181, %v1713
        %v1790 = vmul.f32 %v1182, %v1714
        %v1791 = vmul.f32 %v1183, %v1715
        %v1792 = vmul.f32 %v1184, %v1716
        %v1793 = vmul.f32 %v1185, %v1717
        %v1794 = vmul.f32 %v1186, %v1718
        %v1795 = vmul.f32 %v1187, %v1719
        %v1796 = vmul.f32 %v1188, %v1720
        %v1797 = vmul.f32 %v1189, %v1721
        %v1798 = vmul.f32 %v1190, %v1722
        %v1799 = vmul.f32 %v1191, %v1723
        %v1800 = vmul.f32 %v1192, %v1724
        %v1801 = vmul.f32 %v1193, %v1725
        %v1802 = vmul.f32 %v1194, %v1726
        %v1803 = vmul.f32 %v1195, %v1727
        %v1804 = vmul.f32 %v1196, %v1728
        %v1805 = vmul.f32 %v1197, %v1729
        %v1806 = vmul.f32 %v1198, %v1730
        %v1807 = vmul.f32 %v1199, %v1731
        %v1808 = vmul.f32 %v1200, %v1732
        %v1809 = vmul.f32 %v1201, %v1733
        %v1810 = vmul.f32 %v1202, %v1734
        %v1811 = vmul.f32 %v1203, %v1735
        %v1812 = vmul.f32 %v1204, %v1736
        %v1813 = vmul.f32 %v1205, %v1737
        %v1814 = vmul.f32 %v1206, %v1738
        %v1815 = vmul.f32 %v1207, %v1739
        %v1816 = vmul.f32 %v1208, %v1740
        %v1817 = vmul.f32 %v1209, %v1741
        %v1818 = vmul.f32 %v1210, %v1742
        %v1819 = vmul.f32 %v1211, %v1743
        %v1820 = vmul.f32 %v1212, %v1744
        %v1821 = vmul.f32 %v1213, %v1745
        %v1822 = vmul.f32 %v1214, %v1746
        %v1823 = vmul.f32 %v1215, %v1747
        %v1824 = vmul.f32 %v1216, %v1748
        %v1825 = vmul.f32 %v1217, %v1749
        %v1826 = vmul.f32 %v1218, %v1750
        %v1827 = vmul.f32 %v1219, %v1751
        %v1828 = vmul.f32 %v1220, %v1752
        %v1829 = vmul.f32 %v1221, %v1753
        %v1830 = vmul.f32 %v1222, %v1754
        %v1831 = vmul.f32 %v1223, %v1755
        %v1832 = vmul.f32 %v1224, %v1756
        %v1833 = vmul.f32 %v1225, %v1757
        %v1834 = vmul.f32 %v1226, %v1758
        %v1835 = vmul.f32 %v1227, %v1759
        %v1836 = vmul.f32 %v1228, %v1760
        %v1837 = vmul.f32 %v1229, %v1761
        %v1838 = vmul.f32 %v1230, %v1762
        %v1839 = vmul.f32 %v1231, %v1763
        %v1840 = vmul.f32 %v1232, %v1764
        %v1841 = vmul.f32 %v1233, %v1765
        %v1842 = vmul.f32 %v1234, %v1766
        %v1843 = vmul.f32 %v1235, %v1767
        %v1844 = vmul.f32 %v1236, %v1768
        %v1845 = vmul.f32 %v1237, %v1769
        %v1846 = vmul.f32 %v1238, %v1770
        %v1847 = vmul.f32 %v1239, %v1771
        %v1848 = vmul.f32 %v1240, %v1772
        %v1849 = vmul.f32 %v1241, %v1773
        %v1850 = vmul.f32 %v1242, %v1774
        %v1851 = vmul.f32 %v1243, %v1775
        %v1852 = vmul.f32 %v1244, %v1776
        %v1853 = vmul.f32 %v1245, %v1777
        %v1854 = vmul.f32 %v1246, %v1778
        %v1855 = vpack.c.bf16 %v1783, %v1779
        %v1856 = vpack.c.bf16 %v1784, %v1780
        %v1857 = vpack.c.bf16 %v1785, %v1781
        %v1858 = vpack.c.bf16 %v1786, %v1782
        %v1859 = vpack.c.bf16 %v1791, %v1787
        %v1860 = vpack.c.bf16 %v1792, %v1788
        %v1861 = vpack.c.bf16 %v1793, %v1789
        %v1862 = vpack.c.bf16 %v1794, %v1790
        %v1863 = vpack.c.bf16 %v1799, %v1795
        %v1864 = vpack.c.bf16 %v1800, %v1796
        %v1865 = vpack.c.bf16 %v1801, %v1797
        %v1866 = vpack.c.bf16 %v1802, %v1798
        %v1867 = vpack.c.bf16 %v1807, %v1803
        %v1868 = vpack.c.bf16 %v1808, %v1804
        %v1869 = vpack.c.bf16 %v1809, %v1805
        %v1870 = vpack.c.bf16 %v1810, %v1806
        %v1871 = vpack.c.bf16 %v1815, %v1811
        %v1872 = vpack.c.bf16 %v1816, %v1812
        %v1873 = vpack.c.bf16 %v1817, %v1813
        %v1874 = vpack.c.bf16 %v1818, %v1814
        %v1875 = vpack.c.bf16 %v1823, %v1819
        %v1876 = vpack.c.bf16 %v1824, %v1820
        %v1877 = vpack.c.bf16 %v1825, %v1821
        %v1878 = vpack.c.bf16 %v1826, %v1822
        %v1879 = vpack.c.bf16 %v1831, %v1827
        %v1880 = vpack.c.bf16 %v1832, %v1828
        %v1881 = vpack.c.bf16 %v1833, %v1829
        %v1882 = vpack.c.bf16 %v1834, %v1830
        %v1883 = vpack.c.bf16 %v1839, %v1835
        %v1884 = vpack.c.bf16 %v1840, %v1836
        %v1885 = vpack.c.bf16 %v1841, %v1837
        %v1886 = vpack.c.bf16 %v1842, %v1838
        %v1887 = vpack.c.bf16 %v1847, %v1843
        %v1888 = vpack.c.bf16 %v1848, %v1844
        %v1889 = vpack.c.bf16 %v1849, %v1845
        %v1890 = vpack.c.bf16 %v1850, %v1846
        %v1891 = vpack.c.bf16 %v1851, %v1851
        %v1892 = vpack.c.bf16 %v1852, %v1852
        %v1893 = vpack.c.bf16 %v1853, %v1853
        %v1894 = vpack.c.bf16 %v1854, %v1854
        %v1895 = vld [vmem:[#allocation7] sm:$0xff]
        %v1896 = vld [vmem:[#allocation7 + $0x8] sm:$0xff]
        %v1897 = vld [vmem:[#allocation7 + $0x10] sm:$0xff]
        %v1898 = vld [vmem:[#allocation7 + $0x18] sm:$0xff]
        %v1899 = vld [vmem:[#allocation7 + $0x20] sm:$0xff]
        %v1900 = vld [vmem:[#allocation7 + $0x28] sm:$0xff]
        %v1901 = vld [vmem:[#allocation7 + $0x30] sm:$0xff]
        %v1902 = vld [vmem:[#allocation7 + $0x38] sm:$0xff]
        %v1903 = vld [vmem:[#allocation7 + $0x40] sm:$0xff]
        %v1904 = vld [vmem:[#allocation7 + $0x48] sm:$0xff]
        %v1905 = vld [vmem:[#allocation7 + $0x50] sm:$0xff]
        %v1906 = vld [vmem:[#allocation7 + $0x58] sm:$0xff]
        %v1907 = vld [vmem:[#allocation7 + $0x60] sm:$0xff]
        %v1908 = vld [vmem:[#allocation7 + $0x68] sm:$0xff]
        %v1909 = vld [vmem:[#allocation7 + $0x70] sm:$0xff]
        %v1910 = vld [vmem:[#allocation7 + $0x78] sm:$0xff]
        %v1911 = vld [vmem:[#allocation7 + $0x80] sm:$0xff]
        %v1912 = vld [vmem:[#allocation7 + $0x88] sm:$0xff]
        %v1913 = vld [vmem:[#allocation7 + $0x90] sm:$0xff]
        %v1914 = vld [vmem:[#allocation7 + $0x98] sm:$0xff]
        %v1915 = vld [vmem:[#allocation7 + $0xa0] sm:$0xff]
        %v1916 = vld [vmem:[#allocation7 + $0xa8] sm:$0xff]
        %v1917 = vld [vmem:[#allocation7 + $0xb0] sm:$0xff]
        %v1918 = vld [vmem:[#allocation7 + $0xb8] sm:$0xff]
        %v1919 = vld [vmem:[#allocation7 + $0xc0] sm:$0xff]
        %v1920 = vld [vmem:[#allocation7 + $0xc8] sm:$0xff]
        %v1921 = vld [vmem:[#allocation7 + $0xd0] sm:$0xff]
        %v1922 = vld [vmem:[#allocation7 + $0xd8] sm:$0xff]
        %v1923 = vld [vmem:[#allocation7 + $0xe0] sm:$0xff]
        %v1924 = vld [vmem:[#allocation7 + $0xe8] sm:$0xff]
        %v1925 = vld [vmem:[#allocation7 + $0xf0] sm:$0xff]
        %v1926 = vld [vmem:[#allocation7 + $0xf8] sm:$0xff]
        %v1927 = vld [vmem:[#allocation7 + $0x100] sm:$0xff]
        %v1928 = vld [vmem:[#allocation7 + $0x108] sm:$0xff]
        %v1929 = vld [vmem:[#allocation7 + $0x110] sm:$0xff]
        %v1930 = vld [vmem:[#allocation7 + $0x118] sm:$0xff]
        %v1931 = vld [vmem:[#allocation7 + $0x120] sm:$0xff]
        %v1932 = vld [vmem:[#allocation7 + $0x128] sm:$0xff]
        %v1933 = vld [vmem:[#allocation7 + $0x130] sm:$0xff]
        %v1934 = vld [vmem:[#allocation7 + $0x138] sm:$0xff]
        %v1935 = vld [vmem:[#allocation7 + $0x140] sm:$0xff]
        %v1936 = vld [vmem:[#allocation7 + $0x148] sm:$0xff]
        %v1937 = vld [vmem:[#allocation7 + $0x150] sm:$0xff]
        %v1938 = vld [vmem:[#allocation7 + $0x158] sm:$0xff]
        %v1939 = vld [vmem:[#allocation7 + $0x160] sm:$0xff]
        %v1940 = vld [vmem:[#allocation7 + $0x168] sm:$0xff]
        %v1941 = vld [vmem:[#allocation7 + $0x170] sm:$0xff]
        %v1942 = vld [vmem:[#allocation7 + $0x178] sm:$0xff]
        %v1943 = vld [vmem:[#allocation7 + $0x180] sm:$0xff]
        %v1944 = vld [vmem:[#allocation7 + $0x188] sm:$0xff]
        %v1945 = vld [vmem:[#allocation7 + $0x190] sm:$0xff]
        %v1946 = vld [vmem:[#allocation7 + $0x198] sm:$0xff]
        %v1947 = vld [vmem:[#allocation7 + $0x1a0] sm:$0xff]
        %v1948 = vld [vmem:[#allocation7 + $0x1a8] sm:$0xff]
        %v1949 = vld [vmem:[#allocation7 + $0x1b0] sm:$0xff]
        %v1950 = vld [vmem:[#allocation7 + $0x1b8] sm:$0xff]
        %v1951 = vld [vmem:[#allocation7 + $0x1c0] sm:$0xff]
        %v1952 = vld [vmem:[#allocation7 + $0x1c8] sm:$0xff]
        %v1953 = vld [vmem:[#allocation7 + $0x1d0] sm:$0xff]
        %v1954 = vld [vmem:[#allocation7 + $0x1d8] sm:$0xff]
        %v1955 = vld [vmem:[#allocation7 + $0x1e0] sm:$0xff]
        %v1956 = vld [vmem:[#allocation7 + $0x1e8] sm:$0xff]
        %v1957 = vld [vmem:[#allocation7 + $0x1f0] sm:$0xff]
        %v1958 = vld [vmem:[#allocation7 + $0x1f8] sm:$0xff]
        %v1959 = vld [vmem:[#allocation7 + $0x200] sm:$0xff]
        %v1960 = vld [vmem:[#allocation7 + $0x208] sm:$0xff]
        %v1961 = vld [vmem:[#allocation7 + $0x210] sm:$0xff]
        %v1962 = vld [vmem:[#allocation7 + $0x218] sm:$0xff]
        %v1963 = vld [vmem:[#allocation7 + $0x220] sm:$0xff]
        %v1964 = vld [vmem:[#allocation7 + $0x228] sm:$0xff]
        %v1965 = vld [vmem:[#allocation7 + $0x230] sm:$0xff]
        %v1966 = vld [vmem:[#allocation7 + $0x238] sm:$0xff]
        %v1967 = vld [vmem:[#allocation7 + $0x240] sm:$0xff]
        %v1968 = vld [vmem:[#allocation7 + $0x248] sm:$0xff]
        %v1969 = vld [vmem:[#allocation7 + $0x250] sm:$0xff]
        %v1970 = vld [vmem:[#allocation7 + $0x258] sm:$0xff]
        %v1971 = vld [vmem:[#allocation7 + $0x260] sm:$0xff]
        %v1972 = vld [vmem:[#allocation7 + $0x268] sm:$0xff]
        %v1973 = vld [vmem:[#allocation7 + $0x270] sm:$0xff]
        %v1974 = vld [vmem:[#allocation7 + $0x278] sm:$0xff]
        %v1975 = vld [vmem:[#allocation7 + $0x280] sm:$0xff]
        %v1976 = vld [vmem:[#allocation7 + $0x288] sm:$0xff]
        %v1977 = vld [vmem:[#allocation7 + $0x290] sm:$0xff]
        %v1978 = vld [vmem:[#allocation7 + $0x298] sm:$0xff]
        %v1979 = vld [vmem:[#allocation7 + $0x2a0] sm:$0xff]
        %v1980 = vld [vmem:[#allocation7 + $0x2a8] sm:$0xff]
        %v1981 = vld [vmem:[#allocation7 + $0x2b0] sm:$0xff]
        %v1982 = vld [vmem:[#allocation7 + $0x2b8] sm:$0xff]
        %v1983 = vld [vmem:[#allocation7 + $0x2c0] sm:$0xff]
        %v1984 = vld [vmem:[#allocation7 + $0x2c8] sm:$0xff]
        %v1985 = vld [vmem:[#allocation7 + $0x2d0] sm:$0xff]
        %v1986 = vld [vmem:[#allocation7 + $0x2d8] sm:$0xff]
        %v1987 = vld [vmem:[#allocation7 + $0x2e0] sm:$0xff]
        %v1988 = vld [vmem:[#allocation7 + $0x2e8] sm:$0xff]
        %v1989 = vld [vmem:[#allocation7 + $0x2f0] sm:$0xff]
        %v1990 = vld [vmem:[#allocation7 + $0x2f8] sm:$0xff]
        %v1991 = vld [vmem:[#allocation7 + $0x300] sm:$0xff]
        %v1992 = vld [vmem:[#allocation7 + $0x308] sm:$0xff]
        %v1993 = vld [vmem:[#allocation7 + $0x310] sm:$0xff]
        %v1994 = vld [vmem:[#allocation7 + $0x318] sm:$0xff]
        %v1995 = vld [vmem:[#allocation7 + $0x320] sm:$0xff]
        %v1996 = vld [vmem:[#allocation7 + $0x328] sm:$0xff]
        %v1997 = vld [vmem:[#allocation7 + $0x330] sm:$0xff]
        %v1998 = vld [vmem:[#allocation7 + $0x338] sm:$0xff]
        %v1999 = vld [vmem:[#allocation7 + $0x340] sm:$0xff]
        %v2000 = vld [vmem:[#allocation7 + $0x348] sm:$0xff]
        %v2001 = vld [vmem:[#allocation7 + $0x350] sm:$0xff]
        %v2002 = vld [vmem:[#allocation7 + $0x358] sm:$0xff]
        %v2003 = vld [vmem:[#allocation7 + $0x360] sm:$0xff]
        %v2004 = vld [vmem:[#allocation7 + $0x368] sm:$0xff]
        %v2005 = vld [vmem:[#allocation7 + $0x370] sm:$0xff]
        %v2006 = vld [vmem:[#allocation7 + $0x378] sm:$0xff]
        %v2007 = vld [vmem:[#allocation7 + $0x380] sm:$0xff]
        %v2008 = vld [vmem:[#allocation7 + $0x388] sm:$0xff]
        %v2009 = vld [vmem:[#allocation7 + $0x390] sm:$0xff]
        %v2010 = vld [vmem:[#allocation7 + $0x398] sm:$0xff]
        %v2011 = vld [vmem:[#allocation7 + $0x3a0] sm:$0xff]
        %v2012 = vld [vmem:[#allocation7 + $0x3a8] sm:$0xff]
        %v2013 = vld [vmem:[#allocation7 + $0x3b0] sm:$0xff]
        %v2014 = vld [vmem:[#allocation7 + $0x3b8] sm:$0xff]
        %v2015 = vld [vmem:[#allocation7 + $0x3c0] sm:$0xff]
        %v2016 = vld [vmem:[#allocation7 + $0x3c8] sm:$0xff]
        %v2017 = vld [vmem:[#allocation7 + $0x3d0] sm:$0xff]
        %v2018 = vld [vmem:[#allocation7 + $0x3d8] sm:$0xff]
        %v2019 = vld [vmem:[#allocation7 + $0x3e0] sm:$0xff]
        %v2020 = vld [vmem:[#allocation7 + $0x3e8] sm:$0xff]
        %v2021 = vld [vmem:[#allocation7 + $0x3f0] sm:$0xff]
        %v2022 = vld [vmem:[#allocation7 + $0x3f8] sm:$0xff]
        %v2023 = vld [vmem:[#allocation7 + $0x400] sm:$0xff]
        %v2024 = vld [vmem:[#allocation7 + $0x408] sm:$0xff]
        %v2025 = vld [vmem:[#allocation7 + $0x410] sm:$0xff]
        %v2026 = vld [vmem:[#allocation7 + $0x418] sm:$0xff]
        %v2027 = vld [vmem:[#allocation7 + $0x420] sm:$0xff]
        %v2028 = vld [vmem:[#allocation7 + $0x428] sm:$0xff]
        %v2029 = vld [vmem:[#allocation7 + $0x430] sm:$0xff]
        %v2030 = vld [vmem:[#allocation7 + $0x438] sm:$0xff]
        %v2031 = vld [vmem:[#allocation7 + $0x440] sm:$0xff]
        %v2032 = vld [vmem:[#allocation7 + $0x448] sm:$0xff]
        %v2033 = vld [vmem:[#allocation7 + $0x450] sm:$0xff]
        %v2034 = vld [vmem:[#allocation7 + $0x458] sm:$0xff]
        %v2035 = vld [vmem:[#allocation7 + $0x460] sm:$0xff]
        %v2036 = vld [vmem:[#allocation7 + $0x468] sm:$0xff]
        %v2037 = vld [vmem:[#allocation7 + $0x470] sm:$0xff]
        %v2038 = vld [vmem:[#allocation7 + $0x478] sm:$0xff]
        %v2039 = vld [vmem:[#allocation7 + $0x480] sm:$0xff]
        %v2040 = vld [vmem:[#allocation7 + $0x488] sm:$0xff]
        %v2041 = vld [vmem:[#allocation7 + $0x490] sm:$0xff]
        %v2042 = vld [vmem:[#allocation7 + $0x498] sm:$0xff]
        %v2043 = vld [vmem:[#allocation7 + $0x4a0] sm:$0xff]
        %v2044 = vld [vmem:[#allocation7 + $0x4a8] sm:$0xff]
        %v2045 = vld [vmem:[#allocation7 + $0x4b0] sm:$0xff]
        %v2046 = vld [vmem:[#allocation7 + $0x4b8] sm:$0xff]
        %v2047 = vld [vmem:[#allocation7 + $0x4c0] sm:$0xff]
        %v2048 = vld [vmem:[#allocation7 + $0x4c8] sm:$0xff]
        %v2049 = vld [vmem:[#allocation7 + $0x4d0] sm:$0xff]
        %v2050 = vld [vmem:[#allocation7 + $0x4d8] sm:$0xff]
        %v2051 = vld [vmem:[#allocation7 + $0x4e0] sm:$0xff]
        %v2052 = vld [vmem:[#allocation7 + $0x4e8] sm:$0xff]
        %v2053 = vld [vmem:[#allocation7 + $0x4f0] sm:$0xff]
        %v2054 = vld [vmem:[#allocation7 + $0x4f8] sm:$0xff]
        %v2055 = vld [vmem:[#allocation7 + $0x500] sm:$0xff]
        %v2056 = vld [vmem:[#allocation7 + $0x508] sm:$0xff]
        %v2057 = vld [vmem:[#allocation7 + $0x510] sm:$0xff]
        %v2058 = vld [vmem:[#allocation7 + $0x518] sm:$0xff]
        %v2059 = vld [vmem:[#allocation7 + $0x520] sm:$0xff]
        %v2060 = vld [vmem:[#allocation7 + $0x528] sm:$0xff]
        %v2061 = vld [vmem:[#allocation7 + $0x530] sm:$0xff]
        %v2062 = vld [vmem:[#allocation7 + $0x538] sm:$0xff]
        %v2063 = vld [vmem:[#allocation7 + $0x540] sm:$0xff]
        %v2064 = vld [vmem:[#allocation7 + $0x548] sm:$0xff]
        %v2065 = vld [vmem:[#allocation7 + $0x550] sm:$0xff]
        %v2066 = vld [vmem:[#allocation7 + $0x558] sm:$0xff]
        %v2067 = vld [vmem:[#allocation7 + $0x560] sm:$0xff]
        %v2068 = vld [vmem:[#allocation7 + $0x568] sm:$0xff]
        %v2069 = vld [vmem:[#allocation7 + $0x570] sm:$0xff]
        %v2070 = vld [vmem:[#allocation7 + $0x578] sm:$0xff]
        %v2071 = vld [vmem:[#allocation7 + $0x580] sm:$0xff]
        %v2072 = vld [vmem:[#allocation7 + $0x588] sm:$0xff]
        %v2073 = vld [vmem:[#allocation7 + $0x590] sm:$0xff]
        %v2074 = vld [vmem:[#allocation7 + $0x598] sm:$0xff]
        %v2075 = vld [vmem:[#allocation7 + $0x5a0] sm:$0xff]
        %v2076 = vld [vmem:[#allocation7 + $0x5a8] sm:$0xff]
        %v2077 = vld [vmem:[#allocation7 + $0x5b0] sm:$0xff]
        %v2078 = vld [vmem:[#allocation7 + $0x5b8] sm:$0xff]
        %v2079 = vld [vmem:[#allocation7 + $0x5c0] sm:$0xff]
        %v2080 = vld [vmem:[#allocation7 + $0x5c8] sm:$0xff]
        %v2081 = vld [vmem:[#allocation7 + $0x5d0] sm:$0xff]
        %v2082 = vld [vmem:[#allocation7 + $0x5d8] sm:$0xff]
        %v2083 = vld [vmem:[#allocation7 + $0x5e0] sm:$0xff]
        %v2084 = vld [vmem:[#allocation7 + $0x5e8] sm:$0xff]
        %v2085 = vld [vmem:[#allocation7 + $0x5f0] sm:$0xff]
        %v2086 = vld [vmem:[#allocation7 + $0x5f8] sm:$0xff]
        %v2087 = vld [vmem:[%s4] sm:$0x3f]
        %v2089 = vlaneseq
        %v2090 = vshrl.u32 %v2089, 7
        %v2091 = vsub.s32 0, %v2090
        %v2092 = vrot.slane %v2087, %v2091
        %v2093 = vlaneseq
        %v2094 = vshrl.u32 %v2093, 7
        %v2095 = vsub.s32 1, %v2094
        %v2096 = vrot.slane %v2087, %v2095
        %v2097 = vlaneseq
        %v2098 = vshrl.u32 %v2097, 7
        %v2099 = vsub.s32 2, %v2098
        %v2100 = vrot.slane %v2087, %v2099
        %v2101 = vlaneseq
        %v2102 = vshrl.u32 %v2101, 7
        %v2103 = vsub.s32 3, %v2102
        %v2104 = vrot.slane %v2087, %v2103
        %v2105 = vlaneseq
        %v2106 = vshrl.u32 %v2105, 7
        %v2107 = vsub.s32 4, %v2106
        %v2108 = vrot.slane %v2087, %v2107
        %v2109 = vlaneseq
        %v2110 = vshrl.u32 %v2109, 7
        %v2111 = vsub.s32 5, %v2110
        %v2112 = vrot.slane %v2087, %v2111
        %v2311 = vunpack.c.l.b16 %v1895
        %v2312 = vunpack.c.h.b16 %v1895
        %v2313 = vunpack.c.l.b16 %v1896
        %v2314 = vunpack.c.h.b16 %v1896
        %v2315 = vunpack.c.l.b16 %v1897
        %v2316 = vunpack.c.h.b16 %v1897
        %v2317 = vunpack.c.l.b16 %v1898
        %v2318 = vunpack.c.h.b16 %v1898
        %v2319 = vunpack.c.l.b16 %v1899
        %v2320 = vunpack.c.h.b16 %v1899
        %v2321 = vunpack.c.l.b16 %v1900
        %v2322 = vunpack.c.h.b16 %v1900
        %v2323 = vunpack.c.l.b16 %v1901
        %v2324 = vunpack.c.h.b16 %v1901
        %v2325 = vunpack.c.l.b16 %v1902
        %v2326 = vunpack.c.h.b16 %v1902
        %v2327 = vunpack.c.l.b16 %v1903
        %v2328 = vunpack.c.h.b16 %v1903
        %v2329 = vunpack.c.l.b16 %v1904
        %v2330 = vunpack.c.h.b16 %v1904
        %v2331 = vunpack.c.l.b16 %v1905
        %v2332 = vunpack.c.h.b16 %v1905
        %v2333 = vunpack.c.l.b16 %v1906
        %v2334 = vunpack.c.h.b16 %v1906
        %v2335 = vunpack.c.l.b16 %v1907
        %v2336 = vunpack.c.h.b16 %v1907
        %v2337 = vunpack.c.l.b16 %v1908
        %v2338 = vunpack.c.h.b16 %v1908
        %v2339 = vunpack.c.l.b16 %v1909
        %v2340 = vunpack.c.h.b16 %v1909
        %v2341 = vunpack.c.l.b16 %v1910
        %v2342 = vunpack.c.h.b16 %v1910
        %v2343 = vunpack.c.l.b16 %v1911
        %v2344 = vunpack.c.h.b16 %v1911
        %v2345 = vunpack.c.l.b16 %v1912
        %v2346 = vunpack.c.h.b16 %v1912
        %v2347 = vunpack.c.l.b16 %v1913
        %v2348 = vunpack.c.h.b16 %v1913
        %v2349 = vunpack.c.l.b16 %v1914
        %v2350 = vunpack.c.h.b16 %v1914
        %v2351 = vunpack.c.l.b16 %v1915
        %v2352 = vunpack.c.h.b16 %v1915
        %v2353 = vunpack.c.l.b16 %v1916
        %v2354 = vunpack.c.h.b16 %v1916
        %v2355 = vunpack.c.l.b16 %v1917
        %v2356 = vunpack.c.h.b16 %v1917
        %v2357 = vunpack.c.l.b16 %v1918
        %v2358 = vunpack.c.h.b16 %v1918
        %v2359 = vunpack.c.l.b16 %v1919
        %v2360 = vunpack.c.h.b16 %v1919
        %v2361 = vunpack.c.l.b16 %v1920
        %v2362 = vunpack.c.h.b16 %v1920
        %v2363 = vunpack.c.l.b16 %v1921
        %v2364 = vunpack.c.h.b16 %v1921
        %v2365 = vunpack.c.l.b16 %v1922
        %v2366 = vunpack.c.h.b16 %v1922
        %v2367 = vunpack.c.l.b16 %v1923
        %v2368 = vunpack.c.h.b16 %v1923
        %v2369 = vunpack.c.l.b16 %v1924
        %v2370 = vunpack.c.h.b16 %v1924
        %v2371 = vunpack.c.l.b16 %v1925
        %v2372 = vunpack.c.h.b16 %v1925
        %v2373 = vunpack.c.l.b16 %v1926
        %v2374 = vunpack.c.h.b16 %v1926
        %v2375 = vunpack.c.l.b16 %v1927
        %v2376 = vunpack.c.h.b16 %v1927
        %v2377 = vunpack.c.l.b16 %v1928
        %v2378 = vunpack.c.h.b16 %v1928
        %v2379 = vunpack.c.l.b16 %v1929
        %v2380 = vunpack.c.h.b16 %v1929
        %v2381 = vunpack.c.l.b16 %v1930
        %v2382 = vunpack.c.h.b16 %v1930
        %v2383 = vunpack.c.l.b16 %v1931
        %v2384 = vunpack.c.h.b16 %v1931
        %v2385 = vunpack.c.l.b16 %v1932
        %v2386 = vunpack.c.h.b16 %v1932
        %v2387 = vunpack.c.l.b16 %v1933
        %v2388 = vunpack.c.h.b16 %v1933
        %v2389 = vunpack.c.l.b16 %v1934
        %v2390 = vunpack.c.h.b16 %v1934
        %v2391 = vunpack.c.l.b16 %v1935
        %v2392 = vunpack.c.h.b16 %v1935
        %v2393 = vunpack.c.l.b16 %v1936
        %v2394 = vunpack.c.h.b16 %v1936
        %v2395 = vunpack.c.l.b16 %v1937
        %v2396 = vunpack.c.h.b16 %v1937
        %v2397 = vunpack.c.l.b16 %v1938
        %v2398 = vunpack.c.h.b16 %v1938
        %v2399 = vunpack.c.l.b16 %v1939
        %v2400 = vunpack.c.h.b16 %v1939
        %v2401 = vunpack.c.l.b16 %v1940
        %v2402 = vunpack.c.h.b16 %v1940
        %v2403 = vunpack.c.l.b16 %v1941
        %v2404 = vunpack.c.h.b16 %v1941
        %v2405 = vunpack.c.l.b16 %v1942
        %v2406 = vunpack.c.h.b16 %v1942
        %v2407 = vunpack.c.l.b16 %v1943
        %v2408 = vunpack.c.h.b16 %v1943
        %v2409 = vunpack.c.l.b16 %v1944
        %v2410 = vunpack.c.h.b16 %v1944
        %v2411 = vunpack.c.l.b16 %v1945
        %v2412 = vunpack.c.h.b16 %v1945
        %v2413 = vunpack.c.l.b16 %v1946
        %v2414 = vunpack.c.h.b16 %v1946
        %v2415 = vunpack.c.l.b16 %v1947
        %v2416 = vunpack.c.h.b16 %v1947
        %v2417 = vunpack.c.l.b16 %v1948
        %v2418 = vunpack.c.h.b16 %v1948
        %v2419 = vunpack.c.l.b16 %v1949
        %v2420 = vunpack.c.h.b16 %v1949
        %v2421 = vunpack.c.l.b16 %v1950
        %v2422 = vunpack.c.h.b16 %v1950
        %v2423 = vunpack.c.l.b16 %v1951
        %v2424 = vunpack.c.h.b16 %v1951
        %v2425 = vunpack.c.l.b16 %v1952
        %v2426 = vunpack.c.h.b16 %v1952
        %v2427 = vunpack.c.l.b16 %v1953
        %v2428 = vunpack.c.h.b16 %v1953
        %v2429 = vunpack.c.l.b16 %v1954
        %v2430 = vunpack.c.h.b16 %v1954
        %v2431 = vunpack.c.l.b16 %v1955
        %v2432 = vunpack.c.h.b16 %v1955
        %v2433 = vunpack.c.l.b16 %v1956
        %v2434 = vunpack.c.h.b16 %v1956
        %v2435 = vunpack.c.l.b16 %v1957
        %v2436 = vunpack.c.h.b16 %v1957
        %v2437 = vunpack.c.l.b16 %v1958
        %v2438 = vunpack.c.h.b16 %v1958
        %v2439 = vunpack.c.l.b16 %v1959
        %v2440 = vunpack.c.h.b16 %v1959
        %v2441 = vunpack.c.l.b16 %v1960
        %v2442 = vunpack.c.h.b16 %v1960
        %v2443 = vunpack.c.l.b16 %v1961
        %v2444 = vunpack.c.h.b16 %v1961
        %v2445 = vunpack.c.l.b16 %v1962
        %v2446 = vunpack.c.h.b16 %v1962
        %v2447 = vunpack.c.l.b16 %v1963
        %v2448 = vunpack.c.h.b16 %v1963
        %v2449 = vunpack.c.l.b16 %v1964
        %v2450 = vunpack.c.h.b16 %v1964
        %v2451 = vunpack.c.l.b16 %v1965
        %v2452 = vunpack.c.h.b16 %v1965
        %v2453 = vunpack.c.l.b16 %v1966
        %v2454 = vunpack.c.h.b16 %v1966
        %v2455 = vunpack.c.l.b16 %v1967
        %v2456 = vunpack.c.h.b16 %v1967
        %v2457 = vunpack.c.l.b16 %v1968
        %v2458 = vunpack.c.h.b16 %v1968
        %v2459 = vunpack.c.l.b16 %v1969
        %v2460 = vunpack.c.h.b16 %v1969
        %v2461 = vunpack.c.l.b16 %v1970
        %v2462 = vunpack.c.h.b16 %v1970
        %v2463 = vunpack.c.l.b16 %v1971
        %v2464 = vunpack.c.h.b16 %v1971
        %v2465 = vunpack.c.l.b16 %v1972
        %v2466 = vunpack.c.h.b16 %v1972
        %v2467 = vunpack.c.l.b16 %v1973
        %v2468 = vunpack.c.h.b16 %v1973
        %v2469 = vunpack.c.l.b16 %v1974
        %v2470 = vunpack.c.h.b16 %v1974
        %v2471 = vunpack.c.l.b16 %v1975
        %v2472 = vunpack.c.h.b16 %v1975
        %v2473 = vunpack.c.l.b16 %v1976
        %v2474 = vunpack.c.h.b16 %v1976
        %v2475 = vunpack.c.l.b16 %v1977
        %v2476 = vunpack.c.h.b16 %v1977
        %v2477 = vunpack.c.l.b16 %v1978
        %v2478 = vunpack.c.h.b16 %v1978
        %v2479 = vunpack.c.l.b16 %v1979
        %v2480 = vunpack.c.h.b16 %v1979
        %v2481 = vunpack.c.l.b16 %v1980
        %v2482 = vunpack.c.h.b16 %v1980
        %v2483 = vunpack.c.l.b16 %v1981
        %v2484 = vunpack.c.h.b16 %v1981
        %v2485 = vunpack.c.l.b16 %v1982
        %v2486 = vunpack.c.h.b16 %v1982
        %v2487 = vunpack.c.l.b16 %v1983
        %v2488 = vunpack.c.h.b16 %v1983
        %v2489 = vunpack.c.l.b16 %v1984
        %v2490 = vunpack.c.h.b16 %v1984
        %v2491 = vunpack.c.l.b16 %v1985
        %v2492 = vunpack.c.h.b16 %v1985
        %v2493 = vunpack.c.l.b16 %v1986
        %v2494 = vunpack.c.h.b16 %v1986
        %v2495 = vunpack.c.l.b16 %v1987
        %v2496 = vunpack.c.h.b16 %v1987
        %v2497 = vunpack.c.l.b16 %v1988
        %v2498 = vunpack.c.h.b16 %v1988
        %v2499 = vunpack.c.l.b16 %v1989
        %v2500 = vunpack.c.h.b16 %v1989
        %v2501 = vunpack.c.l.b16 %v1990
        %v2502 = vunpack.c.h.b16 %v1990
        %v2503 = vunpack.c.l.b16 %v1991
        %v2504 = vunpack.c.h.b16 %v1991
        %v2505 = vunpack.c.l.b16 %v1992
        %v2506 = vunpack.c.h.b16 %v1992
        %v2507 = vunpack.c.l.b16 %v1993
        %v2508 = vunpack.c.h.b16 %v1993
        %v2509 = vunpack.c.l.b16 %v1994
        %v2510 = vunpack.c.h.b16 %v1994
        %v2511 = vunpack.c.l.b16 %v1995
        %v2512 = vunpack.c.h.b16 %v1995
        %v2513 = vunpack.c.l.b16 %v1996
        %v2514 = vunpack.c.h.b16 %v1996
        %v2515 = vunpack.c.l.b16 %v1997
        %v2516 = vunpack.c.h.b16 %v1997
        %v2517 = vunpack.c.l.b16 %v1998
        %v2518 = vunpack.c.h.b16 %v1998
        %v2519 = vunpack.c.l.b16 %v1999
        %v2520 = vunpack.c.h.b16 %v1999
        %v2521 = vunpack.c.l.b16 %v2000
        %v2522 = vunpack.c.h.b16 %v2000
        %v2523 = vunpack.c.l.b16 %v2001
        %v2524 = vunpack.c.h.b16 %v2001
        %v2525 = vunpack.c.l.b16 %v2002
        %v2526 = vunpack.c.h.b16 %v2002
        %v2527 = vunpack.c.l.b16 %v2003
        %v2528 = vunpack.c.h.b16 %v2003
        %v2529 = vunpack.c.l.b16 %v2004
        %v2530 = vunpack.c.h.b16 %v2004
        %v2531 = vunpack.c.l.b16 %v2005
        %v2532 = vunpack.c.h.b16 %v2005
        %v2533 = vunpack.c.l.b16 %v2006
        %v2534 = vunpack.c.h.b16 %v2006
        %v2535 = vunpack.c.l.b16 %v2007
        %v2536 = vunpack.c.h.b16 %v2007
        %v2537 = vunpack.c.l.b16 %v2008
        %v2538 = vunpack.c.h.b16 %v2008
        %v2539 = vunpack.c.l.b16 %v2009
        %v2540 = vunpack.c.h.b16 %v2009
        %v2541 = vunpack.c.l.b16 %v2010
        %v2542 = vunpack.c.h.b16 %v2010
        %v2543 = vunpack.c.l.b16 %v2011
        %v2544 = vunpack.c.h.b16 %v2011
        %v2545 = vunpack.c.l.b16 %v2012
        %v2546 = vunpack.c.h.b16 %v2012
        %v2547 = vunpack.c.l.b16 %v2013
        %v2548 = vunpack.c.h.b16 %v2013
        %v2549 = vunpack.c.l.b16 %v2014
        %v2550 = vunpack.c.h.b16 %v2014
        %v2551 = vunpack.c.l.b16 %v2015
        %v2552 = vunpack.c.h.b16 %v2015
        %v2553 = vunpack.c.l.b16 %v2016
        %v2554 = vunpack.c.h.b16 %v2016
        %v2555 = vunpack.c.l.b16 %v2017
        %v2556 = vunpack.c.h.b16 %v2017
        %v2557 = vunpack.c.l.b16 %v2018
        %v2558 = vunpack.c.h.b16 %v2018
        %v2559 = vunpack.c.l.b16 %v2019
        %v2560 = vunpack.c.h.b16 %v2019
        %v2561 = vunpack.c.l.b16 %v2020
        %v2562 = vunpack.c.h.b16 %v2020
        %v2563 = vunpack.c.l.b16 %v2021
        %v2564 = vunpack.c.h.b16 %v2021
        %v2565 = vunpack.c.l.b16 %v2022
        %v2566 = vunpack.c.h.b16 %v2022
        %v2567 = vunpack.c.l.b16 %v2023
        %v2568 = vunpack.c.h.b16 %v2023
        %v2569 = vunpack.c.l.b16 %v2024
        %v2570 = vunpack.c.h.b16 %v2024
        %v2571 = vunpack.c.l.b16 %v2025
        %v2572 = vunpack.c.h.b16 %v2025
        %v2573 = vunpack.c.l.b16 %v2026
        %v2574 = vunpack.c.h.b16 %v2026
        %v2575 = vunpack.c.l.b16 %v2027
        %v2576 = vunpack.c.h.b16 %v2027
        %v2577 = vunpack.c.l.b16 %v2028
        %v2578 = vunpack.c.h.b16 %v2028
        %v2579 = vunpack.c.l.b16 %v2029
        %v2580 = vunpack.c.h.b16 %v2029
        %v2581 = vunpack.c.l.b16 %v2030
        %v2582 = vunpack.c.h.b16 %v2030
        %v2583 = vunpack.c.l.b16 %v2031
        %v2584 = vunpack.c.h.b16 %v2031
        %v2585 = vunpack.c.l.b16 %v2032
        %v2586 = vunpack.c.h.b16 %v2032
        %v2587 = vunpack.c.l.b16 %v2033
        %v2588 = vunpack.c.h.b16 %v2033
        %v2589 = vunpack.c.l.b16 %v2034
        %v2590 = vunpack.c.h.b16 %v2034
        %v2591 = vunpack.c.l.b16 %v2035
        %v2592 = vunpack.c.h.b16 %v2035
        %v2593 = vunpack.c.l.b16 %v2036
        %v2594 = vunpack.c.h.b16 %v2036
        %v2595 = vunpack.c.l.b16 %v2037
        %v2596 = vunpack.c.h.b16 %v2037
        %v2597 = vunpack.c.l.b16 %v2038
        %v2598 = vunpack.c.h.b16 %v2038
        %v2599 = vunpack.c.l.b16 %v2039
        %v2600 = vunpack.c.h.b16 %v2039
        %v2601 = vunpack.c.l.b16 %v2040
        %v2602 = vunpack.c.h.b16 %v2040
        %v2603 = vunpack.c.l.b16 %v2041
        %v2604 = vunpack.c.h.b16 %v2041
        %v2605 = vunpack.c.l.b16 %v2042
        %v2606 = vunpack.c.h.b16 %v2042
        %v2607 = vunpack.c.l.b16 %v2043
        %v2608 = vunpack.c.h.b16 %v2043
        %v2609 = vunpack.c.l.b16 %v2044
        %v2610 = vunpack.c.h.b16 %v2044
        %v2611 = vunpack.c.l.b16 %v2045
        %v2612 = vunpack.c.h.b16 %v2045
        %v2613 = vunpack.c.l.b16 %v2046
        %v2614 = vunpack.c.h.b16 %v2046
        %v2615 = vunpack.c.l.b16 %v2047
        %v2616 = vunpack.c.h.b16 %v2047
        %v2617 = vunpack.c.l.b16 %v2048
        %v2618 = vunpack.c.h.b16 %v2048
        %v2619 = vunpack.c.l.b16 %v2049
        %v2620 = vunpack.c.h.b16 %v2049
        %v2621 = vunpack.c.l.b16 %v2050
        %v2622 = vunpack.c.h.b16 %v2050
        %v2623 = vunpack.c.l.b16 %v2051
        %v2624 = vunpack.c.h.b16 %v2051
        %v2625 = vunpack.c.l.b16 %v2052
        %v2626 = vunpack.c.h.b16 %v2052
        %v2627 = vunpack.c.l.b16 %v2053
        %v2628 = vunpack.c.h.b16 %v2053
        %v2629 = vunpack.c.l.b16 %v2054
        %v2630 = vunpack.c.h.b16 %v2054
        %v2631 = vunpack.c.l.b16 %v2055
        %v2632 = vunpack.c.h.b16 %v2055
        %v2633 = vunpack.c.l.b16 %v2056
        %v2634 = vunpack.c.h.b16 %v2056
        %v2635 = vunpack.c.l.b16 %v2057
        %v2636 = vunpack.c.h.b16 %v2057
        %v2637 = vunpack.c.l.b16 %v2058
        %v2638 = vunpack.c.h.b16 %v2058
        %v2639 = vunpack.c.l.b16 %v2059
        %v2640 = vunpack.c.h.b16 %v2059
        %v2641 = vunpack.c.l.b16 %v2060
        %v2642 = vunpack.c.h.b16 %v2060
        %v2643 = vunpack.c.l.b16 %v2061
        %v2644 = vunpack.c.h.b16 %v2061
        %v2645 = vunpack.c.l.b16 %v2062
        %v2646 = vunpack.c.h.b16 %v2062
        %v2647 = vunpack.c.l.b16 %v2063
        %v2648 = vunpack.c.h.b16 %v2063
        %v2649 = vunpack.c.l.b16 %v2064
        %v2650 = vunpack.c.h.b16 %v2064
        %v2651 = vunpack.c.l.b16 %v2065
        %v2652 = vunpack.c.h.b16 %v2065
        %v2653 = vunpack.c.l.b16 %v2066
        %v2654 = vunpack.c.h.b16 %v2066
        %v2655 = vunpack.c.l.b16 %v2067
        %v2656 = vunpack.c.h.b16 %v2067
        %v2657 = vunpack.c.l.b16 %v2068
        %v2658 = vunpack.c.h.b16 %v2068
        %v2659 = vunpack.c.l.b16 %v2069
        %v2660 = vunpack.c.h.b16 %v2069
        %v2661 = vunpack.c.l.b16 %v2070
        %v2662 = vunpack.c.h.b16 %v2070
        %v2663 = vunpack.c.l.b16 %v2071
        %v2664 = vunpack.c.h.b16 %v2071
        %v2665 = vunpack.c.l.b16 %v2072
        %v2666 = vunpack.c.h.b16 %v2072
        %v2667 = vunpack.c.l.b16 %v2073
        %v2668 = vunpack.c.h.b16 %v2073
        %v2669 = vunpack.c.l.b16 %v2074
        %v2670 = vunpack.c.h.b16 %v2074
        %v2671 = vunpack.c.l.b16 %v2075
        %v2672 = vunpack.c.h.b16 %v2075
        %v2673 = vunpack.c.l.b16 %v2076
        %v2674 = vunpack.c.h.b16 %v2076
        %v2675 = vunpack.c.l.b16 %v2077
        %v2676 = vunpack.c.h.b16 %v2077
        %v2677 = vunpack.c.l.b16 %v2078
        %v2678 = vunpack.c.h.b16 %v2078
        %v2679 = vunpack.c.l.b16 %v2079
        %v2680 = vunpack.c.h.b16 %v2079
        %v2681 = vunpack.c.l.b16 %v2080
        %v2682 = vunpack.c.h.b16 %v2080
        %v2683 = vunpack.c.l.b16 %v2081
        %v2684 = vunpack.c.h.b16 %v2081
        %v2685 = vunpack.c.l.b16 %v2082
        %v2686 = vunpack.c.h.b16 %v2082
        %v2687 = vunpack.c.l.b16 %v2083
        %v2688 = vunpack.c.h.b16 %v2083
        %v2689 = vunpack.c.l.b16 %v2084
        %v2690 = vunpack.c.h.b16 %v2084
        %v2691 = vunpack.c.l.b16 %v2085
        %v2692 = vunpack.c.h.b16 %v2085
        %v2693 = vunpack.c.l.b16 %v2086
        %v2694 = vunpack.c.h.b16 %v2086
        %v2695 = vpack.c.b16 %v2317, %v2311
        %v2696 = vpack.c.b16 %v2318, %v2312
        %v2697 = vpack.c.b16 %v2319, %v2313
        %v2698 = vpack.c.b16 %v2320, %v2314
        %v2699 = vpack.c.b16 %v2321, %v2315
        %v2700 = vpack.c.b16 %v2322, %v2316
        %v2701 = vpack.c.b16 %v2329, %v2323
        %v2702 = vpack.c.b16 %v2330, %v2324
        %v2703 = vpack.c.b16 %v2331, %v2325
        %v2704 = vpack.c.b16 %v2332, %v2326
        %v2705 = vpack.c.b16 %v2333, %v2327
        %v2706 = vpack.c.b16 %v2334, %v2328
        %v2707 = vpack.c.b16 %v2341, %v2335
        %v2708 = vpack.c.b16 %v2342, %v2336
        %v2709 = vpack.c.b16 %v2343, %v2337
        %v2710 = vpack.c.b16 %v2344, %v2338
        %v2711 = vpack.c.b16 %v2345, %v2339
        %v2712 = vpack.c.b16 %v2346, %v2340
        %v2713 = vpack.c.b16 %v2353, %v2347
        %v2714 = vpack.c.b16 %v2354, %v2348
        %v2715 = vpack.c.b16 %v2355, %v2349
        %v2716 = vpack.c.b16 %v2356, %v2350
        %v2717 = vpack.c.b16 %v2357, %v2351
        %v2718 = vpack.c.b16 %v2358, %v2352
        %v2719 = vpack.c.b16 %v2365, %v2359
        %v2720 = vpack.c.b16 %v2366, %v2360
        %v2721 = vpack.c.b16 %v2367, %v2361
        %v2722 = vpack.c.b16 %v2368, %v2362
        %v2723 = vpack.c.b16 %v2369, %v2363
        %v2724 = vpack.c.b16 %v2370, %v2364
        %v2725 = vpack.c.b16 %v2377, %v2371
        %v2726 = vpack.c.b16 %v2378, %v2372
        %v2727 = vpack.c.b16 %v2379, %v2373
        %v2728 = vpack.c.b16 %v2380, %v2374
        %v2729 = vpack.c.b16 %v2381, %v2375
        %v2730 = vpack.c.b16 %v2382, %v2376
        %v2731 = vpack.c.b16 %v2389, %v2383
        %v2732 = vpack.c.b16 %v2390, %v2384
        %v2733 = vpack.c.b16 %v2391, %v2385
        %v2734 = vpack.c.b16 %v2392, %v2386
        %v2735 = vpack.c.b16 %v2393, %v2387
        %v2736 = vpack.c.b16 %v2394, %v2388
        %v2737 = vpack.c.b16 %v2401, %v2395
        %v2738 = vpack.c.b16 %v2402, %v2396
        %v2739 = vpack.c.b16 %v2403, %v2397
        %v2740 = vpack.c.b16 %v2404, %v2398
        %v2741 = vpack.c.b16 %v2405, %v2399
        %v2742 = vpack.c.b16 %v2406, %v2400
        %v2743 = vpack.c.b16 %v2413, %v2407
        %v2744 = vpack.c.b16 %v2414, %v2408
        %v2745 = vpack.c.b16 %v2415, %v2409
        %v2746 = vpack.c.b16 %v2416, %v2410
        %v2747 = vpack.c.b16 %v2417, %v2411
        %v2748 = vpack.c.b16 %v2418, %v2412
        %v2749 = vpack.c.b16 %v2425, %v2419
        %v2750 = vpack.c.b16 %v2426, %v2420
        %v2751 = vpack.c.b16 %v2427, %v2421
        %v2752 = vpack.c.b16 %v2428, %v2422
        %v2753 = vpack.c.b16 %v2429, %v2423
        %v2754 = vpack.c.b16 %v2430, %v2424
        %v2755 = vpack.c.b16 %v2437, %v2431
        %v2756 = vpack.c.b16 %v2438, %v2432
        %v2757 = vpack.c.b16 %v2439, %v2433
        %v2758 = vpack.c.b16 %v2440, %v2434
        %v2759 = vpack.c.b16 %v2441, %v2435
        %v2760 = vpack.c.b16 %v2442, %v2436
        %v2761 = vpack.c.b16 %v2449, %v2443
        %v2762 = vpack.c.b16 %v2450, %v2444
        %v2763 = vpack.c.b16 %v2451, %v2445
        %v2764 = vpack.c.b16 %v2452, %v2446
        %v2765 = vpack.c.b16 %v2453, %v2447
        %v2766 = vpack.c.b16 %v2454, %v2448
        %v2767 = vpack.c.b16 %v2461, %v2455
        %v2768 = vpack.c.b16 %v2462, %v2456
        %v2769 = vpack.c.b16 %v2463, %v2457
        %v2770 = vpack.c.b16 %v2464, %v2458
        %v2771 = vpack.c.b16 %v2465, %v2459
        %v2772 = vpack.c.b16 %v2466, %v2460
        %v2773 = vpack.c.b16 %v2473, %v2467
        %v2774 = vpack.c.b16 %v2474, %v2468
        %v2775 = vpack.c.b16 %v2475, %v2469
        %v2776 = vpack.c.b16 %v2476, %v2470
        %v2777 = vpack.c.b16 %v2477, %v2471
        %v2778 = vpack.c.b16 %v2478, %v2472
        %v2779 = vpack.c.b16 %v2485, %v2479
        %v2780 = vpack.c.b16 %v2486, %v2480
        %v2781 = vpack.c.b16 %v2487, %v2481
        %v2782 = vpack.c.b16 %v2488, %v2482
        %v2783 = vpack.c.b16 %v2489, %v2483
        %v2784 = vpack.c.b16 %v2490, %v2484
        %v2785 = vpack.c.b16 %v2497, %v2491
        %v2786 = vpack.c.b16 %v2498, %v2492
        %v2787 = vpack.c.b16 %v2499, %v2493
        %v2788 = vpack.c.b16 %v2500, %v2494
        %v2789 = vpack.c.b16 %v2501, %v2495
        %v2790 = vpack.c.b16 %v2502, %v2496
        %v2791 = vpack.c.b16 %v2509, %v2503
        %v2792 = vpack.c.b16 %v2510, %v2504
        %v2793 = vpack.c.b16 %v2511, %v2505
        %v2794 = vpack.c.b16 %v2512, %v2506
        %v2795 = vpack.c.b16 %v2513, %v2507
        %v2796 = vpack.c.b16 %v2514, %v2508
        %v2797 = vpack.c.b16 %v2521, %v2515
        %v2798 = vpack.c.b16 %v2522, %v2516
        %v2799 = vpack.c.b16 %v2523, %v2517
        %v2800 = vpack.c.b16 %v2524, %v2518
        %v2801 = vpack.c.b16 %v2525, %v2519
        %v2802 = vpack.c.b16 %v2526, %v2520
        %v2803 = vpack.c.b16 %v2533, %v2527
        %v2804 = vpack.c.b16 %v2534, %v2528
        %v2805 = vpack.c.b16 %v2535, %v2529
        %v2806 = vpack.c.b16 %v2536, %v2530
        %v2807 = vpack.c.b16 %v2537, %v2531
        %v2808 = vpack.c.b16 %v2538, %v2532
        %v2809 = vpack.c.b16 %v2545, %v2539
        %v2810 = vpack.c.b16 %v2546, %v2540
        %v2811 = vpack.c.b16 %v2547, %v2541
        %v2812 = vpack.c.b16 %v2548, %v2542
        %v2813 = vpack.c.b16 %v2549, %v2543
        %v2814 = vpack.c.b16 %v2550, %v2544
        %v2815 = vpack.c.b16 %v2557, %v2551
        %v2816 = vpack.c.b16 %v2558, %v2552
        %v2817 = vpack.c.b16 %v2559, %v2553
        %v2818 = vpack.c.b16 %v2560, %v2554
        %v2819 = vpack.c.b16 %v2561, %v2555
        %v2820 = vpack.c.b16 %v2562, %v2556
        %v2821 = vpack.c.b16 %v2569, %v2563
        %v2822 = vpack.c.b16 %v2570, %v2564
        %v2823 = vpack.c.b16 %v2571, %v2565
        %v2824 = vpack.c.b16 %v2572, %v2566
        %v2825 = vpack.c.b16 %v2573, %v2567
        %v2826 = vpack.c.b16 %v2574, %v2568
        %v2827 = vpack.c.b16 %v2581, %v2575
        %v2828 = vpack.c.b16 %v2582, %v2576
        %v2829 = vpack.c.b16 %v2583, %v2577
        %v2830 = vpack.c.b16 %v2584, %v2578
        %v2831 = vpack.c.b16 %v2585, %v2579
        %v2832 = vpack.c.b16 %v2586, %v2580
        %v2833 = vpack.c.b16 %v2593, %v2587
        %v2834 = vpack.c.b16 %v2594, %v2588
        %v2835 = vpack.c.b16 %v2595, %v2589
        %v2836 = vpack.c.b16 %v2596, %v2590
        %v2837 = vpack.c.b16 %v2597, %v2591
        %v2838 = vpack.c.b16 %v2598, %v2592
        %v2839 = vpack.c.b16 %v2605, %v2599
        %v2840 = vpack.c.b16 %v2606, %v2600
        %v2841 = vpack.c.b16 %v2607, %v2601
        %v2842 = vpack.c.b16 %v2608, %v2602
        %v2843 = vpack.c.b16 %v2609, %v2603
        %v2844 = vpack.c.b16 %v2610, %v2604
        %v2845 = vpack.c.b16 %v2617, %v2611
        %v2846 = vpack.c.b16 %v2618, %v2612
        %v2847 = vpack.c.b16 %v2619, %v2613
        %v2848 = vpack.c.b16 %v2620, %v2614
        %v2849 = vpack.c.b16 %v2621, %v2615
        %v2850 = vpack.c.b16 %v2622, %v2616
        %v2851 = vpack.c.b16 %v2629, %v2623
        %v2852 = vpack.c.b16 %v2630, %v2624
        %v2853 = vpack.c.b16 %v2631, %v2625
        %v2854 = vpack.c.b16 %v2632, %v2626
        %v2855 = vpack.c.b16 %v2633, %v2627
        %v2856 = vpack.c.b16 %v2634, %v2628
        %v2857 = vpack.c.b16 %v2641, %v2635
        %v2858 = vpack.c.b16 %v2642, %v2636
        %v2859 = vpack.c.b16 %v2643, %v2637
        %v2860 = vpack.c.b16 %v2644, %v2638
        %v2861 = vpack.c.b16 %v2645, %v2639
        %v2862 = vpack.c.b16 %v2646, %v2640
        %v2863 = vpack.c.b16 %v2653, %v2647
        %v2864 = vpack.c.b16 %v2654, %v2648
        %v2865 = vpack.c.b16 %v2655, %v2649
        %v2866 = vpack.c.b16 %v2656, %v2650
        %v2867 = vpack.c.b16 %v2657, %v2651
        %v2868 = vpack.c.b16 %v2658, %v2652
        %v2869 = vpack.c.b16 %v2665, %v2659
        %v2870 = vpack.c.b16 %v2666, %v2660
        %v2871 = vpack.c.b16 %v2667, %v2661
        %v2872 = vpack.c.b16 %v2668, %v2662
        %v2873 = vpack.c.b16 %v2669, %v2663
        %v2874 = vpack.c.b16 %v2670, %v2664
        %v2875 = vpack.c.b16 %v2677, %v2671
        %v2876 = vpack.c.b16 %v2678, %v2672
        %v2877 = vpack.c.b16 %v2679, %v2673
        %v2878 = vpack.c.b16 %v2680, %v2674
        %v2879 = vpack.c.b16 %v2681, %v2675
        %v2880 = vpack.c.b16 %v2682, %v2676
        %v2881 = vpack.c.b16 %v2689, %v2683
        %v2882 = vpack.c.b16 %v2690, %v2684
        %v2883 = vpack.c.b16 %v2691, %v2685
        %v2884 = vpack.c.b16 %v2692, %v2686
        %v2885 = vpack.c.b16 %v2693, %v2687
        %v2886 = vpack.c.b16 %v2694, %v2688
        %3079 = vmatprep.subr.bf16.mxu0 %v2696
        %3080 = vmatpush1.bf16.msra.mxu0 %v2695
        %3081 = vmatprep.subr.bf16.mxu0 %v2702
        %3082 = vmatpush1.bf16.msra.mxu0 %v2701
        %3083 = vmatprep.subr.bf16.mxu0 %v2708
        %3084 = vmatpush1.bf16.msra.mxu0 %v2707
        %3085 = vmatprep.subr.bf16.mxu0 %v2714
        %3086 = vmatpush1.bf16.msra.mxu0 %v2713
        %3087 = vmatprep.subr.bf16.mxu0 %v2720
        %3088 = vmatpush1.bf16.msra.mxu0 %v2719
        %3089 = vmatprep.subr.bf16.mxu0 %v2726
        %3090 = vmatpush1.bf16.msra.mxu0 %v2725
        %3091 = vmatprep.subr.bf16.mxu0 %v2732
        %3092 = vmatpush1.bf16.msra.mxu0 %v2731
        %3093 = vmatprep.subr.bf16.mxu0 %v2738
        %3094 = vmatpush1.bf16.msra.mxu0 %v2737
        %3095 = vmatprep.subr.bf16.mxu0 %v2744
        %3096 = vmatpush1.bf16.msra.mxu0 %v2743
        %3097 = vmatprep.subr.bf16.mxu0 %v2750
        %3098 = vmatpush1.bf16.msra.mxu0 %v2749
        %3099 = vmatprep.subr.bf16.mxu0 %v2756
        %3100 = vmatpush1.bf16.msra.mxu0 %v2755
        %3101 = vmatprep.subr.bf16.mxu0 %v2762
        %3102 = vmatpush1.bf16.msra.mxu0 %v2761
        %3103 = vmatprep.subr.bf16.mxu0 %v2768
        %3104 = vmatpush1.bf16.msra.mxu0 %v2767
        %3105 = vmatprep.subr.bf16.mxu0 %v2774
        %3106 = vmatpush1.bf16.msra.mxu0 %v2773
        %3107 = vmatprep.subr.bf16.mxu0 %v2780
        %3108 = vmatpush1.bf16.msra.mxu0 %v2779
        %3109 = vmatprep.subr.bf16.mxu0 %v2786
        %3110 = vmatpush1.bf16.msra.mxu0 %v2785
        %3111 = vmatprep.mubr.bf16.mxu0 %v1856
        %3112 = vmatmul.mubr.bf16.gmra.mrb[0].mxu0 %v1855
        %v3113 = vpop.f32.mrb[0].mxu0
        %v3114 = vadd.f32 %v2092, %v3113
        %v3115 = vpop.f32.mrb[0].mxu0
        %v3116 = vadd.f32 %v2096, %v3115
        %v3117 = vpop.f32.mrb[0].mxu0
        %v3118 = vadd.f32 %v2092, %v3117
        %v3119 = vpop.f32.mrb[0].mxu0
        %v3120 = vadd.f32 %v2096, %v3119
        %3121 = vmatprep.mubr.bf16.mxu0 %v1860
        %3122 = vmatmul.mubr.bf16.gmra.mrb[0].mxu0 %v1859
        %v3123 = vpop.f32.mrb[0].mxu0
        %v3124 = vadd.f32 %v2092, %v3123
        %v3125 = vpop.f32.mrb[0].mxu0
        %v3126 = vadd.f32 %v2096, %v3125
        %v3127 = vpop.f32.mrb[0].mxu0
        %v3128 = vadd.f32 %v2092, %v3127
        %v3129 = vpop.f32.mrb[0].mxu0
        %v3130 = vadd.f32 %v2096, %v3129
        %3131 = vmatprep.mubr.bf16.mxu0 %v1864
        %3132 = vmatmul.mubr.bf16.gmra.mrb[0].mxu0 %v1863
        %v3133 = vpop.f32.mrb[0].mxu0
        %v3134 = vadd.f32 %v2092, %v3133
        %v3135 = vpop.f32.mrb[0].mxu0
        %v3136 = vadd.f32 %v2096, %v3135
        %v3137 = vpop.f32.mrb[0].mxu0
        %v3138 = vadd.f32 %v2092, %v3137
        %v3139 = vpop.f32.mrb[0].mxu0
        %v3140 = vadd.f32 %v2096, %v3139
        %3141 = vmatprep.mubr.bf16.mxu0 %v1868
        %3142 = vmatmul.mubr.bf16.gmra.mrb[0].mxu0 %v1867
        %v3143 = vpop.f32.mrb[0].mxu0
        %v3144 = vadd.f32 %v2092, %v3143
        %v3145 = vpop.f32.mrb[0].mxu0
        %v3146 = vadd.f32 %v2096, %v3145
        %v3147 = vpop.f32.mrb[0].mxu0
        %v3148 = vadd.f32 %v2092, %v3147
        %v3149 = vpop.f32.mrb[0].mxu0
        %v3150 = vadd.f32 %v2096, %v3149
        %3151 = vmatprep.mubr.bf16.mxu0 %v1872
        %3152 = vmatmul.mubr.bf16.gmra.mrb[0].mxu0 %v1871
        %v3153 = vpop.f32.mrb[0].mxu0
        %v3154 = vadd.f32 %v2092, %v3153
        %v3155 = vpop.f32.mrb[0].mxu0
        %v3156 = vadd.f32 %v2096, %v3155
        %v3157 = vpop.f32.mrb[0].mxu0
        %v3158 = vadd.f32 %v2092, %v3157
        %v3159 = vpop.f32.mrb[0].mxu0
        %v3160 = vadd.f32 %v2096, %v3159
        %3161 = vmatprep.mubr.bf16.mxu0 %v1876
        %3162 = vmatmul.mubr.bf16.gmra.mrb[0].mxu0 %v1875
        %v3163 = vpop.f32.mrb[0].mxu0
        %v3164 = vadd.f32 %v2092, %v3163
        %v3165 = vpop.f32.mrb[0].mxu0
        %v3166 = vadd.f32 %v2096, %v3165
        %v3167 = vpop.f32.mrb[0].mxu0
        %v3168 = vadd.f32 %v2092, %v3167
        %v3169 = vpop.f32.mrb[0].mxu0
        %v3170 = vadd.f32 %v2096, %v3169
        %3171 = vmatprep.mubr.bf16.mxu0 %v1880
        %3172 = vmatmul.mubr.bf16.gmra.mrb[0].mxu0 %v1879
        %v3173 = vpop.f32.mrb[0].mxu0
        %v3174 = vadd.f32 %v2092, %v3173
        %v3175 = vpop.f32.mrb[0].mxu0
        %v3176 = vadd.f32 %v2096, %v3175
        %v3177 = vpop.f32.mrb[0].mxu0
        %v3178 = vadd.f32 %v2092, %v3177
        %v3179 = vpop.f32.mrb[0].mxu0
        %v3180 = vadd.f32 %v2096, %v3179
        %3181 = vmatprep.mubr.bf16.mxu0 %v1884
        %3182 = vmatmul.mubr.bf16.gmra.mrb[0].mxu0 %v1883
        %v3183 = vpop.f32.mrb[0].mxu0
        %v3184 = vadd.f32 %v2092, %v3183
        %v3185 = vpop.f32.mrb[0].mxu0
        %v3186 = vadd.f32 %v2096, %v3185
        %v3187 = vpop.f32.mrb[0].mxu0
        %v3188 = vadd.f32 %v2092, %v3187
        %v3189 = vpop.f32.mrb[0].mxu0
        %v3190 = vadd.f32 %v2096, %v3189
        %3191 = vmatprep.mubr.bf16.mxu0 %v1888
        %3192 = vmatmul.mubr.bf16.gmra.mrb[0].mxu0 %v1887
        %v3193 = vpop.f32.mrb[0].mxu0
        %v3194 = vadd.f32 %v2092, %v3193
        %v3195 = vpop.f32.mrb[0].mxu0
        %v3196 = vadd.f32 %v2096, %v3195
        %v3197 = vpop.f32.mrb[0].mxu0
        %v3198 = vadd.f32 %v2092, %v3197
        %v3199 = vpop.f32.mrb[0].mxu0
        %v3200 = vadd.f32 %v2096, %v3199
        %3201 = vmatprep.mubr.bf16.mxu0 %v1892
        %3202 = vmatmul.mubr.bf16.gmra.mrb[0].mxu0 %v1891
        %v3203 = vpop.f32.mrb[0].mxu0
        %v3204 = vadd.f32 %v2092, %v3203
        %v3205 = vpop.f32.mrb[0].mxu0
        %v3206 = vadd.f32 %v2096, %v3205
        %v3207 = vpop.f32.mrb[0].mxu0
        %v3208 = vpop.f32.mrb[0].mxu0
        %3209 = vdwg.mxu0
        %3210 = vmatprep.subr.bf16.mxu0 %v2792
        %3211 = vmatpush1.bf16.msra.mxu0 %v2791
        %3212 = vmatprep.subr.bf16.mxu0 %v2798
        %3213 = vmatpush1.bf16.msra.mxu0 %v2797
        %3214 = vmatprep.subr.bf16.mxu0 %v2804
        %3215 = vmatpush1.bf16.msra.mxu0 %v2803
        %3216 = vmatprep.subr.bf16.mxu0 %v2810
        %3217 = vmatpush1.bf16.msra.mxu0 %v2809
        %3218 = vmatprep.subr.bf16.mxu0 %v2816
        %3219 = vmatpush1.bf16.msra.mxu0 %v2815
        %3220 = vmatprep.subr.bf16.mxu0 %v2822
        %3221 = vmatpush1.bf16.msra.mxu0 %v2821
        %3222 = vmatprep.subr.bf16.mxu0 %v2828
        %3223 = vmatpush1.bf16.msra.mxu0 %v2827
        %3224 = vmatprep.subr.bf16.mxu0 %v2834
        %3225 = vmatpush1.bf16.msra.mxu0 %v2833
        %3226 = vmatprep.subr.bf16.mxu0 %v2840
        %3227 = vmatpush1.bf16.msra.mxu0 %v2839
        %3228 = vmatprep.subr.bf16.mxu0 %v2846
        %3229 = vmatpush1.bf16.msra.mxu0 %v2845
        %3230 = vmatprep.subr.bf16.mxu0 %v2852
        %3231 = vmatpush1.bf16.msra.mxu0 %v2851
        %3232 = vmatprep.subr.bf16.mxu0 %v2858
        %3233 = vmatpush1.bf16.msra.mxu0 %v2857
        %3234 = vmatprep.subr.bf16.mxu0 %v2864
        %3235 = vmatpush1.bf16.msra.mxu0 %v2863
        %3236 = vmatprep.subr.bf16.mxu0 %v2870
        %3237 = vmatpush1.bf16.msra.mxu0 %v2869
        %3238 = vmatprep.subr.bf16.mxu0 %v2876
        %3239 = vmatpush1.bf16.msra.mxu0 %v2875
        %3240 = vmatprep.subr.bf16.mxu0 %v2882
        %3241 = vmatpush1.bf16.msra.mxu0 %v2881
        %3242 = vmatprep.mubr.bf16.mxu0 %v1858
        %3243 = vmatmul.mubr.bf16.gmra.mrb[0].mxu0 %v1857
        %v3244 = vpop.f32.mrb[0].mxu0
        %v3245 = vadd.f32 %v3114, %v3244
        %v3246 = vpop.f32.mrb[0].mxu0
        %v3247 = vadd.f32 %v3116, %v3246
        %v3248 = vpop.f32.mrb[0].mxu0
        %v3249 = vadd.f32 %v3118, %v3248
        %v3250 = vpop.f32.mrb[0].mxu0
        %v3251 = vadd.f32 %v3120, %v3250
        %3252 = vmatprep.mubr.bf16.mxu0 %v1862
        %3253 = vmatmul.mubr.bf16.gmra.mrb[0].mxu0 %v1861
        %v3254 = vpop.f32.mrb[0].mxu0
        %v3255 = vadd.f32 %v3124, %v3254
        %v3256 = vpop.f32.mrb[0].mxu0
        %v3257 = vadd.f32 %v3126, %v3256
        %v3258 = vpop.f32.mrb[0].mxu0
        %v3259 = vadd.f32 %v3128, %v3258
        %v3260 = vpop.f32.mrb[0].mxu0
        %v3261 = vadd.f32 %v3130, %v3260
        %3262 = vmatprep.mubr.bf16.mxu0 %v1866
        %3263 = vmatmul.mubr.bf16.gmra.mrb[0].mxu0 %v1865
        %v3264 = vpop.f32.mrb[0].mxu0
        %v3265 = vadd.f32 %v3134, %v3264
        %v3266 = vpop.f32.mrb[0].mxu0
        %v3267 = vadd.f32 %v3136, %v3266
        %v3268 = vpop.f32.mrb[0].mxu0
        %v3269 = vadd.f32 %v3138, %v3268
        %v3270 = vpop.f32.mrb[0].mxu0
        %v3271 = vadd.f32 %v3140, %v3270
        %3272 = vmatprep.mubr.bf16.mxu0 %v1870
        %3273 = vmatmul.mubr.bf16.gmra.mrb[0].mxu0 %v1869
        %v3274 = vpop.f32.mrb[0].mxu0
        %v3275 = vadd.f32 %v3144, %v3274
        %v3276 = vpop.f32.mrb[0].mxu0
        %v3277 = vadd.f32 %v3146, %v3276
        %v3278 = vpop.f32.mrb[0].mxu0
        %v3279 = vadd.f32 %v3148, %v3278
        %v3280 = vpop.f32.mrb[0].mxu0
        %v3281 = vadd.f32 %v3150, %v3280
        %3282 = vmatprep.mubr.bf16.mxu0 %v1874
        %3283 = vmatmul.mubr.bf16.gmra.mrb[0].mxu0 %v1873
        %v3284 = vpop.f32.mrb[0].mxu0
        %v3285 = vadd.f32 %v3154, %v3284
        %v3286 = vpop.f32.mrb[0].mxu0
        %v3287 = vadd.f32 %v3156, %v3286
        %v3288 = vpop.f32.mrb[0].mxu0
        %v3289 = vadd.f32 %v3158, %v3288
        %v3290 = vpop.f32.mrb[0].mxu0
        %v3291 = vadd.f32 %v3160, %v3290
        %3292 = vmatprep.mubr.bf16.mxu0 %v1878
        %3293 = vmatmul.mubr.bf16.gmra.mrb[0].mxu0 %v1877
        %v3294 = vpop.f32.mrb[0].mxu0
        %v3295 = vadd.f32 %v3164, %v3294
        %v3296 = vpop.f32.mrb[0].mxu0
        %v3297 = vadd.f32 %v3166, %v3296
        %v3298 = vpop.f32.mrb[0].mxu0
        %v3299 = vadd.f32 %v3168, %v3298
        %v3300 = vpop.f32.mrb[0].mxu0
        %v3301 = vadd.f32 %v3170, %v3300
        %3302 = vmatprep.mubr.bf16.mxu0 %v1882
        %3303 = vmatmul.mubr.bf16.gmra.mrb[0].mxu0 %v1881
        %v3304 = vpop.f32.mrb[0].mxu0
        %v3305 = vadd.f32 %v3174, %v3304
        %v3306 = vpop.f32.mrb[0].mxu0
        %v3307 = vadd.f32 %v3176, %v3306
        %v3308 = vpop.f32.mrb[0].mxu0
        %v3309 = vadd.f32 %v3178, %v3308
        %v3310 = vpop.f32.mrb[0].mxu0
        %v3311 = vadd.f32 %v3180, %v3310
        %3312 = vmatprep.mubr.bf16.mxu0 %v1886
        %3313 = vmatmul.mubr.bf16.gmra.mrb[0].mxu0 %v1885
        %v3314 = vpop.f32.mrb[0].mxu0
        %v3315 = vadd.f32 %v3184, %v3314
        %v3316 = vpop.f32.mrb[0].mxu0
        %v3317 = vadd.f32 %v3186, %v3316
        %v3318 = vpop.f32.mrb[0].mxu0
        %v3319 = vadd.f32 %v3188, %v3318
        %v3320 = vpop.f32.mrb[0].mxu0
        %v3321 = vadd.f32 %v3190, %v3320
        %3322 = vmatprep.mubr.bf16.mxu0 %v1890
        %3323 = vmatmul.mubr.bf16.gmra.mrb[0].mxu0 %v1889
        %v3324 = vpop.f32.mrb[0].mxu0
        %v3325 = vadd.f32 %v3194, %v3324
        %v3326 = vpop.f32.mrb[0].mxu0
        %v3327 = vadd.f32 %v3196, %v3326
        %v3328 = vpop.f32.mrb[0].mxu0
        %v3329 = vadd.f32 %v3198, %v3328
        %v3330 = vpop.f32.mrb[0].mxu0
        %v3331 = vadd.f32 %v3200, %v3330
        %3332 = vmatprep.mubr.bf16.mxu0 %v1894
        %3333 = vmatmul.mubr.bf16.gmra.mrb[0].mxu0 %v1893
        %v3334 = vpop.f32.mrb[0].mxu0
        %v3335 = vadd.f32 %v3204, %v3334
        %v3336 = vpop.f32.mrb[0].mxu0
        %v3337 = vadd.f32 %v3206, %v3336
        %v3338 = vpop.f32.mrb[0].mxu0
        %v3339 = vpop.f32.mrb[0].mxu0
        %3340 = vdwg.mxu0
        %3341 = vmatprep.subr.bf16.mxu0 %v2698
        %3342 = vmatpush1.bf16.msra.mxu0 %v2697
        %3343 = vmatprep.subr.bf16.mxu0 %v2704
        %3344 = vmatpush1.bf16.msra.mxu0 %v2703
        %3345 = vmatprep.subr.bf16.mxu0 %v2710
        %3346 = vmatpush1.bf16.msra.mxu0 %v2709
        %3347 = vmatprep.subr.bf16.mxu0 %v2716
        %3348 = vmatpush1.bf16.msra.mxu0 %v2715
        %3349 = vmatprep.subr.bf16.mxu0 %v2722
        %3350 = vmatpush1.bf16.msra.mxu0 %v2721
        %3351 = vmatprep.subr.bf16.mxu0 %v2728
        %3352 = vmatpush1.bf16.msra.mxu0 %v2727
        %3353 = vmatprep.subr.bf16.mxu0 %v2734
        %3354 = vmatpush1.bf16.msra.mxu0 %v2733
        %3355 = vmatprep.subr.bf16.mxu0 %v2740
        %3356 = vmatpush1.bf16.msra.mxu0 %v2739
        %3357 = vmatprep.subr.bf16.mxu0 %v2746
        %3358 = vmatpush1.bf16.msra.mxu0 %v2745
        %3359 = vmatprep.subr.bf16.mxu0 %v2752
        %3360 = vmatpush1.bf16.msra.mxu0 %v2751
        %3361 = vmatprep.subr.bf16.mxu0 %v2758
        %3362 = vmatpush1.bf16.msra.mxu0 %v2757
        %3363 = vmatprep.subr.bf16.mxu0 %v2764
        %3364 = vmatpush1.bf16.msra.mxu0 %v2763
        %3365 = vmatprep.subr.bf16.mxu0 %v2770
        %3366 = vmatpush1.bf16.msra.mxu0 %v2769
        %3367 = vmatprep.subr.bf16.mxu0 %v2776
        %3368 = vmatpush1.bf16.msra.mxu0 %v2775
        %3369 = vmatprep.subr.bf16.mxu0 %v2782
        %3370 = vmatpush1.bf16.msra.mxu0 %v2781
        %3371 = vmatprep.subr.bf16.mxu0 %v2788
        %3372 = vmatpush1.bf16.msra.mxu0 %v2787
        %3373 = vmatprep.mubr.bf16.mxu0 %v1856
        %3374 = vmatmul.mubr.bf16.gmra.mrb[0].mxu0 %v1855
        %v3375 = vpop.f32.mrb[0].mxu0
        %v3376 = vadd.f32 %v2100, %v3375
        %v3377 = vpop.f32.mrb[0].mxu0
        %v3378 = vadd.f32 %v2104, %v3377
        %v3379 = vpop.f32.mrb[0].mxu0
        %v3380 = vadd.f32 %v2100, %v3379
        %v3381 = vpop.f32.mrb[0].mxu0
        %v3382 = vadd.f32 %v2104, %v3381
        %3383 = vmatprep.mubr.bf16.mxu0 %v1860
        %3384 = vmatmul.mubr.bf16.gmra.mrb[0].mxu0 %v1859
        %v3385 = vpop.f32.mrb[0].mxu0
        %v3386 = vadd.f32 %v2100, %v3385
        %v3387 = vpop.f32.mrb[0].mxu0
        %v3388 = vadd.f32 %v2104, %v3387
        %v3389 = vpop.f32.mrb[0].mxu0
        %v3390 = vadd.f32 %v2100, %v3389
        %v3391 = vpop.f32.mrb[0].mxu0
        %v3392 = vadd.f32 %v2104, %v3391
        %3393 = vmatprep.mubr.bf16.mxu0 %v1864
        %3394 = vmatmul.mubr.bf16.gmra.mrb[0].mxu0 %v1863
        %v3395 = vpop.f32.mrb[0].mxu0
        %v3396 = vadd.f32 %v2100, %v3395
        %v3397 = vpop.f32.mrb[0].mxu0
        %v3398 = vadd.f32 %v2104, %v3397
        %v3399 = vpop.f32.mrb[0].mxu0
        %v3400 = vadd.f32 %v2100, %v3399
        %v3401 = vpop.f32.mrb[0].mxu0
        %v3402 = vadd.f32 %v2104, %v3401
        %3403 = vmatprep.mubr.bf16.mxu0 %v1868
        %3404 = vmatmul.mubr.bf16.gmra.mrb[0].mxu0 %v1867
        %v3405 = vpop.f32.mrb[0].mxu0
        %v3406 = vadd.f32 %v2100, %v3405
        %v3407 = vpop.f32.mrb[0].mxu0
        %v3408 = vadd.f32 %v2104, %v3407
        %v3409 = vpop.f32.mrb[0].mxu0
        %v3410 = vadd.f32 %v2100, %v3409
        %v3411 = vpop.f32.mrb[0].mxu0
        %v3412 = vadd.f32 %v2104, %v3411
        %3413 = vmatprep.mubr.bf16.mxu0 %v1872
        %3414 = vmatmul.mubr.bf16.gmra.mrb[0].mxu0 %v1871
        %v3415 = vpop.f32.mrb[0].mxu0
        %v3416 = vadd.f32 %v2100, %v3415
        %v3417 = vpop.f32.mrb[0].mxu0
        %v3418 = vadd.f32 %v2104, %v3417
        %v3419 = vpop.f32.mrb[0].mxu0
        %v3420 = vadd.f32 %v2100, %v3419
        %v3421 = vpop.f32.mrb[0].mxu0
        %v3422 = vadd.f32 %v2104, %v3421
        %3423 = vmatprep.mubr.bf16.mxu0 %v1876
        %3424 = vmatmul.mubr.bf16.gmra.mrb[0].mxu0 %v1875
        %v3425 = vpop.f32.mrb[0].mxu0
        %v3426 = vadd.f32 %v2100, %v3425
        %v3427 = vpop.f32.mrb[0].mxu0
        %v3428 = vadd.f32 %v2104, %v3427
        %v3429 = vpop.f32.mrb[0].mxu0
        %v3430 = vadd.f32 %v2100, %v3429
        %v3431 = vpop.f32.mrb[0].mxu0
        %v3432 = vadd.f32 %v2104, %v3431
        %3433 = vmatprep.mubr.bf16.mxu0 %v1880
        %3434 = vmatmul.mubr.bf16.gmra.mrb[0].mxu0 %v1879
        %v3435 = vpop.f32.mrb[0].mxu0
        %v3436 = vadd.f32 %v2100, %v3435
        %v3437 = vpop.f32.mrb[0].mxu0
        %v3438 = vadd.f32 %v2104, %v3437
        %v3439 = vpop.f32.mrb[0].mxu0
        %v3440 = vadd.f32 %v2100, %v3439
        %v3441 = vpop.f32.mrb[0].mxu0
        %v3442 = vadd.f32 %v2104, %v3441
        %3443 = vmatprep.mubr.bf16.mxu0 %v1884
        %3444 = vmatmul.mubr.bf16.gmra.mrb[0].mxu0 %v1883
        %v3445 = vpop.f32.mrb[0].mxu0
        %v3446 = vadd.f32 %v2100, %v3445
        %v3447 = vpop.f32.mrb[0].mxu0
        %v3448 = vadd.f32 %v2104, %v3447
        %v3449 = vpop.f32.mrb[0].mxu0
        %v3450 = vadd.f32 %v2100, %v3449
        %v3451 = vpop.f32.mrb[0].mxu0
        %v3452 = vadd.f32 %v2104, %v3451
        %3453 = vmatprep.mubr.bf16.mxu0 %v1888
        %3454 = vmatmul.mubr.bf16.gmra.mrb[0].mxu0 %v1887
        %v3455 = vpop.f32.mrb[0].mxu0
        %v3456 = vadd.f32 %v2100, %v3455
        %v3457 = vpop.f32.mrb[0].mxu0
        %v3458 = vadd.f32 %v2104, %v3457
        %v3459 = vpop.f32.mrb[0].mxu0
        %v3460 = vadd.f32 %v2100, %v3459
        %v3461 = vpop.f32.mrb[0].mxu0
        %v3462 = vadd.f32 %v2104, %v3461
        %3463 = vmatprep.mubr.bf16.mxu0 %v1892
        %3464 = vmatmul.mubr.bf16.gmra.mrb[0].mxu0 %v1891
        %v3465 = vpop.f32.mrb[0].mxu0
        %v3466 = vadd.f32 %v2100, %v3465
        %v3467 = vpop.f32.mrb[0].mxu0
        %v3468 = vadd.f32 %v2104, %v3467
        %v3469 = vpop.f32.mrb[0].mxu0
        %v3470 = vpop.f32.mrb[0].mxu0
        %3471 = vdwg.mxu0
        %3472 = vmatprep.subr.bf16.mxu0 %v2794
        %3473 = vmatpush1.bf16.msra.mxu0 %v2793
        %3474 = vmatprep.subr.bf16.mxu0 %v2800
        %3475 = vmatpush1.bf16.msra.mxu0 %v2799
        %3476 = vmatprep.subr.bf16.mxu0 %v2806
        %3477 = vmatpush1.bf16.msra.mxu0 %v2805
        %3478 = vmatprep.subr.bf16.mxu0 %v2812
        %3479 = vmatpush1.bf16.msra.mxu0 %v2811
        %3480 = vmatprep.subr.bf16.mxu0 %v2818
        %3481 = vmatpush1.bf16.msra.mxu0 %v2817
        %3482 = vmatprep.subr.bf16.mxu0 %v2824
        %3483 = vmatpush1.bf16.msra.mxu0 %v2823
        %3484 = vmatprep.subr.bf16.mxu0 %v2830
        %3485 = vmatpush1.bf16.msra.mxu0 %v2829
        %3486 = vmatprep.subr.bf16.mxu0 %v2836
        %3487 = vmatpush1.bf16.msra.mxu0 %v2835
        %3488 = vmatprep.subr.bf16.mxu0 %v2842
        %3489 = vmatpush1.bf16.msra.mxu0 %v2841
        %3490 = vmatprep.subr.bf16.mxu0 %v2848
        %3491 = vmatpush1.bf16.msra.mxu0 %v2847
        %3492 = vmatprep.subr.bf16.mxu0 %v2854
        %3493 = vmatpush1.bf16.msra.mxu0 %v2853
        %3494 = vmatprep.subr.bf16.mxu0 %v2860
        %3495 = vmatpush1.bf16.msra.mxu0 %v2859
        %3496 = vmatprep.subr.bf16.mxu0 %v2866
        %3497 = vmatpush1.bf16.msra.mxu0 %v2865
        %3498 = vmatprep.subr.bf16.mxu0 %v2872
        %3499 = vmatpush1.bf16.msra.mxu0 %v2871
        %3500 = vmatprep.subr.bf16.mxu0 %v2878
        %3501 = vmatpush1.bf16.msra.mxu0 %v2877
        %3502 = vmatprep.subr.bf16.mxu0 %v2884
        %3503 = vmatpush1.bf16.msra.mxu0 %v2883
        %3504 = vmatprep.mubr.bf16.mxu0 %v1858
        %3505 = vmatmul.mubr.bf16.gmra.mrb[0].mxu0 %v1857
        %v3506 = vpop.f32.mrb[0].mxu0
        %v3507 = vadd.f32 %v3376, %v3506
        %v3508 = vpop.f32.mrb[0].mxu0
        %v3509 = vadd.f32 %v3378, %v3508
        %v3510 = vpop.f32.mrb[0].mxu0
        %v3511 = vadd.f32 %v3380, %v3510
        %v3512 = vpop.f32.mrb[0].mxu0
        %v3513 = vadd.f32 %v3382, %v3512
        %3514 = vmatprep.mubr.bf16.mxu0 %v1862
        %3515 = vmatmul.mubr.bf16.gmra.mrb[0].mxu0 %v1861
        %v3516 = vpop.f32.mrb[0].mxu0
        %v3517 = vadd.f32 %v3386, %v3516
        %v3518 = vpop.f32.mrb[0].mxu0
        %v3519 = vadd.f32 %v3388, %v3518
        %v3520 = vpop.f32.mrb[0].mxu0
        %v3521 = vadd.f32 %v3390, %v3520
        %v3522 = vpop.f32.mrb[0].mxu0
        %v3523 = vadd.f32 %v3392, %v3522
        %3524 = vmatprep.mubr.bf16.mxu0 %v1866
        %3525 = vmatmul.mubr.bf16.gmra.mrb[0].mxu0 %v1865
        %v3526 = vpop.f32.mrb[0].mxu0
        %v3527 = vadd.f32 %v3396, %v3526
        %v3528 = vpop.f32.mrb[0].mxu0
        %v3529 = vadd.f32 %v3398, %v3528
        %v3530 = vpop.f32.mrb[0].mxu0
        %v3531 = vadd.f32 %v3400, %v3530
        %v3532 = vpop.f32.mrb[0].mxu0
        %v3533 = vadd.f32 %v3402, %v3532
        %3534 = vmatprep.mubr.bf16.mxu0 %v1870
        %3535 = vmatmul.mubr.bf16.gmra.mrb[0].mxu0 %v1869
        %v3536 = vpop.f32.mrb[0].mxu0
        %v3537 = vadd.f32 %v3406, %v3536
        %v3538 = vpop.f32.mrb[0].mxu0
        %v3539 = vadd.f32 %v3408, %v3538
        %v3540 = vpop.f32.mrb[0].mxu0
        %v3541 = vadd.f32 %v3410, %v3540
        %v3542 = vpop.f32.mrb[0].mxu0
        %v3543 = vadd.f32 %v3412, %v3542
        %3544 = vmatprep.mubr.bf16.mxu0 %v1874
        %3545 = vmatmul.mubr.bf16.gmra.mrb[0].mxu0 %v1873
        %v3546 = vpop.f32.mrb[0].mxu0
        %v3547 = vadd.f32 %v3416, %v3546
        %v3548 = vpop.f32.mrb[0].mxu0
        %v3549 = vadd.f32 %v3418, %v3548
        %v3550 = vpop.f32.mrb[0].mxu0
        %v3551 = vadd.f32 %v3420, %v3550
        %v3552 = vpop.f32.mrb[0].mxu0
        %v3553 = vadd.f32 %v3422, %v3552
        %3554 = vmatprep.mubr.bf16.mxu0 %v1878
        %3555 = vmatmul.mubr.bf16.gmra.mrb[0].mxu0 %v1877
        %v3556 = vpop.f32.mrb[0].mxu0
        %v3557 = vadd.f32 %v3426, %v3556
        %v3558 = vpop.f32.mrb[0].mxu0
        %v3559 = vadd.f32 %v3428, %v3558
        %v3560 = vpop.f32.mrb[0].mxu0
        %v3561 = vadd.f32 %v3430, %v3560
        %v3562 = vpop.f32.mrb[0].mxu0
        %v3563 = vadd.f32 %v3432, %v3562
        %3564 = vmatprep.mubr.bf16.mxu0 %v1882
        %3565 = vmatmul.mubr.bf16.gmra.mrb[0].mxu0 %v1881
        %v3566 = vpop.f32.mrb[0].mxu0
        %v3567 = vadd.f32 %v3436, %v3566
        %v3568 = vpop.f32.mrb[0].mxu0
        %v3569 = vadd.f32 %v3438, %v3568
        %v3570 = vpop.f32.mrb[0].mxu0
        %v3571 = vadd.f32 %v3440, %v3570
        %v3572 = vpop.f32.mrb[0].mxu0
        %v3573 = vadd.f32 %v3442, %v3572
        %3574 = vmatprep.mubr.bf16.mxu0 %v1886
        %3575 = vmatmul.mubr.bf16.gmra.mrb[0].mxu0 %v1885
        %v3576 = vpop.f32.mrb[0].mxu0
        %v3577 = vadd.f32 %v3446, %v3576
        %v3578 = vpop.f32.mrb[0].mxu0
        %v3579 = vadd.f32 %v3448, %v3578
        %v3580 = vpop.f32.mrb[0].mxu0
        %v3581 = vadd.f32 %v3450, %v3580
        %v3582 = vpop.f32.mrb[0].mxu0
        %v3583 = vadd.f32 %v3452, %v3582
        %3584 = vmatprep.mubr.bf16.mxu0 %v1890
        %3585 = vmatmul.mubr.bf16.gmra.mrb[0].mxu0 %v1889
        %v3586 = vpop.f32.mrb[0].mxu0
        %v3587 = vadd.f32 %v3456, %v3586
        %v3588 = vpop.f32.mrb[0].mxu0
        %v3589 = vadd.f32 %v3458, %v3588
        %v3590 = vpop.f32.mrb[0].mxu0
        %v3591 = vadd.f32 %v3460, %v3590
        %v3592 = vpop.f32.mrb[0].mxu0
        %v3593 = vadd.f32 %v3462, %v3592
        %3594 = vmatprep.mubr.bf16.mxu0 %v1894
        %3595 = vmatmul.mubr.bf16.gmra.mrb[0].mxu0 %v1893
        %v3596 = vpop.f32.mrb[0].mxu0
        %v3597 = vadd.f32 %v3466, %v3596
        %v3598 = vpop.f32.mrb[0].mxu0
        %v3599 = vadd.f32 %v3468, %v3598
        %v3600 = vpop.f32.mrb[0].mxu0
        %v3601 = vpop.f32.mrb[0].mxu0
        %3602 = vdwg.mxu0
        %3603 = vmatprep.subr.bf16.mxu0 %v2700
        %3604 = vmatpush1.bf16.msra.mxu0 %v2699
        %3605 = vmatprep.subr.bf16.mxu0 %v2706
        %3606 = vmatpush1.bf16.msra.mxu0 %v2705
        %3607 = vmatprep.subr.bf16.mxu0 %v2712
        %3608 = vmatpush1.bf16.msra.mxu0 %v2711
        %3609 = vmatprep.subr.bf16.mxu0 %v2718
        %3610 = vmatpush1.bf16.msra.mxu0 %v2717
        %3611 = vmatprep.subr.bf16.mxu0 %v2724
        %3612 = vmatpush1.bf16.msra.mxu0 %v2723
        %3613 = vmatprep.subr.bf16.mxu0 %v2730
        %3614 = vmatpush1.bf16.msra.mxu0 %v2729
        %3615 = vmatprep.subr.bf16.mxu0 %v2736
        %3616 = vmatpush1.bf16.msra.mxu0 %v2735
        %3617 = vmatprep.subr.bf16.mxu0 %v2742
        %3618 = vmatpush1.bf16.msra.mxu0 %v2741
        %3619 = vmatprep.subr.bf16.mxu0 %v2748
        %3620 = vmatpush1.bf16.msra.mxu0 %v2747
        %3621 = vmatprep.subr.bf16.mxu0 %v2754
        %3622 = vmatpush1.bf16.msra.mxu0 %v2753
        %3623 = vmatprep.subr.bf16.mxu0 %v2760
        %3624 = vmatpush1.bf16.msra.mxu0 %v2759
        %3625 = vmatprep.subr.bf16.mxu0 %v2766
        %3626 = vmatpush1.bf16.msra.mxu0 %v2765
        %3627 = vmatprep.subr.bf16.mxu0 %v2772
        %3628 = vmatpush1.bf16.msra.mxu0 %v2771
        %3629 = vmatprep.subr.bf16.mxu0 %v2778
        %3630 = vmatpush1.bf16.msra.mxu0 %v2777
        %3631 = vmatprep.subr.bf16.mxu0 %v2784
        %3632 = vmatpush1.bf16.msra.mxu0 %v2783
        %3633 = vmatprep.subr.bf16.mxu0 %v2790
        %3634 = vmatpush1.bf16.msra.mxu0 %v2789
        %3635 = vmatprep.mubr.bf16.mxu0 %v1856
        %3636 = vmatmul.mubr.bf16.gmra.mrb[0].mxu0 %v1855
        %v3637 = vpop.f32.mrb[0].mxu0
        %v3638 = vadd.f32 %v2108, %v3637
        %v3639 = vpop.f32.mrb[0].mxu0
        %v3640 = vadd.f32 %v2112, %v3639
        %v3641 = vpop.f32.mrb[0].mxu0
        %v3642 = vadd.f32 %v2108, %v3641
        %v3643 = vpop.f32.mrb[0].mxu0
        %v3644 = vadd.f32 %v2112, %v3643
        %3645 = vmatprep.mubr.bf16.mxu0 %v1860
        %3646 = vmatmul.mubr.bf16.gmra.mrb[0].mxu0 %v1859
        %v3647 = vpop.f32.mrb[0].mxu0
        %v3648 = vadd.f32 %v2108, %v3647
        %v3649 = vpop.f32.mrb[0].mxu0
        %v3650 = vadd.f32 %v2112, %v3649
        %v3651 = vpop.f32.mrb[0].mxu0
        %v3652 = vadd.f32 %v2108, %v3651
        %v3653 = vpop.f32.mrb[0].mxu0
        %v3654 = vadd.f32 %v2112, %v3653
        %3655 = vmatprep.mubr.bf16.mxu0 %v1864
        %3656 = vmatmul.mubr.bf16.gmra.mrb[0].mxu0 %v1863
        %v3657 = vpop.f32.mrb[0].mxu0
        %v3658 = vadd.f32 %v2108, %v3657
        %v3659 = vpop.f32.mrb[0].mxu0
        %v3660 = vadd.f32 %v2112, %v3659
        %v3661 = vpop.f32.mrb[0].mxu0
        %v3662 = vadd.f32 %v2108, %v3661
        %v3663 = vpop.f32.mrb[0].mxu0
        %v3664 = vadd.f32 %v2112, %v3663
        %3665 = vmatprep.mubr.bf16.mxu0 %v1868
        %3666 = vmatmul.mubr.bf16.gmra.mrb[0].mxu0 %v1867
        %v3667 = vpop.f32.mrb[0].mxu0
        %v3668 = vadd.f32 %v2108, %v3667
        %v3669 = vpop.f32.mrb[0].mxu0
        %v3670 = vadd.f32 %v2112, %v3669
        %v3671 = vpop.f32.mrb[0].mxu0
        %v3672 = vadd.f32 %v2108, %v3671
        %v3673 = vpop.f32.mrb[0].mxu0
        %v3674 = vadd.f32 %v2112, %v3673
        %3675 = vmatprep.mubr.bf16.mxu0 %v1872
        %3676 = vmatmul.mubr.bf16.gmra.mrb[0].mxu0 %v1871
        %v3677 = vpop.f32.mrb[0].mxu0
        %v3678 = vadd.f32 %v2108, %v3677
        %v3679 = vpop.f32.mrb[0].mxu0
        %v3680 = vadd.f32 %v2112, %v3679
        %v3681 = vpop.f32.mrb[0].mxu0
        %v3682 = vadd.f32 %v2108, %v3681
        %v3683 = vpop.f32.mrb[0].mxu0
        %v3684 = vadd.f32 %v2112, %v3683
        %3685 = vmatprep.mubr.bf16.mxu0 %v1876
        %3686 = vmatmul.mubr.bf16.gmra.mrb[0].mxu0 %v1875
        %v3687 = vpop.f32.mrb[0].mxu0
        %v3688 = vadd.f32 %v2108, %v3687
        %v3689 = vpop.f32.mrb[0].mxu0
        %v3690 = vadd.f32 %v2112, %v3689
        %v3691 = vpop.f32.mrb[0].mxu0
        %v3692 = vadd.f32 %v2108, %v3691
        %v3693 = vpop.f32.mrb[0].mxu0
        %v3694 = vadd.f32 %v2112, %v3693
        %3695 = vmatprep.mubr.bf16.mxu0 %v1880
        %3696 = vmatmul.mubr.bf16.gmra.mrb[0].mxu0 %v1879
        %v3697 = vpop.f32.mrb[0].mxu0
        %v3698 = vadd.f32 %v2108, %v3697
        %v3699 = vpop.f32.mrb[0].mxu0
        %v3700 = vadd.f32 %v2112, %v3699
        %v3701 = vpop.f32.mrb[0].mxu0
        %v3702 = vadd.f32 %v2108, %v3701
        %v3703 = vpop.f32.mrb[0].mxu0
        %v3704 = vadd.f32 %v2112, %v3703
        %3705 = vmatprep.mubr.bf16.mxu0 %v1884
        %3706 = vmatmul.mubr.bf16.gmra.mrb[0].mxu0 %v1883
        %v3707 = vpop.f32.mrb[0].mxu0
        %v3708 = vadd.f32 %v2108, %v3707
        %v3709 = vpop.f32.mrb[0].mxu0
        %v3710 = vadd.f32 %v2112, %v3709
        %v3711 = vpop.f32.mrb[0].mxu0
        %v3712 = vadd.f32 %v2108, %v3711
        %v3713 = vpop.f32.mrb[0].mxu0
        %v3714 = vadd.f32 %v2112, %v3713
        %3715 = vmatprep.mubr.bf16.mxu0 %v1888
        %3716 = vmatmul.mubr.bf16.gmra.mrb[0].mxu0 %v1887
        %v3717 = vpop.f32.mrb[0].mxu0
        %v3718 = vadd.f32 %v2108, %v3717
        %v3719 = vpop.f32.mrb[0].mxu0
        %v3720 = vadd.f32 %v2112, %v3719
        %v3721 = vpop.f32.mrb[0].mxu0
        %v3722 = vadd.f32 %v2108, %v3721
        %v3723 = vpop.f32.mrb[0].mxu0
        %v3724 = vadd.f32 %v2112, %v3723
        %3725 = vmatprep.mubr.bf16.mxu0 %v1892
        %3726 = vmatmul.mubr.bf16.gmra.mrb[0].mxu0 %v1891
        %v3727 = vpop.f32.mrb[0].mxu0
        %v3728 = vadd.f32 %v2108, %v3727
        %v3729 = vpop.f32.mrb[0].mxu0
        %v3730 = vadd.f32 %v2112, %v3729
        %v3731 = vpop.f32.mrb[0].mxu0
        %v3732 = vpop.f32.mrb[0].mxu0
        %3733 = vdwg.mxu0
        %3734 = vmatprep.subr.bf16.mxu0 %v2796
        %3735 = vmatpush1.bf16.msra.mxu0 %v2795
        %3736 = vmatprep.subr.bf16.mxu0 %v2802
        %3737 = vmatpush1.bf16.msra.mxu0 %v2801
        %3738 = vmatprep.subr.bf16.mxu0 %v2808
        %3739 = vmatpush1.bf16.msra.mxu0 %v2807
        %3740 = vmatprep.subr.bf16.mxu0 %v2814
        %3741 = vmatpush1.bf16.msra.mxu0 %v2813
        %3742 = vmatprep.subr.bf16.mxu0 %v2820
        %3743 = vmatpush1.bf16.msra.mxu0 %v2819
        %3744 = vmatprep.subr.bf16.mxu0 %v2826
        %3745 = vmatpush1.bf16.msra.mxu0 %v2825
        %3746 = vmatprep.subr.bf16.mxu0 %v2832
        %3747 = vmatpush1.bf16.msra.mxu0 %v2831
        %3748 = vmatprep.subr.bf16.mxu0 %v2838
        %3749 = vmatpush1.bf16.msra.mxu0 %v2837
        %3750 = vmatprep.subr.bf16.mxu0 %v2844
        %3751 = vmatpush1.bf16.msra.mxu0 %v2843
        %3752 = vmatprep.subr.bf16.mxu0 %v2850
        %3753 = vmatpush1.bf16.msra.mxu0 %v2849
        %3754 = vmatprep.subr.bf16.mxu0 %v2856
        %3755 = vmatpush1.bf16.msra.mxu0 %v2855
        %3756 = vmatprep.subr.bf16.mxu0 %v2862
        %3757 = vmatpush1.bf16.msra.mxu0 %v2861
        %3758 = vmatprep.subr.bf16.mxu0 %v2868
        %3759 = vmatpush1.bf16.msra.mxu0 %v2867
        %3760 = vmatprep.subr.bf16.mxu0 %v2874
        %3761 = vmatpush1.bf16.msra.mxu0 %v2873
        %3762 = vmatprep.subr.bf16.mxu0 %v2880
        %3763 = vmatpush1.bf16.msra.mxu0 %v2879
        %3764 = vmatprep.subr.bf16.mxu0 %v2886
        %3765 = vmatpush1.bf16.msra.mxu0 %v2885
        %3766 = vmatprep.mubr.bf16.mxu0 %v1858
        %3767 = vmatmul.mubr.bf16.gmra.mrb[0].mxu0 %v1857
        %v3768 = vpop.f32.mrb[0].mxu0
        %v3769 = vadd.f32 %v3638, %v3768
        %v3770 = vpop.f32.mrb[0].mxu0
        %v3771 = vadd.f32 %v3640, %v3770
        %v3772 = vpop.f32.mrb[0].mxu0
        %v3773 = vadd.f32 %v3642, %v3772
        %v3774 = vpop.f32.mrb[0].mxu0
        %v3775 = vadd.f32 %v3644, %v3774
        %3776 = vmatprep.mubr.bf16.mxu0 %v1862
        %3777 = vmatmul.mubr.bf16.gmra.mrb[0].mxu0 %v1861
        %v3778 = vpop.f32.mrb[0].mxu0
        %v3779 = vadd.f32 %v3648, %v3778
        %v3780 = vpop.f32.mrb[0].mxu0
        %v3781 = vadd.f32 %v3650, %v3780
        %v3782 = vpop.f32.mrb[0].mxu0
        %v3783 = vadd.f32 %v3652, %v3782
        %v3784 = vpop.f32.mrb[0].mxu0
        %v3785 = vadd.f32 %v3654, %v3784
        %3786 = vmatprep.mubr.bf16.mxu0 %v1866
        %3787 = vmatmul.mubr.bf16.gmra.mrb[0].mxu0 %v1865
        %v3788 = vpop.f32.mrb[0].mxu0
        %v3789 = vadd.f32 %v3658, %v3788
        %v3790 = vpop.f32.mrb[0].mxu0
        %v3791 = vadd.f32 %v3660, %v3790
        %v3792 = vpop.f32.mrb[0].mxu0
        %v3793 = vadd.f32 %v3662, %v3792
        %v3794 = vpop.f32.mrb[0].mxu0
        %v3795 = vadd.f32 %v3664, %v3794
        %3796 = vmatprep.mubr.bf16.mxu0 %v1870
        %3797 = vmatmul.mubr.bf16.gmra.mrb[0].mxu0 %v1869
        %v3798 = vpop.f32.mrb[0].mxu0
        %v3799 = vadd.f32 %v3668, %v3798
        %v3800 = vpop.f32.mrb[0].mxu0
        %v3801 = vadd.f32 %v3670, %v3800
        %v3802 = vpop.f32.mrb[0].mxu0
        %v3803 = vadd.f32 %v3672, %v3802
        %v3804 = vpop.f32.mrb[0].mxu0
        %v3805 = vadd.f32 %v3674, %v3804
        %3806 = vmatprep.mubr.bf16.mxu0 %v1874
        %3807 = vmatmul.mubr.bf16.gmra.mrb[0].mxu0 %v1873
        %v3808 = vpop.f32.mrb[0].mxu0
        %v3809 = vadd.f32 %v3678, %v3808
        %v3810 = vpop.f32.mrb[0].mxu0
        %v3811 = vadd.f32 %v3680, %v3810
        %v3812 = vpop.f32.mrb[0].mxu0
        %v3813 = vadd.f32 %v3682, %v3812
        %v3814 = vpop.f32.mrb[0].mxu0
        %v3815 = vadd.f32 %v3684, %v3814
        %3816 = vmatprep.mubr.bf16.mxu0 %v1878
        %3817 = vmatmul.mubr.bf16.gmra.mrb[0].mxu0 %v1877
        %v3818 = vpop.f32.mrb[0].mxu0
        %v3819 = vadd.f32 %v3688, %v3818
        %v3820 = vpop.f32.mrb[0].mxu0
        %v3821 = vadd.f32 %v3690, %v3820
        %v3822 = vpop.f32.mrb[0].mxu0
        %v3823 = vadd.f32 %v3692, %v3822
        %v3824 = vpop.f32.mrb[0].mxu0
        %v3825 = vadd.f32 %v3694, %v3824
        %3826 = vmatprep.mubr.bf16.mxu0 %v1882
        %3827 = vmatmul.mubr.bf16.gmra.mrb[0].mxu0 %v1881
        %v3828 = vpop.f32.mrb[0].mxu0
        %v3829 = vadd.f32 %v3698, %v3828
        %v3830 = vpop.f32.mrb[0].mxu0
        %v3831 = vadd.f32 %v3700, %v3830
        %v3832 = vpop.f32.mrb[0].mxu0
        %v3833 = vadd.f32 %v3702, %v3832
        %v3834 = vpop.f32.mrb[0].mxu0
        %v3835 = vadd.f32 %v3704, %v3834
        %3836 = vmatprep.mubr.bf16.mxu0 %v1886
        %3837 = vmatmul.mubr.bf16.gmra.mrb[0].mxu0 %v1885
        %v3838 = vpop.f32.mrb[0].mxu0
        %v3839 = vadd.f32 %v3708, %v3838
        %v3840 = vpop.f32.mrb[0].mxu0
        %v3841 = vadd.f32 %v3710, %v3840
        %v3842 = vpop.f32.mrb[0].mxu0
        %v3843 = vadd.f32 %v3712, %v3842
        %v3844 = vpop.f32.mrb[0].mxu0
        %v3845 = vadd.f32 %v3714, %v3844
        %3846 = vmatprep.mubr.bf16.mxu0 %v1890
        %3847 = vmatmul.mubr.bf16.gmra.mrb[0].mxu0 %v1889
        %v3848 = vpop.f32.mrb[0].mxu0
        %v3849 = vadd.f32 %v3718, %v3848
        %v3850 = vpop.f32.mrb[0].mxu0
        %v3851 = vadd.f32 %v3720, %v3850
        %v3852 = vpop.f32.mrb[0].mxu0
        %v3853 = vadd.f32 %v3722, %v3852
        %v3854 = vpop.f32.mrb[0].mxu0
        %v3855 = vadd.f32 %v3724, %v3854
        %3856 = vmatprep.mubr.bf16.mxu0 %v1894
        %3857 = vmatmul.mubr.bf16.gmra.mrb[0].mxu0 %v1893
        %v3858 = vpop.f32.mrb[0].mxu0
        %v3859 = vadd.f32 %v3728, %v3858
        %v3860 = vpop.f32.mrb[0].mxu0
        %v3861 = vadd.f32 %v3730, %v3860
        %v3862 = vpop.f32.mrb[0].mxu0
        %v3863 = vpop.f32.mrb[0].mxu0
        %3864 = vdwg.mxu0
        %v3865 = vmul.f32 %v3245, 0.5
        %v3866 = vmul.f32 %v3247, 0.5
        %v3867 = vmul.f32 %v3507, 0.5
        %v3868 = vmul.f32 %v3249, 0.5
        %v3869 = vmul.f32 %v3251, 0.5
        %v3870 = vmul.f32 %v3511, 0.5
        %v3871 = vmul.f32 %v3255, 0.5
        %v3872 = vmul.f32 %v3257, 0.5
        %v3873 = vmul.f32 %v3517, 0.5
        %v3874 = vmul.f32 %v3259, 0.5
        %v3875 = vmul.f32 %v3261, 0.5
        %v3876 = vmul.f32 %v3521, 0.5
        %v3877 = vmul.f32 %v3265, 0.5
        %v3878 = vmul.f32 %v3267, 0.5
        %v3879 = vmul.f32 %v3527, 0.5
        %v3880 = vmul.f32 %v3269, 0.5
        %v3881 = vmul.f32 %v3271, 0.5
        %v3882 = vmul.f32 %v3531, 0.5
        %v3883 = vmul.f32 %v3275, 0.5
        %v3884 = vmul.f32 %v3277, 0.5
        %v3885 = vmul.f32 %v3537, 0.5
        %v3886 = vmul.f32 %v3279, 0.5
        %v3887 = vmul.f32 %v3281, 0.5
        %v3888 = vmul.f32 %v3541, 0.5
        %v3889 = vmul.f32 %v3285, 0.5
        %v3890 = vmul.f32 %v3287, 0.5
        %v3891 = vmul.f32 %v3547, 0.5
        %v3892 = vmul.f32 %v3289, 0.5
        %v3893 = vmul.f32 %v3291, 0.5
        %v3894 = vmul.f32 %v3551, 0.5
        %v3895 = vmul.f32 %v3295, 0.5
        %v3896 = vmul.f32 %v3297, 0.5
        %v3897 = vmul.f32 %v3557, 0.5
        %v3898 = vmul.f32 %v3299, 0.5
        %v3899 = vmul.f32 %v3301, 0.5
        %v3900 = vmul.f32 %v3561, 0.5
        %v3901 = vmul.f32 %v3305, 0.5
        %v3902 = vmul.f32 %v3307, 0.5
        %v3903 = vmul.f32 %v3567, 0.5
        %v3904 = vmul.f32 %v3309, 0.5
        %v3905 = vmul.f32 %v3311, 0.5
        %v3906 = vmul.f32 %v3571, 0.5
        %v3907 = vmul.f32 %v3315, 0.5
        %v3908 = vmul.f32 %v3317, 0.5
        %v3909 = vmul.f32 %v3577, 0.5
        %v3910 = vmul.f32 %v3319, 0.5
        %v3911 = vmul.f32 %v3321, 0.5
        %v3912 = vmul.f32 %v3581, 0.5
        %v3913 = vmul.f32 %v3325, 0.5
        %v3914 = vmul.f32 %v3327, 0.5
        %v3915 = vmul.f32 %v3587, 0.5
        %v3916 = vmul.f32 %v3329, 0.5
        %v3917 = vmul.f32 %v3331, 0.5
        %v3918 = vmul.f32 %v3591, 0.5
        %v3919 = vmul.f32 %v3335, 0.5
        %v3920 = vmul.f32 %v3337, 0.5
        %v3921 = vmul.f32 %v3597, 0.5
        %v3922 = vmul.f32 %v3245, %v3245
        %v3923 = vmul.f32 %v3247, %v3247
        %v3924 = vmul.f32 %v3507, %v3507
        %v3925 = vmul.f32 %v3249, %v3249
        %v3926 = vmul.f32 %v3251, %v3251
        %v3927 = vmul.f32 %v3511, %v3511
        %v3928 = vmul.f32 %v3255, %v3255
        %v3929 = vmul.f32 %v3257, %v3257
        %v3930 = vmul.f32 %v3517, %v3517
        %v3931 = vmul.f32 %v3259, %v3259
        %v3932 = vmul.f32 %v3261, %v3261
        %v3933 = vmul.f32 %v3521, %v3521
        %v3934 = vmul.f32 %v3265, %v3265
        %v3935 = vmul.f32 %v3267, %v3267
        %v3936 = vmul.f32 %v3527, %v3527
        %v3937 = vmul.f32 %v3269, %v3269
        %v3938 = vmul.f32 %v3271, %v3271
        %v3939 = vmul.f32 %v3531, %v3531
        %v3940 = vmul.f32 %v3275, %v3275
        %v3941 = vmul.f32 %v3277, %v3277
        %v3942 = vmul.f32 %v3537, %v3537
        %v3943 = vmul.f32 %v3279, %v3279
        %v3944 = vmul.f32 %v3281, %v3281
        %v3945 = vmul.f32 %v3541, %v3541
        %v3946 = vmul.f32 %v3285, %v3285
        %v3947 = vmul.f32 %v3287, %v3287
        %v3948 = vmul.f32 %v3547, %v3547
        %v3949 = vmul.f32 %v3289, %v3289
        %v3950 = vmul.f32 %v3291, %v3291
        %v3951 = vmul.f32 %v3551, %v3551
        %v3952 = vmul.f32 %v3295, %v3295
        %v3953 = vmul.f32 %v3297, %v3297
        %v3954 = vmul.f32 %v3557, %v3557
        %v3955 = vmul.f32 %v3299, %v3299
        %v3956 = vmul.f32 %v3301, %v3301
        %v3957 = vmul.f32 %v3561, %v3561
        %v3958 = vmul.f32 %v3305, %v3305
        %v3959 = vmul.f32 %v3307, %v3307
        %v3960 = vmul.f32 %v3567, %v3567
        %v3961 = vmul.f32 %v3309, %v3309
        %v3962 = vmul.f32 %v3311, %v3311
        %v3963 = vmul.f32 %v3571, %v3571
        %v3964 = vmul.f32 %v3315, %v3315
        %v3965 = vmul.f32 %v3317, %v3317
        %v3966 = vmul.f32 %v3577, %v3577
        %v3967 = vmul.f32 %v3319, %v3319
        %v3968 = vmul.f32 %v3321, %v3321
        %v3969 = vmul.f32 %v3581, %v3581
        %v3970 = vmul.f32 %v3325, %v3325
        %v3971 = vmul.f32 %v3327, %v3327
        %v3972 = vmul.f32 %v3587, %v3587
        %v3973 = vmul.f32 %v3329, %v3329
        %v3974 = vmul.f32 %v3331, %v3331
        %v3975 = vmul.f32 %v3591, %v3591
        %v3976 = vmul.f32 %v3335, %v3335
        %v3977 = vmul.f32 %v3337, %v3337
        %v3978 = vmul.f32 %v3597, %v3597
        %v3979 = vmul.f32 %v3922, %v3245
        %v3980 = vmul.f32 %v3923, %v3247
        %v3981 = vmul.f32 %v3924, %v3507
        %v3982 = vmul.f32 %v3925, %v3249
        %v3983 = vmul.f32 %v3926, %v3251
        %v3984 = vmul.f32 %v3927, %v3511
        %v3985 = vmul.f32 %v3928, %v3255
        %v3986 = vmul.f32 %v3929, %v3257
        %v3987 = vmul.f32 %v3930, %v3517
        %v3988 = vmul.f32 %v3931, %v3259
        %v3989 = vmul.f32 %v3932, %v3261
        %v3990 = vmul.f32 %v3933, %v3521
        %v3991 = vmul.f32 %v3934, %v3265
        %v3992 = vmul.f32 %v3935, %v3267
        %v3993 = vmul.f32 %v3936, %v3527
        %v3994 = vmul.f32 %v3937, %v3269
        %v3995 = vmul.f32 %v3938, %v3271
        %v3996 = vmul.f32 %v3939, %v3531
        %v3997 = vmul.f32 %v3940, %v3275
        %v3998 = vmul.f32 %v3941, %v3277
        %v3999 = vmul.f32 %v3942, %v3537
        %v4000 = vmul.f32 %v3943, %v3279
        %v4001 = vmul.f32 %v3944, %v3281
        %v4002 = vmul.f32 %v3945, %v3541
        %v4003 = vmul.f32 %v3946, %v3285
        %v4004 = vmul.f32 %v3947, %v3287
        %v4005 = vmul.f32 %v3948, %v3547
        %v4006 = vmul.f32 %v3949, %v3289
        %v4007 = vmul.f32 %v3950, %v3291
        %v4008 = vmul.f32 %v3951, %v3551
        %v4009 = vmul.f32 %v3952, %v3295
        %v4010 = vmul.f32 %v3953, %v3297
        %v4011 = vmul.f32 %v3954, %v3557
        %v4012 = vmul.f32 %v3955, %v3299
        %v4013 = vmul.f32 %v3956, %v3301
        %v4014 = vmul.f32 %v3957, %v3561
        %v4015 = vmul.f32 %v3958, %v3305
        %v4016 = vmul.f32 %v3959, %v3307
        %v4017 = vmul.f32 %v3960, %v3567
        %v4018 = vmul.f32 %v3961, %v3309
        %v4019 = vmul.f32 %v3962, %v3311
        %v4020 = vmul.f32 %v3963, %v3571
        %v4021 = vmul.f32 %v3964, %v3315
        %v4022 = vmul.f32 %v3965, %v3317
        %v4023 = vmul.f32 %v3966, %v3577
        %v4024 = vmul.f32 %v3967, %v3319
        %v4025 = vmul.f32 %v3968, %v3321
        %v4026 = vmul.f32 %v3969, %v3581
        %v4027 = vmul.f32 %v3970, %v3325
        %v4028 = vmul.f32 %v3971, %v3327
        %v4029 = vmul.f32 %v3972, %v3587
        %v4030 = vmul.f32 %v3973, %v3329
        %v4031 = vmul.f32 %v3974, %v3331
        %v4032 = vmul.f32 %v3975, %v3591
        %v4033 = vmul.f32 %v3976, %v3335
        %v4034 = vmul.f32 %v3977, %v3337
        %v4035 = vmul.f32 %v3978, %v3597
        %v4036 = vmul.f32 %v3979, 0.044715
        %v4037 = vmul.f32 %v3980, 0.044715
        %v4038 = vmul.f32 %v3981, 0.044715
        %v4039 = vmul.f32 %v3982, 0.044715
        %v4040 = vmul.f32 %v3983, 0.044715
        %v4041 = vmul.f32 %v3984, 0.044715
        %v4042 = vmul.f32 %v3985, 0.044715
        %v4043 = vmul.f32 %v3986, 0.044715
        %v4044 = vmul.f32 %v3987, 0.044715
        %v4045 = vmul.f32 %v3988, 0.044715
        %v4046 = vmul.f32 %v3989, 0.044715
        %v4047 = vmul.f32 %v3990, 0.044715
        %v4048 = vmul.f32 %v3991, 0.044715
        %v4049 = vmul.f32 %v3992, 0.044715
        %v4050 = vmul.f32 %v3993, 0.044715
        %v4051 = vmul.f32 %v3994, 0.044715
        %v4052 = vmul.f32 %v3995, 0.044715
        %v4053 = vmul.f32 %v3996, 0.044715
        %v4054 = vmul.f32 %v3997, 0.044715
        %v4055 = vmul.f32 %v3998, 0.044715
        %v4056 = vmul.f32 %v3999, 0.044715
        %v4057 = vmul.f32 %v4000, 0.044715
        %v4058 = vmul.f32 %v4001, 0.044715
        %v4059 = vmul.f32 %v4002, 0.044715
        %v4060 = vmul.f32 %v4003, 0.044715
        %v4061 = vmul.f32 %v4004, 0.044715
        %v4062 = vmul.f32 %v4005, 0.044715
        %v4063 = vmul.f32 %v4006, 0.044715
        %v4064 = vmul.f32 %v4007, 0.044715
        %v4065 = vmul.f32 %v4008, 0.044715
        %v4066 = vmul.f32 %v4009, 0.044715
        %v4067 = vmul.f32 %v4010, 0.044715
        %v4068 = vmul.f32 %v4011, 0.044715
        %v4069 = vmul.f32 %v4012, 0.044715
        %v4070 = vmul.f32 %v4013, 0.044715
        %v4071 = vmul.f32 %v4014, 0.044715
        %v4072 = vmul.f32 %v4015, 0.044715
        %v4073 = vmul.f32 %v4016, 0.044715
        %v4074 = vmul.f32 %v4017, 0.044715
        %v4075 = vmul.f32 %v4018, 0.044715
        %v4076 = vmul.f32 %v4019, 0.044715
        %v4077 = vmul.f32 %v4020, 0.044715
        %v4078 = vmul.f32 %v4021, 0.044715
        %v4079 = vmul.f32 %v4022, 0.044715
        %v4080 = vmul.f32 %v4023, 0.044715
        %v4081 = vmul.f32 %v4024, 0.044715
        %v4082 = vmul.f32 %v4025, 0.044715
        %v4083 = vmul.f32 %v4026, 0.044715
        %v4084 = vmul.f32 %v4027, 0.044715
        %v4085 = vmul.f32 %v4028, 0.044715
        %v4086 = vmul.f32 %v4029, 0.044715
        %v4087 = vmul.f32 %v4030, 0.044715
        %v4088 = vmul.f32 %v4031, 0.044715
        %v4089 = vmul.f32 %v4032, 0.044715
        %v4090 = vmul.f32 %v4033, 0.044715
        %v4091 = vmul.f32 %v4034, 0.044715
        %v4092 = vmul.f32 %v4035, 0.044715
        %v4093 = vadd.f32 %v3245, %v4036
        %v4094 = vadd.f32 %v3247, %v4037
        %v4095 = vadd.f32 %v3507, %v4038
        %v4096 = vadd.f32 %v3249, %v4039
        %v4097 = vadd.f32 %v3251, %v4040
        %v4098 = vadd.f32 %v3511, %v4041
        %v4099 = vadd.f32 %v3255, %v4042
        %v4100 = vadd.f32 %v3257, %v4043
        %v4101 = vadd.f32 %v3517, %v4044
        %v4102 = vadd.f32 %v3259, %v4045
        %v4103 = vadd.f32 %v3261, %v4046
        %v4104 = vadd.f32 %v3521, %v4047
        %v4105 = vadd.f32 %v3265, %v4048
        %v4106 = vadd.f32 %v3267, %v4049
        %v4107 = vadd.f32 %v3527, %v4050
        %v4108 = vadd.f32 %v3269, %v4051
        %v4109 = vadd.f32 %v3271, %v4052
        %v4110 = vadd.f32 %v3531, %v4053
        %v4111 = vadd.f32 %v3275, %v4054
        %v4112 = vadd.f32 %v3277, %v4055
        %v4113 = vadd.f32 %v3537, %v4056
        %v4114 = vadd.f32 %v3279, %v4057
        %v4115 = vadd.f32 %v3281, %v4058
        %v4116 = vadd.f32 %v3541, %v4059
        %v4117 = vadd.f32 %v3285, %v4060
        %v4118 = vadd.f32 %v3287, %v4061
        %v4119 = vadd.f32 %v3547, %v4062
        %v4120 = vadd.f32 %v3289, %v4063
        %v4121 = vadd.f32 %v3291, %v4064
        %v4122 = vadd.f32 %v3551, %v4065
        %v4123 = vadd.f32 %v3295, %v4066
        %v4124 = vadd.f32 %v3297, %v4067
        %v4125 = vadd.f32 %v3557, %v4068
        %v4126 = vadd.f32 %v3299, %v4069
        %v4127 = vadd.f32 %v3301, %v4070
        %v4128 = vadd.f32 %v3561, %v4071
        %v4129 = vadd.f32 %v3305, %v4072
        %v4130 = vadd.f32 %v3307, %v4073
        %v4131 = vadd.f32 %v3567, %v4074
        %v4132 = vadd.f32 %v3309, %v4075
        %v4133 = vadd.f32 %v3311, %v4076
        %v4134 = vadd.f32 %v3571, %v4077
        %v4135 = vadd.f32 %v3315, %v4078
        %v4136 = vadd.f32 %v3317, %v4079
        %v4137 = vadd.f32 %v3577, %v4080
        %v4138 = vadd.f32 %v3319, %v4081
        %v4139 = vadd.f32 %v3321, %v4082
        %v4140 = vadd.f32 %v3581, %v4083
        %v4141 = vadd.f32 %v3325, %v4084
        %v4142 = vadd.f32 %v3327, %v4085
        %v4143 = vadd.f32 %v3587, %v4086
        %v4144 = vadd.f32 %v3329, %v4087
        %v4145 = vadd.f32 %v3331, %v4088
        %v4146 = vadd.f32 %v3591, %v4089
        %v4147 = vadd.f32 %v3335, %v4090
        %v4148 = vadd.f32 %v3337, %v4091
        %v4149 = vadd.f32 %v3597, %v4092
        %v4150 = vmul.f32 %v4093, 0.7978846
        %v4151 = vmul.f32 %v4094, 0.7978846
        %v4152 = vmul.f32 %v4095, 0.7978846
        %v4153 = vmul.f32 %v4096, 0.7978846
        %v4154 = vmul.f32 %v4097, 0.7978846
        %v4155 = vmul.f32 %v4098, 0.7978846
        %v4156 = vmul.f32 %v4099, 0.7978846
        %v4157 = vmul.f32 %v4100, 0.7978846
        %v4158 = vmul.f32 %v4101, 0.7978846
        %v4159 = vmul.f32 %v4102, 0.7978846
        %v4160 = vmul.f32 %v4103, 0.7978846
        %v4161 = vmul.f32 %v4104, 0.7978846
        %v4162 = vmul.f32 %v4105, 0.7978846
        %v4163 = vmul.f32 %v4106, 0.7978846
        %v4164 = vmul.f32 %v4107, 0.7978846
        %v4165 = vmul.f32 %v4108, 0.7978846
        %v4166 = vmul.f32 %v4109, 0.7978846
        %v4167 = vmul.f32 %v4110, 0.7978846
        %v4168 = vmul.f32 %v4111, 0.7978846
        %v4169 = vmul.f32 %v4112, 0.7978846
        %v4170 = vmul.f32 %v4113, 0.7978846
        %v4171 = vmul.f32 %v4114, 0.7978846
        %v4172 = vmul.f32 %v4115, 0.7978846
        %v4173 = vmul.f32 %v4116, 0.7978846
        %v4174 = vmul.f32 %v4117, 0.7978846
        %v4175 = vmul.f32 %v4118, 0.7978846
        %v4176 = vmul.f32 %v4119, 0.7978846
        %v4177 = vmul.f32 %v4120, 0.7978846
        %v4178 = vmul.f32 %v4121, 0.7978846
        %v4179 = vmul.f32 %v4122, 0.7978846
        %v4180 = vmul.f32 %v4123, 0.7978846
        %v4181 = vmul.f32 %v4124, 0.7978846
        %v4182 = vmul.f32 %v4125, 0.7978846
        %v4183 = vmul.f32 %v4126, 0.7978846
        %v4184 = vmul.f32 %v4127, 0.7978846
        %v4185 = vmul.f32 %v4128, 0.7978846
        %v4186 = vmul.f32 %v4129, 0.7978846
        %v4187 = vmul.f32 %v4130, 0.7978846
        %v4188 = vmul.f32 %v4131, 0.7978846
        %v4189 = vmul.f32 %v4132, 0.7978846
        %v4190 = vmul.f32 %v4133, 0.7978846
        %v4191 = vmul.f32 %v4134, 0.7978846
        %v4192 = vmul.f32 %v4135, 0.7978846
        %v4193 = vmul.f32 %v4136, 0.7978846
        %v4194 = vmul.f32 %v4137, 0.7978846
        %v4195 = vmul.f32 %v4138, 0.7978846
        %v4196 = vmul.f32 %v4139, 0.7978846
        %v4197 = vmul.f32 %v4140, 0.7978846
        %v4198 = vmul.f32 %v4141, 0.7978846
        %v4199 = vmul.f32 %v4142, 0.7978846
        %v4200 = vmul.f32 %v4143, 0.7978846
        %v4201 = vmul.f32 %v4144, 0.7978846
        %v4202 = vmul.f32 %v4145, 0.7978846
        %v4203 = vmul.f32 %v4146, 0.7978846
        %v4204 = vmul.f32 %v4147, 0.7978846
        %v4205 = vmul.f32 %v4148, 0.7978846
        %v4206 = vmul.f32 %v4149, 0.7978846
        %v4207 = vtanh.pop %v4150
        %v4208 = vtanh.pop %v4151
        %v4209 = vtanh.pop %v4152
        %v4210 = vtanh.pop %v4153
        %v4211 = vtanh.pop %v4154
        %v4212 = vtanh.pop %v4155
        %v4213 = vtanh.pop %v4156
        %v4214 = vtanh.pop %v4157
        %v4215 = vtanh.pop %v4158
        %v4216 = vtanh.pop %v4159
        %v4217 = vtanh.pop %v4160
        %v4218 = vtanh.pop %v4161
        %v4219 = vtanh.pop %v4162
        %v4220 = vtanh.pop %v4163
        %v4221 = vtanh.pop %v4164
        %v4222 = vtanh.pop %v4165
        %v4223 = vtanh.pop %v4166
        %v4224 = vtanh.pop %v4167
        %v4225 = vtanh.pop %v4168
        %v4226 = vtanh.pop %v4169
        %v4227 = vtanh.pop %v4170
        %v4228 = vtanh.pop %v4171
        %v4229 = vtanh.pop %v4172
        %v4230 = vtanh.pop %v4173
        %v4231 = vtanh.pop %v4174
        %v4232 = vtanh.pop %v4175
        %v4233 = vtanh.pop %v4176
        %v4234 = vtanh.pop %v4177
        %v4235 = vtanh.pop %v4178
        %v4236 = vtanh.pop %v4179
        %v4237 = vtanh.pop %v4180
        %v4238 = vtanh.pop %v4181
        %v4239 = vtanh.pop %v4182
        %v4240 = vtanh.pop %v4183
        %v4241 = vtanh.pop %v4184
        %v4242 = vtanh.pop %v4185
        %v4243 = vtanh.pop %v4186
        %v4244 = vtanh.pop %v4187
        %v4245 = vtanh.pop %v4188
        %v4246 = vtanh.pop %v4189
        %v4247 = vtanh.pop %v4190
        %v4248 = vtanh.pop %v4191
        %v4249 = vtanh.pop %v4192
        %v4250 = vtanh.pop %v4193
        %v4251 = vtanh.pop %v4194
        %v4252 = vtanh.pop %v4195
        %v4253 = vtanh.pop %v4196
        %v4254 = vtanh.pop %v4197
        %v4255 = vtanh.pop %v4198
        %v4256 = vtanh.pop %v4199
        %v4257 = vtanh.pop %v4200
        %v4258 = vtanh.pop %v4201
        %v4259 = vtanh.pop %v4202
        %v4260 = vtanh.pop %v4203
        %v4261 = vtanh.pop %v4204
        %v4262 = vtanh.pop %v4205
        %v4263 = vtanh.pop %v4206
        %v4264 = vadd.f32 %v4207, 1.0
        %v4265 = vadd.f32 %v4208, 1.0
        %v4266 = vadd.f32 %v4209, 1.0
        %v4267 = vadd.f32 %v4210, 1.0
        %v4268 = vadd.f32 %v4211, 1.0
        %v4269 = vadd.f32 %v4212, 1.0
        %v4270 = vadd.f32 %v4213, 1.0
        %v4271 = vadd.f32 %v4214, 1.0
        %v4272 = vadd.f32 %v4215, 1.0
        %v4273 = vadd.f32 %v4216, 1.0
        %v4274 = vadd.f32 %v4217, 1.0
        %v4275 = vadd.f32 %v4218, 1.0
        %v4276 = vadd.f32 %v4219, 1.0
        %v4277 = vadd.f32 %v4220, 1.0
        %v4278 = vadd.f32 %v4221, 1.0
        %v4279 = vadd.f32 %v4222, 1.0
        %v4280 = vadd.f32 %v4223, 1.0
        %v4281 = vadd.f32 %v4224, 1.0
        %v4282 = vadd.f32 %v4225, 1.0
        %v4283 = vadd.f32 %v4226, 1.0
        %v4284 = vadd.f32 %v4227, 1.0
        %v4285 = vadd.f32 %v4228, 1.0
        %v4286 = vadd.f32 %v4229, 1.0
        %v4287 = vadd.f32 %v4230, 1.0
        %v4288 = vadd.f32 %v4231, 1.0
        %v4289 = vadd.f32 %v4232, 1.0
        %v4290 = vadd.f32 %v4233, 1.0
        %v4291 = vadd.f32 %v4234, 1.0
        %v4292 = vadd.f32 %v4235, 1.0
        %v4293 = vadd.f32 %v4236, 1.0
        %v4294 = vadd.f32 %v4237, 1.0
        %v4295 = vadd.f32 %v4238, 1.0
        %v4296 = vadd.f32 %v4239, 1.0
        %v4297 = vadd.f32 %v4240, 1.0
        %v4298 = vadd.f32 %v4241, 1.0
        %v4299 = vadd.f32 %v4242, 1.0
        %v4300 = vadd.f32 %v4243, 1.0
        %v4301 = vadd.f32 %v4244, 1.0
        %v4302 = vadd.f32 %v4245, 1.0
        %v4303 = vadd.f32 %v4246, 1.0
        %v4304 = vadd.f32 %v4247, 1.0
        %v4305 = vadd.f32 %v4248, 1.0
        %v4306 = vadd.f32 %v4249, 1.0
        %v4307 = vadd.f32 %v4250, 1.0
        %v4308 = vadd.f32 %v4251, 1.0
        %v4309 = vadd.f32 %v4252, 1.0
        %v4310 = vadd.f32 %v4253, 1.0
        %v4311 = vadd.f32 %v4254, 1.0
        %v4312 = vadd.f32 %v4255, 1.0
        %v4313 = vadd.f32 %v4256, 1.0
        %v4314 = vadd.f32 %v4257, 1.0
        %v4315 = vadd.f32 %v4258, 1.0
        %v4316 = vadd.f32 %v4259, 1.0
        %v4317 = vadd.f32 %v4260, 1.0
        %v4318 = vadd.f32 %v4261, 1.0
        %v4319 = vadd.f32 %v4262, 1.0
        %v4320 = vadd.f32 %v4263, 1.0
        %v4321 = vmul.f32 %v3865, %v4264
        %v4322 = vmul.f32 %v3866, %v4265
        %v4323 = vmul.f32 %v3867, %v4266
        %v4324 = vmul.f32 %v3868, %v4267
        %v4325 = vmul.f32 %v3869, %v4268
        %v4326 = vmul.f32 %v3870, %v4269
        %v4327 = vmul.f32 %v3871, %v4270
        %v4328 = vmul.f32 %v3872, %v4271
        %v4329 = vmul.f32 %v3873, %v4272
        %v4330 = vmul.f32 %v3874, %v4273
        %v4331 = vmul.f32 %v3875, %v4274
        %v4332 = vmul.f32 %v3876, %v4275
        %v4333 = vmul.f32 %v3877, %v4276
        %v4334 = vmul.f32 %v3878, %v4277
        %v4335 = vmul.f32 %v3879, %v4278
        %v4336 = vmul.f32 %v3880, %v4279
        %v4337 = vmul.f32 %v3881, %v4280
        %v4338 = vmul.f32 %v3882, %v4281
        %v4339 = vmul.f32 %v3883, %v4282
        %v4340 = vmul.f32 %v3884, %v4283
        %v4341 = vmul.f32 %v3885, %v4284
        %v4342 = vmul.f32 %v3886, %v4285
        %v4343 = vmul.f32 %v3887, %v4286
        %v4344 = vmul.f32 %v3888, %v4287
        %v4345 = vmul.f32 %v3889, %v4288
        %v4346 = vmul.f32 %v3890, %v4289
        %v4347 = vmul.f32 %v3891, %v4290
        %v4348 = vmul.f32 %v3892, %v4291
        %v4349 = vmul.f32 %v3893, %v4292
        %v4350 = vmul.f32 %v3894, %v4293
        %v4351 = vmul.f32 %v3895, %v4294
        %v4352 = vmul.f32 %v3896, %v4295
        %v4353 = vmul.f32 %v3897, %v4296
        %v4354 = vmul.f32 %v3898, %v4297
        %v4355 = vmul.f32 %v3899, %v4298
        %v4356 = vmul.f32 %v3900, %v4299
        %v4357 = vmul.f32 %v3901, %v4300
        %v4358 = vmul.f32 %v3902, %v4301
        %v4359 = vmul.f32 %v3903, %v4302
        %v4360 = vmul.f32 %v3904, %v4303
        %v4361 = vmul.f32 %v3905, %v4304
        %v4362 = vmul.f32 %v3906, %v4305
        %v4363 = vmul.f32 %v3907, %v4306
        %v4364 = vmul.f32 %v3908, %v4307
        %v4365 = vmul.f32 %v3909, %v4308
        %v4366 = vmul.f32 %v3910, %v4309
        %v4367 = vmul.f32 %v3911, %v4310
        %v4368 = vmul.f32 %v3912, %v4311
        %v4369 = vmul.f32 %v3913, %v4312
        %v4370 = vmul.f32 %v3914, %v4313
        %v4371 = vmul.f32 %v3915, %v4314
        %v4372 = vmul.f32 %v3916, %v4315
        %v4373 = vmul.f32 %v3917, %v4316
        %v4374 = vmul.f32 %v3918, %v4317
        %v4375 = vmul.f32 %v3919, %v4318
        %v4376 = vmul.f32 %v3920, %v4319
        %v4377 = vmul.f32 %v3921, %v4320
        %v4378 = vpack.c.bf16 %v4324, %v4321
        %v4379 = vpack.c.bf16 %v4325, %v4322
        %v4380 = vpack.c.bf16 %v4326, %v4323
        %v4381 = vpack.c.bf16 %v4330, %v4327
        %v4382 = vpack.c.bf16 %v4331, %v4328
        %v4383 = vpack.c.bf16 %v4332, %v4329
        %v4384 = vpack.c.bf16 %v4336, %v4333
        %v4385 = vpack.c.bf16 %v4337, %v4334
        %v4386 = vpack.c.bf16 %v4338, %v4335
        %v4387 = vpack.c.bf16 %v4342, %v4339
        %v4388 = vpack.c.bf16 %v4343, %v4340
        %v4389 = vpack.c.bf16 %v4344, %v4341
        %v4390 = vpack.c.bf16 %v4348, %v4345
        %v4391 = vpack.c.bf16 %v4349, %v4346
        %v4392 = vpack.c.bf16 %v4350, %v4347
        %v4393 = vpack.c.bf16 %v4354, %v4351
        %v4394 = vpack.c.bf16 %v4355, %v4352
        %v4395 = vpack.c.bf16 %v4356, %v4353
        %v4396 = vpack.c.bf16 %v4360, %v4357
        %v4397 = vpack.c.bf16 %v4361, %v4358
        %v4398 = vpack.c.bf16 %v4362, %v4359
        %v4399 = vpack.c.bf16 %v4366, %v4363
        %v4400 = vpack.c.bf16 %v4367, %v4364
        %v4401 = vpack.c.bf16 %v4368, %v4365
        %v4402 = vpack.c.bf16 %v4372, %v4369
        %v4403 = vpack.c.bf16 %v4373, %v4370
        %v4404 = vpack.c.bf16 %v4374, %v4371
        %v4405 = vpack.c.bf16 %v4375, %v4375
        %v4406 = vpack.c.bf16 %v4376, %v4376
        %v4407 = vpack.c.bf16 %v4377, %v4377
        %v4408 = vld [vmem:[#allocation8] sm:$0xff]
        %v4409 = vld [vmem:[#allocation8 + $0x8] sm:$0xf]
        %v4410 = vld [vmem:[#allocation8 + $0xc] sm:$0xff]
        %v4411 = vld [vmem:[#allocation8 + $0x14] sm:$0xf]
        %v4412 = vld [vmem:[#allocation8 + $0x18] sm:$0xff]
        %v4413 = vld [vmem:[#allocation8 + $0x20] sm:$0xf]
        %v4414 = vld [vmem:[#allocation8 + $0x24] sm:$0xff]
        %v4415 = vld [vmem:[#allocation8 + $0x2c] sm:$0xf]
        %v4416 = vld [vmem:[#allocation8 + $0x30] sm:$0xff]
        %v4417 = vld [vmem:[#allocation8 + $0x38] sm:$0xf]
        %v4418 = vld [vmem:[#allocation8 + $0x3c] sm:$0xff]
        %v4419 = vld [vmem:[#allocation8 + $0x44] sm:$0xf]
        %v4420 = vld [vmem:[#allocation8 + $0x48] sm:$0xff]
        %v4421 = vld [vmem:[#allocation8 + $0x50] sm:$0xf]
        %v4422 = vld [vmem:[#allocation8 + $0x54] sm:$0xff]
        %v4423 = vld [vmem:[#allocation8 + $0x5c] sm:$0xf]
        %v4424 = vld [vmem:[#allocation8 + $0x60] sm:$0xff]
        %v4425 = vld [vmem:[#allocation8 + $0x68] sm:$0xf]
        %v4426 = vld [vmem:[#allocation8 + $0x6c] sm:$0xff]
        %v4427 = vld [vmem:[#allocation8 + $0x74] sm:$0xf]
        %v4428 = vld [vmem:[#allocation8 + $0x78] sm:$0xff]
        %v4429 = vld [vmem:[#allocation8 + $0x80] sm:$0xf]
        %v4430 = vld [vmem:[#allocation8 + $0x84] sm:$0xff]
        %v4431 = vld [vmem:[#allocation8 + $0x8c] sm:$0xf]
        %v4432 = vld [vmem:[#allocation8 + $0x90] sm:$0xff]
        %v4433 = vld [vmem:[#allocation8 + $0x98] sm:$0xf]
        %v4434 = vld [vmem:[#allocation8 + $0x9c] sm:$0xff]
        %v4435 = vld [vmem:[#allocation8 + $0xa4] sm:$0xf]
        %v4436 = vld [vmem:[#allocation8 + $0xa8] sm:$0xff]
        %v4437 = vld [vmem:[#allocation8 + $0xb0] sm:$0xf]
        %v4438 = vld [vmem:[#allocation8 + $0xb4] sm:$0xff]
        %v4439 = vld [vmem:[#allocation8 + $0xbc] sm:$0xf]
        %v4440 = vld [vmem:[#allocation8 + $0xc0] sm:$0xff]
        %v4441 = vld [vmem:[#allocation8 + $0xc8] sm:$0xf]
        %v4442 = vld [vmem:[#allocation8 + $0xcc] sm:$0xff]
        %v4443 = vld [vmem:[#allocation8 + $0xd4] sm:$0xf]
        %v4444 = vld [vmem:[#allocation8 + $0xd8] sm:$0xff]
        %v4445 = vld [vmem:[#allocation8 + $0xe0] sm:$0xf]
        %v4446 = vld [vmem:[#allocation8 + $0xe4] sm:$0xff]
        %v4447 = vld [vmem:[#allocation8 + $0xec] sm:$0xf]
        %v4448 = vld [vmem:[#allocation8 + $0xf0] sm:$0xff]
        %v4449 = vld [vmem:[#allocation8 + $0xf8] sm:$0xf]
        %v4450 = vld [vmem:[#allocation8 + $0xfc] sm:$0xff]
        %v4451 = vld [vmem:[#allocation8 + $0x104] sm:$0xf]
        %v4452 = vld [vmem:[#allocation8 + $0x108] sm:$0xff]
        %v4453 = vld [vmem:[#allocation8 + $0x110] sm:$0xf]
        %v4454 = vld [vmem:[#allocation8 + $0x114] sm:$0xff]
        %v4455 = vld [vmem:[#allocation8 + $0x11c] sm:$0xf]
        %v4456 = vld [vmem:[#allocation8 + $0x120] sm:$0xff]
        %v4457 = vld [vmem:[#allocation8 + $0x128] sm:$0xf]
        %v4458 = vld [vmem:[#allocation8 + $0x12c] sm:$0xff]
        %v4459 = vld [vmem:[#allocation8 + $0x134] sm:$0xf]
        %v4460 = vld [vmem:[#allocation8 + $0x138] sm:$0xff]
        %v4461 = vld [vmem:[#allocation8 + $0x140] sm:$0xf]
        %v4462 = vld [vmem:[#allocation8 + $0x144] sm:$0xff]
        %v4463 = vld [vmem:[#allocation8 + $0x14c] sm:$0xf]
        %v4464 = vld [vmem:[#allocation8 + $0x150] sm:$0xff]
        %v4465 = vld [vmem:[#allocation8 + $0x158] sm:$0xf]
        %v4466 = vld [vmem:[#allocation8 + $0x15c] sm:$0xff]
        %v4467 = vld [vmem:[#allocation8 + $0x164] sm:$0xf]
        %v4468 = vld [vmem:[#allocation8 + $0x168] sm:$0xff]
        %v4469 = vld [vmem:[#allocation8 + $0x170] sm:$0xf]
        %v4470 = vld [vmem:[#allocation8 + $0x174] sm:$0xff]
        %v4471 = vld [vmem:[#allocation8 + $0x17c] sm:$0xf]
        %v4472 = vld [vmem:[#allocation8 + $0x180] sm:$0xff]
        %v4473 = vld [vmem:[#allocation8 + $0x188] sm:$0xf]
        %v4474 = vld [vmem:[#allocation8 + $0x18c] sm:$0xff]
        %v4475 = vld [vmem:[#allocation8 + $0x194] sm:$0xf]
        %v4476 = vld [vmem:[#allocation8 + $0x198] sm:$0xff]
        %v4477 = vld [vmem:[#allocation8 + $0x1a0] sm:$0xf]
        %v4478 = vld [vmem:[#allocation8 + $0x1a4] sm:$0xff]
        %v4479 = vld [vmem:[#allocation8 + $0x1ac] sm:$0xf]
        %v4480 = vld [vmem:[#allocation8 + $0x1b0] sm:$0xff]
        %v4481 = vld [vmem:[#allocation8 + $0x1b8] sm:$0xf]
        %v4482 = vld [vmem:[#allocation8 + $0x1bc] sm:$0xff]
        %v4483 = vld [vmem:[#allocation8 + $0x1c4] sm:$0xf]
        %v4484 = vld [vmem:[#allocation8 + $0x1c8] sm:$0xff]
        %v4485 = vld [vmem:[#allocation8 + $0x1d0] sm:$0xf]
        %v4486 = vld [vmem:[#allocation8 + $0x1d4] sm:$0xff]
        %v4487 = vld [vmem:[#allocation8 + $0x1dc] sm:$0xf]
        %v4488 = vld [vmem:[#allocation8 + $0x1e0] sm:$0xff]
        %v4489 = vld [vmem:[#allocation8 + $0x1e8] sm:$0xf]
        %v4490 = vld [vmem:[#allocation8 + $0x1ec] sm:$0xff]
        %v4491 = vld [vmem:[#allocation8 + $0x1f4] sm:$0xf]
        %v4492 = vld [vmem:[#allocation8 + $0x1f8] sm:$0xff]
        %v4493 = vld [vmem:[#allocation8 + $0x200] sm:$0xf]
        %v4494 = vld [vmem:[#allocation8 + $0x204] sm:$0xff]
        %v4495 = vld [vmem:[#allocation8 + $0x20c] sm:$0xf]
        %v4496 = vld [vmem:[#allocation8 + $0x210] sm:$0xff]
        %v4497 = vld [vmem:[#allocation8 + $0x218] sm:$0xf]
        %v4498 = vld [vmem:[#allocation8 + $0x21c] sm:$0xff]
        %v4499 = vld [vmem:[#allocation8 + $0x224] sm:$0xf]
        %v4500 = vld [vmem:[#allocation8 + $0x228] sm:$0xff]
        %v4501 = vld [vmem:[#allocation8 + $0x230] sm:$0xf]
        %v4502 = vld [vmem:[#allocation8 + $0x234] sm:$0xff]
        %v4503 = vld [vmem:[#allocation8 + $0x23c] sm:$0xf]
        %v4504 = vld [vmem:[%s6] sm:$0x7]
        %v4506 = vlaneseq
        %v4507 = vshrl.u32 %v4506, 7
        %v4508 = vsub.s32 0, %v4507
        %v4509 = vrot.slane %v4504, %v4508
        %v4510 = vlaneseq
        %v4511 = vshrl.u32 %v4510, 7
        %v4512 = vsub.s32 1, %v4511
        %v4513 = vrot.slane %v4504, %v4512
        %v4514 = vlaneseq
        %v4515 = vshrl.u32 %v4514, 7
        %v4516 = vsub.s32 2, %v4515
        %v4517 = vrot.slane %v4504, %v4516
        %v4617 = vunpack.c.l.b16 %v4408
        %v4618 = vunpack.c.h.b16 %v4408
        %v4619 = vunpack.c.l.b16 %v4409
        %v4620 = vunpack.c.l.b16 %v4410
        %v4621 = vunpack.c.h.b16 %v4410
        %v4622 = vunpack.c.l.b16 %v4411
        %v4623 = vunpack.c.l.b16 %v4412
        %v4624 = vunpack.c.h.b16 %v4412
        %v4625 = vunpack.c.l.b16 %v4413
        %v4626 = vunpack.c.l.b16 %v4414
        %v4627 = vunpack.c.h.b16 %v4414
        %v4628 = vunpack.c.l.b16 %v4415
        %v4629 = vunpack.c.l.b16 %v4416
        %v4630 = vunpack.c.h.b16 %v4416
        %v4631 = vunpack.c.l.b16 %v4417
        %v4632 = vunpack.c.l.b16 %v4418
        %v4633 = vunpack.c.h.b16 %v4418
        %v4634 = vunpack.c.l.b16 %v4419
        %v4635 = vunpack.c.l.b16 %v4420
        %v4636 = vunpack.c.h.b16 %v4420
        %v4637 = vunpack.c.l.b16 %v4421
        %v4638 = vunpack.c.l.b16 %v4422
        %v4639 = vunpack.c.h.b16 %v4422
        %v4640 = vunpack.c.l.b16 %v4423
        %v4641 = vunpack.c.l.b16 %v4424
        %v4642 = vunpack.c.h.b16 %v4424
        %v4643 = vunpack.c.l.b16 %v4425
        %v4644 = vunpack.c.l.b16 %v4426
        %v4645 = vunpack.c.h.b16 %v4426
        %v4646 = vunpack.c.l.b16 %v4427
        %v4647 = vunpack.c.l.b16 %v4428
        %v4648 = vunpack.c.h.b16 %v4428
        %v4649 = vunpack.c.l.b16 %v4429
        %v4650 = vunpack.c.l.b16 %v4430
        %v4651 = vunpack.c.h.b16 %v4430
        %v4652 = vunpack.c.l.b16 %v4431
        %v4653 = vunpack.c.l.b16 %v4432
        %v4654 = vunpack.c.h.b16 %v4432
        %v4655 = vunpack.c.l.b16 %v4433
        %v4656 = vunpack.c.l.b16 %v4434
        %v4657 = vunpack.c.h.b16 %v4434
        %v4658 = vunpack.c.l.b16 %v4435
        %v4659 = vunpack.c.l.b16 %v4436
        %v4660 = vunpack.c.h.b16 %v4436
        %v4661 = vunpack.c.l.b16 %v4437
        %v4662 = vunpack.c.l.b16 %v4438
        %v4663 = vunpack.c.h.b16 %v4438
        %v4664 = vunpack.c.l.b16 %v4439
        %v4665 = vunpack.c.l.b16 %v4440
        %v4666 = vunpack.c.h.b16 %v4440
        %v4667 = vunpack.c.l.b16 %v4441
        %v4668 = vunpack.c.l.b16 %v4442
        %v4669 = vunpack.c.h.b16 %v4442
        %v4670 = vunpack.c.l.b16 %v4443
        %v4671 = vunpack.c.l.b16 %v4444
        %v4672 = vunpack.c.h.b16 %v4444
        %v4673 = vunpack.c.l.b16 %v4445
        %v4674 = vunpack.c.l.b16 %v4446
        %v4675 = vunpack.c.h.b16 %v4446
        %v4676 = vunpack.c.l.b16 %v4447
        %v4677 = vunpack.c.l.b16 %v4448
        %v4678 = vunpack.c.h.b16 %v4448
        %v4679 = vunpack.c.l.b16 %v4449
        %v4680 = vunpack.c.l.b16 %v4450
        %v4681 = vunpack.c.h.b16 %v4450
        %v4682 = vunpack.c.l.b16 %v4451
        %v4683 = vunpack.c.l.b16 %v4452
        %v4684 = vunpack.c.h.b16 %v4452
        %v4685 = vunpack.c.l.b16 %v4453
        %v4686 = vunpack.c.l.b16 %v4454
        %v4687 = vunpack.c.h.b16 %v4454
        %v4688 = vunpack.c.l.b16 %v4455
        %v4689 = vunpack.c.l.b16 %v4456
        %v4690 = vunpack.c.h.b16 %v4456
        %v4691 = vunpack.c.l.b16 %v4457
        %v4692 = vunpack.c.l.b16 %v4458
        %v4693 = vunpack.c.h.b16 %v4458
        %v4694 = vunpack.c.l.b16 %v4459
        %v4695 = vunpack.c.l.b16 %v4460
        %v4696 = vunpack.c.h.b16 %v4460
        %v4697 = vunpack.c.l.b16 %v4461
        %v4698 = vunpack.c.l.b16 %v4462
        %v4699 = vunpack.c.h.b16 %v4462
        %v4700 = vunpack.c.l.b16 %v4463
        %v4701 = vunpack.c.l.b16 %v4464
        %v4702 = vunpack.c.h.b16 %v4464
        %v4703 = vunpack.c.l.b16 %v4465
        %v4704 = vunpack.c.l.b16 %v4466
        %v4705 = vunpack.c.h.b16 %v4466
        %v4706 = vunpack.c.l.b16 %v4467
        %v4707 = vunpack.c.l.b16 %v4468
        %v4708 = vunpack.c.h.b16 %v4468
        %v4709 = vunpack.c.l.b16 %v4469
        %v4710 = vunpack.c.l.b16 %v4470
        %v4711 = vunpack.c.h.b16 %v4470
        %v4712 = vunpack.c.l.b16 %v4471
        %v4713 = vunpack.c.l.b16 %v4472
        %v4714 = vunpack.c.h.b16 %v4472
        %v4715 = vunpack.c.l.b16 %v4473
        %v4716 = vunpack.c.l.b16 %v4474
        %v4717 = vunpack.c.h.b16 %v4474
        %v4718 = vunpack.c.l.b16 %v4475
        %v4719 = vunpack.c.l.b16 %v4476
        %v4720 = vunpack.c.h.b16 %v4476
        %v4721 = vunpack.c.l.b16 %v4477
        %v4722 = vunpack.c.l.b16 %v4478
        %v4723 = vunpack.c.h.b16 %v4478
        %v4724 = vunpack.c.l.b16 %v4479
        %v4725 = vunpack.c.l.b16 %v4480
        %v4726 = vunpack.c.h.b16 %v4480
        %v4727 = vunpack.c.l.b16 %v4481
        %v4728 = vunpack.c.l.b16 %v4482
        %v4729 = vunpack.c.h.b16 %v4482
        %v4730 = vunpack.c.l.b16 %v4483
        %v4731 = vunpack.c.l.b16 %v4484
        %v4732 = vunpack.c.h.b16 %v4484
        %v4733 = vunpack.c.l.b16 %v4485
        %v4734 = vunpack.c.l.b16 %v4486
        %v4735 = vunpack.c.h.b16 %v4486
        %v4736 = vunpack.c.l.b16 %v4487
        %v4737 = vunpack.c.l.b16 %v4488
        %v4738 = vunpack.c.h.b16 %v4488
        %v4739 = vunpack.c.l.b16 %v4489
        %v4740 = vunpack.c.l.b16 %v4490
        %v4741 = vunpack.c.h.b16 %v4490
        %v4742 = vunpack.c.l.b16 %v4491
        %v4743 = vunpack.c.l.b16 %v4492
        %v4744 = vunpack.c.h.b16 %v4492
        %v4745 = vunpack.c.l.b16 %v4493
        %v4746 = vunpack.c.l.b16 %v4494
        %v4747 = vunpack.c.h.b16 %v4494
        %v4748 = vunpack.c.l.b16 %v4495
        %v4749 = vunpack.c.l.b16 %v4496
        %v4750 = vunpack.c.h.b16 %v4496
        %v4751 = vunpack.c.l.b16 %v4497
        %v4752 = vunpack.c.l.b16 %v4498
        %v4753 = vunpack.c.h.b16 %v4498
        %v4754 = vunpack.c.l.b16 %v4499
        %v4755 = vunpack.c.l.b16 %v4500
        %v4756 = vunpack.c.h.b16 %v4500
        %v4757 = vunpack.c.l.b16 %v4501
        %v4758 = vunpack.c.l.b16 %v4502
        %v4759 = vunpack.c.h.b16 %v4502
        %v4760 = vunpack.c.l.b16 %v4503
        %v4761 = vpack.c.b16 %v4620, %v4617
        %v4762 = vpack.c.b16 %v4621, %v4618
        %v4763 = vpack.c.b16 %v4622, %v4619
        %v4764 = vpack.c.b16 %v4626, %v4623
        %v4765 = vpack.c.b16 %v4627, %v4624
        %v4766 = vpack.c.b16 %v4628, %v4625
        %v4767 = vpack.c.b16 %v4632, %v4629
        %v4768 = vpack.c.b16 %v4633, %v4630
        %v4769 = vpack.c.b16 %v4634, %v4631
        %v4770 = vpack.c.b16 %v4638, %v4635
        %v4771 = vpack.c.b16 %v4639, %v4636
        %v4772 = vpack.c.b16 %v4640, %v4637
        %v4773 = vpack.c.b16 %v4644, %v4641
        %v4774 = vpack.c.b16 %v4645, %v4642
        %v4775 = vpack.c.b16 %v4646, %v4643
        %v4776 = vpack.c.b16 %v4650, %v4647
        %v4777 = vpack.c.b16 %v4651, %v4648
        %v4778 = vpack.c.b16 %v4652, %v4649
        %v4779 = vpack.c.b16 %v4656, %v4653
        %v4780 = vpack.c.b16 %v4657, %v4654
        %v4781 = vpack.c.b16 %v4658, %v4655
        %v4782 = vpack.c.b16 %v4662, %v4659
        %v4783 = vpack.c.b16 %v4663, %v4660
        %v4784 = vpack.c.b16 %v4664, %v4661
        %v4785 = vpack.c.b16 %v4668, %v4665
        %v4786 = vpack.c.b16 %v4669, %v4666
        %v4787 = vpack.c.b16 %v4670, %v4667
        %v4788 = vpack.c.b16 %v4674, %v4671
        %v4789 = vpack.c.b16 %v4675, %v4672
        %v4790 = vpack.c.b16 %v4676, %v4673
        %v4791 = vpack.c.b16 %v4680, %v4677
        %v4792 = vpack.c.b16 %v4681, %v4678
        %v4793 = vpack.c.b16 %v4682, %v4679
        %v4794 = vpack.c.b16 %v4686, %v4683
        %v4795 = vpack.c.b16 %v4687, %v4684
        %v4796 = vpack.c.b16 %v4688, %v4685
        %v4797 = vpack.c.b16 %v4692, %v4689
        %v4798 = vpack.c.b16 %v4693, %v4690
        %v4799 = vpack.c.b16 %v4694, %v4691
        %v4800 = vpack.c.b16 %v4698, %v4695
        %v4801 = vpack.c.b16 %v4699, %v4696
        %v4802 = vpack.c.b16 %v4700, %v4697
        %v4803 = vpack.c.b16 %v4704, %v4701
        %v4804 = vpack.c.b16 %v4705, %v4702
        %v4805 = vpack.c.b16 %v4706, %v4703
        %v4806 = vpack.c.b16 %v4710, %v4707
        %v4807 = vpack.c.b16 %v4711, %v4708
        %v4808 = vpack.c.b16 %v4712, %v4709
        %v4809 = vpack.c.b16 %v4716, %v4713
        %v4810 = vpack.c.b16 %v4717, %v4714
        %v4811 = vpack.c.b16 %v4718, %v4715
        %v4812 = vpack.c.b16 %v4722, %v4719
        %v4813 = vpack.c.b16 %v4723, %v4720
        %v4814 = vpack.c.b16 %v4724, %v4721
        %v4815 = vpack.c.b16 %v4728, %v4725
        %v4816 = vpack.c.b16 %v4729, %v4726
        %v4817 = vpack.c.b16 %v4730, %v4727
        %v4818 = vpack.c.b16 %v4734, %v4731
        %v4819 = vpack.c.b16 %v4735, %v4732
        %v4820 = vpack.c.b16 %v4736, %v4733
        %v4821 = vpack.c.b16 %v4740, %v4737
        %v4822 = vpack.c.b16 %v4741, %v4738
        %v4823 = vpack.c.b16 %v4742, %v4739
        %v4824 = vpack.c.b16 %v4746, %v4743
        %v4825 = vpack.c.b16 %v4747, %v4744
        %v4826 = vpack.c.b16 %v4748, %v4745
        %v4827 = vpack.c.b16 %v4752, %v4749
        %v4828 = vpack.c.b16 %v4753, %v4750
        %v4829 = vpack.c.b16 %v4754, %v4751
        %v4830 = vpack.c.b16 %v4758, %v4755
        %v4831 = vpack.c.b16 %v4759, %v4756
        %v4832 = vpack.c.b16 %v4760, %v4757
        %4905 = vmatprep.subr.bf16.mxu0 %v4762
        %4906 = vmatpush1.bf16.msra.mxu0 %v4761
        %4907 = vmatprep.subr.bf16.mxu0 %v4765
        %4908 = vmatpush1.bf16.msra.mxu0 %v4764
        %4909 = vmatprep.subr.bf16.mxu0 %v4768
        %4910 = vmatpush1.bf16.msra.mxu0 %v4767
        %4911 = vmatprep.subr.bf16.mxu0 %v4771
        %4912 = vmatpush1.bf16.msra.mxu0 %v4770
        %4913 = vmatprep.subr.bf16.mxu0 %v4774
        %4914 = vmatpush1.bf16.msra.mxu0 %v4773
        %4915 = vmatprep.subr.bf16.mxu0 %v4777
        %4916 = vmatpush1.bf16.msra.mxu0 %v4776
        %4917 = vmatprep.subr.bf16.mxu0 %v4780
        %4918 = vmatpush1.bf16.msra.mxu0 %v4779
        %4919 = vmatprep.subr.bf16.mxu0 %v4783
        %4920 = vmatpush1.bf16.msra.mxu0 %v4782
        %4921 = vmatprep.subr.bf16.mxu0 %v4786
        %4922 = vmatpush1.bf16.msra.mxu0 %v4785
        %4923 = vmatprep.subr.bf16.mxu0 %v4789
        %4924 = vmatpush1.bf16.msra.mxu0 %v4788
        %4925 = vmatprep.subr.bf16.mxu0 %v4792
        %4926 = vmatpush1.bf16.msra.mxu0 %v4791
        %4927 = vmatprep.subr.bf16.mxu0 %v4795
        %4928 = vmatpush1.bf16.msra.mxu0 %v4794
        %4929 = vmatprep.subr.bf16.mxu0 %v4798
        %4930 = vmatpush1.bf16.msra.mxu0 %v4797
        %4931 = vmatprep.subr.bf16.mxu0 %v4801
        %4932 = vmatpush1.bf16.msra.mxu0 %v4800
        %4933 = vmatprep.subr.bf16.mxu0 %v4804
        %4934 = vmatpush1.bf16.msra.mxu0 %v4803
        %4935 = vmatprep.subr.bf16.mxu0 %v4807
        %4936 = vmatpush1.bf16.msra.mxu0 %v4806
        %4937 = vmatprep.mubr.bf16.mxu0 %v4379
        %4938 = vmatmul.mubr.bf16.gmra.mrb[0].mxu0 %v4378
        %v4939 = vpop.f32.mrb[0].mxu0
        %v4940 = vadd.f32 %v4509, %v4939
        %v4941 = vpop.f32.mrb[0].mxu0
        %v4942 = vadd.f32 %v4513, %v4941
        %v4943 = vpop.f32.mrb[0].mxu0
        %v4944 = vadd.f32 %v4509, %v4943
        %v4945 = vpop.f32.mrb[0].mxu0
        %v4946 = vadd.f32 %v4513, %v4945
        %4947 = vmatprep.mubr.bf16.mxu0 %v4382
        %4948 = vmatmul.mubr.bf16.gmra.mrb[0].mxu0 %v4381
        %v4949 = vpop.f32.mrb[0].mxu0
        %v4950 = vadd.f32 %v4509, %v4949
        %v4951 = vpop.f32.mrb[0].mxu0
        %v4952 = vadd.f32 %v4513, %v4951
        %v4953 = vpop.f32.mrb[0].mxu0
        %v4954 = vadd.f32 %v4509, %v4953
        %v4955 = vpop.f32.mrb[0].mxu0
        %v4956 = vadd.f32 %v4513, %v4955
        %4957 = vmatprep.mubr.bf16.mxu0 %v4385
        %4958 = vmatmul.mubr.bf16.gmra.mrb[0].mxu0 %v4384
        %v4959 = vpop.f32.mrb[0].mxu0
        %v4960 = vadd.f32 %v4509, %v4959
        %v4961 = vpop.f32.mrb[0].mxu0
        %v4962 = vadd.f32 %v4513, %v4961
        %v4963 = vpop.f32.mrb[0].mxu0
        %v4964 = vadd.f32 %v4509, %v4963
        %v4965 = vpop.f32.mrb[0].mxu0
        %v4966 = vadd.f32 %v4513, %v4965
        %4967 = vmatprep.mubr.bf16.mxu0 %v4388
        %4968 = vmatmul.mubr.bf16.gmra.mrb[0].mxu0 %v4387
        %v4969 = vpop.f32.mrb[0].mxu0
        %v4970 = vadd.f32 %v4509, %v4969
        %v4971 = vpop.f32.mrb[0].mxu0
        %v4972 = vadd.f32 %v4513, %v4971
        %v4973 = vpop.f32.mrb[0].mxu0
        %v4974 = vadd.f32 %v4509, %v4973
        %v4975 = vpop.f32.mrb[0].mxu0
        %v4976 = vadd.f32 %v4513, %v4975
        %4977 = vmatprep.mubr.bf16.mxu0 %v4391
        %4978 = vmatmul.mubr.bf16.gmra.mrb[0].mxu0 %v4390
        %v4979 = vpop.f32.mrb[0].mxu0
        %v4980 = vadd.f32 %v4509, %v4979
        %v4981 = vpop.f32.mrb[0].mxu0
        %v4982 = vadd.f32 %v4513, %v4981
        %v4983 = vpop.f32.mrb[0].mxu0
        %v4984 = vadd.f32 %v4509, %v4983
        %v4985 = vpop.f32.mrb[0].mxu0
        %v4986 = vadd.f32 %v4513, %v4985
        %4987 = vmatprep.mubr.bf16.mxu0 %v4394
        %4988 = vmatmul.mubr.bf16.gmra.mrb[0].mxu0 %v4393
        %v4989 = vpop.f32.mrb[0].mxu0
        %v4990 = vadd.f32 %v4509, %v4989
        %v4991 = vpop.f32.mrb[0].mxu0
        %v4992 = vadd.f32 %v4513, %v4991
        %v4993 = vpop.f32.mrb[0].mxu0
        %v4994 = vadd.f32 %v4509, %v4993
        %v4995 = vpop.f32.mrb[0].mxu0
        %v4996 = vadd.f32 %v4513, %v4995
        %4997 = vmatprep.mubr.bf16.mxu0 %v4397
        %4998 = vmatmul.mubr.bf16.gmra.mrb[0].mxu0 %v4396
        %v4999 = vpop.f32.mrb[0].mxu0
        %v5000 = vadd.f32 %v4509, %v4999
        %v5001 = vpop.f32.mrb[0].mxu0
        %v5002 = vadd.f32 %v4513, %v5001
        %v5003 = vpop.f32.mrb[0].mxu0
        %v5004 = vadd.f32 %v4509, %v5003
        %v5005 = vpop.f32.mrb[0].mxu0
        %v5006 = vadd.f32 %v4513, %v5005
        %5007 = vmatprep.mubr.bf16.mxu0 %v4400
        %5008 = vmatmul.mubr.bf16.gmra.mrb[0].mxu0 %v4399
        %v5009 = vpop.f32.mrb[0].mxu0
        %v5010 = vadd.f32 %v4509, %v5009
        %v5011 = vpop.f32.mrb[0].mxu0
        %v5012 = vadd.f32 %v4513, %v5011
        %v5013 = vpop.f32.mrb[0].mxu0
        %v5014 = vadd.f32 %v4509, %v5013
        %v5015 = vpop.f32.mrb[0].mxu0
        %v5016 = vadd.f32 %v4513, %v5015
        %5017 = vmatprep.mubr.bf16.mxu0 %v4403
        %5018 = vmatmul.mubr.bf16.gmra.mrb[0].mxu0 %v4402
        %v5019 = vpop.f32.mrb[0].mxu0
        %v5020 = vadd.f32 %v4509, %v5019
        %v5021 = vpop.f32.mrb[0].mxu0
        %v5022 = vadd.f32 %v4513, %v5021
        %v5023 = vpop.f32.mrb[0].mxu0
        %v5024 = vadd.f32 %v4509, %v5023
        %v5025 = vpop.f32.mrb[0].mxu0
        %v5026 = vadd.f32 %v4513, %v5025
        %5027 = vmatprep.mubr.bf16.mxu0 %v4406
        %5028 = vmatmul.mubr.bf16.gmra.mrb[0].mxu0 %v4405
        %v5029 = vpop.f32.mrb[0].mxu0
        %v5030 = vadd.f32 %v4509, %v5029
        %v5031 = vpop.f32.mrb[0].mxu0
        %v5032 = vadd.f32 %v4513, %v5031
        %v5033 = vpop.f32.mrb[0].mxu0
        %v5034 = vpop.f32.mrb[0].mxu0
        %5035 = vdwg.mxu0
        %5036 = vmatprep.subr.bf16.mxu0 %v4810
        %5037 = vmatpush1.bf16.msra.mxu0 %v4809
        %5038 = vmatprep.subr.bf16.mxu0 %v4813
        %5039 = vmatpush1.bf16.msra.mxu0 %v4812
        %5040 = vmatprep.subr.bf16.mxu0 %v4816
        %5041 = vmatpush1.bf16.msra.mxu0 %v4815
        %5042 = vmatprep.subr.bf16.mxu0 %v4819
        %5043 = vmatpush1.bf16.msra.mxu0 %v4818
        %5044 = vmatprep.subr.bf16.mxu0 %v4822
        %5045 = vmatpush1.bf16.msra.mxu0 %v4821
        %5046 = vmatprep.subr.bf16.mxu0 %v4825
        %5047 = vmatpush1.bf16.msra.mxu0 %v4824
        %5048 = vmatprep.subr.bf16.mxu0 %v4828
        %5049 = vmatpush1.bf16.msra.mxu0 %v4827
        %5050 = vmatprep.subr.bf16.mxu0 %v4831
        %5051 = vmatpush1.bf16.msra.mxu0 %v4830
        %5052 = vmatprep.subr.bf16.mxu0 0
        %5053 = vmatpush1.bf16.msra.mxu0 0
        %5054 = vmatprep.subr.bf16.mxu0 0
        %5055 = vmatpush1.bf16.msra.mxu0 0
        %5056 = vmatprep.subr.bf16.mxu0 0
        %5057 = vmatpush1.bf16.msra.mxu0 0
        %5058 = vmatprep.subr.bf16.mxu0 0
        %5059 = vmatpush1.bf16.msra.mxu0 0
        %5060 = vmatprep.subr.bf16.mxu0 0
        %5061 = vmatpush1.bf16.msra.mxu0 0
        %5062 = vmatprep.subr.bf16.mxu0 0
        %5063 = vmatpush1.bf16.msra.mxu0 0
        %5064 = vmatprep.subr.bf16.mxu0 0
        %5065 = vmatpush1.bf16.msra.mxu0 0
        %5066 = vmatprep.subr.bf16.mxu0 0
        %5067 = vmatpush1.bf16.msra.mxu0 0
        %5068 = vmatprep.mubr.bf16.mxu0 0
        %5069 = vmatmul.mubr.bf16.gmra.mrb[0].mxu0 %v4380
        %v5070 = vpop.f32.mrb[0].mxu0
        %v5071 = vadd.f32 %v4940, %v5070
        %v5072 = vpop.f32.mrb[0].mxu0
        %v5073 = vadd.f32 %v4942, %v5072
        %v5074 = vpop.f32.mrb[0].mxu0
        %v5075 = vadd.f32 %v4944, %v5074
        %v5076 = vpop.f32.mrb[0].mxu0
        %v5077 = vadd.f32 %v4946, %v5076
        %5078 = vmatprep.mubr.bf16.mxu0 0
        %5079 = vmatmul.mubr.bf16.gmra.mrb[0].mxu0 %v4383
        %v5080 = vpop.f32.mrb[0].mxu0
        %v5081 = vadd.f32 %v4950, %v5080
        %v5082 = vpop.f32.mrb[0].mxu0
        %v5083 = vadd.f32 %v4952, %v5082
        %v5084 = vpop.f32.mrb[0].mxu0
        %v5085 = vadd.f32 %v4954, %v5084
        %v5086 = vpop.f32.mrb[0].mxu0
        %v5087 = vadd.f32 %v4956, %v5086
        %5088 = vmatprep.mubr.bf16.mxu0 0
        %5089 = vmatmul.mubr.bf16.gmra.mrb[0].mxu0 %v4386
        %v5090 = vpop.f32.mrb[0].mxu0
        %v5091 = vadd.f32 %v4960, %v5090
        %v5092 = vpop.f32.mrb[0].mxu0
        %v5093 = vadd.f32 %v4962, %v5092
        %v5094 = vpop.f32.mrb[0].mxu0
        %v5095 = vadd.f32 %v4964, %v5094
        %v5096 = vpop.f32.mrb[0].mxu0
        %v5097 = vadd.f32 %v4966, %v5096
        %5098 = vmatprep.mubr.bf16.mxu0 0
        %5099 = vmatmul.mubr.bf16.gmra.mrb[0].mxu0 %v4389
        %v5100 = vpop.f32.mrb[0].mxu0
        %v5101 = vadd.f32 %v4970, %v5100
        %v5102 = vpop.f32.mrb[0].mxu0
        %v5103 = vadd.f32 %v4972, %v5102
        %v5104 = vpop.f32.mrb[0].mxu0
        %v5105 = vadd.f32 %v4974, %v5104
        %v5106 = vpop.f32.mrb[0].mxu0
        %v5107 = vadd.f32 %v4976, %v5106
        %5108 = vmatprep.mubr.bf16.mxu0 0
        %5109 = vmatmul.mubr.bf16.gmra.mrb[0].mxu0 %v4392
        %v5110 = vpop.f32.mrb[0].mxu0
        %v5111 = vadd.f32 %v4980, %v5110
        %v5112 = vpop.f32.mrb[0].mxu0
        %v5113 = vadd.f32 %v4982, %v5112
        %v5114 = vpop.f32.mrb[0].mxu0
        %v5115 = vadd.f32 %v4984, %v5114
        %v5116 = vpop.f32.mrb[0].mxu0
        %v5117 = vadd.f32 %v4986, %v5116
        %5118 = vmatprep.mubr.bf16.mxu0 0
        %5119 = vmatmul.mubr.bf16.gmra.mrb[0].mxu0 %v4395
        %v5120 = vpop.f32.mrb[0].mxu0
        %v5121 = vadd.f32 %v4990, %v5120
        %v5122 = vpop.f32.mrb[0].mxu0
        %v5123 = vadd.f32 %v4992, %v5122
        %v5124 = vpop.f32.mrb[0].mxu0
        %v5125 = vadd.f32 %v4994, %v5124
        %v5126 = vpop.f32.mrb[0].mxu0
        %v5127 = vadd.f32 %v4996, %v5126
        %5128 = vmatprep.mubr.bf16.mxu0 0
        %5129 = vmatmul.mubr.bf16.gmra.mrb[0].mxu0 %v4398
        %v5130 = vpop.f32.mrb[0].mxu0
        %v5131 = vadd.f32 %v5000, %v5130
        %v5132 = vpop.f32.mrb[0].mxu0
        %v5133 = vadd.f32 %v5002, %v5132
        %v5134 = vpop.f32.mrb[0].mxu0
        %v5135 = vadd.f32 %v5004, %v5134
        %v5136 = vpop.f32.mrb[0].mxu0
        %v5137 = vadd.f32 %v5006, %v5136
        %5138 = vmatprep.mubr.bf16.mxu0 0
        %5139 = vmatmul.mubr.bf16.gmra.mrb[0].mxu0 %v4401
        %v5140 = vpop.f32.mrb[0].mxu0
        %v5141 = vadd.f32 %v5010, %v5140
        %v5142 = vpop.f32.mrb[0].mxu0
        %v5143 = vadd.f32 %v5012, %v5142
        %v5144 = vpop.f32.mrb[0].mxu0
        %v5145 = vadd.f32 %v5014, %v5144
        %v5146 = vpop.f32.mrb[0].mxu0
        %v5147 = vadd.f32 %v5016, %v5146
        %5148 = vmatprep.mubr.bf16.mxu0 0
        %5149 = vmatmul.mubr.bf16.gmra.mrb[0].mxu0 %v4404
        %v5150 = vpop.f32.mrb[0].mxu0
        %v5151 = vadd.f32 %v5020, %v5150
        %v5152 = vpop.f32.mrb[0].mxu0
        %v5153 = vadd.f32 %v5022, %v5152
        %v5154 = vpop.f32.mrb[0].mxu0
        %v5155 = vadd.f32 %v5024, %v5154
        %v5156 = vpop.f32.mrb[0].mxu0
        %v5157 = vadd.f32 %v5026, %v5156
        %5158 = vmatprep.mubr.bf16.mxu0 0
        %5159 = vmatmul.mubr.bf16.gmra.mrb[0].mxu0 %v4407
        %v5160 = vpop.f32.mrb[0].mxu0
        %v5161 = vadd.f32 %v5030, %v5160
        %v5162 = vpop.f32.mrb[0].mxu0
        %v5163 = vadd.f32 %v5032, %v5162
        %v5164 = vpop.f32.mrb[0].mxu0
        %v5165 = vpop.f32.mrb[0].mxu0
        %5166 = vdwg.mxu0
        %5167 = vmatprep.subr.bf16.mxu0 0
        %5168 = vmatpush1.bf16.msra.mxu0 %v4763
        %5169 = vmatprep.subr.bf16.mxu0 0
        %5170 = vmatpush1.bf16.msra.mxu0 %v4766
        %5171 = vmatprep.subr.bf16.mxu0 0
        %5172 = vmatpush1.bf16.msra.mxu0 %v4769
        %5173 = vmatprep.subr.bf16.mxu0 0
        %5174 = vmatpush1.bf16.msra.mxu0 %v4772
        %5175 = vmatprep.subr.bf16.mxu0 0
        %5176 = vmatpush1.bf16.msra.mxu0 %v4775
        %5177 = vmatprep.subr.bf16.mxu0 0
        %5178 = vmatpush1.bf16.msra.mxu0 %v4778
        %5179 = vmatprep.subr.bf16.mxu0 0
        %5180 = vmatpush1.bf16.msra.mxu0 %v4781
        %5181 = vmatprep.subr.bf16.mxu0 0
        %5182 = vmatpush1.bf16.msra.mxu0 %v4784
        %5183 = vmatprep.subr.bf16.mxu0 0
        %5184 = vmatpush1.bf16.msra.mxu0 %v4787
        %5185 = vmatprep.subr.bf16.mxu0 0
        %5186 = vmatpush1.bf16.msra.mxu0 %v4790
        %5187 = vmatprep.subr.bf16.mxu0 0
        %5188 = vmatpush1.bf16.msra.mxu0 %v4793
        %5189 = vmatprep.subr.bf16.mxu0 0
        %5190 = vmatpush1.bf16.msra.mxu0 %v4796
        %5191 = vmatprep.subr.bf16.mxu0 0
        %5192 = vmatpush1.bf16.msra.mxu0 %v4799
        %5193 = vmatprep.subr.bf16.mxu0 0
        %5194 = vmatpush1.bf16.msra.mxu0 %v4802
        %5195 = vmatprep.subr.bf16.mxu0 0
        %5196 = vmatpush1.bf16.msra.mxu0 %v4805
        %5197 = vmatprep.subr.bf16.mxu0 0
        %5198 = vmatpush1.bf16.msra.mxu0 %v4808
        %5199 = vmatprep.mubr.bf16.mxu0 %v4379
        %5200 = vmatmul.mubr.bf16.gmra.mrb[0].mxu0 %v4378
        %v5201 = vpop.f32.mrb[0].mxu0
        %v5202 = vadd.f32 %v4517, %v5201
        %v5203 = vpop.f32.mrb[0].mxu0
        %v5204 = vpop.f32.mrb[0].mxu0
        %v5205 = vadd.f32 %v4517, %v5204
        %v5206 = vpop.f32.mrb[0].mxu0
        %5207 = vmatprep.mubr.bf16.mxu0 %v4382
        %5208 = vmatmul.mubr.bf16.gmra.mrb[0].mxu0 %v4381
        %v5209 = vpop.f32.mrb[0].mxu0
        %v5210 = vadd.f32 %v4517, %v5209
        %v5211 = vpop.f32.mrb[0].mxu0
        %v5212 = vpop.f32.mrb[0].mxu0
        %v5213 = vadd.f32 %v4517, %v5212
        %v5214 = vpop.f32.mrb[0].mxu0
        %5215 = vmatprep.mubr.bf16.mxu0 %v4385
        %5216 = vmatmul.mubr.bf16.gmra.mrb[0].mxu0 %v4384
        %v5217 = vpop.f32.mrb[0].mxu0
        %v5218 = vadd.f32 %v4517, %v5217
        %v5219 = vpop.f32.mrb[0].mxu0
        %v5220 = vpop.f32.mrb[0].mxu0
        %v5221 = vadd.f32 %v4517, %v5220
        %v5222 = vpop.f32.mrb[0].mxu0
        %5223 = vmatprep.mubr.bf16.mxu0 %v4388
        %5224 = vmatmul.mubr.bf16.gmra.mrb[0].mxu0 %v4387
        %v5225 = vpop.f32.mrb[0].mxu0
        %v5226 = vadd.f32 %v4517, %v5225
        %v5227 = vpop.f32.mrb[0].mxu0
        %v5228 = vpop.f32.mrb[0].mxu0
        %v5229 = vadd.f32 %v4517, %v5228
        %v5230 = vpop.f32.mrb[0].mxu0
        %5231 = vmatprep.mubr.bf16.mxu0 %v4391
        %5232 = vmatmul.mubr.bf16.gmra.mrb[0].mxu0 %v4390
        %v5233 = vpop.f32.mrb[0].mxu0
        %v5234 = vadd.f32 %v4517, %v5233
        %v5235 = vpop.f32.mrb[0].mxu0
        %v5236 = vpop.f32.mrb[0].mxu0
        %v5237 = vadd.f32 %v4517, %v5236
        %v5238 = vpop.f32.mrb[0].mxu0
        %5239 = vmatprep.mubr.bf16.mxu0 %v4394
        %5240 = vmatmul.mubr.bf16.gmra.mrb[0].mxu0 %v4393
        %v5241 = vpop.f32.mrb[0].mxu0
        %v5242 = vadd.f32 %v4517, %v5241
        %v5243 = vpop.f32.mrb[0].mxu0
        %v5244 = vpop.f32.mrb[0].mxu0
        %v5245 = vadd.f32 %v4517, %v5244
        %v5246 = vpop.f32.mrb[0].mxu0
        %5247 = vmatprep.mubr.bf16.mxu0 %v4397
        %5248 = vmatmul.mubr.bf16.gmra.mrb[0].mxu0 %v4396
        %v5249 = vpop.f32.mrb[0].mxu0
        %v5250 = vadd.f32 %v4517, %v5249
        %v5251 = vpop.f32.mrb[0].mxu0
        %v5252 = vpop.f32.mrb[0].mxu0
        %v5253 = vadd.f32 %v4517, %v5252
        %v5254 = vpop.f32.mrb[0].mxu0
        %5255 = vmatprep.mubr.bf16.mxu0 %v4400
        %5256 = vmatmul.mubr.bf16.gmra.mrb[0].mxu0 %v4399
        %v5257 = vpop.f32.mrb[0].mxu0
        %v5258 = vadd.f32 %v4517, %v5257
        %v5259 = vpop.f32.mrb[0].mxu0
        %v5260 = vpop.f32.mrb[0].mxu0
        %v5261 = vadd.f32 %v4517, %v5260
        %v5262 = vpop.f32.mrb[0].mxu0
        %5263 = vmatprep.mubr.bf16.mxu0 %v4403
        %5264 = vmatmul.mubr.bf16.gmra.mrb[0].mxu0 %v4402
        %v5265 = vpop.f32.mrb[0].mxu0
        %v5266 = vadd.f32 %v4517, %v5265
        %v5267 = vpop.f32.mrb[0].mxu0
        %v5268 = vpop.f32.mrb[0].mxu0
        %v5269 = vadd.f32 %v4517, %v5268
        %v5270 = vpop.f32.mrb[0].mxu0
        %5271 = vmatprep.mubr.bf16.mxu0 %v4406
        %5272 = vmatmul.mubr.bf16.gmra.mrb[0].mxu0 %v4405
        %v5273 = vpop.f32.mrb[0].mxu0
        %v5274 = vadd.f32 %v4517, %v5273
        %v5275 = vpop.f32.mrb[0].mxu0
        %v5276 = vpop.f32.mrb[0].mxu0
        %v5277 = vpop.f32.mrb[0].mxu0
        %5278 = vdwg.mxu0
        %5279 = vmatprep.subr.bf16.mxu0 0
        %5280 = vmatpush1.bf16.msra.mxu0 %v4811
        %5281 = vmatprep.subr.bf16.mxu0 0
        %5282 = vmatpush1.bf16.msra.mxu0 %v4814
        %5283 = vmatprep.subr.bf16.mxu0 0
        %5284 = vmatpush1.bf16.msra.mxu0 %v4817
        %5285 = vmatprep.subr.bf16.mxu0 0
        %5286 = vmatpush1.bf16.msra.mxu0 %v4820
        %5287 = vmatprep.subr.bf16.mxu0 0
        %5288 = vmatpush1.bf16.msra.mxu0 %v4823
        %5289 = vmatprep.subr.bf16.mxu0 0
        %5290 = vmatpush1.bf16.msra.mxu0 %v4826
        %5291 = vmatprep.subr.bf16.mxu0 0
        %5292 = vmatpush1.bf16.msra.mxu0 %v4829
        %5293 = vmatprep.subr.bf16.mxu0 0
        %5294 = vmatpush1.bf16.msra.mxu0 %v4832
        %5295 = vmatprep.subr.bf16.mxu0 0
        %5296 = vmatpush1.bf16.msra.mxu0 0
        %5297 = vmatprep.subr.bf16.mxu0 0
        %5298 = vmatpush1.bf16.msra.mxu0 0
        %5299 = vmatprep.subr.bf16.mxu0 0
        %5300 = vmatpush1.bf16.msra.mxu0 0
        %5301 = vmatprep.subr.bf16.mxu0 0
        %5302 = vmatpush1.bf16.msra.mxu0 0
        %5303 = vmatprep.subr.bf16.mxu0 0
        %5304 = vmatpush1.bf16.msra.mxu0 0
        %5305 = vmatprep.subr.bf16.mxu0 0
        %5306 = vmatpush1.bf16.msra.mxu0 0
        %5307 = vmatprep.subr.bf16.mxu0 0
        %5308 = vmatpush1.bf16.msra.mxu0 0
        %5309 = vmatprep.subr.bf16.mxu0 0
        %5310 = vmatpush1.bf16.msra.mxu0 0
        %5311 = vmatprep.mubr.bf16.mxu0 0
        %5312 = vmatmul.mubr.bf16.gmra.mrb[0].mxu0 %v4380
        %v5313 = vpop.f32.mrb[0].mxu0
        %v5314 = vadd.f32 %v5202, %v5313
        %v5315 = vpop.f32.mrb[0].mxu0
        %v5316 = vpop.f32.mrb[0].mxu0
        %v5317 = vadd.f32 %v5205, %v5316
        %v5318 = vpop.f32.mrb[0].mxu0
        %5319 = vmatprep.mubr.bf16.mxu0 0
        %5320 = vmatmul.mubr.bf16.gmra.mrb[0].mxu0 %v4383
        %v5321 = vpop.f32.mrb[0].mxu0
        %v5322 = vadd.f32 %v5210, %v5321
        %v5323 = vpop.f32.mrb[0].mxu0
        %v5324 = vpop.f32.mrb[0].mxu0
        %v5325 = vadd.f32 %v5213, %v5324
        %v5326 = vpop.f32.mrb[0].mxu0
        %5327 = vmatprep.mubr.bf16.mxu0 0
        %5328 = vmatmul.mubr.bf16.gmra.mrb[0].mxu0 %v4386
        %v5329 = vpop.f32.mrb[0].mxu0
        %v5330 = vadd.f32 %v5218, %v5329
        %v5331 = vpop.f32.mrb[0].mxu0
        %v5332 = vpop.f32.mrb[0].mxu0
        %v5333 = vadd.f32 %v5221, %v5332
        %v5334 = vpop.f32.mrb[0].mxu0
        %5335 = vmatprep.mubr.bf16.mxu0 0
        %5336 = vmatmul.mubr.bf16.gmra.mrb[0].mxu0 %v4389
        %v5337 = vpop.f32.mrb[0].mxu0
        %v5338 = vadd.f32 %v5226, %v5337
        %v5339 = vpop.f32.mrb[0].mxu0
        %v5340 = vpop.f32.mrb[0].mxu0
        %v5341 = vadd.f32 %v5229, %v5340
        %v5342 = vpop.f32.mrb[0].mxu0
        %5343 = vmatprep.mubr.bf16.mxu0 0
        %5344 = vmatmul.mubr.bf16.gmra.mrb[0].mxu0 %v4392
        %v5345 = vpop.f32.mrb[0].mxu0
        %v5346 = vadd.f32 %v5234, %v5345
        %v5347 = vpop.f32.mrb[0].mxu0
        %v5348 = vpop.f32.mrb[0].mxu0
        %v5349 = vadd.f32 %v5237, %v5348
        %v5350 = vpop.f32.mrb[0].mxu0
        %5351 = vmatprep.mubr.bf16.mxu0 0
        %5352 = vmatmul.mubr.bf16.gmra.mrb[0].mxu0 %v4395
        %v5353 = vpop.f32.mrb[0].mxu0
        %v5354 = vadd.f32 %v5242, %v5353
        %v5355 = vpop.f32.mrb[0].mxu0
        %v5356 = vpop.f32.mrb[0].mxu0
        %v5357 = vadd.f32 %v5245, %v5356
        %v5358 = vpop.f32.mrb[0].mxu0
        %5359 = vmatprep.mubr.bf16.mxu0 0
        %5360 = vmatmul.mubr.bf16.gmra.mrb[0].mxu0 %v4398
        %v5361 = vpop.f32.mrb[0].mxu0
        %v5362 = vadd.f32 %v5250, %v5361
        %v5363 = vpop.f32.mrb[0].mxu0
        %v5364 = vpop.f32.mrb[0].mxu0
        %v5365 = vadd.f32 %v5253, %v5364
        %v5366 = vpop.f32.mrb[0].mxu0
        %5367 = vmatprep.mubr.bf16.mxu0 0
        %5368 = vmatmul.mubr.bf16.gmra.mrb[0].mxu0 %v4401
        %v5369 = vpop.f32.mrb[0].mxu0
        %v5370 = vadd.f32 %v5258, %v5369
        %v5371 = vpop.f32.mrb[0].mxu0
        %v5372 = vpop.f32.mrb[0].mxu0
        %v5373 = vadd.f32 %v5261, %v5372
        %v5374 = vpop.f32.mrb[0].mxu0
        %5375 = vmatprep.mubr.bf16.mxu0 0
        %5376 = vmatmul.mubr.bf16.gmra.mrb[0].mxu0 %v4404
        %v5377 = vpop.f32.mrb[0].mxu0
        %v5378 = vadd.f32 %v5266, %v5377
        %v5379 = vpop.f32.mrb[0].mxu0
        %v5380 = vpop.f32.mrb[0].mxu0
        %v5381 = vadd.f32 %v5269, %v5380
        %v5382 = vpop.f32.mrb[0].mxu0
        %5383 = vmatprep.mubr.bf16.mxu0 0
        %5384 = vmatmul.mubr.bf16.gmra.mrb[0].mxu0 %v4407
        %v5385 = vpop.f32.mrb[0].mxu0
        %v5386 = vadd.f32 %v5274, %v5385
        %v5387 = vpop.f32.mrb[0].mxu0
        %v5388 = vpop.f32.mrb[0].mxu0
        %v5389 = vpop.f32.mrb[0].mxu0
        %5390 = vdwg.mxu0
        %v5391 = vmul.f32 %v5071, 0.5
        %v5392 = vmul.f32 %v5073, 0.5
        %v5393 = vmul.f32 %v5314, 0.5
        %v5394 = vmul.f32 %v5075, 0.5
        %v5395 = vmul.f32 %v5077, 0.5
        %v5396 = vmul.f32 %v5317, 0.5
        %v5397 = vmul.f32 %v5081, 0.5
        %v5398 = vmul.f32 %v5083, 0.5
        %v5399 = vmul.f32 %v5322, 0.5
        %v5400 = vmul.f32 %v5085, 0.5
        %v5401 = vmul.f32 %v5087, 0.5
        %v5402 = vmul.f32 %v5325, 0.5
        %v5403 = vmul.f32 %v5091, 0.5
        %v5404 = vmul.f32 %v5093, 0.5
        %v5405 = vmul.f32 %v5330, 0.5
        %v5406 = vmul.f32 %v5095, 0.5
        %v5407 = vmul.f32 %v5097, 0.5
        %v5408 = vmul.f32 %v5333, 0.5
        %v5409 = vmul.f32 %v5101, 0.5
        %v5410 = vmul.f32 %v5103, 0.5
        %v5411 = vmul.f32 %v5338, 0.5
        %v5412 = vmul.f32 %v5105, 0.5
        %v5413 = vmul.f32 %v5107, 0.5
        %v5414 = vmul.f32 %v5341, 0.5
        %v5415 = vmul.f32 %v5111, 0.5
        %v5416 = vmul.f32 %v5113, 0.5
        %v5417 = vmul.f32 %v5346, 0.5
        %v5418 = vmul.f32 %v5115, 0.5
        %v5419 = vmul.f32 %v5117, 0.5
        %v5420 = vmul.f32 %v5349, 0.5
        %v5421 = vmul.f32 %v5121, 0.5
        %v5422 = vmul.f32 %v5123, 0.5
        %v5423 = vmul.f32 %v5354, 0.5
        %v5424 = vmul.f32 %v5125, 0.5
        %v5425 = vmul.f32 %v5127, 0.5
        %v5426 = vmul.f32 %v5357, 0.5
        %v5427 = vmul.f32 %v5131, 0.5
        %v5428 = vmul.f32 %v5133, 0.5
        %v5429 = vmul.f32 %v5362, 0.5
        %v5430 = vmul.f32 %v5135, 0.5
        %v5431 = vmul.f32 %v5137, 0.5
        %v5432 = vmul.f32 %v5365, 0.5
        %v5433 = vmul.f32 %v5141, 0.5
        %v5434 = vmul.f32 %v5143, 0.5
        %v5435 = vmul.f32 %v5370, 0.5
        %v5436 = vmul.f32 %v5145, 0.5
        %v5437 = vmul.f32 %v5147, 0.5
        %v5438 = vmul.f32 %v5373, 0.5
        %v5439 = vmul.f32 %v5151, 0.5
        %v5440 = vmul.f32 %v5153, 0.5
        %v5441 = vmul.f32 %v5378, 0.5
        %v5442 = vmul.f32 %v5155, 0.5
        %v5443 = vmul.f32 %v5157, 0.5
        %v5444 = vmul.f32 %v5381, 0.5
        %v5445 = vmul.f32 %v5161, 0.5
        %v5446 = vmul.f32 %v5163, 0.5
        %v5447 = vmul.f32 %v5386, 0.5
        %v5448 = vmul.f32 %v5071, %v5071
        %v5449 = vmul.f32 %v5073, %v5073
        %v5450 = vmul.f32 %v5314, %v5314
        %v5451 = vmul.f32 %v5075, %v5075
        %v5452 = vmul.f32 %v5077, %v5077
        %v5453 = vmul.f32 %v5317, %v5317
        %v5454 = vmul.f32 %v5081, %v5081
        %v5455 = vmul.f32 %v5083, %v5083
        %v5456 = vmul.f32 %v5322, %v5322
        %v5457 = vmul.f32 %v5085, %v5085
        %v5458 = vmul.f32 %v5087, %v5087
        %v5459 = vmul.f32 %v5325, %v5325
        %v5460 = vmul.f32 %v5091, %v5091
        %v5461 = vmul.f32 %v5093, %v5093
        %v5462 = vmul.f32 %v5330, %v5330
        %v5463 = vmul.f32 %v5095, %v5095
        %v5464 = vmul.f32 %v5097, %v5097
        %v5465 = vmul.f32 %v5333, %v5333
        %v5466 = vmul.f32 %v5101, %v5101
        %v5467 = vmul.f32 %v5103, %v5103
        %v5468 = vmul.f32 %v5338, %v5338
        %v5469 = vmul.f32 %v5105, %v5105
        %v5470 = vmul.f32 %v5107, %v5107
        %v5471 = vmul.f32 %v5341, %v5341
        %v5472 = vmul.f32 %v5111, %v5111
        %v5473 = vmul.f32 %v5113, %v5113
        %v5474 = vmul.f32 %v5346, %v5346
        %v5475 = vmul.f32 %v5115, %v5115
        %v5476 = vmul.f32 %v5117, %v5117
        %v5477 = vmul.f32 %v5349, %v5349
        %v5478 = vmul.f32 %v5121, %v5121
        %v5479 = vmul.f32 %v5123, %v5123
        %v5480 = vmul.f32 %v5354, %v5354
        %v5481 = vmul.f32 %v5125, %v5125
        %v5482 = vmul.f32 %v5127, %v5127
        %v5483 = vmul.f32 %v5357, %v5357
        %v5484 = vmul.f32 %v5131, %v5131
        %v5485 = vmul.f32 %v5133, %v5133
        %v5486 = vmul.f32 %v5362, %v5362
        %v5487 = vmul.f32 %v5135, %v5135
        %v5488 = vmul.f32 %v5137, %v5137
        %v5489 = vmul.f32 %v5365, %v5365
        %v5490 = vmul.f32 %v5141, %v5141
        %v5491 = vmul.f32 %v5143, %v5143
        %v5492 = vmul.f32 %v5370, %v5370
        %v5493 = vmul.f32 %v5145, %v5145
        %v5494 = vmul.f32 %v5147, %v5147
        %v5495 = vmul.f32 %v5373, %v5373
        %v5496 = vmul.f32 %v5151, %v5151
        %v5497 = vmul.f32 %v5153, %v5153
        %v5498 = vmul.f32 %v5378, %v5378
        %v5499 = vmul.f32 %v5155, %v5155
        %v5500 = vmul.f32 %v5157, %v5157
        %v5501 = vmul.f32 %v5381, %v5381
        %v5502 = vmul.f32 %v5161, %v5161
        %v5503 = vmul.f32 %v5163, %v5163
        %v5504 = vmul.f32 %v5386, %v5386
        %v5505 = vmul.f32 %v5448, %v5071
        %v5506 = vmul.f32 %v5449, %v5073
        %v5507 = vmul.f32 %v5450, %v5314
        %v5508 = vmul.f32 %v5451, %v5075
        %v5509 = vmul.f32 %v5452, %v5077
        %v5510 = vmul.f32 %v5453, %v5317
        %v5511 = vmul.f32 %v5454, %v5081
        %v5512 = vmul.f32 %v5455, %v5083
        %v5513 = vmul.f32 %v5456, %v5322
        %v5514 = vmul.f32 %v5457, %v5085
        %v5515 = vmul.f32 %v5458, %v5087
        %v5516 = vmul.f32 %v5459, %v5325
        %v5517 = vmul.f32 %v5460, %v5091
        %v5518 = vmul.f32 %v5461, %v5093
        %v5519 = vmul.f32 %v5462, %v5330
        %v5520 = vmul.f32 %v5463, %v5095
        %v5521 = vmul.f32 %v5464, %v5097
        %v5522 = vmul.f32 %v5465, %v5333
        %v5523 = vmul.f32 %v5466, %v5101
        %v5524 = vmul.f32 %v5467, %v5103
        %v5525 = vmul.f32 %v5468, %v5338
        %v5526 = vmul.f32 %v5469, %v5105
        %v5527 = vmul.f32 %v5470, %v5107
        %v5528 = vmul.f32 %v5471, %v5341
        %v5529 = vmul.f32 %v5472, %v5111
        %v5530 = vmul.f32 %v5473, %v5113
        %v5531 = vmul.f32 %v5474, %v5346
        %v5532 = vmul.f32 %v5475, %v5115
        %v5533 = vmul.f32 %v5476, %v5117
        %v5534 = vmul.f32 %v5477, %v5349
        %v5535 = vmul.f32 %v5478, %v5121
        %v5536 = vmul.f32 %v5479, %v5123
        %v5537 = vmul.f32 %v5480, %v5354
        %v5538 = vmul.f32 %v5481, %v5125
        %v5539 = vmul.f32 %v5482, %v5127
        %v5540 = vmul.f32 %v5483, %v5357
        %v5541 = vmul.f32 %v5484, %v5131
        %v5542 = vmul.f32 %v5485, %v5133
        %v5543 = vmul.f32 %v5486, %v5362
        %v5544 = vmul.f32 %v5487, %v5135
        %v5545 = vmul.f32 %v5488, %v5137
        %v5546 = vmul.f32 %v5489, %v5365
        %v5547 = vmul.f32 %v5490, %v5141
        %v5548 = vmul.f32 %v5491, %v5143
        %v5549 = vmul.f32 %v5492, %v5370
        %v5550 = vmul.f32 %v5493, %v5145
        %v5551 = vmul.f32 %v5494, %v5147
        %v5552 = vmul.f32 %v5495, %v5373
        %v5553 = vmul.f32 %v5496, %v5151
        %v5554 = vmul.f32 %v5497, %v5153
        %v5555 = vmul.f32 %v5498, %v5378
        %v5556 = vmul.f32 %v5499, %v5155
        %v5557 = vmul.f32 %v5500, %v5157
        %v5558 = vmul.f32 %v5501, %v5381
        %v5559 = vmul.f32 %v5502, %v5161
        %v5560 = vmul.f32 %v5503, %v5163
        %v5561 = vmul.f32 %v5504, %v5386
        %v5562 = vmul.f32 %v5505, 0.044715
        %v5563 = vmul.f32 %v5506, 0.044715
        %v5564 = vmul.f32 %v5507, 0.044715
        %v5565 = vmul.f32 %v5508, 0.044715
        %v5566 = vmul.f32 %v5509, 0.044715
        %v5567 = vmul.f32 %v5510, 0.044715
        %v5568 = vmul.f32 %v5511, 0.044715
        %v5569 = vmul.f32 %v5512, 0.044715
        %v5570 = vmul.f32 %v5513, 0.044715
        %v5571 = vmul.f32 %v5514, 0.044715
        %v5572 = vmul.f32 %v5515, 0.044715
        %v5573 = vmul.f32 %v5516, 0.044715
        %v5574 = vmul.f32 %v5517, 0.044715
        %v5575 = vmul.f32 %v5518, 0.044715
        %v5576 = vmul.f32 %v5519, 0.044715
        %v5577 = vmul.f32 %v5520, 0.044715
        %v5578 = vmul.f32 %v5521, 0.044715
        %v5579 = vmul.f32 %v5522, 0.044715
        %v5580 = vmul.f32 %v5523, 0.044715
        %v5581 = vmul.f32 %v5524, 0.044715
        %v5582 = vmul.f32 %v5525, 0.044715
        %v5583 = vmul.f32 %v5526, 0.044715
        %v5584 = vmul.f32 %v5527, 0.044715
        %v5585 = vmul.f32 %v5528, 0.044715
        %v5586 = vmul.f32 %v5529, 0.044715
        %v5587 = vmul.f32 %v5530, 0.044715
        %v5588 = vmul.f32 %v5531, 0.044715
        %v5589 = vmul.f32 %v5532, 0.044715
        %v5590 = vmul.f32 %v5533, 0.044715
        %v5591 = vmul.f32 %v5534, 0.044715
        %v5592 = vmul.f32 %v5535, 0.044715
        %v5593 = vmul.f32 %v5536, 0.044715
        %v5594 = vmul.f32 %v5537, 0.044715
        %v5595 = vmul.f32 %v5538, 0.044715
        %v5596 = vmul.f32 %v5539, 0.044715
        %v5597 = vmul.f32 %v5540, 0.044715
        %v5598 = vmul.f32 %v5541, 0.044715
        %v5599 = vmul.f32 %v5542, 0.044715
        %v5600 = vmul.f32 %v5543, 0.044715
        %v5601 = vmul.f32 %v5544, 0.044715
        %v5602 = vmul.f32 %v5545, 0.044715
        %v5603 = vmul.f32 %v5546, 0.044715
        %v5604 = vmul.f32 %v5547, 0.044715
        %v5605 = vmul.f32 %v5548, 0.044715
        %v5606 = vmul.f32 %v5549, 0.044715
        %v5607 = vmul.f32 %v5550, 0.044715
        %v5608 = vmul.f32 %v5551, 0.044715
        %v5609 = vmul.f32 %v5552, 0.044715
        %v5610 = vmul.f32 %v5553, 0.044715
        %v5611 = vmul.f32 %v5554, 0.044715
        %v5612 = vmul.f32 %v5555, 0.044715
        %v5613 = vmul.f32 %v5556, 0.044715
        %v5614 = vmul.f32 %v5557, 0.044715
        %v5615 = vmul.f32 %v5558, 0.044715
        %v5616 = vmul.f32 %v5559, 0.044715
        %v5617 = vmul.f32 %v5560, 0.044715
        %v5618 = vmul.f32 %v5561, 0.044715
        %v5619 = vadd.f32 %v5071, %v5562
        %v5620 = vadd.f32 %v5073, %v5563
        %v5621 = vadd.f32 %v5314, %v5564
        %v5622 = vadd.f32 %v5075, %v5565
        %v5623 = vadd.f32 %v5077, %v5566
        %v5624 = vadd.f32 %v5317, %v5567
        %v5625 = vadd.f32 %v5081, %v5568
        %v5626 = vadd.f32 %v5083, %v5569
        %v5627 = vadd.f32 %v5322, %v5570
        %v5628 = vadd.f32 %v5085, %v5571
        %v5629 = vadd.f32 %v5087, %v5572
        %v5630 = vadd.f32 %v5325, %v5573
        %v5631 = vadd.f32 %v5091, %v5574
        %v5632 = vadd.f32 %v5093, %v5575
        %v5633 = vadd.f32 %v5330, %v5576
        %v5634 = vadd.f32 %v5095, %v5577
        %v5635 = vadd.f32 %v5097, %v5578
        %v5636 = vadd.f32 %v5333, %v5579
        %v5637 = vadd.f32 %v5101, %v5580
        %v5638 = vadd.f32 %v5103, %v5581
        %v5639 = vadd.f32 %v5338, %v5582
        %v5640 = vadd.f32 %v5105, %v5583
        %v5641 = vadd.f32 %v5107, %v5584
        %v5642 = vadd.f32 %v5341, %v5585
        %v5643 = vadd.f32 %v5111, %v5586
        %v5644 = vadd.f32 %v5113, %v5587
        %v5645 = vadd.f32 %v5346, %v5588
        %v5646 = vadd.f32 %v5115, %v5589
        %v5647 = vadd.f32 %v5117, %v5590
        %v5648 = vadd.f32 %v5349, %v5591
        %v5649 = vadd.f32 %v5121, %v5592
        %v5650 = vadd.f32 %v5123, %v5593
        %v5651 = vadd.f32 %v5354, %v5594
        %v5652 = vadd.f32 %v5125, %v5595
        %v5653 = vadd.f32 %v5127, %v5596
        %v5654 = vadd.f32 %v5357, %v5597
        %v5655 = vadd.f32 %v5131, %v5598
        %v5656 = vadd.f32 %v5133, %v5599
        %v5657 = vadd.f32 %v5362, %v5600
        %v5658 = vadd.f32 %v5135, %v5601
        %v5659 = vadd.f32 %v5137, %v5602
        %v5660 = vadd.f32 %v5365, %v5603
        %v5661 = vadd.f32 %v5141, %v5604
        %v5662 = vadd.f32 %v5143, %v5605
        %v5663 = vadd.f32 %v5370, %v5606
        %v5664 = vadd.f32 %v5145, %v5607
        %v5665 = vadd.f32 %v5147, %v5608
        %v5666 = vadd.f32 %v5373, %v5609
        %v5667 = vadd.f32 %v5151, %v5610
        %v5668 = vadd.f32 %v5153, %v5611
        %v5669 = vadd.f32 %v5378, %v5612
        %v5670 = vadd.f32 %v5155, %v5613
        %v5671 = vadd.f32 %v5157, %v5614
        %v5672 = vadd.f32 %v5381, %v5615
        %v5673 = vadd.f32 %v5161, %v5616
        %v5674 = vadd.f32 %v5163, %v5617
        %v5675 = vadd.f32 %v5386, %v5618
        %v5676 = vmul.f32 %v5619, 0.7978846
        %v5677 = vmul.f32 %v5620, 0.7978846
        %v5678 = vmul.f32 %v5621, 0.7978846
        %v5679 = vmul.f32 %v5622, 0.7978846
        %v5680 = vmul.f32 %v5623, 0.7978846
        %v5681 = vmul.f32 %v5624, 0.7978846
        %v5682 = vmul.f32 %v5625, 0.7978846
        %v5683 = vmul.f32 %v5626, 0.7978846
        %v5684 = vmul.f32 %v5627, 0.7978846
        %v5685 = vmul.f32 %v5628, 0.7978846
        %v5686 = vmul.f32 %v5629, 0.7978846
        %v5687 = vmul.f32 %v5630, 0.7978846
        %v5688 = vmul.f32 %v5631, 0.7978846
        %v5689 = vmul.f32 %v5632, 0.7978846
        %v5690 = vmul.f32 %v5633, 0.7978846
        %v5691 = vmul.f32 %v5634, 0.7978846
        %v5692 = vmul.f32 %v5635, 0.7978846
        %v5693 = vmul.f32 %v5636, 0.7978846
        %v5694 = vmul.f32 %v5637, 0.7978846
        %v5695 = vmul.f32 %v5638, 0.7978846
        %v5696 = vmul.f32 %v5639, 0.7978846
        %v5697 = vmul.f32 %v5640, 0.7978846
        %v5698 = vmul.f32 %v5641, 0.7978846
        %v5699 = vmul.f32 %v5642, 0.7978846
        %v5700 = vmul.f32 %v5643, 0.7978846
        %v5701 = vmul.f32 %v5644, 0.7978846
        %v5702 = vmul.f32 %v5645, 0.7978846
        %v5703 = vmul.f32 %v5646, 0.7978846
        %v5704 = vmul.f32 %v5647, 0.7978846
        %v5705 = vmul.f32 %v5648, 0.7978846
        %v5706 = vmul.f32 %v5649, 0.7978846
        %v5707 = vmul.f32 %v5650, 0.7978846
        %v5708 = vmul.f32 %v5651, 0.7978846
        %v5709 = vmul.f32 %v5652, 0.7978846
        %v5710 = vmul.f32 %v5653, 0.7978846
        %v5711 = vmul.f32 %v5654, 0.7978846
        %v5712 = vmul.f32 %v5655, 0.7978846
        %v5713 = vmul.f32 %v5656, 0.7978846
        %v5714 = vmul.f32 %v5657, 0.7978846
        %v5715 = vmul.f32 %v5658, 0.7978846
        %v5716 = vmul.f32 %v5659, 0.7978846
        %v5717 = vmul.f32 %v5660, 0.7978846
        %v5718 = vmul.f32 %v5661, 0.7978846
        %v5719 = vmul.f32 %v5662, 0.7978846
        %v5720 = vmul.f32 %v5663, 0.7978846
        %v5721 = vmul.f32 %v5664, 0.7978846
        %v5722 = vmul.f32 %v5665, 0.7978846
        %v5723 = vmul.f32 %v5666, 0.7978846
        %v5724 = vmul.f32 %v5667, 0.7978846
        %v5725 = vmul.f32 %v5668, 0.7978846
        %v5726 = vmul.f32 %v5669, 0.7978846
        %v5727 = vmul.f32 %v5670, 0.7978846
        %v5728 = vmul.f32 %v5671, 0.7978846
        %v5729 = vmul.f32 %v5672, 0.7978846
        %v5730 = vmul.f32 %v5673, 0.7978846
        %v5731 = vmul.f32 %v5674, 0.7978846
        %v5732 = vmul.f32 %v5675, 0.7978846
        %v5733 = vtanh.pop %v5676
        %v5734 = vtanh.pop %v5677
        %v5735 = vtanh.pop %v5678
        %v5736 = vtanh.pop %v5679
        %v5737 = vtanh.pop %v5680
        %v5738 = vtanh.pop %v5681
        %v5739 = vtanh.pop %v5682
        %v5740 = vtanh.pop %v5683
        %v5741 = vtanh.pop %v5684
        %v5742 = vtanh.pop %v5685
        %v5743 = vtanh.pop %v5686
        %v5744 = vtanh.pop %v5687
        %v5745 = vtanh.pop %v5688
        %v5746 = vtanh.pop %v5689
        %v5747 = vtanh.pop %v5690
        %v5748 = vtanh.pop %v5691
        %v5749 = vtanh.pop %v5692
        %v5750 = vtanh.pop %v5693
        %v5751 = vtanh.pop %v5694
        %v5752 = vtanh.pop %v5695
        %v5753 = vtanh.pop %v5696
        %v5754 = vtanh.pop %v5697
        %v5755 = vtanh.pop %v5698
        %v5756 = vtanh.pop %v5699
        %v5757 = vtanh.pop %v5700
        %v5758 = vtanh.pop %v5701
        %v5759 = vtanh.pop %v5702
        %v5760 = vtanh.pop %v5703
        %v5761 = vtanh.pop %v5704
        %v5762 = vtanh.pop %v5705
        %v5763 = vtanh.pop %v5706
        %v5764 = vtanh.pop %v5707
        %v5765 = vtanh.pop %v5708
        %v5766 = vtanh.pop %v5709
        %v5767 = vtanh.pop %v5710
        %v5768 = vtanh.pop %v5711
        %v5769 = vtanh.pop %v5712
        %v5770 = vtanh.pop %v5713
        %v5771 = vtanh.pop %v5714
        %v5772 = vtanh.pop %v5715
        %v5773 = vtanh.pop %v5716
        %v5774 = vtanh.pop %v5717
        %v5775 = vtanh.pop %v5718
        %v5776 = vtanh.pop %v5719
        %v5777 = vtanh.pop %v5720
        %v5778 = vtanh.pop %v5721
        %v5779 = vtanh.pop %v5722
        %v5780 = vtanh.pop %v5723
        %v5781 = vtanh.pop %v5724
        %v5782 = vtanh.pop %v5725
        %v5783 = vtanh.pop %v5726
        %v5784 = vtanh.pop %v5727
        %v5785 = vtanh.pop %v5728
        %v5786 = vtanh.pop %v5729
        %v5787 = vtanh.pop %v5730
        %v5788 = vtanh.pop %v5731
        %v5789 = vtanh.pop %v5732
        %v5790 = vadd.f32 %v5733, 1.0
        %v5791 = vadd.f32 %v5734, 1.0
        %v5792 = vadd.f32 %v5735, 1.0
        %v5793 = vadd.f32 %v5736, 1.0
        %v5794 = vadd.f32 %v5737, 1.0
        %v5795 = vadd.f32 %v5738, 1.0
        %v5796 = vadd.f32 %v5739, 1.0
        %v5797 = vadd.f32 %v5740, 1.0
        %v5798 = vadd.f32 %v5741, 1.0
        %v5799 = vadd.f32 %v5742, 1.0
        %v5800 = vadd.f32 %v5743, 1.0
        %v5801 = vadd.f32 %v5744, 1.0
        %v5802 = vadd.f32 %v5745, 1.0
        %v5803 = vadd.f32 %v5746, 1.0
        %v5804 = vadd.f32 %v5747, 1.0
        %v5805 = vadd.f32 %v5748, 1.0
        %v5806 = vadd.f32 %v5749, 1.0
        %v5807 = vadd.f32 %v5750, 1.0
        %v5808 = vadd.f32 %v5751, 1.0
        %v5809 = vadd.f32 %v5752, 1.0
        %v5810 = vadd.f32 %v5753, 1.0
        %v5811 = vadd.f32 %v5754, 1.0
        %v5812 = vadd.f32 %v5755, 1.0
        %v5813 = vadd.f32 %v5756, 1.0
        %v5814 = vadd.f32 %v5757, 1.0
        %v5815 = vadd.f32 %v5758, 1.0
        %v5816 = vadd.f32 %v5759, 1.0
        %v5817 = vadd.f32 %v5760, 1.0
        %v5818 = vadd.f32 %v5761, 1.0
        %v5819 = vadd.f32 %v5762, 1.0
        %v5820 = vadd.f32 %v5763, 1.0
        %v5821 = vadd.f32 %v5764, 1.0
        %v5822 = vadd.f32 %v5765, 1.0
        %v5823 = vadd.f32 %v5766, 1.0
        %v5824 = vadd.f32 %v5767, 1.0
        %v5825 = vadd.f32 %v5768, 1.0
        %v5826 = vadd.f32 %v5769, 1.0
        %v5827 = vadd.f32 %v5770, 1.0
        %v5828 = vadd.f32 %v5771, 1.0
        %v5829 = vadd.f32 %v5772, 1.0
        %v5830 = vadd.f32 %v5773, 1.0
        %v5831 = vadd.f32 %v5774, 1.0
        %v5832 = vadd.f32 %v5775, 1.0
        %v5833 = vadd.f32 %v5776, 1.0
        %v5834 = vadd.f32 %v5777, 1.0
        %v5835 = vadd.f32 %v5778, 1.0
        %v5836 = vadd.f32 %v5779, 1.0
        %v5837 = vadd.f32 %v5780, 1.0
        %v5838 = vadd.f32 %v5781, 1.0
        %v5839 = vadd.f32 %v5782, 1.0
        %v5840 = vadd.f32 %v5783, 1.0
        %v5841 = vadd.f32 %v5784, 1.0
        %v5842 = vadd.f32 %v5785, 1.0
        %v5843 = vadd.f32 %v5786, 1.0
        %v5844 = vadd.f32 %v5787, 1.0
        %v5845 = vadd.f32 %v5788, 1.0
        %v5846 = vadd.f32 %v5789, 1.0
        %v5847 = vmul.f32 %v5391, %v5790
        %v5848 = vmul.f32 %v5392, %v5791
        %v5849 = vmul.f32 %v5393, %v5792
        %v5850 = vmul.f32 %v5394, %v5793
        %v5851 = vmul.f32 %v5395, %v5794
        %v5852 = vmul.f32 %v5396, %v5795
        %v5853 = vmul.f32 %v5397, %v5796
        %v5854 = vmul.f32 %v5398, %v5797
        %v5855 = vmul.f32 %v5399, %v5798
        %v5856 = vmul.f32 %v5400, %v5799
        %v5857 = vmul.f32 %v5401, %v5800
        %v5858 = vmul.f32 %v5402, %v5801
        %v5859 = vmul.f32 %v5403, %v5802
        %v5860 = vmul.f32 %v5404, %v5803
        %v5861 = vmul.f32 %v5405, %v5804
        %v5862 = vmul.f32 %v5406, %v5805
        %v5863 = vmul.f32 %v5407, %v5806
        %v5864 = vmul.f32 %v5408, %v5807
        %v5865 = vmul.f32 %v5409, %v5808
        %v5866 = vmul.f32 %v5410, %v5809
        %v5867 = vmul.f32 %v5411, %v5810
        %v5868 = vmul.f32 %v5412, %v5811
        %v5869 = vmul.f32 %v5413, %v5812
        %v5870 = vmul.f32 %v5414, %v5813
        %v5871 = vmul.f32 %v5415, %v5814
        %v5872 = vmul.f32 %v5416, %v5815
        %v5873 = vmul.f32 %v5417, %v5816
        %v5874 = vmul.f32 %v5418, %v5817
        %v5875 = vmul.f32 %v5419, %v5818
        %v5876 = vmul.f32 %v5420, %v5819
        %v5877 = vmul.f32 %v5421, %v5820
        %v5878 = vmul.f32 %v5422, %v5821
        %v5879 = vmul.f32 %v5423, %v5822
        %v5880 = vmul.f32 %v5424, %v5823
        %v5881 = vmul.f32 %v5425, %v5824
        %v5882 = vmul.f32 %v5426, %v5825
        %v5883 = vmul.f32 %v5427, %v5826
        %v5884 = vmul.f32 %v5428, %v5827
        %v5885 = vmul.f32 %v5429, %v5828
        %v5886 = vmul.f32 %v5430, %v5829
        %v5887 = vmul.f32 %v5431, %v5830
        %v5888 = vmul.f32 %v5432, %v5831
        %v5889 = vmul.f32 %v5433, %v5832
        %v5890 = vmul.f32 %v5434, %v5833
        %v5891 = vmul.f32 %v5435, %v5834
        %v5892 = vmul.f32 %v5436, %v5835
        %v5893 = vmul.f32 %v5437, %v5836
        %v5894 = vmul.f32 %v5438, %v5837
        %v5895 = vmul.f32 %v5439, %v5838
        %v5896 = vmul.f32 %v5440, %v5839
        %v5897 = vmul.f32 %v5441, %v5840
        %v5898 = vmul.f32 %v5442, %v5841
        %v5899 = vmul.f32 %v5443, %v5842
        %v5900 = vmul.f32 %v5444, %v5843
        %v5901 = vmul.f32 %v5445, %v5844
        %v5902 = vmul.f32 %v5446, %v5845
        %v5903 = vmul.f32 %v5447, %v5846
        %v5904 = vadd.f32 %v5847, %v3509
        %v5905 = vadd.f32 %v5848, %v3769
        %v5906 = vadd.f32 %v5849, %v3771
        %v5907 = vadd.f32 %v5850, %v3513
        %v5908 = vadd.f32 %v5851, %v3773
        %v5909 = vadd.f32 %v5852, %v3775
        %v5910 = vadd.f32 %v5853, %v3519
        %v5911 = vadd.f32 %v5854, %v3779
        %v5912 = vadd.f32 %v5855, %v3781
        %v5913 = vadd.f32 %v5856, %v3523
        %v5914 = vadd.f32 %v5857, %v3783
        %v5915 = vadd.f32 %v5858, %v3785
        %v5916 = vadd.f32 %v5859, %v3529
        %v5917 = vadd.f32 %v5860, %v3789
        %v5918 = vadd.f32 %v5861, %v3791
        %v5919 = vadd.f32 %v5862, %v3533
        %v5920 = vadd.f32 %v5863, %v3793
        %v5921 = vadd.f32 %v5864, %v3795
        %v5922 = vadd.f32 %v5865, %v3539
        %v5923 = vadd.f32 %v5866, %v3799
        %v5924 = vadd.f32 %v5867, %v3801
        %v5925 = vadd.f32 %v5868, %v3543
        %v5926 = vadd.f32 %v5869, %v3803
        %v5927 = vadd.f32 %v5870, %v3805
        %v5928 = vadd.f32 %v5871, %v3549
        %v5929 = vadd.f32 %v5872, %v3809
        %v5930 = vadd.f32 %v5873, %v3811
        %v5931 = vadd.f32 %v5874, %v3553
        %v5932 = vadd.f32 %v5875, %v3813
        %v5933 = vadd.f32 %v5876, %v3815
        %v5934 = vadd.f32 %v5877, %v3559
        %v5935 = vadd.f32 %v5878, %v3819
        %v5936 = vadd.f32 %v5879, %v3821
        %v5937 = vadd.f32 %v5880, %v3563
        %v5938 = vadd.f32 %v5881, %v3823
        %v5939 = vadd.f32 %v5882, %v3825
        %v5940 = vadd.f32 %v5883, %v3569
        %v5941 = vadd.f32 %v5884, %v3829
        %v5942 = vadd.f32 %v5885, %v3831
        %v5943 = vadd.f32 %v5886, %v3573
        %v5944 = vadd.f32 %v5887, %v3833
        %v5945 = vadd.f32 %v5888, %v3835
        %v5946 = vadd.f32 %v5889, %v3579
        %v5947 = vadd.f32 %v5890, %v3839
        %v5948 = vadd.f32 %v5891, %v3841
        %v5949 = vadd.f32 %v5892, %v3583
        %v5950 = vadd.f32 %v5893, %v3843
        %v5951 = vadd.f32 %v5894, %v3845
        %v5952 = vadd.f32 %v5895, %v3589
        %v5953 = vadd.f32 %v5896, %v3849
        %v5954 = vadd.f32 %v5897, %v3851
        %v5955 = vadd.f32 %v5898, %v3593
        %v5956 = vadd.f32 %v5899, %v3853
        %v5957 = vadd.f32 %v5900, %v3855
        %v5958 = vadd.f32 %v5901, %v3599
        %v5959 = vadd.f32 %v5902, %v3859
        %v5960 = vadd.f32 %v5903, %v3861
        %v5961 = vpack.c.bf16 %v5907, %v5904
        %v5962 = vpack.c.bf16 %v5908, %v5905
        %v5963 = vpack.c.bf16 %v5909, %v5906
        %v5964 = vpack.c.bf16 %v5913, %v5910
        %v5965 = vpack.c.bf16 %v5914, %v5911
        %v5966 = vpack.c.bf16 %v5915, %v5912
        %v5967 = vpack.c.bf16 %v5919, %v5916
        %v5968 = vpack.c.bf16 %v5920, %v5917
        %v5969 = vpack.c.bf16 %v5921, %v5918
        %v5970 = vpack.c.bf16 %v5925, %v5922
        %v5971 = vpack.c.bf16 %v5926, %v5923
        %v5972 = vpack.c.bf16 %v5927, %v5924
        %v5973 = vpack.c.bf16 %v5931, %v5928
        %v5974 = vpack.c.bf16 %v5932, %v5929
        %v5975 = vpack.c.bf16 %v5933, %v5930
        %v5976 = vpack.c.bf16 %v5937, %v5934
        %v5977 = vpack.c.bf16 %v5938, %v5935
        %v5978 = vpack.c.bf16 %v5939, %v5936
        %v5979 = vpack.c.bf16 %v5943, %v5940
        %v5980 = vpack.c.bf16 %v5944, %v5941
        %v5981 = vpack.c.bf16 %v5945, %v5942
        %v5982 = vpack.c.bf16 %v5949, %v5946
        %v5983 = vpack.c.bf16 %v5950, %v5947
        %v5984 = vpack.c.bf16 %v5951, %v5948
        %v5985 = vpack.c.bf16 %v5955, %v5952
        %v5986 = vpack.c.bf16 %v5956, %v5953
        %v5987 = vpack.c.bf16 %v5957, %v5954
        %v5988 = vpack.c.bf16 %v5958, %v5958
        %v5989 = vpack.c.bf16 %v5959, %v5959
        %v5990 = vpack.c.bf16 %v5960, %v5960
        %v5991 = vld [vmem:[#allocation10] sm:$0xff]
        %v5992 = vld [vmem:[#allocation10 + $0x8] sm:$0xff]
        %v5993 = vld [vmem:[#allocation10 + $0x10] sm:$0xff]
        %v5994 = vld [vmem:[#allocation10 + $0x18] sm:$0xff]
        %v5995 = vld [vmem:[#allocation10 + $0x20] sm:$0xff]
        %v5996 = vld [vmem:[#allocation10 + $0x28] sm:$0xff]
        %v5997 = vld [vmem:[#allocation10 + $0x30] sm:$0xff]
        %v5998 = vld [vmem:[#allocation10 + $0x38] sm:$0xff]
        %v5999 = vld [vmem:[#allocation10 + $0x40] sm:$0xff]
        %v6000 = vld [vmem:[#allocation10 + $0x48] sm:$0xff]
        %v6001 = vld [vmem:[#allocation10 + $0x50] sm:$0xff]
        %v6002 = vld [vmem:[#allocation10 + $0x58] sm:$0xff]
        %v6003 = vld [vmem:[#allocation10 + $0x60] sm:$0xff]
        %v6004 = vld [vmem:[#allocation10 + $0x68] sm:$0xff]
        %v6005 = vld [vmem:[#allocation10 + $0x70] sm:$0xff]
        %v6006 = vld [vmem:[#allocation10 + $0x78] sm:$0xff]
        %v6007 = vld [vmem:[#allocation10 + $0x80] sm:$0xff]
        %v6008 = vld [vmem:[#allocation10 + $0x88] sm:$0xff]
        %v6009 = vld [vmem:[#allocation10 + $0x90] sm:$0xff]
        %v6010 = vld [vmem:[#allocation10 + $0x98] sm:$0xff]
        %v6011 = vld [vmem:[#allocation10 + $0xa0] sm:$0xff]
        %v6012 = vld [vmem:[#allocation10 + $0xa8] sm:$0xff]
        %v6013 = vld [vmem:[#allocation10 + $0xb0] sm:$0xff]
        %v6014 = vld [vmem:[#allocation10 + $0xb8] sm:$0xff]
        %v6015 = vld [vmem:[#allocation10 + $0xc0] sm:$0xff]
        %v6016 = vld [vmem:[#allocation10 + $0xc8] sm:$0xff]
        %v6017 = vld [vmem:[#allocation10 + $0xd0] sm:$0xff]
        %v6018 = vld [vmem:[#allocation10 + $0xd8] sm:$0xff]
        %v6019 = vld [vmem:[#allocation10 + $0xe0] sm:$0xff]
        %v6020 = vld [vmem:[#allocation10 + $0xe8] sm:$0xff]
        %v6021 = vld [vmem:[#allocation10 + $0xf0] sm:$0xff]
        %v6022 = vld [vmem:[#allocation10 + $0xf8] sm:$0xff]
        %v6023 = vld [vmem:[#allocation10 + $0x100] sm:$0xff]
        %v6024 = vld [vmem:[#allocation10 + $0x108] sm:$0xff]
        %v6025 = vld [vmem:[#allocation10 + $0x110] sm:$0xff]
        %v6026 = vld [vmem:[#allocation10 + $0x118] sm:$0xff]
        %v6027 = vld [vmem:[#allocation10 + $0x120] sm:$0xff]
        %v6028 = vld [vmem:[#allocation10 + $0x128] sm:$0xff]
        %v6029 = vld [vmem:[#allocation10 + $0x130] sm:$0xff]
        %v6030 = vld [vmem:[#allocation10 + $0x138] sm:$0xff]
        %v6031 = vld [vmem:[#allocation10 + $0x140] sm:$0xff]
        %v6032 = vld [vmem:[#allocation10 + $0x148] sm:$0xff]
        %v6033 = vld [vmem:[#allocation10 + $0x150] sm:$0xff]
        %v6034 = vld [vmem:[#allocation10 + $0x158] sm:$0xff]
        %v6035 = vld [vmem:[#allocation10 + $0x160] sm:$0xff]
        %v6036 = vld [vmem:[#allocation10 + $0x168] sm:$0xff]
        %v6037 = vld [vmem:[#allocation10 + $0x170] sm:$0xff]
        %v6038 = vld [vmem:[#allocation10 + $0x178] sm:$0xff]
        %v6039 = vld [vmem:[#allocation10 + $0x180] sm:$0xff]
        %v6040 = vld [vmem:[#allocation10 + $0x188] sm:$0xff]
        %v6041 = vld [vmem:[#allocation10 + $0x190] sm:$0xff]
        %v6042 = vld [vmem:[#allocation10 + $0x198] sm:$0xff]
        %v6043 = vld [vmem:[#allocation10 + $0x1a0] sm:$0xff]
        %v6044 = vld [vmem:[#allocation10 + $0x1a8] sm:$0xff]
        %v6045 = vld [vmem:[#allocation10 + $0x1b0] sm:$0xff]
        %v6046 = vld [vmem:[#allocation10 + $0x1b8] sm:$0xff]
        %v6047 = vld [vmem:[#allocation10 + $0x1c0] sm:$0xff]
        %v6048 = vld [vmem:[#allocation10 + $0x1c8] sm:$0xff]
        %v6049 = vld [vmem:[#allocation10 + $0x1d0] sm:$0xff]
        %v6050 = vld [vmem:[#allocation10 + $0x1d8] sm:$0xff]
        %v6051 = vld [vmem:[#allocation10 + $0x1e0] sm:$0xff]
        %v6052 = vld [vmem:[#allocation10 + $0x1e8] sm:$0xff]
        %v6053 = vld [vmem:[#allocation10 + $0x1f0] sm:$0xff]
        %v6054 = vld [vmem:[#allocation10 + $0x1f8] sm:$0xff]
        %v6055 = vld [vmem:[#allocation10 + $0x200] sm:$0xff]
        %v6056 = vld [vmem:[#allocation10 + $0x208] sm:$0xff]
        %v6057 = vld [vmem:[#allocation10 + $0x210] sm:$0xff]
        %v6058 = vld [vmem:[#allocation10 + $0x218] sm:$0xff]
        %v6059 = vld [vmem:[#allocation10 + $0x220] sm:$0xff]
        %v6060 = vld [vmem:[#allocation10 + $0x228] sm:$0xff]
        %v6061 = vld [vmem:[#allocation10 + $0x230] sm:$0xff]
        %v6062 = vld [vmem:[#allocation10 + $0x238] sm:$0xff]
        %v6063 = vld [vmem:[#allocation10 + $0x240] sm:$0xff]
        %v6064 = vld [vmem:[#allocation10 + $0x248] sm:$0xff]
        %v6065 = vld [vmem:[#allocation10 + $0x250] sm:$0xff]
        %v6066 = vld [vmem:[#allocation10 + $0x258] sm:$0xff]
        %v6067 = vld [vmem:[#allocation10 + $0x260] sm:$0xff]
        %v6068 = vld [vmem:[#allocation10 + $0x268] sm:$0xff]
        %v6069 = vld [vmem:[#allocation10 + $0x270] sm:$0xff]
        %v6070 = vld [vmem:[#allocation10 + $0x278] sm:$0xff]
        %v6071 = vld [vmem:[#allocation10 + $0x280] sm:$0xff]
        %v6072 = vld [vmem:[#allocation10 + $0x288] sm:$0xff]
        %v6073 = vld [vmem:[#allocation10 + $0x290] sm:$0xff]
        %v6074 = vld [vmem:[#allocation10 + $0x298] sm:$0xff]
        %v6075 = vld [vmem:[#allocation10 + $0x2a0] sm:$0xff]
        %v6076 = vld [vmem:[#allocation10 + $0x2a8] sm:$0xff]
        %v6077 = vld [vmem:[#allocation10 + $0x2b0] sm:$0xff]
        %v6078 = vld [vmem:[#allocation10 + $0x2b8] sm:$0xff]
        %v6079 = vld [vmem:[#allocation10 + $0x2c0] sm:$0xff]
        %v6080 = vld [vmem:[#allocation10 + $0x2c8] sm:$0xff]
        %v6081 = vld [vmem:[#allocation10 + $0x2d0] sm:$0xff]
        %v6082 = vld [vmem:[#allocation10 + $0x2d8] sm:$0xff]
        %v6083 = vld [vmem:[#allocation10 + $0x2e0] sm:$0xff]
        %v6084 = vld [vmem:[#allocation10 + $0x2e8] sm:$0xff]
        %v6085 = vld [vmem:[#allocation10 + $0x2f0] sm:$0xff]
        %v6086 = vld [vmem:[#allocation10 + $0x2f8] sm:$0xff]
        %v6087 = vld [vmem:[%s8] sm:$0xf]
        %v6089 = vlaneseq
        %v6090 = vshrl.u32 %v6089, 7
        %v6091 = vsub.s32 0, %v6090
        %v6092 = vrot.slane %v6087, %v6091
        %v6093 = vlaneseq
        %v6094 = vshrl.u32 %v6093, 7
        %v6095 = vsub.s32 1, %v6094
        %v6096 = vrot.slane %v6087, %v6095
        %v6097 = vlaneseq
        %v6098 = vshrl.u32 %v6097, 7
        %v6099 = vsub.s32 2, %v6098
        %v6100 = vrot.slane %v6087, %v6099
        %v6101 = vlaneseq
        %v6102 = vshrl.u32 %v6101, 7
        %v6103 = vsub.s32 3, %v6102
        %v6104 = vrot.slane %v6087, %v6103
        %v6205 = vunpack.c.l.b16 %v5991
        %v6206 = vunpack.c.h.b16 %v5991
        %v6207 = vunpack.c.l.b16 %v5992
        %v6208 = vunpack.c.h.b16 %v5992
        %v6209 = vunpack.c.l.b16 %v5993
        %v6210 = vunpack.c.h.b16 %v5993
        %v6211 = vunpack.c.l.b16 %v5994
        %v6212 = vunpack.c.h.b16 %v5994
        %v6213 = vunpack.c.l.b16 %v5995
        %v6214 = vunpack.c.h.b16 %v5995
        %v6215 = vunpack.c.l.b16 %v5996
        %v6216 = vunpack.c.h.b16 %v5996
        %v6217 = vunpack.c.l.b16 %v5997
        %v6218 = vunpack.c.h.b16 %v5997
        %v6219 = vunpack.c.l.b16 %v5998
        %v6220 = vunpack.c.h.b16 %v5998
        %v6221 = vunpack.c.l.b16 %v5999
        %v6222 = vunpack.c.h.b16 %v5999
        %v6223 = vunpack.c.l.b16 %v6000
        %v6224 = vunpack.c.h.b16 %v6000
        %v6225 = vunpack.c.l.b16 %v6001
        %v6226 = vunpack.c.h.b16 %v6001
        %v6227 = vunpack.c.l.b16 %v6002
        %v6228 = vunpack.c.h.b16 %v6002
        %v6229 = vunpack.c.l.b16 %v6003
        %v6230 = vunpack.c.h.b16 %v6003
        %v6231 = vunpack.c.l.b16 %v6004
        %v6232 = vunpack.c.h.b16 %v6004
        %v6233 = vunpack.c.l.b16 %v6005
        %v6234 = vunpack.c.h.b16 %v6005
        %v6235 = vunpack.c.l.b16 %v6006
        %v6236 = vunpack.c.h.b16 %v6006
        %v6237 = vunpack.c.l.b16 %v6007
        %v6238 = vunpack.c.h.b16 %v6007
        %v6239 = vunpack.c.l.b16 %v6008
        %v6240 = vunpack.c.h.b16 %v6008
        %v6241 = vunpack.c.l.b16 %v6009
        %v6242 = vunpack.c.h.b16 %v6009
        %v6243 = vunpack.c.l.b16 %v6010
        %v6244 = vunpack.c.h.b16 %v6010
        %v6245 = vunpack.c.l.b16 %v6011
        %v6246 = vunpack.c.h.b16 %v6011
        %v6247 = vunpack.c.l.b16 %v6012
        %v6248 = vunpack.c.h.b16 %v6012
        %v6249 = vunpack.c.l.b16 %v6013
        %v6250 = vunpack.c.h.b16 %v6013
        %v6251 = vunpack.c.l.b16 %v6014
        %v6252 = vunpack.c.h.b16 %v6014
        %v6253 = vunpack.c.l.b16 %v6015
        %v6254 = vunpack.c.h.b16 %v6015
        %v6255 = vunpack.c.l.b16 %v6016
        %v6256 = vunpack.c.h.b16 %v6016
        %v6257 = vunpack.c.l.b16 %v6017
        %v6258 = vunpack.c.h.b16 %v6017
        %v6259 = vunpack.c.l.b16 %v6018
        %v6260 = vunpack.c.h.b16 %v6018
        %v6261 = vunpack.c.l.b16 %v6019
        %v6262 = vunpack.c.h.b16 %v6019
        %v6263 = vunpack.c.l.b16 %v6020
        %v6264 = vunpack.c.h.b16 %v6020
        %v6265 = vunpack.c.l.b16 %v6021
        %v6266 = vunpack.c.h.b16 %v6021
        %v6267 = vunpack.c.l.b16 %v6022
        %v6268 = vunpack.c.h.b16 %v6022
        %v6269 = vunpack.c.l.b16 %v6023
        %v6270 = vunpack.c.h.b16 %v6023
        %v6271 = vunpack.c.l.b16 %v6024
        %v6272 = vunpack.c.h.b16 %v6024
        %v6273 = vunpack.c.l.b16 %v6025
        %v6274 = vunpack.c.h.b16 %v6025
        %v6275 = vunpack.c.l.b16 %v6026
        %v6276 = vunpack.c.h.b16 %v6026
        %v6277 = vunpack.c.l.b16 %v6027
        %v6278 = vunpack.c.h.b16 %v6027
        %v6279 = vunpack.c.l.b16 %v6028
        %v6280 = vunpack.c.h.b16 %v6028
        %v6281 = vunpack.c.l.b16 %v6029
        %v6282 = vunpack.c.h.b16 %v6029
        %v6283 = vunpack.c.l.b16 %v6030
        %v6284 = vunpack.c.h.b16 %v6030
        %v6285 = vunpack.c.l.b16 %v6031
        %v6286 = vunpack.c.h.b16 %v6031
        %v6287 = vunpack.c.l.b16 %v6032
        %v6288 = vunpack.c.h.b16 %v6032
        %v6289 = vunpack.c.l.b16 %v6033
        %v6290 = vunpack.c.h.b16 %v6033
        %v6291 = vunpack.c.l.b16 %v6034
        %v6292 = vunpack.c.h.b16 %v6034
        %v6293 = vunpack.c.l.b16 %v6035
        %v6294 = vunpack.c.h.b16 %v6035
        %v6295 = vunpack.c.l.b16 %v6036
        %v6296 = vunpack.c.h.b16 %v6036
        %v6297 = vunpack.c.l.b16 %v6037
        %v6298 = vunpack.c.h.b16 %v6037
        %v6299 = vunpack.c.l.b16 %v6038
        %v6300 = vunpack.c.h.b16 %v6038
        %v6301 = vunpack.c.l.b16 %v6039
        %v6302 = vunpack.c.h.b16 %v6039
        %v6303 = vunpack.c.l.b16 %v6040
        %v6304 = vunpack.c.h.b16 %v6040
        %v6305 = vunpack.c.l.b16 %v6041
        %v6306 = vunpack.c.h.b16 %v6041
        %v6307 = vunpack.c.l.b16 %v6042
        %v6308 = vunpack.c.h.b16 %v6042
        %v6309 = vunpack.c.l.b16 %v6043
        %v6310 = vunpack.c.h.b16 %v6043
        %v6311 = vunpack.c.l.b16 %v6044
        %v6312 = vunpack.c.h.b16 %v6044
        %v6313 = vunpack.c.l.b16 %v6045
        %v6314 = vunpack.c.h.b16 %v6045
        %v6315 = vunpack.c.l.b16 %v6046
        %v6316 = vunpack.c.h.b16 %v6046
        %v6317 = vunpack.c.l.b16 %v6047
        %v6318 = vunpack.c.h.b16 %v6047
        %v6319 = vunpack.c.l.b16 %v6048
        %v6320 = vunpack.c.h.b16 %v6048
        %v6321 = vunpack.c.l.b16 %v6049
        %v6322 = vunpack.c.h.b16 %v6049
        %v6323 = vunpack.c.l.b16 %v6050
        %v6324 = vunpack.c.h.b16 %v6050
        %v6325 = vunpack.c.l.b16 %v6051
        %v6326 = vunpack.c.h.b16 %v6051
        %v6327 = vunpack.c.l.b16 %v6052
        %v6328 = vunpack.c.h.b16 %v6052
        %v6329 = vunpack.c.l.b16 %v6053
        %v6330 = vunpack.c.h.b16 %v6053
        %v6331 = vunpack.c.l.b16 %v6054
        %v6332 = vunpack.c.h.b16 %v6054
        %v6333 = vunpack.c.l.b16 %v6055
        %v6334 = vunpack.c.h.b16 %v6055
        %v6335 = vunpack.c.l.b16 %v6056
        %v6336 = vunpack.c.h.b16 %v6056
        %v6337 = vunpack.c.l.b16 %v6057
        %v6338 = vunpack.c.h.b16 %v6057
        %v6339 = vunpack.c.l.b16 %v6058
        %v6340 = vunpack.c.h.b16 %v6058
        %v6341 = vunpack.c.l.b16 %v6059
        %v6342 = vunpack.c.h.b16 %v6059
        %v6343 = vunpack.c.l.b16 %v6060
        %v6344 = vunpack.c.h.b16 %v6060
        %v6345 = vunpack.c.l.b16 %v6061
        %v6346 = vunpack.c.h.b16 %v6061
        %v6347 = vunpack.c.l.b16 %v6062
        %v6348 = vunpack.c.h.b16 %v6062
        %v6349 = vunpack.c.l.b16 %v6063
        %v6350 = vunpack.c.h.b16 %v6063
        %v6351 = vunpack.c.l.b16 %v6064
        %v6352 = vunpack.c.h.b16 %v6064
        %v6353 = vunpack.c.l.b16 %v6065
        %v6354 = vunpack.c.h.b16 %v6065
        %v6355 = vunpack.c.l.b16 %v6066
        %v6356 = vunpack.c.h.b16 %v6066
        %v6357 = vunpack.c.l.b16 %v6067
        %v6358 = vunpack.c.h.b16 %v6067
        %v6359 = vunpack.c.l.b16 %v6068
        %v6360 = vunpack.c.h.b16 %v6068
        %v6361 = vunpack.c.l.b16 %v6069
        %v6362 = vunpack.c.h.b16 %v6069
        %v6363 = vunpack.c.l.b16 %v6070
        %v6364 = vunpack.c.h.b16 %v6070
        %v6365 = vunpack.c.l.b16 %v6071
        %v6366 = vunpack.c.h.b16 %v6071
        %v6367 = vunpack.c.l.b16 %v6072
        %v6368 = vunpack.c.h.b16 %v6072
        %v6369 = vunpack.c.l.b16 %v6073
        %v6370 = vunpack.c.h.b16 %v6073
        %v6371 = vunpack.c.l.b16 %v6074
        %v6372 = vunpack.c.h.b16 %v6074
        %v6373 = vunpack.c.l.b16 %v6075
        %v6374 = vunpack.c.h.b16 %v6075
        %v6375 = vunpack.c.l.b16 %v6076
        %v6376 = vunpack.c.h.b16 %v6076
        %v6377 = vunpack.c.l.b16 %v6077
        %v6378 = vunpack.c.h.b16 %v6077
        %v6379 = vunpack.c.l.b16 %v6078
        %v6380 = vunpack.c.h.b16 %v6078
        %v6381 = vunpack.c.l.b16 %v6079
        %v6382 = vunpack.c.h.b16 %v6079
        %v6383 = vunpack.c.l.b16 %v6080
        %v6384 = vunpack.c.h.b16 %v6080
        %v6385 = vunpack.c.l.b16 %v6081
        %v6386 = vunpack.c.h.b16 %v6081
        %v6387 = vunpack.c.l.b16 %v6082
        %v6388 = vunpack.c.h.b16 %v6082
        %v6389 = vunpack.c.l.b16 %v6083
        %v6390 = vunpack.c.h.b16 %v6083
        %v6391 = vunpack.c.l.b16 %v6084
        %v6392 = vunpack.c.h.b16 %v6084
        %v6393 = vunpack.c.l.b16 %v6085
        %v6394 = vunpack.c.h.b16 %v6085
        %v6395 = vunpack.c.l.b16 %v6086
        %v6396 = vunpack.c.h.b16 %v6086
        %v6397 = vpack.c.b16 %v6209, %v6205
        %v6398 = vpack.c.b16 %v6210, %v6206
        %v6399 = vpack.c.b16 %v6211, %v6207
        %v6400 = vpack.c.b16 %v6212, %v6208
        %v6401 = vpack.c.b16 %v6217, %v6213
        %v6402 = vpack.c.b16 %v6218, %v6214
        %v6403 = vpack.c.b16 %v6219, %v6215
        %v6404 = vpack.c.b16 %v6220, %v6216
        %v6405 = vpack.c.b16 %v6225, %v6221
        %v6406 = vpack.c.b16 %v6226, %v6222
        %v6407 = vpack.c.b16 %v6227, %v6223
        %v6408 = vpack.c.b16 %v6228, %v6224
        %v6409 = vpack.c.b16 %v6233, %v6229
        %v6410 = vpack.c.b16 %v6234, %v6230
        %v6411 = vpack.c.b16 %v6235, %v6231
        %v6412 = vpack.c.b16 %v6236, %v6232
        %v6413 = vpack.c.b16 %v6241, %v6237
        %v6414 = vpack.c.b16 %v6242, %v6238
        %v6415 = vpack.c.b16 %v6243, %v6239
        %v6416 = vpack.c.b16 %v6244, %v6240
        %v6417 = vpack.c.b16 %v6249, %v6245
        %v6418 = vpack.c.b16 %v6250, %v6246
        %v6419 = vpack.c.b16 %v6251, %v6247
        %v6420 = vpack.c.b16 %v6252, %v6248
        %v6421 = vpack.c.b16 %v6257, %v6253
        %v6422 = vpack.c.b16 %v6258, %v6254
        %v6423 = vpack.c.b16 %v6259, %v6255
        %v6424 = vpack.c.b16 %v6260, %v6256
        %v6425 = vpack.c.b16 %v6265, %v6261
        %v6426 = vpack.c.b16 %v6266, %v6262
        %v6427 = vpack.c.b16 %v6267, %v6263
        %v6428 = vpack.c.b16 %v6268, %v6264
        %v6429 = vpack.c.b16 %v6273, %v6269
        %v6430 = vpack.c.b16 %v6274, %v6270
        %v6431 = vpack.c.b16 %v6275, %v6271
        %v6432 = vpack.c.b16 %v6276, %v6272
        %v6433 = vpack.c.b16 %v6281, %v6277
        %v6434 = vpack.c.b16 %v6282, %v6278
        %v6435 = vpack.c.b16 %v6283, %v6279
        %v6436 = vpack.c.b16 %v6284, %v6280
        %v6437 = vpack.c.b16 %v6289, %v6285
        %v6438 = vpack.c.b16 %v6290, %v6286
        %v6439 = vpack.c.b16 %v6291, %v6287
        %v6440 = vpack.c.b16 %v6292, %v6288
        %v6441 = vpack.c.b16 %v6297, %v6293
        %v6442 = vpack.c.b16 %v6298, %v6294
        %v6443 = vpack.c.b16 %v6299, %v6295
        %v6444 = vpack.c.b16 %v6300, %v6296
        %v6445 = vpack.c.b16 %v6305, %v6301
        %v6446 = vpack.c.b16 %v6306, %v6302
        %v6447 = vpack.c.b16 %v6307, %v6303
        %v6448 = vpack.c.b16 %v6308, %v6304
        %v6449 = vpack.c.b16 %v6313, %v6309
        %v6450 = vpack.c.b16 %v6314, %v6310
        %v6451 = vpack.c.b16 %v6315, %v6311
        %v6452 = vpack.c.b16 %v6316, %v6312
        %v6453 = vpack.c.b16 %v6321, %v6317
        %v6454 = vpack.c.b16 %v6322, %v6318
        %v6455 = vpack.c.b16 %v6323, %v6319
        %v6456 = vpack.c.b16 %v6324, %v6320
        %v6457 = vpack.c.b16 %v6329, %v6325
        %v6458 = vpack.c.b16 %v6330, %v6326
        %v6459 = vpack.c.b16 %v6331, %v6327
        %v6460 = vpack.c.b16 %v6332, %v6328
        %v6461 = vpack.c.b16 %v6337, %v6333
        %v6462 = vpack.c.b16 %v6338, %v6334
        %v6463 = vpack.c.b16 %v6339, %v6335
        %v6464 = vpack.c.b16 %v6340, %v6336
        %v6465 = vpack.c.b16 %v6345, %v6341
        %v6466 = vpack.c.b16 %v6346, %v6342
        %v6467 = vpack.c.b16 %v6347, %v6343
        %v6468 = vpack.c.b16 %v6348, %v6344
        %v6469 = vpack.c.b16 %v6353, %v6349
        %v6470 = vpack.c.b16 %v6354, %v6350
        %v6471 = vpack.c.b16 %v6355, %v6351
        %v6472 = vpack.c.b16 %v6356, %v6352
        %v6473 = vpack.c.b16 %v6361, %v6357
        %v6474 = vpack.c.b16 %v6362, %v6358
        %v6475 = vpack.c.b16 %v6363, %v6359
        %v6476 = vpack.c.b16 %v6364, %v6360
        %v6477 = vpack.c.b16 %v6369, %v6365
        %v6478 = vpack.c.b16 %v6370, %v6366
        %v6479 = vpack.c.b16 %v6371, %v6367
        %v6480 = vpack.c.b16 %v6372, %v6368
        %v6481 = vpack.c.b16 %v6377, %v6373
        %v6482 = vpack.c.b16 %v6378, %v6374
        %v6483 = vpack.c.b16 %v6379, %v6375
        %v6484 = vpack.c.b16 %v6380, %v6376
        %v6485 = vpack.c.b16 %v6385, %v6381
        %v6486 = vpack.c.b16 %v6386, %v6382
        %v6487 = vpack.c.b16 %v6387, %v6383
        %v6488 = vpack.c.b16 %v6388, %v6384
        %v6489 = vpack.c.b16 %v6393, %v6389
        %v6490 = vpack.c.b16 %v6394, %v6390
        %v6491 = vpack.c.b16 %v6395, %v6391
        %v6492 = vpack.c.b16 %v6396, %v6392
        %6589 = vmatprep.subr.bf16.mxu0 %v6398
        %6590 = vmatpush1.bf16.msra.mxu0 %v6397
        %6591 = vmatprep.subr.bf16.mxu0 %v6402
        %6592 = vmatpush1.bf16.msra.mxu0 %v6401
        %6593 = vmatprep.subr.bf16.mxu0 %v6406
        %6594 = vmatpush1.bf16.msra.mxu0 %v6405
        %6595 = vmatprep.subr.bf16.mxu0 %v6410
        %6596 = vmatpush1.bf16.msra.mxu0 %v6409
        %6597 = vmatprep.subr.bf16.mxu0 %v6414
        %6598 = vmatpush1.bf16.msra.mxu0 %v6413
        %6599 = vmatprep.subr.bf16.mxu0 %v6418
        %6600 = vmatpush1.bf16.msra.mxu0 %v6417
        %6601 = vmatprep.subr.bf16.mxu0 %v6422
        %6602 = vmatpush1.bf16.msra.mxu0 %v6421
        %6603 = vmatprep.subr.bf16.mxu0 %v6426
        %6604 = vmatpush1.bf16.msra.mxu0 %v6425
        %6605 = vmatprep.subr.bf16.mxu0 %v6430
        %6606 = vmatpush1.bf16.msra.mxu0 %v6429
        %6607 = vmatprep.subr.bf16.mxu0 %v6434
        %6608 = vmatpush1.bf16.msra.mxu0 %v6433
        %6609 = vmatprep.subr.bf16.mxu0 %v6438
        %6610 = vmatpush1.bf16.msra.mxu0 %v6437
        %6611 = vmatprep.subr.bf16.mxu0 %v6442
        %6612 = vmatpush1.bf16.msra.mxu0 %v6441
        %6613 = vmatprep.subr.bf16.mxu0 %v6446
        %6614 = vmatpush1.bf16.msra.mxu0 %v6445
        %6615 = vmatprep.subr.bf16.mxu0 %v6450
        %6616 = vmatpush1.bf16.msra.mxu0 %v6449
        %6617 = vmatprep.subr.bf16.mxu0 %v6454
        %6618 = vmatpush1.bf16.msra.mxu0 %v6453
        %6619 = vmatprep.subr.bf16.mxu0 %v6458
        %6620 = vmatpush1.bf16.msra.mxu0 %v6457
        %6621 = vmatprep.mubr.bf16.mxu0 %v5962
        %6622 = vmatmul.mubr.bf16.gmra.mrb[0].mxu0 %v5961
        %v6623 = vpop.f32.mrb[0].mxu0
        %v6624 = vadd.f32 %v6092, %v6623
        %v6625 = vpop.f32.mrb[0].mxu0
        %v6626 = vadd.f32 %v6096, %v6625
        %v6627 = vpop.f32.mrb[0].mxu0
        %v6628 = vadd.f32 %v6092, %v6627
        %v6629 = vpop.f32.mrb[0].mxu0
        %v6630 = vadd.f32 %v6096, %v6629
        %6631 = vmatprep.mubr.bf16.mxu0 %v5965
        %6632 = vmatmul.mubr.bf16.gmra.mrb[0].mxu0 %v5964
        %v6633 = vpop.f32.mrb[0].mxu0
        %v6634 = vadd.f32 %v6092, %v6633
        %v6635 = vpop.f32.mrb[0].mxu0
        %v6636 = vadd.f32 %v6096, %v6635
        %v6637 = vpop.f32.mrb[0].mxu0
        %v6638 = vadd.f32 %v6092, %v6637
        %v6639 = vpop.f32.mrb[0].mxu0
        %v6640 = vadd.f32 %v6096, %v6639
        %6641 = vmatprep.mubr.bf16.mxu0 %v5968
        %6642 = vmatmul.mubr.bf16.gmra.mrb[0].mxu0 %v5967
        %v6643 = vpop.f32.mrb[0].mxu0
        %v6644 = vadd.f32 %v6092, %v6643
        %v6645 = vpop.f32.mrb[0].mxu0
        %v6646 = vadd.f32 %v6096, %v6645
        %v6647 = vpop.f32.mrb[0].mxu0
        %v6648 = vadd.f32 %v6092, %v6647
        %v6649 = vpop.f32.mrb[0].mxu0
        %v6650 = vadd.f32 %v6096, %v6649
        %6651 = vmatprep.mubr.bf16.mxu0 %v5971
        %6652 = vmatmul.mubr.bf16.gmra.mrb[0].mxu0 %v5970
        %v6653 = vpop.f32.mrb[0].mxu0
        %v6654 = vadd.f32 %v6092, %v6653
        %v6655 = vpop.f32.mrb[0].mxu0
        %v6656 = vadd.f32 %v6096, %v6655
        %v6657 = vpop.f32.mrb[0].mxu0
        %v6658 = vadd.f32 %v6092, %v6657
        %v6659 = vpop.f32.mrb[0].mxu0
        %v6660 = vadd.f32 %v6096, %v6659
        %6661 = vmatprep.mubr.bf16.mxu0 %v5974
        %6662 = vmatmul.mubr.bf16.gmra.mrb[0].mxu0 %v5973
        %v6663 = vpop.f32.mrb[0].mxu0
        %v6664 = vadd.f32 %v6092, %v6663
        %v6665 = vpop.f32.mrb[0].mxu0
        %v6666 = vadd.f32 %v6096, %v6665
        %v6667 = vpop.f32.mrb[0].mxu0
        %v6668 = vadd.f32 %v6092, %v6667
        %v6669 = vpop.f32.mrb[0].mxu0
        %v6670 = vadd.f32 %v6096, %v6669
        %6671 = vmatprep.mubr.bf16.mxu0 %v5977
        %6672 = vmatmul.mubr.bf16.gmra.mrb[0].mxu0 %v5976
        %v6673 = vpop.f32.mrb[0].mxu0
        %v6674 = vadd.f32 %v6092, %v6673
        %v6675 = vpop.f32.mrb[0].mxu0
        %v6676 = vadd.f32 %v6096, %v6675
        %v6677 = vpop.f32.mrb[0].mxu0
        %v6678 = vadd.f32 %v6092, %v6677
        %v6679 = vpop.f32.mrb[0].mxu0
        %v6680 = vadd.f32 %v6096, %v6679
        %6681 = vmatprep.mubr.bf16.mxu0 %v5980
        %6682 = vmatmul.mubr.bf16.gmra.mrb[0].mxu0 %v5979
        %v6683 = vpop.f32.mrb[0].mxu0
        %v6684 = vadd.f32 %v6092, %v6683
        %v6685 = vpop.f32.mrb[0].mxu0
        %v6686 = vadd.f32 %v6096, %v6685
        %v6687 = vpop.f32.mrb[0].mxu0
        %v6688 = vadd.f32 %v6092, %v6687
        %v6689 = vpop.f32.mrb[0].mxu0
        %v6690 = vadd.f32 %v6096, %v6689
        %6691 = vmatprep.mubr.bf16.mxu0 %v5983
        %6692 = vmatmul.mubr.bf16.gmra.mrb[0].mxu0 %v5982
        %v6693 = vpop.f32.mrb[0].mxu0
        %v6694 = vadd.f32 %v6092, %v6693
        %v6695 = vpop.f32.mrb[0].mxu0
        %v6696 = vadd.f32 %v6096, %v6695
        %v6697 = vpop.f32.mrb[0].mxu0
        %v6698 = vadd.f32 %v6092, %v6697
        %v6699 = vpop.f32.mrb[0].mxu0
        %v6700 = vadd.f32 %v6096, %v6699
        %6701 = vmatprep.mubr.bf16.mxu0 %v5986
        %6702 = vmatmul.mubr.bf16.gmra.mrb[0].mxu0 %v5985
        %v6703 = vpop.f32.mrb[0].mxu0
        %v6704 = vadd.f32 %v6092, %v6703
        %v6705 = vpop.f32.mrb[0].mxu0
        %v6706 = vadd.f32 %v6096, %v6705
        %v6707 = vpop.f32.mrb[0].mxu0
        %v6708 = vadd.f32 %v6092, %v6707
        %v6709 = vpop.f32.mrb[0].mxu0
        %v6710 = vadd.f32 %v6096, %v6709
        %6711 = vmatprep.mubr.bf16.mxu0 %v5989
        %6712 = vmatmul.mubr.bf16.gmra.mrb[0].mxu0 %v5988
        %v6713 = vpop.f32.mrb[0].mxu0
        %v6714 = vadd.f32 %v6092, %v6713
        %v6715 = vpop.f32.mrb[0].mxu0
        %v6716 = vadd.f32 %v6096, %v6715
        %v6717 = vpop.f32.mrb[0].mxu0
        %v6718 = vpop.f32.mrb[0].mxu0
        %6719 = vdwg.mxu0
        %6720 = vmatprep.subr.bf16.mxu0 %v6462
        %6721 = vmatpush1.bf16.msra.mxu0 %v6461
        %6722 = vmatprep.subr.bf16.mxu0 %v6466
        %6723 = vmatpush1.bf16.msra.mxu0 %v6465
        %6724 = vmatprep.subr.bf16.mxu0 %v6470
        %6725 = vmatpush1.bf16.msra.mxu0 %v6469
        %6726 = vmatprep.subr.bf16.mxu0 %v6474
        %6727 = vmatpush1.bf16.msra.mxu0 %v6473
        %6728 = vmatprep.subr.bf16.mxu0 %v6478
        %6729 = vmatpush1.bf16.msra.mxu0 %v6477
        %6730 = vmatprep.subr.bf16.mxu0 %v6482
        %6731 = vmatpush1.bf16.msra.mxu0 %v6481
        %6732 = vmatprep.subr.bf16.mxu0 %v6486
        %6733 = vmatpush1.bf16.msra.mxu0 %v6485
        %6734 = vmatprep.subr.bf16.mxu0 %v6490
        %6735 = vmatpush1.bf16.msra.mxu0 %v6489
        %6736 = vmatprep.subr.bf16.mxu0 0
        %6737 = vmatpush1.bf16.msra.mxu0 0
        %6738 = vmatprep.subr.bf16.mxu0 0
        %6739 = vmatpush1.bf16.msra.mxu0 0
        %6740 = vmatprep.subr.bf16.mxu0 0
        %6741 = vmatpush1.bf16.msra.mxu0 0
        %6742 = vmatprep.subr.bf16.mxu0 0
        %6743 = vmatpush1.bf16.msra.mxu0 0
        %6744 = vmatprep.subr.bf16.mxu0 0
        %6745 = vmatpush1.bf16.msra.mxu0 0
        %6746 = vmatprep.subr.bf16.mxu0 0
        %6747 = vmatpush1.bf16.msra.mxu0 0
        %6748 = vmatprep.subr.bf16.mxu0 0
        %6749 = vmatpush1.bf16.msra.mxu0 0
        %6750 = vmatprep.subr.bf16.mxu0 0
        %6751 = vmatpush1.bf16.msra.mxu0 0
        %6752 = vmatprep.mubr.bf16.mxu0 0
        %6753 = vmatmul.mubr.bf16.gmra.mrb[0].mxu0 %v5963
        %v6754 = vpop.f32.mrb[0].mxu0
        %v6755 = vadd.f32 %v6624, %v6754
        %v6756 = vpop.f32.mrb[0].mxu0
        %v6757 = vadd.f32 %v6626, %v6756
        %v6758 = vpop.f32.mrb[0].mxu0
        %v6759 = vadd.f32 %v6628, %v6758
        %v6760 = vpop.f32.mrb[0].mxu0
        %v6761 = vadd.f32 %v6630, %v6760
        %6762 = vmatprep.mubr.bf16.mxu0 0
        %6763 = vmatmul.mubr.bf16.gmra.mrb[0].mxu0 %v5966
        %v6764 = vpop.f32.mrb[0].mxu0
        %v6765 = vadd.f32 %v6634, %v6764
        %v6766 = vpop.f32.mrb[0].mxu0
        %v6767 = vadd.f32 %v6636, %v6766
        %v6768 = vpop.f32.mrb[0].mxu0
        %v6769 = vadd.f32 %v6638, %v6768
        %v6770 = vpop.f32.mrb[0].mxu0
        %v6771 = vadd.f32 %v6640, %v6770
        %6772 = vmatprep.mubr.bf16.mxu0 0
        %6773 = vmatmul.mubr.bf16.gmra.mrb[0].mxu0 %v5969
        %v6774 = vpop.f32.mrb[0].mxu0
        %v6775 = vadd.f32 %v6644, %v6774
        %v6776 = vpop.f32.mrb[0].mxu0
        %v6777 = vadd.f32 %v6646, %v6776
        %v6778 = vpop.f32.mrb[0].mxu0
        %v6779 = vadd.f32 %v6648, %v6778
        %v6780 = vpop.f32.mrb[0].mxu0
        %v6781 = vadd.f32 %v6650, %v6780
        %6782 = vmatprep.mubr.bf16.mxu0 0
        %6783 = vmatmul.mubr.bf16.gmra.mrb[0].mxu0 %v5972
        %v6784 = vpop.f32.mrb[0].mxu0
        %v6785 = vadd.f32 %v6654, %v6784
        %v6786 = vpop.f32.mrb[0].mxu0
        %v6787 = vadd.f32 %v6656, %v6786
        %v6788 = vpop.f32.mrb[0].mxu0
        %v6789 = vadd.f32 %v6658, %v6788
        %v6790 = vpop.f32.mrb[0].mxu0
        %v6791 = vadd.f32 %v6660, %v6790
        %6792 = vmatprep.mubr.bf16.mxu0 0
        %6793 = vmatmul.mubr.bf16.gmra.mrb[0].mxu0 %v5975
        %v6794 = vpop.f32.mrb[0].mxu0
        %v6795 = vadd.f32 %v6664, %v6794
        %v6796 = vpop.f32.mrb[0].mxu0
        %v6797 = vadd.f32 %v6666, %v6796
        %v6798 = vpop.f32.mrb[0].mxu0
        %v6799 = vadd.f32 %v6668, %v6798
        %v6800 = vpop.f32.mrb[0].mxu0
        %v6801 = vadd.f32 %v6670, %v6800
        %6802 = vmatprep.mubr.bf16.mxu0 0
        %6803 = vmatmul.mubr.bf16.gmra.mrb[0].mxu0 %v5978
        %v6804 = vpop.f32.mrb[0].mxu0
        %v6805 = vadd.f32 %v6674, %v6804
        %v6806 = vpop.f32.mrb[0].mxu0
        %v6807 = vadd.f32 %v6676, %v6806
        %v6808 = vpop.f32.mrb[0].mxu0
        %v6809 = vadd.f32 %v6678, %v6808
        %v6810 = vpop.f32.mrb[0].mxu0
        %v6811 = vadd.f32 %v6680, %v6810
        %6812 = vmatprep.mubr.bf16.mxu0 0
        %6813 = vmatmul.mubr.bf16.gmra.mrb[0].mxu0 %v5981
        %v6814 = vpop.f32.mrb[0].mxu0
        %v6815 = vadd.f32 %v6684, %v6814
        %v6816 = vpop.f32.mrb[0].mxu0
        %v6817 = vadd.f32 %v6686, %v6816
        %v6818 = vpop.f32.mrb[0].mxu0
        %v6819 = vadd.f32 %v6688, %v6818
        %v6820 = vpop.f32.mrb[0].mxu0
        %v6821 = vadd.f32 %v6690, %v6820
        %6822 = vmatprep.mubr.bf16.mxu0 0
        %6823 = vmatmul.mubr.bf16.gmra.mrb[0].mxu0 %v5984
        %v6824 = vpop.f32.mrb[0].mxu0
        %v6825 = vadd.f32 %v6694, %v6824
        %v6826 = vpop.f32.mrb[0].mxu0
        %v6827 = vadd.f32 %v6696, %v6826
        %v6828 = vpop.f32.mrb[0].mxu0
        %v6829 = vadd.f32 %v6698, %v6828
        %v6830 = vpop.f32.mrb[0].mxu0
        %v6831 = vadd.f32 %v6700, %v6830
        %6832 = vmatprep.mubr.bf16.mxu0 0
        %6833 = vmatmul.mubr.bf16.gmra.mrb[0].mxu0 %v5987
        %v6834 = vpop.f32.mrb[0].mxu0
        %v6835 = vadd.f32 %v6704, %v6834
        %v6836 = vpop.f32.mrb[0].mxu0
        %v6837 = vadd.f32 %v6706, %v6836
        %v6838 = vpop.f32.mrb[0].mxu0
        %v6839 = vadd.f32 %v6708, %v6838
        %v6840 = vpop.f32.mrb[0].mxu0
        %v6841 = vadd.f32 %v6710, %v6840
        %6842 = vmatprep.mubr.bf16.mxu0 0
        %6843 = vmatmul.mubr.bf16.gmra.mrb[0].mxu0 %v5990
        %v6844 = vpop.f32.mrb[0].mxu0
        %v6845 = vadd.f32 %v6714, %v6844
        %v6846 = vpop.f32.mrb[0].mxu0
        %v6847 = vadd.f32 %v6716, %v6846
        %v6848 = vpop.f32.mrb[0].mxu0
        %v6849 = vpop.f32.mrb[0].mxu0
        %6850 = vdwg.mxu0
        %6851 = vmatprep.subr.bf16.mxu0 %v6400
        %6852 = vmatpush1.bf16.msra.mxu0 %v6399
        %6853 = vmatprep.subr.bf16.mxu0 %v6404
        %6854 = vmatpush1.bf16.msra.mxu0 %v6403
        %6855 = vmatprep.subr.bf16.mxu0 %v6408
        %6856 = vmatpush1.bf16.msra.mxu0 %v6407
        %6857 = vmatprep.subr.bf16.mxu0 %v6412
        %6858 = vmatpush1.bf16.msra.mxu0 %v6411
        %6859 = vmatprep.subr.bf16.mxu0 %v6416
        %6860 = vmatpush1.bf16.msra.mxu0 %v6415
        %6861 = vmatprep.subr.bf16.mxu0 %v6420
        %6862 = vmatpush1.bf16.msra.mxu0 %v6419
        %6863 = vmatprep.subr.bf16.mxu0 %v6424
        %6864 = vmatpush1.bf16.msra.mxu0 %v6423
        %6865 = vmatprep.subr.bf16.mxu0 %v6428
        %6866 = vmatpush1.bf16.msra.mxu0 %v6427
        %6867 = vmatprep.subr.bf16.mxu0 %v6432
        %6868 = vmatpush1.bf16.msra.mxu0 %v6431
        %6869 = vmatprep.subr.bf16.mxu0 %v6436
        %6870 = vmatpush1.bf16.msra.mxu0 %v6435
        %6871 = vmatprep.subr.bf16.mxu0 %v6440
        %6872 = vmatpush1.bf16.msra.mxu0 %v6439
        %6873 = vmatprep.subr.bf16.mxu0 %v6444
        %6874 = vmatpush1.bf16.msra.mxu0 %v6443
        %6875 = vmatprep.subr.bf16.mxu0 %v6448
        %6876 = vmatpush1.bf16.msra.mxu0 %v6447
        %6877 = vmatprep.subr.bf16.mxu0 %v6452
        %6878 = vmatpush1.bf16.msra.mxu0 %v6451
        %6879 = vmatprep.subr.bf16.mxu0 %v6456
        %6880 = vmatpush1.bf16.msra.mxu0 %v6455
        %6881 = vmatprep.subr.bf16.mxu0 %v6460
        %6882 = vmatpush1.bf16.msra.mxu0 %v6459
        %6883 = vmatprep.mubr.bf16.mxu0 %v5962
        %6884 = vmatmul.mubr.bf16.gmra.mrb[0].mxu0 %v5961
        %v6885 = vpop.f32.mrb[0].mxu0
        %v6886 = vadd.f32 %v6100, %v6885
        %v6887 = vpop.f32.mrb[0].mxu0
        %v6888 = vadd.f32 %v6104, %v6887
        %v6889 = vpop.f32.mrb[0].mxu0
        %v6890 = vadd.f32 %v6100, %v6889
        %v6891 = vpop.f32.mrb[0].mxu0
        %v6892 = vadd.f32 %v6104, %v6891
        %6893 = vmatprep.mubr.bf16.mxu0 %v5965
        %6894 = vmatmul.mubr.bf16.gmra.mrb[0].mxu0 %v5964
        %v6895 = vpop.f32.mrb[0].mxu0
        %v6896 = vadd.f32 %v6100, %v6895
        %v6897 = vpop.f32.mrb[0].mxu0
        %v6898 = vadd.f32 %v6104, %v6897
        %v6899 = vpop.f32.mrb[0].mxu0
        %v6900 = vadd.f32 %v6100, %v6899
        %v6901 = vpop.f32.mrb[0].mxu0
        %v6902 = vadd.f32 %v6104, %v6901
        %6903 = vmatprep.mubr.bf16.mxu0 %v5968
        %6904 = vmatmul.mubr.bf16.gmra.mrb[0].mxu0 %v5967
        %v6905 = vpop.f32.mrb[0].mxu0
        %v6906 = vadd.f32 %v6100, %v6905
        %v6907 = vpop.f32.mrb[0].mxu0
        %v6908 = vadd.f32 %v6104, %v6907
        %v6909 = vpop.f32.mrb[0].mxu0
        %v6910 = vadd.f32 %v6100, %v6909
        %v6911 = vpop.f32.mrb[0].mxu0
        %v6912 = vadd.f32 %v6104, %v6911
        %6913 = vmatprep.mubr.bf16.mxu0 %v5971
        %6914 = vmatmul.mubr.bf16.gmra.mrb[0].mxu0 %v5970
        %v6915 = vpop.f32.mrb[0].mxu0
        %v6916 = vadd.f32 %v6100, %v6915
        %v6917 = vpop.f32.mrb[0].mxu0
        %v6918 = vadd.f32 %v6104, %v6917
        %v6919 = vpop.f32.mrb[0].mxu0
        %v6920 = vadd.f32 %v6100, %v6919
        %v6921 = vpop.f32.mrb[0].mxu0
        %v6922 = vadd.f32 %v6104, %v6921
        %6923 = vmatprep.mubr.bf16.mxu0 %v5974
        %6924 = vmatmul.mubr.bf16.gmra.mrb[0].mxu0 %v5973
        %v6925 = vpop.f32.mrb[0].mxu0
        %v6926 = vadd.f32 %v6100, %v6925
        %v6927 = vpop.f32.mrb[0].mxu0
        %v6928 = vadd.f32 %v6104, %v6927
        %v6929 = vpop.f32.mrb[0].mxu0
        %v6930 = vadd.f32 %v6100, %v6929
        %v6931 = vpop.f32.mrb[0].mxu0
        %v6932 = vadd.f32 %v6104, %v6931
        %6933 = vmatprep.mubr.bf16.mxu0 %v5977
        %6934 = vmatmul.mubr.bf16.gmra.mrb[0].mxu0 %v5976
        %v6935 = vpop.f32.mrb[0].mxu0
        %v6936 = vadd.f32 %v6100, %v6935
        %v6937 = vpop.f32.mrb[0].mxu0
        %v6938 = vadd.f32 %v6104, %v6937
        %v6939 = vpop.f32.mrb[0].mxu0
        %v6940 = vadd.f32 %v6100, %v6939
        %v6941 = vpop.f32.mrb[0].mxu0
        %v6942 = vadd.f32 %v6104, %v6941
        %6943 = vmatprep.mubr.bf16.mxu0 %v5980
        %6944 = vmatmul.mubr.bf16.gmra.mrb[0].mxu0 %v5979
        %v6945 = vpop.f32.mrb[0].mxu0
        %v6946 = vadd.f32 %v6100, %v6945
        %v6947 = vpop.f32.mrb[0].mxu0
        %v6948 = vadd.f32 %v6104, %v6947
        %v6949 = vpop.f32.mrb[0].mxu0
        %v6950 = vadd.f32 %v6100, %v6949
        %v6951 = vpop.f32.mrb[0].mxu0
        %v6952 = vadd.f32 %v6104, %v6951
        %6953 = vmatprep.mubr.bf16.mxu0 %v5983
        %6954 = vmatmul.mubr.bf16.gmra.mrb[0].mxu0 %v5982
        %v6955 = vpop.f32.mrb[0].mxu0
        %v6956 = vadd.f32 %v6100, %v6955
        %v6957 = vpop.f32.mrb[0].mxu0
        %v6958 = vadd.f32 %v6104, %v6957
        %v6959 = vpop.f32.mrb[0].mxu0
        %v6960 = vadd.f32 %v6100, %v6959
        %v6961 = vpop.f32.mrb[0].mxu0
        %v6962 = vadd.f32 %v6104, %v6961
        %6963 = vmatprep.mubr.bf16.mxu0 %v5986
        %6964 = vmatmul.mubr.bf16.gmra.mrb[0].mxu0 %v5985
        %v6965 = vpop.f32.mrb[0].mxu0
        %v6966 = vadd.f32 %v6100, %v6965
        %v6967 = vpop.f32.mrb[0].mxu0
        %v6968 = vadd.f32 %v6104, %v6967
        %v6969 = vpop.f32.mrb[0].mxu0
        %v6970 = vadd.f32 %v6100, %v6969
        %v6971 = vpop.f32.mrb[0].mxu0
        %v6972 = vadd.f32 %v6104, %v6971
        %6973 = vmatprep.mubr.bf16.mxu0 %v5989
        %6974 = vmatmul.mubr.bf16.gmra.mrb[0].mxu0 %v5988
        %v6975 = vpop.f32.mrb[0].mxu0
        %v6976 = vadd.f32 %v6100, %v6975
        %v6977 = vpop.f32.mrb[0].mxu0
        %v6978 = vadd.f32 %v6104, %v6977
        %v6979 = vpop.f32.mrb[0].mxu0
        %v6980 = vpop.f32.mrb[0].mxu0
        %6981 = vdwg.mxu0
        %6982 = vmatprep.subr.bf16.mxu0 %v6464
        %6983 = vmatpush1.bf16.msra.mxu0 %v6463
        %6984 = vmatprep.subr.bf16.mxu0 %v6468
        %6985 = vmatpush1.bf16.msra.mxu0 %v6467
        %6986 = vmatprep.subr.bf16.mxu0 %v6472
        %6987 = vmatpush1.bf16.msra.mxu0 %v6471
        %6988 = vmatprep.subr.bf16.mxu0 %v6476
        %6989 = vmatpush1.bf16.msra.mxu0 %v6475
        %6990 = vmatprep.subr.bf16.mxu0 %v6480
        %6991 = vmatpush1.bf16.msra.mxu0 %v6479
        %6992 = vmatprep.subr.bf16.mxu0 %v6484
        %6993 = vmatpush1.bf16.msra.mxu0 %v6483
        %6994 = vmatprep.subr.bf16.mxu0 %v6488
        %6995 = vmatpush1.bf16.msra.mxu0 %v6487
        %6996 = vmatprep.subr.bf16.mxu0 %v6492
        %6997 = vmatpush1.bf16.msra.mxu0 %v6491
        %6998 = vmatprep.subr.bf16.mxu0 0
        %6999 = vmatpush1.bf16.msra.mxu0 0
        %7000 = vmatprep.subr.bf16.mxu0 0
        %7001 = vmatpush1.bf16.msra.mxu0 0
        %7002 = vmatprep.subr.bf16.mxu0 0
        %7003 = vmatpush1.bf16.msra.mxu0 0
        %7004 = vmatprep.subr.bf16.mxu0 0
        %7005 = vmatpush1.bf16.msra.mxu0 0
        %7006 = vmatprep.subr.bf16.mxu0 0
        %7007 = vmatpush1.bf16.msra.mxu0 0
        %7008 = vmatprep.subr.bf16.mxu0 0
        %7009 = vmatpush1.bf16.msra.mxu0 0
        %7010 = vmatprep.subr.bf16.mxu0 0
        %7011 = vmatpush1.bf16.msra.mxu0 0
        %7012 = vmatprep.subr.bf16.mxu0 0
        %7013 = vmatpush1.bf16.msra.mxu0 0
        %7014 = vmatprep.mubr.bf16.mxu0 0
        %7015 = vmatmul.mubr.bf16.gmra.mrb[0].mxu0 %v5963
        %v7016 = vpop.f32.mrb[0].mxu0
        %v7017 = vadd.f32 %v6886, %v7016
        %v7018 = vpop.f32.mrb[0].mxu0
        %v7019 = vadd.f32 %v6888, %v7018
        %v7020 = vpop.f32.mrb[0].mxu0
        %v7021 = vadd.f32 %v6890, %v7020
        %v7022 = vpop.f32.mrb[0].mxu0
        %v7023 = vadd.f32 %v6892, %v7022
        %7024 = vmatprep.mubr.bf16.mxu0 0
        %7025 = vmatmul.mubr.bf16.gmra.mrb[0].mxu0 %v5966
        %v7026 = vpop.f32.mrb[0].mxu0
        %v7027 = vadd.f32 %v6896, %v7026
        %v7028 = vpop.f32.mrb[0].mxu0
        %v7029 = vadd.f32 %v6898, %v7028
        %v7030 = vpop.f32.mrb[0].mxu0
        %v7031 = vadd.f32 %v6900, %v7030
        %v7032 = vpop.f32.mrb[0].mxu0
        %v7033 = vadd.f32 %v6902, %v7032
        %7034 = vmatprep.mubr.bf16.mxu0 0
        %7035 = vmatmul.mubr.bf16.gmra.mrb[0].mxu0 %v5969
        %v7036 = vpop.f32.mrb[0].mxu0
        %v7037 = vadd.f32 %v6906, %v7036
        %v7038 = vpop.f32.mrb[0].mxu0
        %v7039 = vadd.f32 %v6908, %v7038
        %v7040 = vpop.f32.mrb[0].mxu0
        %v7041 = vadd.f32 %v6910, %v7040
        %v7042 = vpop.f32.mrb[0].mxu0
        %v7043 = vadd.f32 %v6912, %v7042
        %7044 = vmatprep.mubr.bf16.mxu0 0
        %7045 = vmatmul.mubr.bf16.gmra.mrb[0].mxu0 %v5972
        %v7046 = vpop.f32.mrb[0].mxu0
        %v7047 = vadd.f32 %v6916, %v7046
        %v7048 = vpop.f32.mrb[0].mxu0
        %v7049 = vadd.f32 %v6918, %v7048
        %v7050 = vpop.f32.mrb[0].mxu0
        %v7051 = vadd.f32 %v6920, %v7050
        %v7052 = vpop.f32.mrb[0].mxu0
        %v7053 = vadd.f32 %v6922, %v7052
        %7054 = vmatprep.mubr.bf16.mxu0 0
        %7055 = vmatmul.mubr.bf16.gmra.mrb[0].mxu0 %v5975
        %v7056 = vpop.f32.mrb[0].mxu0
        %v7057 = vadd.f32 %v6926, %v7056
        %v7058 = vpop.f32.mrb[0].mxu0
        %v7059 = vadd.f32 %v6928, %v7058
        %v7060 = vpop.f32.mrb[0].mxu0
        %v7061 = vadd.f32 %v6930, %v7060
        %v7062 = vpop.f32.mrb[0].mxu0
        %v7063 = vadd.f32 %v6932, %v7062
        %7064 = vmatprep.mubr.bf16.mxu0 0
        %7065 = vmatmul.mubr.bf16.gmra.mrb[0].mxu0 %v5978
        %v7066 = vpop.f32.mrb[0].mxu0
        %v7067 = vadd.f32 %v6936, %v7066
        %v7068 = vpop.f32.mrb[0].mxu0
        %v7069 = vadd.f32 %v6938, %v7068
        %v7070 = vpop.f32.mrb[0].mxu0
        %v7071 = vadd.f32 %v6940, %v7070
        %v7072 = vpop.f32.mrb[0].mxu0
        %v7073 = vadd.f32 %v6942, %v7072
        %7074 = vmatprep.mubr.bf16.mxu0 0
        %7075 = vmatmul.mubr.bf16.gmra.mrb[0].mxu0 %v5981
        %v7076 = vpop.f32.mrb[0].mxu0
        %v7077 = vadd.f32 %v6946, %v7076
        %v7078 = vpop.f32.mrb[0].mxu0
        %v7079 = vadd.f32 %v6948, %v7078
        %v7080 = vpop.f32.mrb[0].mxu0
        %v7081 = vadd.f32 %v6950, %v7080
        %v7082 = vpop.f32.mrb[0].mxu0
        %v7083 = vadd.f32 %v6952, %v7082
        %7084 = vmatprep.mubr.bf16.mxu0 0
        %7085 = vmatmul.mubr.bf16.gmra.mrb[0].mxu0 %v5984
        %v7086 = vpop.f32.mrb[0].mxu0
        %v7087 = vadd.f32 %v6956, %v7086
        %v7088 = vpop.f32.mrb[0].mxu0
        %v7089 = vadd.f32 %v6958, %v7088
        %v7090 = vpop.f32.mrb[0].mxu0
        %v7091 = vadd.f32 %v6960, %v7090
        %v7092 = vpop.f32.mrb[0].mxu0
        %v7093 = vadd.f32 %v6962, %v7092
        %7094 = vmatprep.mubr.bf16.mxu0 0
        %7095 = vmatmul.mubr.bf16.gmra.mrb[0].mxu0 %v5987
        %v7096 = vpop.f32.mrb[0].mxu0
        %v7097 = vadd.f32 %v6966, %v7096
        %v7098 = vpop.f32.mrb[0].mxu0
        %v7099 = vadd.f32 %v6968, %v7098
        %v7100 = vpop.f32.mrb[0].mxu0
        %v7101 = vadd.f32 %v6970, %v7100
        %v7102 = vpop.f32.mrb[0].mxu0
        %v7103 = vadd.f32 %v6972, %v7102
        %7104 = vmatprep.mubr.bf16.mxu0 0
        %7105 = vmatmul.mubr.bf16.gmra.mrb[0].mxu0 %v5990
        %v7106 = vpop.f32.mrb[0].mxu0
        %v7107 = vadd.f32 %v6976, %v7106
        %v7108 = vpop.f32.mrb[0].mxu0
        %v7109 = vadd.f32 %v6978, %v7108
        %v7110 = vpop.f32.mrb[0].mxu0
        %v7111 = vpop.f32.mrb[0].mxu0
        %7112 = vdwg.mxu0
        %v7113 = vmul.f32 %v6755, 0.5
        %v7114 = vmul.f32 %v6757, 0.5
        %v7115 = vmul.f32 %v6759, 0.5
        %v7116 = vmul.f32 %v6761, 0.5
        %v7117 = vmul.f32 %v6765, 0.5
        %v7118 = vmul.f32 %v6767, 0.5
        %v7119 = vmul.f32 %v6769, 0.5
        %v7120 = vmul.f32 %v6771, 0.5
        %v7121 = vmul.f32 %v6775, 0.5
        %v7122 = vmul.f32 %v6777, 0.5
        %v7123 = vmul.f32 %v6779, 0.5
        %v7124 = vmul.f32 %v6781, 0.5
        %v7125 = vmul.f32 %v6785, 0.5
        %v7126 = vmul.f32 %v6787, 0.5
        %v7127 = vmul.f32 %v6789, 0.5
        %v7128 = vmul.f32 %v6791, 0.5
        %v7129 = vmul.f32 %v6795, 0.5
        %v7130 = vmul.f32 %v6797, 0.5
        %v7131 = vmul.f32 %v6799, 0.5
        %v7132 = vmul.f32 %v6801, 0.5
        %v7133 = vmul.f32 %v6805, 0.5
        %v7134 = vmul.f32 %v6807, 0.5
        %v7135 = vmul.f32 %v6809, 0.5
        %v7136 = vmul.f32 %v6811, 0.5
        %v7137 = vmul.f32 %v6815, 0.5
        %v7138 = vmul.f32 %v6817, 0.5
        %v7139 = vmul.f32 %v6819, 0.5
        %v7140 = vmul.f32 %v6821, 0.5
        %v7141 = vmul.f32 %v6825, 0.5
        %v7142 = vmul.f32 %v6827, 0.5
        %v7143 = vmul.f32 %v6829, 0.5
        %v7144 = vmul.f32 %v6831, 0.5
        %v7145 = vmul.f32 %v6835, 0.5
        %v7146 = vmul.f32 %v6837, 0.5
        %v7147 = vmul.f32 %v6839, 0.5
        %v7148 = vmul.f32 %v6841, 0.5
        %v7149 = vmul.f32 %v6845, 0.5
        %v7150 = vmul.f32 %v6847, 0.5
        %v7151 = vmul.f32 %v6755, %v6755
        %v7152 = vmul.f32 %v6757, %v6757
        %v7153 = vmul.f32 %v6759, %v6759
        %v7154 = vmul.f32 %v6761, %v6761
        %v7155 = vmul.f32 %v6765, %v6765
        %v7156 = vmul.f32 %v6767, %v6767
        %v7157 = vmul.f32 %v6769, %v6769
        %v7158 = vmul.f32 %v6771, %v6771
        %v7159 = vmul.f32 %v6775, %v6775
        %v7160 = vmul.f32 %v6777, %v6777
        %v7161 = vmul.f32 %v6779, %v6779
        %v7162 = vmul.f32 %v6781, %v6781
        %v7163 = vmul.f32 %v6785, %v6785
        %v7164 = vmul.f32 %v6787, %v6787
        %v7165 = vmul.f32 %v6789, %v6789
        %v7166 = vmul.f32 %v6791, %v6791
        %v7167 = vmul.f32 %v6795, %v6795
        %v7168 = vmul.f32 %v6797, %v6797
        %v7169 = vmul.f32 %v6799, %v6799
        %v7170 = vmul.f32 %v6801, %v6801
        %v7171 = vmul.f32 %v6805, %v6805
        %v7172 = vmul.f32 %v6807, %v6807
        %v7173 = vmul.f32 %v6809, %v6809
        %v7174 = vmul.f32 %v6811, %v6811
        %v7175 = vmul.f32 %v6815, %v6815
        %v7176 = vmul.f32 %v6817, %v6817
        %v7177 = vmul.f32 %v6819, %v6819
        %v7178 = vmul.f32 %v6821, %v6821
        %v7179 = vmul.f32 %v6825, %v6825
        %v7180 = vmul.f32 %v6827, %v6827
        %v7181 = vmul.f32 %v6829, %v6829
        %v7182 = vmul.f32 %v6831, %v6831
        %v7183 = vmul.f32 %v6835, %v6835
        %v7184 = vmul.f32 %v6837, %v6837
        %v7185 = vmul.f32 %v6839, %v6839
        %v7186 = vmul.f32 %v6841, %v6841
        %v7187 = vmul.f32 %v6845, %v6845
        %v7188 = vmul.f32 %v6847, %v6847
        %v7189 = vmul.f32 %v7151, %v6755
        %v7190 = vmul.f32 %v7152, %v6757
        %v7191 = vmul.f32 %v7153, %v6759
        %v7192 = vmul.f32 %v7154, %v6761
        %v7193 = vmul.f32 %v7155, %v6765
        %v7194 = vmul.f32 %v7156, %v6767
        %v7195 = vmul.f32 %v7157, %v6769
        %v7196 = vmul.f32 %v7158, %v6771
        %v7197 = vmul.f32 %v7159, %v6775
        %v7198 = vmul.f32 %v7160, %v6777
        %v7199 = vmul.f32 %v7161, %v6779
        %v7200 = vmul.f32 %v7162, %v6781
        %v7201 = vmul.f32 %v7163, %v6785
        %v7202 = vmul.f32 %v7164, %v6787
        %v7203 = vmul.f32 %v7165, %v6789
        %v7204 = vmul.f32 %v7166, %v6791
        %v7205 = vmul.f32 %v7167, %v6795
        %v7206 = vmul.f32 %v7168, %v6797
        %v7207 = vmul.f32 %v7169, %v6799
        %v7208 = vmul.f32 %v7170, %v6801
        %v7209 = vmul.f32 %v7171, %v6805
        %v7210 = vmul.f32 %v7172, %v6807
        %v7211 = vmul.f32 %v7173, %v6809
        %v7212 = vmul.f32 %v7174, %v6811
        %v7213 = vmul.f32 %v7175, %v6815
        %v7214 = vmul.f32 %v7176, %v6817
        %v7215 = vmul.f32 %v7177, %v6819
        %v7216 = vmul.f32 %v7178, %v6821
        %v7217 = vmul.f32 %v7179, %v6825
        %v7218 = vmul.f32 %v7180, %v6827
        %v7219 = vmul.f32 %v7181, %v6829
        %v7220 = vmul.f32 %v7182, %v6831
        %v7221 = vmul.f32 %v7183, %v6835
        %v7222 = vmul.f32 %v7184, %v6837
        %v7223 = vmul.f32 %v7185, %v6839
        %v7224 = vmul.f32 %v7186, %v6841
        %v7225 = vmul.f32 %v7187, %v6845
        %v7226 = vmul.f32 %v7188, %v6847
        %v7227 = vmul.f32 %v7189, 0.044715
        %v7228 = vmul.f32 %v7190, 0.044715
        %v7229 = vmul.f32 %v7191, 0.044715
        %v7230 = vmul.f32 %v7192, 0.044715
        %v7231 = vmul.f32 %v7193, 0.044715
        %v7232 = vmul.f32 %v7194, 0.044715
        %v7233 = vmul.f32 %v7195, 0.044715
        %v7234 = vmul.f32 %v7196, 0.044715
        %v7235 = vmul.f32 %v7197, 0.044715
        %v7236 = vmul.f32 %v7198, 0.044715
        %v7237 = vmul.f32 %v7199, 0.044715
        %v7238 = vmul.f32 %v7200, 0.044715
        %v7239 = vmul.f32 %v7201, 0.044715
        %v7240 = vmul.f32 %v7202, 0.044715
        %v7241 = vmul.f32 %v7203, 0.044715
        %v7242 = vmul.f32 %v7204, 0.044715
        %v7243 = vmul.f32 %v7205, 0.044715
        %v7244 = vmul.f32 %v7206, 0.044715
        %v7245 = vmul.f32 %v7207, 0.044715
        %v7246 = vmul.f32 %v7208, 0.044715
        %v7247 = vmul.f32 %v7209, 0.044715
        %v7248 = vmul.f32 %v7210, 0.044715
        %v7249 = vmul.f32 %v7211, 0.044715
        %v7250 = vmul.f32 %v7212, 0.044715
        %v7251 = vmul.f32 %v7213, 0.044715
        %v7252 = vmul.f32 %v7214, 0.044715
        %v7253 = vmul.f32 %v7215, 0.044715
        %v7254 = vmul.f32 %v7216, 0.044715
        %v7255 = vmul.f32 %v7217, 0.044715
        %v7256 = vmul.f32 %v7218, 0.044715
        %v7257 = vmul.f32 %v7219, 0.044715
        %v7258 = vmul.f32 %v7220, 0.044715
        %v7259 = vmul.f32 %v7221, 0.044715
        %v7260 = vmul.f32 %v7222, 0.044715
        %v7261 = vmul.f32 %v7223, 0.044715
        %v7262 = vmul.f32 %v7224, 0.044715
        %v7263 = vmul.f32 %v7225, 0.044715
        %v7264 = vmul.f32 %v7226, 0.044715
        %v7265 = vadd.f32 %v6755, %v7227
        %v7266 = vadd.f32 %v6757, %v7228
        %v7267 = vadd.f32 %v6759, %v7229
        %v7268 = vadd.f32 %v6761, %v7230
        %v7269 = vadd.f32 %v6765, %v7231
        %v7270 = vadd.f32 %v6767, %v7232
        %v7271 = vadd.f32 %v6769, %v7233
        %v7272 = vadd.f32 %v6771, %v7234
        %v7273 = vadd.f32 %v6775, %v7235
        %v7274 = vadd.f32 %v6777, %v7236
        %v7275 = vadd.f32 %v6779, %v7237
        %v7276 = vadd.f32 %v6781, %v7238
        %v7277 = vadd.f32 %v6785, %v7239
        %v7278 = vadd.f32 %v6787, %v7240
        %v7279 = vadd.f32 %v6789, %v7241
        %v7280 = vadd.f32 %v6791, %v7242
        %v7281 = vadd.f32 %v6795, %v7243
        %v7282 = vadd.f32 %v6797, %v7244
        %v7283 = vadd.f32 %v6799, %v7245
        %v7284 = vadd.f32 %v6801, %v7246
        %v7285 = vadd.f32 %v6805, %v7247
        %v7286 = vadd.f32 %v6807, %v7248
        %v7287 = vadd.f32 %v6809, %v7249
        %v7288 = vadd.f32 %v6811, %v7250
        %v7289 = vadd.f32 %v6815, %v7251
        %v7290 = vadd.f32 %v6817, %v7252
        %v7291 = vadd.f32 %v6819, %v7253
        %v7292 = vadd.f32 %v6821, %v7254
        %v7293 = vadd.f32 %v6825, %v7255
        %v7294 = vadd.f32 %v6827, %v7256
        %v7295 = vadd.f32 %v6829, %v7257
        %v7296 = vadd.f32 %v6831, %v7258
        %v7297 = vadd.f32 %v6835, %v7259
        %v7298 = vadd.f32 %v6837, %v7260
        %v7299 = vadd.f32 %v6839, %v7261
        %v7300 = vadd.f32 %v6841, %v7262
        %v7301 = vadd.f32 %v6845, %v7263
        %v7302 = vadd.f32 %v6847, %v7264
        %v7303 = vmul.f32 %v7265, 0.7978846
        %v7304 = vmul.f32 %v7266, 0.7978846
        %v7305 = vmul.f32 %v7267, 0.7978846
        %v7306 = vmul.f32 %v7268, 0.7978846
        %v7307 = vmul.f32 %v7269, 0.7978846
        %v7308 = vmul.f32 %v7270, 0.7978846
        %v7309 = vmul.f32 %v7271, 0.7978846
        %v7310 = vmul.f32 %v7272, 0.7978846
        %v7311 = vmul.f32 %v7273, 0.7978846
        %v7312 = vmul.f32 %v7274, 0.7978846
        %v7313 = vmul.f32 %v7275, 0.7978846
        %v7314 = vmul.f32 %v7276, 0.7978846
        %v7315 = vmul.f32 %v7277, 0.7978846
        %v7316 = vmul.f32 %v7278, 0.7978846
        %v7317 = vmul.f32 %v7279, 0.7978846
        %v7318 = vmul.f32 %v7280, 0.7978846
        %v7319 = vmul.f32 %v7281, 0.7978846
        %v7320 = vmul.f32 %v7282, 0.7978846
        %v7321 = vmul.f32 %v7283, 0.7978846
        %v7322 = vmul.f32 %v7284, 0.7978846
        %v7323 = vmul.f32 %v7285, 0.7978846
        %v7324 = vmul.f32 %v7286, 0.7978846
        %v7325 = vmul.f32 %v7287, 0.7978846
        %v7326 = vmul.f32 %v7288, 0.7978846
        %v7327 = vmul.f32 %v7289, 0.7978846
        %v7328 = vmul.f32 %v7290, 0.7978846
        %v7329 = vmul.f32 %v7291, 0.7978846
        %v7330 = vmul.f32 %v7292, 0.7978846
        %v7331 = vmul.f32 %v7293, 0.7978846
        %v7332 = vmul.f32 %v7294, 0.7978846
        %v7333 = vmul.f32 %v7295, 0.7978846
        %v7334 = vmul.f32 %v7296, 0.7978846
        %v7335 = vmul.f32 %v7297, 0.7978846
        %v7336 = vmul.f32 %v7298, 0.7978846
        %v7337 = vmul.f32 %v7299, 0.7978846
        %v7338 = vmul.f32 %v7300, 0.7978846
        %v7339 = vmul.f32 %v7301, 0.7978846
        %v7340 = vmul.f32 %v7302, 0.7978846
        %v7341 = vtanh.pop %v7303
        %v7342 = vtanh.pop %v7304
        %v7343 = vtanh.pop %v7305
        %v7344 = vtanh.pop %v7306
        %v7345 = vtanh.pop %v7307
        %v7346 = vtanh.pop %v7308
        %v7347 = vtanh.pop %v7309
        %v7348 = vtanh.pop %v7310
        %v7349 = vtanh.pop %v7311
        %v7350 = vtanh.pop %v7312
        %v7351 = vtanh.pop %v7313
        %v7352 = vtanh.pop %v7314
        %v7353 = vtanh.pop %v7315
        %v7354 = vtanh.pop %v7316
        %v7355 = vtanh.pop %v7317
        %v7356 = vtanh.pop %v7318
        %v7357 = vtanh.pop %v7319
        %v7358 = vtanh.pop %v7320
        %v7359 = vtanh.pop %v7321
        %v7360 = vtanh.pop %v7322
        %v7361 = vtanh.pop %v7323
        %v7362 = vtanh.pop %v7324
        %v7363 = vtanh.pop %v7325
        %v7364 = vtanh.pop %v7326
        %v7365 = vtanh.pop %v7327
        %v7366 = vtanh.pop %v7328
        %v7367 = vtanh.pop %v7329
        %v7368 = vtanh.pop %v7330
        %v7369 = vtanh.pop %v7331
        %v7370 = vtanh.pop %v7332
        %v7371 = vtanh.pop %v7333
        %v7372 = vtanh.pop %v7334
        %v7373 = vtanh.pop %v7335
        %v7374 = vtanh.pop %v7336
        %v7375 = vtanh.pop %v7337
        %v7376 = vtanh.pop %v7338
        %v7377 = vtanh.pop %v7339
        %v7378 = vtanh.pop %v7340
        %v7379 = vadd.f32 %v7341, 1.0
        %v7380 = vadd.f32 %v7342, 1.0
        %v7381 = vadd.f32 %v7343, 1.0
        %v7382 = vadd.f32 %v7344, 1.0
        %v7383 = vadd.f32 %v7345, 1.0
        %v7384 = vadd.f32 %v7346, 1.0
        %v7385 = vadd.f32 %v7347, 1.0
        %v7386 = vadd.f32 %v7348, 1.0
        %v7387 = vadd.f32 %v7349, 1.0
        %v7388 = vadd.f32 %v7350, 1.0
        %v7389 = vadd.f32 %v7351, 1.0
        %v7390 = vadd.f32 %v7352, 1.0
        %v7391 = vadd.f32 %v7353, 1.0
        %v7392 = vadd.f32 %v7354, 1.0
        %v7393 = vadd.f32 %v7355, 1.0
        %v7394 = vadd.f32 %v7356, 1.0
        %v7395 = vadd.f32 %v7357, 1.0
        %v7396 = vadd.f32 %v7358, 1.0
        %v7397 = vadd.f32 %v7359, 1.0
        %v7398 = vadd.f32 %v7360, 1.0
        %v7399 = vadd.f32 %v7361, 1.0
        %v7400 = vadd.f32 %v7362, 1.0
        %v7401 = vadd.f32 %v7363, 1.0
        %v7402 = vadd.f32 %v7364, 1.0
        %v7403 = vadd.f32 %v7365, 1.0
        %v7404 = vadd.f32 %v7366, 1.0
        %v7405 = vadd.f32 %v7367, 1.0
        %v7406 = vadd.f32 %v7368, 1.0
        %v7407 = vadd.f32 %v7369, 1.0
        %v7408 = vadd.f32 %v7370, 1.0
        %v7409 = vadd.f32 %v7371, 1.0
        %v7410 = vadd.f32 %v7372, 1.0
        %v7411 = vadd.f32 %v7373, 1.0
        %v7412 = vadd.f32 %v7374, 1.0
        %v7413 = vadd.f32 %v7375, 1.0
        %v7414 = vadd.f32 %v7376, 1.0
        %v7415 = vadd.f32 %v7377, 1.0
        %v7416 = vadd.f32 %v7378, 1.0
        %v7417 = vmul.f32 %v7113, %v7379
        %v7418 = vmul.f32 %v7114, %v7380
        %v7419 = vmul.f32 %v7115, %v7381
        %v7420 = vmul.f32 %v7116, %v7382
        %v7421 = vmul.f32 %v7117, %v7383
        %v7422 = vmul.f32 %v7118, %v7384
        %v7423 = vmul.f32 %v7119, %v7385
        %v7424 = vmul.f32 %v7120, %v7386
        %v7425 = vmul.f32 %v7121, %v7387
        %v7426 = vmul.f32 %v7122, %v7388
        %v7427 = vmul.f32 %v7123, %v7389
        %v7428 = vmul.f32 %v7124, %v7390
        %v7429 = vmul.f32 %v7125, %v7391
        %v7430 = vmul.f32 %v7126, %v7392
        %v7431 = vmul.f32 %v7127, %v7393
        %v7432 = vmul.f32 %v7128, %v7394
        %v7433 = vmul.f32 %v7129, %v7395
        %v7434 = vmul.f32 %v7130, %v7396
        %v7435 = vmul.f32 %v7131, %v7397
        %v7436 = vmul.f32 %v7132, %v7398
        %v7437 = vmul.f32 %v7133, %v7399
        %v7438 = vmul.f32 %v7134, %v7400
        %v7439 = vmul.f32 %v7135, %v7401
        %v7440 = vmul.f32 %v7136, %v7402
        %v7441 = vmul.f32 %v7137, %v7403
        %v7442 = vmul.f32 %v7138, %v7404
        %v7443 = vmul.f32 %v7139, %v7405
        %v7444 = vmul.f32 %v7140, %v7406
        %v7445 = vmul.f32 %v7141, %v7407
        %v7446 = vmul.f32 %v7142, %v7408
        %v7447 = vmul.f32 %v7143, %v7409
        %v7448 = vmul.f32 %v7144, %v7410
        %v7449 = vmul.f32 %v7145, %v7411
        %v7450 = vmul.f32 %v7146, %v7412
        %v7451 = vmul.f32 %v7147, %v7413
        %v7452 = vmul.f32 %v7148, %v7414
        %v7453 = vmul.f32 %v7149, %v7415
        %v7454 = vmul.f32 %v7150, %v7416
        %v7455 = vpack.c.bf16 %v7419, %v7417
        %v7456 = vpack.c.bf16 %v7420, %v7418
        %v7457 = vpack.c.bf16 %v7423, %v7421
        %v7458 = vpack.c.bf16 %v7424, %v7422
        %v7459 = vpack.c.bf16 %v7427, %v7425
        %v7460 = vpack.c.bf16 %v7428, %v7426
        %v7461 = vpack.c.bf16 %v7431, %v7429
        %v7462 = vpack.c.bf16 %v7432, %v7430
        %v7463 = vpack.c.bf16 %v7435, %v7433
        %v7464 = vpack.c.bf16 %v7436, %v7434
        %v7465 = vpack.c.bf16 %v7439, %v7437
        %v7466 = vpack.c.bf16 %v7440, %v7438
        %v7467 = vpack.c.bf16 %v7443, %v7441
        %v7468 = vpack.c.bf16 %v7444, %v7442
        %v7469 = vpack.c.bf16 %v7447, %v7445
        %v7470 = vpack.c.bf16 %v7448, %v7446
        %v7471 = vpack.c.bf16 %v7451, %v7449
        %v7472 = vpack.c.bf16 %v7452, %v7450
        %v7473 = vpack.c.bf16 %v7453, %v7453
        %v7474 = vpack.c.bf16 %v7454, %v7454
        %v7475 = vld [vmem:[#allocation11] sm:$0xff]
        %v7476 = vld [vmem:[#allocation11 + $0x8] sm:$0xff]
        %v7477 = vld [vmem:[#allocation11 + $0x10] sm:$0xff]
        %v7478 = vld [vmem:[#allocation11 + $0x18] sm:$0xff]
        %v7479 = vld [vmem:[#allocation11 + $0x20] sm:$0xff]
        %v7480 = vld [vmem:[#allocation11 + $0x28] sm:$0xff]
        %v7481 = vld [vmem:[#allocation11 + $0x30] sm:$0xff]
        %v7482 = vld [vmem:[#allocation11 + $0x38] sm:$0xff]
        %v7483 = vld [vmem:[#allocation11 + $0x40] sm:$0xff]
        %v7484 = vld [vmem:[#allocation11 + $0x48] sm:$0xff]
        %v7485 = vld [vmem:[#allocation11 + $0x50] sm:$0xff]
        %v7486 = vld [vmem:[#allocation11 + $0x58] sm:$0xff]
        %v7487 = vld [vmem:[#allocation11 + $0x60] sm:$0xff]
        %v7488 = vld [vmem:[#allocation11 + $0x68] sm:$0xff]
        %v7489 = vld [vmem:[#allocation11 + $0x70] sm:$0xff]
        %v7490 = vld [vmem:[#allocation11 + $0x78] sm:$0xff]
        %v7491 = vld [vmem:[#allocation11 + $0x80] sm:$0xff]
        %v7492 = vld [vmem:[#allocation11 + $0x88] sm:$0xff]
        %v7493 = vld [vmem:[#allocation11 + $0x90] sm:$0xff]
        %v7494 = vld [vmem:[#allocation11 + $0x98] sm:$0xff]
        %v7495 = vld [vmem:[#allocation11 + $0xa0] sm:$0xff]
        %v7496 = vld [vmem:[#allocation11 + $0xa8] sm:$0xff]
        %v7497 = vld [vmem:[#allocation11 + $0xb0] sm:$0xff]
        %v7498 = vld [vmem:[#allocation11 + $0xb8] sm:$0xff]
        %v7499 = vld [vmem:[#allocation11 + $0xc0] sm:$0xff]
        %v7500 = vld [vmem:[#allocation11 + $0xc8] sm:$0xff]
        %v7501 = vld [vmem:[#allocation11 + $0xd0] sm:$0xff]
        %v7502 = vld [vmem:[#allocation11 + $0xd8] sm:$0xff]
        %v7503 = vld [vmem:[#allocation11 + $0xe0] sm:$0xff]
        %v7504 = vld [vmem:[#allocation11 + $0xe8] sm:$0xff]
        %v7505 = vld [vmem:[#allocation11 + $0xf0] sm:$0xff]
        %v7506 = vld [vmem:[#allocation11 + $0xf8] sm:$0xff]
        %v7507 = vld [vmem:[%s10] sm:$0x3]
        %v7509 = vlaneseq
        %v7510 = vshrl.u32 %v7509, 7
        %v7511 = vsub.s32 0, %v7510
        %v7512 = vrot.slane %v7507, %v7511
        %v7513 = vlaneseq
        %v7514 = vshrl.u32 %v7513, 7
        %v7515 = vsub.s32 1, %v7514
        %v7516 = vrot.slane %v7507, %v7515
        %v7551 = vunpack.c.l.b16 %v7475
        %v7552 = vunpack.c.h.b16 %v7475
        %v7553 = vunpack.c.l.b16 %v7476
        %v7554 = vunpack.c.h.b16 %v7476
        %v7555 = vunpack.c.l.b16 %v7477
        %v7556 = vunpack.c.h.b16 %v7477
        %v7557 = vunpack.c.l.b16 %v7478
        %v7558 = vunpack.c.h.b16 %v7478
        %v7559 = vunpack.c.l.b16 %v7479
        %v7560 = vunpack.c.h.b16 %v7479
        %v7561 = vunpack.c.l.b16 %v7480
        %v7562 = vunpack.c.h.b16 %v7480
        %v7563 = vunpack.c.l.b16 %v7481
        %v7564 = vunpack.c.h.b16 %v7481
        %v7565 = vunpack.c.l.b16 %v7482
        %v7566 = vunpack.c.h.b16 %v7482
        %v7567 = vunpack.c.l.b16 %v7483
        %v7568 = vunpack.c.h.b16 %v7483
        %v7569 = vunpack.c.l.b16 %v7484
        %v7570 = vunpack.c.h.b16 %v7484
        %v7571 = vunpack.c.l.b16 %v7485
        %v7572 = vunpack.c.h.b16 %v7485
        %v7573 = vunpack.c.l.b16 %v7486
        %v7574 = vunpack.c.h.b16 %v7486
        %v7575 = vunpack.c.l.b16 %v7487
        %v7576 = vunpack.c.h.b16 %v7487
        %v7577 = vunpack.c.l.b16 %v7488
        %v7578 = vunpack.c.h.b16 %v7488
        %v7579 = vunpack.c.l.b16 %v7489
        %v7580 = vunpack.c.h.b16 %v7489
        %v7581 = vunpack.c.l.b16 %v7490
        %v7582 = vunpack.c.h.b16 %v7490
        %v7583 = vunpack.c.l.b16 %v7491
        %v7584 = vunpack.c.h.b16 %v7491
        %v7585 = vunpack.c.l.b16 %v7492
        %v7586 = vunpack.c.h.b16 %v7492
        %v7587 = vunpack.c.l.b16 %v7493
        %v7588 = vunpack.c.h.b16 %v7493
        %v7589 = vunpack.c.l.b16 %v7494
        %v7590 = vunpack.c.h.b16 %v7494
        %v7591 = vunpack.c.l.b16 %v7495
        %v7592 = vunpack.c.h.b16 %v7495
        %v7593 = vunpack.c.l.b16 %v7496
        %v7594 = vunpack.c.h.b16 %v7496
        %v7595 = vunpack.c.l.b16 %v7497
        %v7596 = vunpack.c.h.b16 %v7497
        %v7597 = vunpack.c.l.b16 %v7498
        %v7598 = vunpack.c.h.b16 %v7498
        %v7599 = vunpack.c.l.b16 %v7499
        %v7600 = vunpack.c.h.b16 %v7499
        %v7601 = vunpack.c.l.b16 %v7500
        %v7602 = vunpack.c.h.b16 %v7500
        %v7603 = vunpack.c.l.b16 %v7501
        %v7604 = vunpack.c.h.b16 %v7501
        %v7605 = vunpack.c.l.b16 %v7502
        %v7606 = vunpack.c.h.b16 %v7502
        %v7607 = vunpack.c.l.b16 %v7503
        %v7608 = vunpack.c.h.b16 %v7503
        %v7609 = vunpack.c.l.b16 %v7504
        %v7610 = vunpack.c.h.b16 %v7504
        %v7611 = vunpack.c.l.b16 %v7505
        %v7612 = vunpack.c.h.b16 %v7505
        %v7613 = vunpack.c.l.b16 %v7506
        %v7614 = vunpack.c.h.b16 %v7506
        %v7615 = vpack.c.b16 %v7553, %v7551
        %v7616 = vpack.c.b16 %v7554, %v7552
        %v7617 = vpack.c.b16 %v7557, %v7555
        %v7618 = vpack.c.b16 %v7558, %v7556
        %v7619 = vpack.c.b16 %v7561, %v7559
        %v7620 = vpack.c.b16 %v7562, %v7560
        %v7621 = vpack.c.b16 %v7565, %v7563
        %v7622 = vpack.c.b16 %v7566, %v7564
        %v7623 = vpack.c.b16 %v7569, %v7567
        %v7624 = vpack.c.b16 %v7570, %v7568
        %v7625 = vpack.c.b16 %v7573, %v7571
        %v7626 = vpack.c.b16 %v7574, %v7572
        %v7627 = vpack.c.b16 %v7577, %v7575
        %v7628 = vpack.c.b16 %v7578, %v7576
        %v7629 = vpack.c.b16 %v7581, %v7579
        %v7630 = vpack.c.b16 %v7582, %v7580
        %v7631 = vpack.c.b16 %v7585, %v7583
        %v7632 = vpack.c.b16 %v7586, %v7584
        %v7633 = vpack.c.b16 %v7589, %v7587
        %v7634 = vpack.c.b16 %v7590, %v7588
        %v7635 = vpack.c.b16 %v7593, %v7591
        %v7636 = vpack.c.b16 %v7594, %v7592
        %v7637 = vpack.c.b16 %v7597, %v7595
        %v7638 = vpack.c.b16 %v7598, %v7596
        %v7639 = vpack.c.b16 %v7601, %v7599
        %v7640 = vpack.c.b16 %v7602, %v7600
        %v7641 = vpack.c.b16 %v7605, %v7603
        %v7642 = vpack.c.b16 %v7606, %v7604
        %v7643 = vpack.c.b16 %v7609, %v7607
        %v7644 = vpack.c.b16 %v7610, %v7608
        %v7645 = vpack.c.b16 %v7613, %v7611
        %v7646 = vpack.c.b16 %v7614, %v7612
        %7679 = vmatprep.subr.bf16.mxu0 %v7616
        %7680 = vmatpush1.bf16.msra.mxu0 %v7615
        %7681 = vmatprep.subr.bf16.mxu0 %v7618
        %7682 = vmatpush1.bf16.msra.mxu0 %v7617
        %7683 = vmatprep.subr.bf16.mxu0 %v7620
        %7684 = vmatpush1.bf16.msra.mxu0 %v7619
        %7685 = vmatprep.subr.bf16.mxu0 %v7622
        %7686 = vmatpush1.bf16.msra.mxu0 %v7621
        %7687 = vmatprep.subr.bf16.mxu0 %v7624
        %7688 = vmatpush1.bf16.msra.mxu0 %v7623
        %7689 = vmatprep.subr.bf16.mxu0 %v7626
        %7690 = vmatpush1.bf16.msra.mxu0 %v7625
        %7691 = vmatprep.subr.bf16.mxu0 %v7628
        %7692 = vmatpush1.bf16.msra.mxu0 %v7627
        %7693 = vmatprep.subr.bf16.mxu0 %v7630
        %7694 = vmatpush1.bf16.msra.mxu0 %v7629
        %7695 = vmatprep.subr.bf16.mxu0 %v7632
        %7696 = vmatpush1.bf16.msra.mxu0 %v7631
        %7697 = vmatprep.subr.bf16.mxu0 %v7634
        %7698 = vmatpush1.bf16.msra.mxu0 %v7633
        %7699 = vmatprep.subr.bf16.mxu0 %v7636
        %7700 = vmatpush1.bf16.msra.mxu0 %v7635
        %7701 = vmatprep.subr.bf16.mxu0 %v7638
        %7702 = vmatpush1.bf16.msra.mxu0 %v7637
        %7703 = vmatprep.subr.bf16.mxu0 %v7640
        %7704 = vmatpush1.bf16.msra.mxu0 %v7639
        %7705 = vmatprep.subr.bf16.mxu0 %v7642
        %7706 = vmatpush1.bf16.msra.mxu0 %v7641
        %7707 = vmatprep.subr.bf16.mxu0 %v7644
        %7708 = vmatpush1.bf16.msra.mxu0 %v7643
        %7709 = vmatprep.subr.bf16.mxu0 %v7646
        %7710 = vmatpush1.bf16.msra.mxu0 %v7645
        %7711 = vmatprep.mubr.bf16.mxu0 %v7456
        %7712 = vmatmul.mubr.bf16.gmra.mrb[0].mxu0 %v7455
        %v7713 = vpop.f32.mrb[0].mxu0
        %v7714 = vadd.f32 %v7512, %v7713
        %v7715 = vpop.f32.mrb[0].mxu0
        %v7716 = vadd.f32 %v7516, %v7715
        %v7717 = vpop.f32.mrb[0].mxu0
        %v7718 = vadd.f32 %v7512, %v7717
        %v7719 = vpop.f32.mrb[0].mxu0
        %v7720 = vadd.f32 %v7516, %v7719
        %7721 = vmatprep.mubr.bf16.mxu0 %v7458
        %7722 = vmatmul.mubr.bf16.gmra.mrb[0].mxu0 %v7457
        %v7723 = vpop.f32.mrb[0].mxu0
        %v7724 = vadd.f32 %v7512, %v7723
        %v7725 = vpop.f32.mrb[0].mxu0
        %v7726 = vadd.f32 %v7516, %v7725
        %v7727 = vpop.f32.mrb[0].mxu0
        %v7728 = vadd.f32 %v7512, %v7727
        %v7729 = vpop.f32.mrb[0].mxu0
        %v7730 = vadd.f32 %v7516, %v7729
        %7731 = vmatprep.mubr.bf16.mxu0 %v7460
        %7732 = vmatmul.mubr.bf16.gmra.mrb[0].mxu0 %v7459
        %v7733 = vpop.f32.mrb[0].mxu0
        %v7734 = vadd.f32 %v7512, %v7733
        %v7735 = vpop.f32.mrb[0].mxu0
        %v7736 = vadd.f32 %v7516, %v7735
        %v7737 = vpop.f32.mrb[0].mxu0
        %v7738 = vadd.f32 %v7512, %v7737
        %v7739 = vpop.f32.mrb[0].mxu0
        %v7740 = vadd.f32 %v7516, %v7739
        %7741 = vmatprep.mubr.bf16.mxu0 %v7462
        %7742 = vmatmul.mubr.bf16.gmra.mrb[0].mxu0 %v7461
        %v7743 = vpop.f32.mrb[0].mxu0
        %v7744 = vadd.f32 %v7512, %v7743
        %v7745 = vpop.f32.mrb[0].mxu0
        %v7746 = vadd.f32 %v7516, %v7745
        %v7747 = vpop.f32.mrb[0].mxu0
        %v7748 = vadd.f32 %v7512, %v7747
        %v7749 = vpop.f32.mrb[0].mxu0
        %v7750 = vadd.f32 %v7516, %v7749
        %7751 = vmatprep.mubr.bf16.mxu0 %v7464
        %7752 = vmatmul.mubr.bf16.gmra.mrb[0].mxu0 %v7463
        %v7753 = vpop.f32.mrb[0].mxu0
        %v7754 = vadd.f32 %v7512, %v7753
        %v7755 = vpop.f32.mrb[0].mxu0
        %v7756 = vadd.f32 %v7516, %v7755
        %v7757 = vpop.f32.mrb[0].mxu0
        %v7758 = vadd.f32 %v7512, %v7757
        %v7759 = vpop.f32.mrb[0].mxu0
        %v7760 = vadd.f32 %v7516, %v7759
        %7761 = vmatprep.mubr.bf16.mxu0 %v7466
        %7762 = vmatmul.mubr.bf16.gmra.mrb[0].mxu0 %v7465
        %v7763 = vpop.f32.mrb[0].mxu0
        %v7764 = vadd.f32 %v7512, %v7763
        %v7765 = vpop.f32.mrb[0].mxu0
        %v7766 = vadd.f32 %v7516, %v7765
        %v7767 = vpop.f32.mrb[0].mxu0
        %v7768 = vadd.f32 %v7512, %v7767
        %v7769 = vpop.f32.mrb[0].mxu0
        %v7770 = vadd.f32 %v7516, %v7769
        %7771 = vmatprep.mubr.bf16.mxu0 %v7468
        %7772 = vmatmul.mubr.bf16.gmra.mrb[0].mxu0 %v7467
        %v7773 = vpop.f32.mrb[0].mxu0
        %v7774 = vadd.f32 %v7512, %v7773
        %v7775 = vpop.f32.mrb[0].mxu0
        %v7776 = vadd.f32 %v7516, %v7775
        %v7777 = vpop.f32.mrb[0].mxu0
        %v7778 = vadd.f32 %v7512, %v7777
        %v7779 = vpop.f32.mrb[0].mxu0
        %v7780 = vadd.f32 %v7516, %v7779
        %7781 = vmatprep.mubr.bf16.mxu0 %v7470
        %7782 = vmatmul.mubr.bf16.gmra.mrb[0].mxu0 %v7469
        %v7783 = vpop.f32.mrb[0].mxu0
        %v7784 = vadd.f32 %v7512, %v7783
        %v7785 = vpop.f32.mrb[0].mxu0
        %v7786 = vadd.f32 %v7516, %v7785
        %v7787 = vpop.f32.mrb[0].mxu0
        %v7788 = vadd.f32 %v7512, %v7787
        %v7789 = vpop.f32.mrb[0].mxu0
        %v7790 = vadd.f32 %v7516, %v7789
        %7791 = vmatprep.mubr.bf16.mxu0 %v7472
        %7792 = vmatmul.mubr.bf16.gmra.mrb[0].mxu0 %v7471
        %v7793 = vpop.f32.mrb[0].mxu0
        %v7794 = vadd.f32 %v7512, %v7793
        %v7795 = vpop.f32.mrb[0].mxu0
        %v7796 = vadd.f32 %v7516, %v7795
        %v7797 = vpop.f32.mrb[0].mxu0
        %v7798 = vadd.f32 %v7512, %v7797
        %v7799 = vpop.f32.mrb[0].mxu0
        %v7800 = vadd.f32 %v7516, %v7799
        %7801 = vmatprep.mubr.bf16.mxu0 %v7474
        %7802 = vmatmul.mubr.bf16.gmra.mrb[0].mxu0 %v7473
        %v7803 = vpop.f32.mrb[0].mxu0
        %v7804 = vadd.f32 %v7512, %v7803
        %v7805 = vpop.f32.mrb[0].mxu0
        %v7806 = vadd.f32 %v7516, %v7805
        %v7807 = vpop.f32.mrb[0].mxu0
        %v7808 = vpop.f32.mrb[0].mxu0
        %7809 = vdwg.mxu0
        %v7810 = vmul.f32 %v7714, 0.5
        %v7811 = vmul.f32 %v7716, 0.5
        %v7812 = vmul.f32 %v7718, 0.5
        %v7813 = vmul.f32 %v7720, 0.5
        %v7814 = vmul.f32 %v7724, 0.5
        %v7815 = vmul.f32 %v7726, 0.5
        %v7816 = vmul.f32 %v7728, 0.5
        %v7817 = vmul.f32 %v7730, 0.5
        %v7818 = vmul.f32 %v7734, 0.5
        %v7819 = vmul.f32 %v7736, 0.5
        %v7820 = vmul.f32 %v7738, 0.5
        %v7821 = vmul.f32 %v7740, 0.5
        %v7822 = vmul.f32 %v7744, 0.5
        %v7823 = vmul.f32 %v7746, 0.5
        %v7824 = vmul.f32 %v7748, 0.5
        %v7825 = vmul.f32 %v7750, 0.5
        %v7826 = vmul.f32 %v7754, 0.5
        %v7827 = vmul.f32 %v7756, 0.5
        %v7828 = vmul.f32 %v7758, 0.5
        %v7829 = vmul.f32 %v7760, 0.5
        %v7830 = vmul.f32 %v7764, 0.5
        %v7831 = vmul.f32 %v7766, 0.5
        %v7832 = vmul.f32 %v7768, 0.5
        %v7833 = vmul.f32 %v7770, 0.5
        %v7834 = vmul.f32 %v7774, 0.5
        %v7835 = vmul.f32 %v7776, 0.5
        %v7836 = vmul.f32 %v7778, 0.5
        %v7837 = vmul.f32 %v7780, 0.5
        %v7838 = vmul.f32 %v7784, 0.5
        %v7839 = vmul.f32 %v7786, 0.5
        %v7840 = vmul.f32 %v7788, 0.5
        %v7841 = vmul.f32 %v7790, 0.5
        %v7842 = vmul.f32 %v7794, 0.5
        %v7843 = vmul.f32 %v7796, 0.5
        %v7844 = vmul.f32 %v7798, 0.5
        %v7845 = vmul.f32 %v7800, 0.5
        %v7846 = vmul.f32 %v7804, 0.5
        %v7847 = vmul.f32 %v7806, 0.5
        %v7848 = vmul.f32 %v7714, %v7714
        %v7849 = vmul.f32 %v7716, %v7716
        %v7850 = vmul.f32 %v7718, %v7718
        %v7851 = vmul.f32 %v7720, %v7720
        %v7852 = vmul.f32 %v7724, %v7724
        %v7853 = vmul.f32 %v7726, %v7726
        %v7854 = vmul.f32 %v7728, %v7728
        %v7855 = vmul.f32 %v7730, %v7730
        %v7856 = vmul.f32 %v7734, %v7734
        %v7857 = vmul.f32 %v7736, %v7736
        %v7858 = vmul.f32 %v7738, %v7738
        %v7859 = vmul.f32 %v7740, %v7740
        %v7860 = vmul.f32 %v7744, %v7744
        %v7861 = vmul.f32 %v7746, %v7746
        %v7862 = vmul.f32 %v7748, %v7748
        %v7863 = vmul.f32 %v7750, %v7750
        %v7864 = vmul.f32 %v7754, %v7754
        %v7865 = vmul.f32 %v7756, %v7756
        %v7866 = vmul.f32 %v7758, %v7758
        %v7867 = vmul.f32 %v7760, %v7760
        %v7868 = vmul.f32 %v7764, %v7764
        %v7869 = vmul.f32 %v7766, %v7766
        %v7870 = vmul.f32 %v7768, %v7768
        %v7871 = vmul.f32 %v7770, %v7770
        %v7872 = vmul.f32 %v7774, %v7774
        %v7873 = vmul.f32 %v7776, %v7776
        %v7874 = vmul.f32 %v7778, %v7778
        %v7875 = vmul.f32 %v7780, %v7780
        %v7876 = vmul.f32 %v7784, %v7784
        %v7877 = vmul.f32 %v7786, %v7786
        %v7878 = vmul.f32 %v7788, %v7788
        %v7879 = vmul.f32 %v7790, %v7790
        %v7880 = vmul.f32 %v7794, %v7794
        %v7881 = vmul.f32 %v7796, %v7796
        %v7882 = vmul.f32 %v7798, %v7798
        %v7883 = vmul.f32 %v7800, %v7800
        %v7884 = vmul.f32 %v7804, %v7804
        %v7885 = vmul.f32 %v7806, %v7806
        %v7886 = vmul.f32 %v7848, %v7714
        %v7887 = vmul.f32 %v7849, %v7716
        %v7888 = vmul.f32 %v7850, %v7718
        %v7889 = vmul.f32 %v7851, %v7720
        %v7890 = vmul.f32 %v7852, %v7724
        %v7891 = vmul.f32 %v7853, %v7726
        %v7892 = vmul.f32 %v7854, %v7728
        %v7893 = vmul.f32 %v7855, %v7730
        %v7894 = vmul.f32 %v7856, %v7734
        %v7895 = vmul.f32 %v7857, %v7736
        %v7896 = vmul.f32 %v7858, %v7738
        %v7897 = vmul.f32 %v7859, %v7740
        %v7898 = vmul.f32 %v7860, %v7744
        %v7899 = vmul.f32 %v7861, %v7746
        %v7900 = vmul.f32 %v7862, %v7748
        %v7901 = vmul.f32 %v7863, %v7750
        %v7902 = vmul.f32 %v7864, %v7754
        %v7903 = vmul.f32 %v7865, %v7756
        %v7904 = vmul.f32 %v7866, %v7758
        %v7905 = vmul.f32 %v7867, %v7760
        %v7906 = vmul.f32 %v7868, %v7764
        %v7907 = vmul.f32 %v7869, %v7766
        %v7908 = vmul.f32 %v7870, %v7768
        %v7909 = vmul.f32 %v7871, %v7770
        %v7910 = vmul.f32 %v7872, %v7774
        %v7911 = vmul.f32 %v7873, %v7776
        %v7912 = vmul.f32 %v7874, %v7778
        %v7913 = vmul.f32 %v7875, %v7780
        %v7914 = vmul.f32 %v7876, %v7784
        %v7915 = vmul.f32 %v7877, %v7786
        %v7916 = vmul.f32 %v7878, %v7788
        %v7917 = vmul.f32 %v7879, %v7790
        %v7918 = vmul.f32 %v7880, %v7794
        %v7919 = vmul.f32 %v7881, %v7796
        %v7920 = vmul.f32 %v7882, %v7798
        %v7921 = vmul.f32 %v7883, %v7800
        %v7922 = vmul.f32 %v7884, %v7804
        %v7923 = vmul.f32 %v7885, %v7806
        %v7924 = vmul.f32 %v7886, 0.044715
        %v7925 = vmul.f32 %v7887, 0.044715
        %v7926 = vmul.f32 %v7888, 0.044715
        %v7927 = vmul.f32 %v7889, 0.044715
        %v7928 = vmul.f32 %v7890, 0.044715
        %v7929 = vmul.f32 %v7891, 0.044715
        %v7930 = vmul.f32 %v7892, 0.044715
        %v7931 = vmul.f32 %v7893, 0.044715
        %v7932 = vmul.f32 %v7894, 0.044715
        %v7933 = vmul.f32 %v7895, 0.044715
        %v7934 = vmul.f32 %v7896, 0.044715
        %v7935 = vmul.f32 %v7897, 0.044715
        %v7936 = vmul.f32 %v7898, 0.044715
        %v7937 = vmul.f32 %v7899, 0.044715
        %v7938 = vmul.f32 %v7900, 0.044715
        %v7939 = vmul.f32 %v7901, 0.044715
        %v7940 = vmul.f32 %v7902, 0.044715
        %v7941 = vmul.f32 %v7903, 0.044715
        %v7942 = vmul.f32 %v7904, 0.044715
        %v7943 = vmul.f32 %v7905, 0.044715
        %v7944 = vmul.f32 %v7906, 0.044715
        %v7945 = vmul.f32 %v7907, 0.044715
        %v7946 = vmul.f32 %v7908, 0.044715
        %v7947 = vmul.f32 %v7909, 0.044715
        %v7948 = vmul.f32 %v7910, 0.044715
        %v7949 = vmul.f32 %v7911, 0.044715
        %v7950 = vmul.f32 %v7912, 0.044715
        %v7951 = vmul.f32 %v7913, 0.044715
        %v7952 = vmul.f32 %v7914, 0.044715
        %v7953 = vmul.f32 %v7915, 0.044715
        %v7954 = vmul.f32 %v7916, 0.044715
        %v7955 = vmul.f32 %v7917, 0.044715
        %v7956 = vmul.f32 %v7918, 0.044715
        %v7957 = vmul.f32 %v7919, 0.044715
        %v7958 = vmul.f32 %v7920, 0.044715
        %v7959 = vmul.f32 %v7921, 0.044715
        %v7960 = vmul.f32 %v7922, 0.044715
        %v7961 = vmul.f32 %v7923, 0.044715
        %v7962 = vadd.f32 %v7714, %v7924
        %v7963 = vadd.f32 %v7716, %v7925
        %v7964 = vadd.f32 %v7718, %v7926
        %v7965 = vadd.f32 %v7720, %v7927
        %v7966 = vadd.f32 %v7724, %v7928
        %v7967 = vadd.f32 %v7726, %v7929
        %v7968 = vadd.f32 %v7728, %v7930
        %v7969 = vadd.f32 %v7730, %v7931
        %v7970 = vadd.f32 %v7734, %v7932
        %v7971 = vadd.f32 %v7736, %v7933
        %v7972 = vadd.f32 %v7738, %v7934
        %v7973 = vadd.f32 %v7740, %v7935
        %v7974 = vadd.f32 %v7744, %v7936
        %v7975 = vadd.f32 %v7746, %v7937
        %v7976 = vadd.f32 %v7748, %v7938
        %v7977 = vadd.f32 %v7750, %v7939
        %v7978 = vadd.f32 %v7754, %v7940
        %v7979 = vadd.f32 %v7756, %v7941
        %v7980 = vadd.f32 %v7758, %v7942
        %v7981 = vadd.f32 %v7760, %v7943
        %v7982 = vadd.f32 %v7764, %v7944
        %v7983 = vadd.f32 %v7766, %v7945
        %v7984 = vadd.f32 %v7768, %v7946
        %v7985 = vadd.f32 %v7770, %v7947
        %v7986 = vadd.f32 %v7774, %v7948
        %v7987 = vadd.f32 %v7776, %v7949
        %v7988 = vadd.f32 %v7778, %v7950
        %v7989 = vadd.f32 %v7780, %v7951
        %v7990 = vadd.f32 %v7784, %v7952
        %v7991 = vadd.f32 %v7786, %v7953
        %v7992 = vadd.f32 %v7788, %v7954
        %v7993 = vadd.f32 %v7790, %v7955
        %v7994 = vadd.f32 %v7794, %v7956
        %v7995 = vadd.f32 %v7796, %v7957
        %v7996 = vadd.f32 %v7798, %v7958
        %v7997 = vadd.f32 %v7800, %v7959
        %v7998 = vadd.f32 %v7804, %v7960
        %v7999 = vadd.f32 %v7806, %v7961
        %v8000 = vmul.f32 %v7962, 0.7978846
        %v8001 = vmul.f32 %v7963, 0.7978846
        %v8002 = vmul.f32 %v7964, 0.7978846
        %v8003 = vmul.f32 %v7965, 0.7978846
        %v8004 = vmul.f32 %v7966, 0.7978846
        %v8005 = vmul.f32 %v7967, 0.7978846
        %v8006 = vmul.f32 %v7968, 0.7978846
        %v8007 = vmul.f32 %v7969, 0.7978846
        %v8008 = vmul.f32 %v7970, 0.7978846
        %v8009 = vmul.f32 %v7971, 0.7978846
        %v8010 = vmul.f32 %v7972, 0.7978846
        %v8011 = vmul.f32 %v7973, 0.7978846
        %v8012 = vmul.f32 %v7974, 0.7978846
        %v8013 = vmul.f32 %v7975, 0.7978846
        %v8014 = vmul.f32 %v7976, 0.7978846
        %v8015 = vmul.f32 %v7977, 0.7978846
        %v8016 = vmul.f32 %v7978, 0.7978846
        %v8017 = vmul.f32 %v7979, 0.7978846
        %v8018 = vmul.f32 %v7980, 0.7978846
        %v8019 = vmul.f32 %v7981, 0.7978846
        %v8020 = vmul.f32 %v7982, 0.7978846
        %v8021 = vmul.f32 %v7983, 0.7978846
        %v8022 = vmul.f32 %v7984, 0.7978846
        %v8023 = vmul.f32 %v7985, 0.7978846
        %v8024 = vmul.f32 %v7986, 0.7978846
        %v8025 = vmul.f32 %v7987, 0.7978846
        %v8026 = vmul.f32 %v7988, 0.7978846
        %v8027 = vmul.f32 %v7989, 0.7978846
        %v8028 = vmul.f32 %v7990, 0.7978846
        %v8029 = vmul.f32 %v7991, 0.7978846
        %v8030 = vmul.f32 %v7992, 0.7978846
        %v8031 = vmul.f32 %v7993, 0.7978846
        %v8032 = vmul.f32 %v7994, 0.7978846
        %v8033 = vmul.f32 %v7995, 0.7978846
        %v8034 = vmul.f32 %v7996, 0.7978846
        %v8035 = vmul.f32 %v7997, 0.7978846
        %v8036 = vmul.f32 %v7998, 0.7978846
        %v8037 = vmul.f32 %v7999, 0.7978846
        %v8038 = vtanh.pop %v8000
        %v8039 = vtanh.pop %v8001
        %v8040 = vtanh.pop %v8002
        %v8041 = vtanh.pop %v8003
        %v8042 = vtanh.pop %v8004
        %v8043 = vtanh.pop %v8005
        %v8044 = vtanh.pop %v8006
        %v8045 = vtanh.pop %v8007
        %v8046 = vtanh.pop %v8008
        %v8047 = vtanh.pop %v8009
        %v8048 = vtanh.pop %v8010
        %v8049 = vtanh.pop %v8011
        %v8050 = vtanh.pop %v8012
        %v8051 = vtanh.pop %v8013
        %v8052 = vtanh.pop %v8014
        %v8053 = vtanh.pop %v8015
        %v8054 = vtanh.pop %v8016
        %v8055 = vtanh.pop %v8017
        %v8056 = vtanh.pop %v8018
        %v8057 = vtanh.pop %v8019
        %v8058 = vtanh.pop %v8020
        %v8059 = vtanh.pop %v8021
        %v8060 = vtanh.pop %v8022
        %v8061 = vtanh.pop %v8023
        %v8062 = vtanh.pop %v8024
        %v8063 = vtanh.pop %v8025
        %v8064 = vtanh.pop %v8026
        %v8065 = vtanh.pop %v8027
        %v8066 = vtanh.pop %v8028
        %v8067 = vtanh.pop %v8029
        %v8068 = vtanh.pop %v8030
        %v8069 = vtanh.pop %v8031
        %v8070 = vtanh.pop %v8032
        %v8071 = vtanh.pop %v8033
        %v8072 = vtanh.pop %v8034
        %v8073 = vtanh.pop %v8035
        %v8074 = vtanh.pop %v8036
        %v8075 = vtanh.pop %v8037
        %v8076 = vadd.f32 %v8038, 1.0
        %v8077 = vadd.f32 %v8039, 1.0
        %v8078 = vadd.f32 %v8040, 1.0
        %v8079 = vadd.f32 %v8041, 1.0
        %v8080 = vadd.f32 %v8042, 1.0
        %v8081 = vadd.f32 %v8043, 1.0
        %v8082 = vadd.f32 %v8044, 1.0
        %v8083 = vadd.f32 %v8045, 1.0
        %v8084 = vadd.f32 %v8046, 1.0
        %v8085 = vadd.f32 %v8047, 1.0
        %v8086 = vadd.f32 %v8048, 1.0
        %v8087 = vadd.f32 %v8049, 1.0
        %v8088 = vadd.f32 %v8050, 1.0
        %v8089 = vadd.f32 %v8051, 1.0
        %v8090 = vadd.f32 %v8052, 1.0
        %v8091 = vadd.f32 %v8053, 1.0
        %v8092 = vadd.f32 %v8054, 1.0
        %v8093 = vadd.f32 %v8055, 1.0
        %v8094 = vadd.f32 %v8056, 1.0
        %v8095 = vadd.f32 %v8057, 1.0
        %v8096 = vadd.f32 %v8058, 1.0
        %v8097 = vadd.f32 %v8059, 1.0
        %v8098 = vadd.f32 %v8060, 1.0
        %v8099 = vadd.f32 %v8061, 1.0
        %v8100 = vadd.f32 %v8062, 1.0
        %v8101 = vadd.f32 %v8063, 1.0
        %v8102 = vadd.f32 %v8064, 1.0
        %v8103 = vadd.f32 %v8065, 1.0
        %v8104 = vadd.f32 %v8066, 1.0
        %v8105 = vadd.f32 %v8067, 1.0
        %v8106 = vadd.f32 %v8068, 1.0
        %v8107 = vadd.f32 %v8069, 1.0
        %v8108 = vadd.f32 %v8070, 1.0
        %v8109 = vadd.f32 %v8071, 1.0
        %v8110 = vadd.f32 %v8072, 1.0
        %v8111 = vadd.f32 %v8073, 1.0
        %v8112 = vadd.f32 %v8074, 1.0
        %v8113 = vadd.f32 %v8075, 1.0
        %v8114 = vmul.f32 %v7810, %v8076
        %v8115 = vmul.f32 %v7811, %v8077
        %v8116 = vmul.f32 %v7812, %v8078
        %v8117 = vmul.f32 %v7813, %v8079
        %v8118 = vmul.f32 %v7814, %v8080
        %v8119 = vmul.f32 %v7815, %v8081
        %v8120 = vmul.f32 %v7816, %v8082
        %v8121 = vmul.f32 %v7817, %v8083
        %v8122 = vmul.f32 %v7818, %v8084
        %v8123 = vmul.f32 %v7819, %v8085
        %v8124 = vmul.f32 %v7820, %v8086
        %v8125 = vmul.f32 %v7821, %v8087
        %v8126 = vmul.f32 %v7822, %v8088
        %v8127 = vmul.f32 %v7823, %v8089
        %v8128 = vmul.f32 %v7824, %v8090
        %v8129 = vmul.f32 %v7825, %v8091
        %v8130 = vmul.f32 %v7826, %v8092
        %v8131 = vmul.f32 %v7827, %v8093
        %v8132 = vmul.f32 %v7828, %v8094
        %v8133 = vmul.f32 %v7829, %v8095
        %v8134 = vmul.f32 %v7830, %v8096
        %v8135 = vmul.f32 %v7831, %v8097
        %v8136 = vmul.f32 %v7832, %v8098
        %v8137 = vmul.f32 %v7833, %v8099
        %v8138 = vmul.f32 %v7834, %v8100
        %v8139 = vmul.f32 %v7835, %v8101
        %v8140 = vmul.f32 %v7836, %v8102
        %v8141 = vmul.f32 %v7837, %v8103
        %v8142 = vmul.f32 %v7838, %v8104
        %v8143 = vmul.f32 %v7839, %v8105
        %v8144 = vmul.f32 %v7840, %v8106
        %v8145 = vmul.f32 %v7841, %v8107
        %v8146 = vmul.f32 %v7842, %v8108
        %v8147 = vmul.f32 %v7843, %v8109
        %v8148 = vmul.f32 %v7844, %v8110
        %v8149 = vmul.f32 %v7845, %v8111
        %v8150 = vmul.f32 %v7846, %v8112
        %v8151 = vmul.f32 %v7847, %v8113
        %v8152 = vadd.f32 %v8114, %v7017
        %v8153 = vadd.f32 %v8115, %v7019
        %v8154 = vadd.f32 %v8116, %v7021
        %v8155 = vadd.f32 %v8117, %v7023
        %v8156 = vadd.f32 %v8118, %v7027
        %v8157 = vadd.f32 %v8119, %v7029
        %v8158 = vadd.f32 %v8120, %v7031
        %v8159 = vadd.f32 %v8121, %v7033
        %v8160 = vadd.f32 %v8122, %v7037
        %v8161 = vadd.f32 %v8123, %v7039
        %v8162 = vadd.f32 %v8124, %v7041
        %v8163 = vadd.f32 %v8125, %v7043
        %v8164 = vadd.f32 %v8126, %v7047
        %v8165 = vadd.f32 %v8127, %v7049
        %v8166 = vadd.f32 %v8128, %v7051
        %v8167 = vadd.f32 %v8129, %v7053
        %v8168 = vadd.f32 %v8130, %v7057
        %v8169 = vadd.f32 %v8131, %v7059
        %v8170 = vadd.f32 %v8132, %v7061
        %v8171 = vadd.f32 %v8133, %v7063
        %v8172 = vadd.f32 %v8134, %v7067
        %v8173 = vadd.f32 %v8135, %v7069
        %v8174 = vadd.f32 %v8136, %v7071
        %v8175 = vadd.f32 %v8137, %v7073
        %v8176 = vadd.f32 %v8138, %v7077
        %v8177 = vadd.f32 %v8139, %v7079
        %v8178 = vadd.f32 %v8140, %v7081
        %v8179 = vadd.f32 %v8141, %v7083
        %v8180 = vadd.f32 %v8142, %v7087
        %v8181 = vadd.f32 %v8143, %v7089
        %v8182 = vadd.f32 %v8144, %v7091
        %v8183 = vadd.f32 %v8145, %v7093
        %v8184 = vadd.f32 %v8146, %v7097
        %v8185 = vadd.f32 %v8147, %v7099
        %v8186 = vadd.f32 %v8148, %v7101
        %v8187 = vadd.f32 %v8149, %v7103
        %v8188 = vadd.f32 %v8150, %v7107
        %v8189 = vadd.f32 %v8151, %v7109
        %v8190 = vpack.c.bf16 %v8154, %v8152
        %v8191 = vpack.c.bf16 %v8155, %v8153
        %v8192 = vpack.c.bf16 %v8158, %v8156
        %v8193 = vpack.c.bf16 %v8159, %v8157
        %v8194 = vpack.c.bf16 %v8162, %v8160
        %v8195 = vpack.c.bf16 %v8163, %v8161
        %v8196 = vpack.c.bf16 %v8166, %v8164
        %v8197 = vpack.c.bf16 %v8167, %v8165
        %v8198 = vpack.c.bf16 %v8170, %v8168
        %v8199 = vpack.c.bf16 %v8171, %v8169
        %v8200 = vpack.c.bf16 %v8174, %v8172
        %v8201 = vpack.c.bf16 %v8175, %v8173
        %v8202 = vpack.c.bf16 %v8178, %v8176
        %v8203 = vpack.c.bf16 %v8179, %v8177
        %v8204 = vpack.c.bf16 %v8182, %v8180
        %v8205 = vpack.c.bf16 %v8183, %v8181
        %v8206 = vpack.c.bf16 %v8186, %v8184
        %v8207 = vpack.c.bf16 %v8187, %v8185
        %v8208 = vpack.c.bf16 %v8188, %v8188
        %v8209 = vpack.c.bf16 %v8189, %v8189
        %v8210 = vld [vmem:[#allocation13] sm:$0xf]
        %v8211 = vld [vmem:[#allocation13 + $0x4] sm:$0xf]
        %v8212 = vld [vmem:[#allocation13 + $0x8] sm:$0xf]
        %v8213 = vld [vmem:[#allocation13 + $0xc] sm:$0xf]
        %v8214 = vld [vmem:[#allocation13 + $0x10] sm:$0xf]
        %v8215 = vld [vmem:[#allocation13 + $0x14] sm:$0xf]
        %v8216 = vld [vmem:[#allocation13 + $0x18] sm:$0xf]
        %v8217 = vld [vmem:[#allocation13 + $0x1c] sm:$0xf]
        %v8218 = vld [vmem:[#allocation13 + $0x20] sm:$0xf]
        %v8219 = vld [vmem:[#allocation13 + $0x24] sm:$0xf]
        %v8220 = vld [vmem:[#allocation13 + $0x28] sm:$0xf]
        %v8221 = vld [vmem:[#allocation13 + $0x2c] sm:$0xf]
        %v8222 = vld [vmem:[#allocation13 + $0x30] sm:$0xf]
        %v8223 = vld [vmem:[#allocation13 + $0x34] sm:$0xf]
        %v8224 = vld [vmem:[#allocation13 + $0x38] sm:$0xf]
        %v8225 = vld [vmem:[#allocation13 + $0x3c] sm:$0xf]
        %v8226 = vld [vmem:[#allocation13 + $0x40] sm:$0xf]
        %v8227 = vld [vmem:[#allocation13 + $0x44] sm:$0xf]
        %v8228 = vld [vmem:[#allocation13 + $0x48] sm:$0xf]
        %v8229 = vld [vmem:[#allocation13 + $0x4c] sm:$0xf]
        %v8230 = vld [vmem:[#allocation13 + $0x50] sm:$0xf]
        %v8231 = vld [vmem:[#allocation13 + $0x54] sm:$0xf]
        %v8232 = vld [vmem:[#allocation13 + $0x58] sm:$0xf]
        %v8233 = vld [vmem:[#allocation13 + $0x5c] sm:$0xf]
        %v8234 = vld [vmem:[#allocation13 + $0x60] sm:$0xf]
        %v8235 = vld [vmem:[#allocation13 + $0x64] sm:$0xf]
        %v8236 = vld [vmem:[#allocation13 + $0x68] sm:$0xf]
        %v8237 = vld [vmem:[#allocation13 + $0x6c] sm:$0xf]
        %v8238 = vld [vmem:[#allocation13 + $0x70] sm:$0xf]
        %v8239 = vld [vmem:[#allocation13 + $0x74] sm:$0xf]
        %v8240 = vld [vmem:[#allocation13 + $0x78] sm:$0xf]
        %v8241 = vld [vmem:[#allocation13 + $0x7c] sm:$0xf]
        %v8242 = vld [vmem:[%s12] sm:$0x1]
        %v8244 = vlaneseq
        %v8245 = vshrl.u32 %v8244, 7
        %v8246 = vsub.s32 0, %v8245
        %v8247 = vrot.slane %v8242, %v8246
        %v8281 = vunpack.c.l.b16 %v8210
        %v8282 = vunpack.c.l.b16 %v8211
        %v8283 = vunpack.c.l.b16 %v8212
        %v8284 = vunpack.c.l.b16 %v8213
        %v8285 = vunpack.c.l.b16 %v8214
        %v8286 = vunpack.c.l.b16 %v8215
        %v8287 = vunpack.c.l.b16 %v8216
        %v8288 = vunpack.c.l.b16 %v8217
        %v8289 = vunpack.c.l.b16 %v8218
        %v8290 = vunpack.c.l.b16 %v8219
        %v8291 = vunpack.c.l.b16 %v8220
        %v8292 = vunpack.c.l.b16 %v8221
        %v8293 = vunpack.c.l.b16 %v8222
        %v8294 = vunpack.c.l.b16 %v8223
        %v8295 = vunpack.c.l.b16 %v8224
        %v8296 = vunpack.c.l.b16 %v8225
        %v8297 = vunpack.c.l.b16 %v8226
        %v8298 = vunpack.c.l.b16 %v8227
        %v8299 = vunpack.c.l.b16 %v8228
        %v8300 = vunpack.c.l.b16 %v8229
        %v8301 = vunpack.c.l.b16 %v8230
        %v8302 = vunpack.c.l.b16 %v8231
        %v8303 = vunpack.c.l.b16 %v8232
        %v8304 = vunpack.c.l.b16 %v8233
        %v8305 = vunpack.c.l.b16 %v8234
        %v8306 = vunpack.c.l.b16 %v8235
        %v8307 = vunpack.c.l.b16 %v8236
        %v8308 = vunpack.c.l.b16 %v8237
        %v8309 = vunpack.c.l.b16 %v8238
        %v8310 = vunpack.c.l.b16 %v8239
        %v8311 = vunpack.c.l.b16 %v8240
        %v8312 = vunpack.c.l.b16 %v8241
        %v8313 = vpack.c.b16 %v8282, %v8281
        %v8314 = vpack.c.b16 %v8284, %v8283
        %v8315 = vpack.c.b16 %v8286, %v8285
        %v8316 = vpack.c.b16 %v8288, %v8287
        %v8317 = vpack.c.b16 %v8290, %v8289
        %v8318 = vpack.c.b16 %v8292, %v8291
        %v8319 = vpack.c.b16 %v8294, %v8293
        %v8320 = vpack.c.b16 %v8296, %v8295
        %v8321 = vpack.c.b16 %v8298, %v8297
        %v8322 = vpack.c.b16 %v8300, %v8299
        %v8323 = vpack.c.b16 %v8302, %v8301
        %v8324 = vpack.c.b16 %v8304, %v8303
        %v8325 = vpack.c.b16 %v8306, %v8305
        %v8326 = vpack.c.b16 %v8308, %v8307
        %v8327 = vpack.c.b16 %v8310, %v8309
        %v8328 = vpack.c.b16 %v8312, %v8311
        %8345 = vmatprep.subr.bf16.mxu0 0
        %8346 = vmatpush1.bf16.msra.mxu0 %v8313
        %8347 = vmatprep.subr.bf16.mxu0 0
        %8348 = vmatpush1.bf16.msra.mxu0 %v8314
        %8349 = vmatprep.subr.bf16.mxu0 0
        %8350 = vmatpush1.bf16.msra.mxu0 %v8315
        %8351 = vmatprep.subr.bf16.mxu0 0
        %8352 = vmatpush1.bf16.msra.mxu0 %v8316
        %8353 = vmatprep.subr.bf16.mxu0 0
        %8354 = vmatpush1.bf16.msra.mxu0 %v8317
        %8355 = vmatprep.subr.bf16.mxu0 0
        %8356 = vmatpush1.bf16.msra.mxu0 %v8318
        %8357 = vmatprep.subr.bf16.mxu0 0
        %8358 = vmatpush1.bf16.msra.mxu0 %v8319
        %8359 = vmatprep.subr.bf16.mxu0 0
        %8360 = vmatpush1.bf16.msra.mxu0 %v8320
        %8361 = vmatprep.subr.bf16.mxu0 0
        %8362 = vmatpush1.bf16.msra.mxu0 %v8321
        %8363 = vmatprep.subr.bf16.mxu0 0
        %8364 = vmatpush1.bf16.msra.mxu0 %v8322
        %8365 = vmatprep.subr.bf16.mxu0 0
        %8366 = vmatpush1.bf16.msra.mxu0 %v8323
        %8367 = vmatprep.subr.bf16.mxu0 0
        %8368 = vmatpush1.bf16.msra.mxu0 %v8324
        %8369 = vmatprep.subr.bf16.mxu0 0
        %8370 = vmatpush1.bf16.msra.mxu0 %v8325
        %8371 = vmatprep.subr.bf16.mxu0 0
        %8372 = vmatpush1.bf16.msra.mxu0 %v8326
        %8373 = vmatprep.subr.bf16.mxu0 0
        %8374 = vmatpush1.bf16.msra.mxu0 %v8327
        %8375 = vmatprep.subr.bf16.mxu0 0
        %8376 = vmatpush1.bf16.msra.mxu0 %v8328
        %8377 = vmatprep.mubr.bf16.mxu0 %v8191
        %8378 = vmatmul.mubr.bf16.gmra.mrb[0].mxu0 %v8190
        %v8379 = vpop.f32.mrb[0].mxu0
        %v8380 = vadd.f32 %v8247, %v8379
        %v8381 = vpop.f32.mrb[0].mxu0
        %v8382 = vpop.f32.mrb[0].mxu0
        %v8383 = vadd.f32 %v8247, %v8382
        %v8384 = vpop.f32.mrb[0].mxu0
        %8385 = vmatprep.mubr.bf16.mxu0 %v8193
        %8386 = vmatmul.mubr.bf16.gmra.mrb[0].mxu0 %v8192
        %v8387 = vpop.f32.mrb[0].mxu0
        %v8388 = vadd.f32 %v8247, %v8387
        %v8389 = vpop.f32.mrb[0].mxu0
        %v8390 = vpop.f32.mrb[0].mxu0
        %v8391 = vadd.f32 %v8247, %v8390
        %v8392 = vpop.f32.mrb[0].mxu0
        %8393 = vmatprep.mubr.bf16.mxu0 %v8195
        %8394 = vmatmul.mubr.bf16.gmra.mrb[0].mxu0 %v8194
        %v8395 = vpop.f32.mrb[0].mxu0
        %v8396 = vadd.f32 %v8247, %v8395
        %v8397 = vpop.f32.mrb[0].mxu0
        %v8398 = vpop.f32.mrb[0].mxu0
        %v8399 = vadd.f32 %v8247, %v8398
        %v8400 = vpop.f32.mrb[0].mxu0
        %8401 = vmatprep.mubr.bf16.mxu0 %v8197
        %8402 = vmatmul.mubr.bf16.gmra.mrb[0].mxu0 %v8196
        %v8403 = vpop.f32.mrb[0].mxu0
        %v8404 = vadd.f32 %v8247, %v8403
        %v8405 = vpop.f32.mrb[0].mxu0
        %v8406 = vpop.f32.mrb[0].mxu0
        %v8407 = vadd.f32 %v8247, %v8406
        %v8408 = vpop.f32.mrb[0].mxu0
        %8409 = vmatprep.mubr.bf16.mxu0 %v8199
        %8410 = vmatmul.mubr.bf16.gmra.mrb[0].mxu0 %v8198
        %v8411 = vpop.f32.mrb[0].mxu0
        %v8412 = vadd.f32 %v8247, %v8411
        %v8413 = vpop.f32.mrb[0].mxu0
        %v8414 = vpop.f32.mrb[0].mxu0
        %v8415 = vadd.f32 %v8247, %v8414
        %v8416 = vpop.f32.mrb[0].mxu0
        %8417 = vmatprep.mubr.bf16.mxu0 %v8201
        %8418 = vmatmul.mubr.bf16.gmra.mrb[0].mxu0 %v8200
        %v8419 = vpop.f32.mrb[0].mxu0
        %v8420 = vadd.f32 %v8247, %v8419
        %v8421 = vpop.f32.mrb[0].mxu0
        %v8422 = vpop.f32.mrb[0].mxu0
        %v8423 = vadd.f32 %v8247, %v8422
        %v8424 = vpop.f32.mrb[0].mxu0
        %8425 = vmatprep.mubr.bf16.mxu0 %v8203
        %8426 = vmatmul.mubr.bf16.gmra.mrb[0].mxu0 %v8202
        %v8427 = vpop.f32.mrb[0].mxu0
        %v8428 = vadd.f32 %v8247, %v8427
        %v8429 = vpop.f32.mrb[0].mxu0
        %v8430 = vpop.f32.mrb[0].mxu0
        %v8431 = vadd.f32 %v8247, %v8430
        %v8432 = vpop.f32.mrb[0].mxu0
        %8433 = vmatprep.mubr.bf16.mxu0 %v8205
        %8434 = vmatmul.mubr.bf16.gmra.mrb[0].mxu0 %v8204
        %v8435 = vpop.f32.mrb[0].mxu0
        %v8436 = vadd.f32 %v8247, %v8435
        %v8437 = vpop.f32.mrb[0].mxu0
        %v8438 = vpop.f32.mrb[0].mxu0
        %v8439 = vadd.f32 %v8247, %v8438
        %v8440 = vpop.f32.mrb[0].mxu0
        %8441 = vmatprep.mubr.bf16.mxu0 %v8207
        %8442 = vmatmul.mubr.bf16.gmra.mrb[0].mxu0 %v8206
        %v8443 = vpop.f32.mrb[0].mxu0
        %v8444 = vadd.f32 %v8247, %v8443
        %v8445 = vpop.f32.mrb[0].mxu0
        %v8446 = vpop.f32.mrb[0].mxu0
        %v8447 = vadd.f32 %v8247, %v8446
        %v8448 = vpop.f32.mrb[0].mxu0
        %8449 = vmatprep.mubr.bf16.mxu0 %v8209
        %8450 = vmatmul.mubr.bf16.gmra.mrb[0].mxu0 %v8208
        %v8451 = vpop.f32.mrb[0].mxu0
        %v8452 = vadd.f32 %v8247, %v8451
        %v8453 = vpop.f32.mrb[0].mxu0
        %v8454 = vpop.f32.mrb[0].mxu0
        %v8455 = vpop.f32.mrb[0].mxu0
        %8456 = vdwg.mxu0
        %v8457 = vmul.f32 %v8380, 0.5
        %v8458 = vmul.f32 %v8383, 0.5
        %v8459 = vmul.f32 %v8388, 0.5
        %v8460 = vmul.f32 %v8391, 0.5
        %v8461 = vmul.f32 %v8396, 0.5
        %v8462 = vmul.f32 %v8399, 0.5
        %v8463 = vmul.f32 %v8404, 0.5
        %v8464 = vmul.f32 %v8407, 0.5
        %v8465 = vmul.f32 %v8412, 0.5
        %v8466 = vmul.f32 %v8415, 0.5
        %v8467 = vmul.f32 %v8420, 0.5
        %v8468 = vmul.f32 %v8423, 0.5
        %v8469 = vmul.f32 %v8428, 0.5
        %v8470 = vmul.f32 %v8431, 0.5
        %v8471 = vmul.f32 %v8436, 0.5
        %v8472 = vmul.f32 %v8439, 0.5
        %v8473 = vmul.f32 %v8444, 0.5
        %v8474 = vmul.f32 %v8447, 0.5
        %v8475 = vmul.f32 %v8452, 0.5
        %v8476 = vmul.f32 %v8380, %v8380
        %v8477 = vmul.f32 %v8383, %v8383
        %v8478 = vmul.f32 %v8388, %v8388
        %v8479 = vmul.f32 %v8391, %v8391
        %v8480 = vmul.f32 %v8396, %v8396
        %v8481 = vmul.f32 %v8399, %v8399
        %v8482 = vmul.f32 %v8404, %v8404
        %v8483 = vmul.f32 %v8407, %v8407
        %v8484 = vmul.f32 %v8412, %v8412
        %v8485 = vmul.f32 %v8415, %v8415
        %v8486 = vmul.f32 %v8420, %v8420
        %v8487 = vmul.f32 %v8423, %v8423
        %v8488 = vmul.f32 %v8428, %v8428
        %v8489 = vmul.f32 %v8431, %v8431
        %v8490 = vmul.f32 %v8436, %v8436
        %v8491 = vmul.f32 %v8439, %v8439
        %v8492 = vmul.f32 %v8444, %v8444
        %v8493 = vmul.f32 %v8447, %v8447
        %v8494 = vmul.f32 %v8452, %v8452
        %v8495 = vmul.f32 %v8476, %v8380
        %v8496 = vmul.f32 %v8477, %v8383
        %v8497 = vmul.f32 %v8478, %v8388
        %v8498 = vmul.f32 %v8479, %v8391
        %v8499 = vmul.f32 %v8480, %v8396
        %v8500 = vmul.f32 %v8481, %v8399
        %v8501 = vmul.f32 %v8482, %v8404
        %v8502 = vmul.f32 %v8483, %v8407
        %v8503 = vmul.f32 %v8484, %v8412
        %v8504 = vmul.f32 %v8485, %v8415
        %v8505 = vmul.f32 %v8486, %v8420
        %v8506 = vmul.f32 %v8487, %v8423
        %v8507 = vmul.f32 %v8488, %v8428
        %v8508 = vmul.f32 %v8489, %v8431
        %v8509 = vmul.f32 %v8490, %v8436
        %v8510 = vmul.f32 %v8491, %v8439
        %v8511 = vmul.f32 %v8492, %v8444
        %v8512 = vmul.f32 %v8493, %v8447
        %v8513 = vmul.f32 %v8494, %v8452
        %v8514 = vmul.f32 %v8495, 0.044715
        %v8515 = vmul.f32 %v8496, 0.044715
        %v8516 = vmul.f32 %v8497, 0.044715
        %v8517 = vmul.f32 %v8498, 0.044715
        %v8518 = vmul.f32 %v8499, 0.044715
        %v8519 = vmul.f32 %v8500, 0.044715
        %v8520 = vmul.f32 %v8501, 0.044715
        %v8521 = vmul.f32 %v8502, 0.044715
        %v8522 = vmul.f32 %v8503, 0.044715
        %v8523 = vmul.f32 %v8504, 0.044715
        %v8524 = vmul.f32 %v8505, 0.044715
        %v8525 = vmul.f32 %v8506, 0.044715
        %v8526 = vmul.f32 %v8507, 0.044715
        %v8527 = vmul.f32 %v8508, 0.044715
        %v8528 = vmul.f32 %v8509, 0.044715
        %v8529 = vmul.f32 %v8510, 0.044715
        %v8530 = vmul.f32 %v8511, 0.044715
        %v8531 = vmul.f32 %v8512, 0.044715
        %v8532 = vmul.f32 %v8513, 0.044715
        %v8533 = vadd.f32 %v8380, %v8514
        %v8534 = vadd.f32 %v8383, %v8515
        %v8535 = vadd.f32 %v8388, %v8516
        %v8536 = vadd.f32 %v8391, %v8517
        %v8537 = vadd.f32 %v8396, %v8518
        %v8538 = vadd.f32 %v8399, %v8519
        %v8539 = vadd.f32 %v8404, %v8520
        %v8540 = vadd.f32 %v8407, %v8521
        %v8541 = vadd.f32 %v8412, %v8522
        %v8542 = vadd.f32 %v8415, %v8523
        %v8543 = vadd.f32 %v8420, %v8524
        %v8544 = vadd.f32 %v8423, %v8525
        %v8545 = vadd.f32 %v8428, %v8526
        %v8546 = vadd.f32 %v8431, %v8527
        %v8547 = vadd.f32 %v8436, %v8528
        %v8548 = vadd.f32 %v8439, %v8529
        %v8549 = vadd.f32 %v8444, %v8530
        %v8550 = vadd.f32 %v8447, %v8531
        %v8551 = vadd.f32 %v8452, %v8532
        %v8552 = vmul.f32 %v8533, 0.7978846
        %v8553 = vmul.f32 %v8534, 0.7978846
        %v8554 = vmul.f32 %v8535, 0.7978846
        %v8555 = vmul.f32 %v8536, 0.7978846
        %v8556 = vmul.f32 %v8537, 0.7978846
        %v8557 = vmul.f32 %v8538, 0.7978846
        %v8558 = vmul.f32 %v8539, 0.7978846
        %v8559 = vmul.f32 %v8540, 0.7978846
        %v8560 = vmul.f32 %v8541, 0.7978846
        %v8561 = vmul.f32 %v8542, 0.7978846
        %v8562 = vmul.f32 %v8543, 0.7978846
        %v8563 = vmul.f32 %v8544, 0.7978846
        %v8564 = vmul.f32 %v8545, 0.7978846
        %v8565 = vmul.f32 %v8546, 0.7978846
        %v8566 = vmul.f32 %v8547, 0.7978846
        %v8567 = vmul.f32 %v8548, 0.7978846
        %v8568 = vmul.f32 %v8549, 0.7978846
        %v8569 = vmul.f32 %v8550, 0.7978846
        %v8570 = vmul.f32 %v8551, 0.7978846
        %v8571 = vtanh.pop %v8552
        %v8572 = vtanh.pop %v8553
        %v8573 = vtanh.pop %v8554
        %v8574 = vtanh.pop %v8555
        %v8575 = vtanh.pop %v8556
        %v8576 = vtanh.pop %v8557
        %v8577 = vtanh.pop %v8558
        %v8578 = vtanh.pop %v8559
        %v8579 = vtanh.pop %v8560
        %v8580 = vtanh.pop %v8561
        %v8581 = vtanh.pop %v8562
        %v8582 = vtanh.pop %v8563
        %v8583 = vtanh.pop %v8564
        %v8584 = vtanh.pop %v8565
        %v8585 = vtanh.pop %v8566
        %v8586 = vtanh.pop %v8567
        %v8587 = vtanh.pop %v8568
        %v8588 = vtanh.pop %v8569
        %v8589 = vtanh.pop %v8570
        %v8590 = vadd.f32 %v8571, 1.0
        %v8591 = vadd.f32 %v8572, 1.0
        %v8592 = vadd.f32 %v8573, 1.0
        %v8593 = vadd.f32 %v8574, 1.0
        %v8594 = vadd.f32 %v8575, 1.0
        %v8595 = vadd.f32 %v8576, 1.0
        %v8596 = vadd.f32 %v8577, 1.0
        %v8597 = vadd.f32 %v8578, 1.0
        %v8598 = vadd.f32 %v8579, 1.0
        %v8599 = vadd.f32 %v8580, 1.0
        %v8600 = vadd.f32 %v8581, 1.0
        %v8601 = vadd.f32 %v8582, 1.0
        %v8602 = vadd.f32 %v8583, 1.0
        %v8603 = vadd.f32 %v8584, 1.0
        %v8604 = vadd.f32 %v8585, 1.0
        %v8605 = vadd.f32 %v8586, 1.0
        %v8606 = vadd.f32 %v8587, 1.0
        %v8607 = vadd.f32 %v8588, 1.0
        %v8608 = vadd.f32 %v8589, 1.0
        %v8609 = vmul.f32 %v8457, %v8590
        %v8610 = vmul.f32 %v8458, %v8591
        %v8611 = vmul.f32 %v8459, %v8592
        %v8612 = vmul.f32 %v8460, %v8593
        %v8613 = vmul.f32 %v8461, %v8594
        %v8614 = vmul.f32 %v8462, %v8595
        %v8615 = vmul.f32 %v8463, %v8596
        %v8616 = vmul.f32 %v8464, %v8597
        %v8617 = vmul.f32 %v8465, %v8598
        %v8618 = vmul.f32 %v8466, %v8599
        %v8619 = vmul.f32 %v8467, %v8600
        %v8620 = vmul.f32 %v8468, %v8601
        %v8621 = vmul.f32 %v8469, %v8602
        %v8622 = vmul.f32 %v8470, %v8603
        %v8623 = vmul.f32 %v8471, %v8604
        %v8624 = vmul.f32 %v8472, %v8605
        %v8625 = vmul.f32 %v8473, %v8606
        %v8626 = vmul.f32 %v8474, %v8607
        %v8627 = vmul.f32 %v8475, %v8608
        %v8628 = vpack.c.bf16 %v8610, %v8609
        %v8629 = vpack.c.bf16 %v8612, %v8611
        %v8630 = vpack.c.bf16 %v8614, %v8613
        %v8631 = vpack.c.bf16 %v8616, %v8615
        %v8632 = vpack.c.bf16 %v8618, %v8617
        %v8633 = vpack.c.bf16 %v8620, %v8619
        %v8634 = vpack.c.bf16 %v8622, %v8621
        %v8635 = vpack.c.bf16 %v8624, %v8623
        %v8636 = vpack.c.bf16 %v8626, %v8625
        %v8637 = vpack.c.bf16 %v8627, %v8627
        %v8638 = vld [vmem:[#allocation14] sm:$0xf]
        %v8639 = vld [vmem:[#allocation14 + $0x4] sm:$0xf]
        %v8640 = vld [vmem:[#allocation14 + $0x8] sm:$0xf]
        %v8641 = vld [vmem:[#allocation14 + $0xc] sm:$0xf]
        %v8642 = vld [vmem:[#allocation14 + $0x10] sm:$0xf]
        %v8643 = vld [vmem:[#allocation14 + $0x14] sm:$0xf]
        %v8644 = vld [vmem:[#allocation14 + $0x18] sm:$0xf]
        %v8645 = vld [vmem:[#allocation14 + $0x1c] sm:$0xf]
        %v8646 = vld [vmem:[#allocation14 + $0x20] sm:$0xf]
        %v8647 = vld [vmem:[#allocation14 + $0x24] sm:$0xf]
        %v8648 = vld [vmem:[#allocation14 + $0x28] sm:$0xf]
        %v8649 = vld [vmem:[#allocation14 + $0x2c] sm:$0xf]
        %v8650 = vld [vmem:[#allocation14 + $0x30] sm:$0xf]
        %v8651 = vld [vmem:[#allocation14 + $0x34] sm:$0xf]
        %v8652 = vld [vmem:[#allocation14 + $0x38] sm:$0xf]
        %v8653 = vld [vmem:[#allocation14 + $0x3c] sm:$0xf]
        %v8654 = vld [vmem:[%s14] sm:$0x1]
        %v8656 = vlaneseq
        %v8657 = vshrl.u32 %v8656, 7
        %v8658 = vsub.s32 0, %v8657
        %v8659 = vrot.slane %v8654, %v8658
        %v8677 = vunpack.c.l.b16 %v8638
        %v8678 = vunpack.c.l.b16 %v8639
        %v8679 = vunpack.c.l.b16 %v8640
        %v8680 = vunpack.c.l.b16 %v8641
        %v8681 = vunpack.c.l.b16 %v8642
        %v8682 = vunpack.c.l.b16 %v8643
        %v8683 = vunpack.c.l.b16 %v8644
        %v8684 = vunpack.c.l.b16 %v8645
        %v8685 = vunpack.c.l.b16 %v8646
        %v8686 = vunpack.c.l.b16 %v8647
        %v8687 = vunpack.c.l.b16 %v8648
        %v8688 = vunpack.c.l.b16 %v8649
        %v8689 = vunpack.c.l.b16 %v8650
        %v8690 = vunpack.c.l.b16 %v8651
        %v8691 = vunpack.c.l.b16 %v8652
        %v8692 = vunpack.c.l.b16 %v8653
        %v8693 = vpack.c.b16 %v8678, %v8677
        %v8694 = vpack.c.b16 %v8680, %v8679
        %v8695 = vpack.c.b16 %v8682, %v8681
        %v8696 = vpack.c.b16 %v8684, %v8683
        %v8697 = vpack.c.b16 %v8686, %v8685
        %v8698 = vpack.c.b16 %v8688, %v8687
        %v8699 = vpack.c.b16 %v8690, %v8689
        %v8700 = vpack.c.b16 %v8692, %v8691
        %8709 = vmatprep.subr.bf16.mxu0 0
        %8710 = vmatpush1.bf16.msra.mxu0 %v8693
        %8711 = vmatprep.subr.bf16.mxu0 0
        %8712 = vmatpush1.bf16.msra.mxu0 %v8694
        %8713 = vmatprep.subr.bf16.mxu0 0
        %8714 = vmatpush1.bf16.msra.mxu0 %v8695
        %8715 = vmatprep.subr.bf16.mxu0 0
        %8716 = vmatpush1.bf16.msra.mxu0 %v8696
        %8717 = vmatprep.subr.bf16.mxu0 0
        %8718 = vmatpush1.bf16.msra.mxu0 %v8697
        %8719 = vmatprep.subr.bf16.mxu0 0
        %8720 = vmatpush1.bf16.msra.mxu0 %v8698
        %8721 = vmatprep.subr.bf16.mxu0 0
        %8722 = vmatpush1.bf16.msra.mxu0 %v8699
        %8723 = vmatprep.subr.bf16.mxu0 0
        %8724 = vmatpush1.bf16.msra.mxu0 %v8700
        %8725 = vmatprep.subr.bf16.mxu0 0
        %8726 = vmatpush1.bf16.msra.mxu0 0
        %8727 = vmatprep.subr.bf16.mxu0 0
        %8728 = vmatpush1.bf16.msra.mxu0 0
        %8729 = vmatprep.subr.bf16.mxu0 0
        %8730 = vmatpush1.bf16.msra.mxu0 0
        %8731 = vmatprep.subr.bf16.mxu0 0
        %8732 = vmatpush1.bf16.msra.mxu0 0
        %8733 = vmatprep.subr.bf16.mxu0 0
        %8734 = vmatpush1.bf16.msra.mxu0 0
        %8735 = vmatprep.subr.bf16.mxu0 0
        %8736 = vmatpush1.bf16.msra.mxu0 0
        %8737 = vmatprep.subr.bf16.mxu0 0
        %8738 = vmatpush1.bf16.msra.mxu0 0
        %8739 = vmatprep.subr.bf16.mxu0 0
        %8740 = vmatpush1.bf16.msra.mxu0 0
        %8741 = vmatprep.mubr.bf16.mxu0 0
        %8742 = vmatmul.mubr.bf16.gmra.mrb[0].mxu0 %v8628
        %v8743 = vpop.f32.mrb[0].mxu0
        %v8744 = vadd.f32 %v8659, %v8743
        %v8745 = vpop.f32.mrb[0].mxu0
        %v8746 = vpop.f32.mrb[0].mxu0
        %v8747 = vadd.f32 %v8659, %v8746
        %v8748 = vpop.f32.mrb[0].mxu0
        %8749 = vmatprep.mubr.bf16.mxu0 0
        %8750 = vmatmul.mubr.bf16.gmra.mrb[0].mxu0 %v8629
        %v8751 = vpop.f32.mrb[0].mxu0
        %v8752 = vadd.f32 %v8659, %v8751
        %v8753 = vpop.f32.mrb[0].mxu0
        %v8754 = vpop.f32.mrb[0].mxu0
        %v8755 = vadd.f32 %v8659, %v8754
        %v8756 = vpop.f32.mrb[0].mxu0
        %8757 = vmatprep.mubr.bf16.mxu0 0
        %8758 = vmatmul.mubr.bf16.gmra.mrb[0].mxu0 %v8630
        %v8759 = vpop.f32.mrb[0].mxu0
        %v8760 = vadd.f32 %v8659, %v8759
        %v8761 = vpop.f32.mrb[0].mxu0
        %v8762 = vpop.f32.mrb[0].mxu0
        %v8763 = vadd.f32 %v8659, %v8762
        %v8764 = vpop.f32.mrb[0].mxu0
        %8765 = vmatprep.mubr.bf16.mxu0 0
        %8766 = vmatmul.mubr.bf16.gmra.mrb[0].mxu0 %v8631
        %v8767 = vpop.f32.mrb[0].mxu0
        %v8768 = vadd.f32 %v8659, %v8767
        %v8769 = vpop.f32.mrb[0].mxu0
        %v8770 = vpop.f32.mrb[0].mxu0
        %v8771 = vadd.f32 %v8659, %v8770
        %v8772 = vpop.f32.mrb[0].mxu0
        %8773 = vmatprep.mubr.bf16.mxu0 0
        %8774 = vmatmul.mubr.bf16.gmra.mrb[0].mxu0 %v8632
        %v8775 = vpop.f32.mrb[0].mxu0
        %v8776 = vadd.f32 %v8659, %v8775
        %v8777 = vpop.f32.mrb[0].mxu0
        %v8778 = vpop.f32.mrb[0].mxu0
        %v8779 = vadd.f32 %v8659, %v8778
        %v8780 = vpop.f32.mrb[0].mxu0
        %8781 = vmatprep.mubr.bf16.mxu0 0
        %8782 = vmatmul.mubr.bf16.gmra.mrb[0].mxu0 %v8633
        %v8783 = vpop.f32.mrb[0].mxu0
        %v8784 = vadd.f32 %v8659, %v8783
        %v8785 = vpop.f32.mrb[0].mxu0
        %v8786 = vpop.f32.mrb[0].mxu0
        %v8787 = vadd.f32 %v8659, %v8786
        %v8788 = vpop.f32.mrb[0].mxu0
        %8789 = vmatprep.mubr.bf16.mxu0 0
        %8790 = vmatmul.mubr.bf16.gmra.mrb[0].mxu0 %v8634
        %v8791 = vpop.f32.mrb[0].mxu0
        %v8792 = vadd.f32 %v8659, %v8791
        %v8793 = vpop.f32.mrb[0].mxu0
        %v8794 = vpop.f32.mrb[0].mxu0
        %v8795 = vadd.f32 %v8659, %v8794
        %v8796 = vpop.f32.mrb[0].mxu0
        %8797 = vmatprep.mubr.bf16.mxu0 0
        %8798 = vmatmul.mubr.bf16.gmra.mrb[0].mxu0 %v8635
        %v8799 = vpop.f32.mrb[0].mxu0
        %v8800 = vadd.f32 %v8659, %v8799
        %v8801 = vpop.f32.mrb[0].mxu0
        %v8802 = vpop.f32.mrb[0].mxu0
        %v8803 = vadd.f32 %v8659, %v8802
        %v8804 = vpop.f32.mrb[0].mxu0
        %8805 = vmatprep.mubr.bf16.mxu0 0
        %8806 = vmatmul.mubr.bf16.gmra.mrb[0].mxu0 %v8636
        %v8807 = vpop.f32.mrb[0].mxu0
        %v8808 = vadd.f32 %v8659, %v8807
        %v8809 = vpop.f32.mrb[0].mxu0
        %v8810 = vpop.f32.mrb[0].mxu0
        %v8811 = vadd.f32 %v8659, %v8810
        %v8812 = vpop.f32.mrb[0].mxu0
        %8813 = vmatprep.mubr.bf16.mxu0 0
        %8814 = vmatmul.mubr.bf16.gmra.mrb[0].mxu0 %v8637
        %v8815 = vpop.f32.mrb[0].mxu0
        %v8816 = vadd.f32 %v8659, %v8815
        %v8817 = vpop.f32.mrb[0].mxu0
        %v8818 = vpop.f32.mrb[0].mxu0
        %v8819 = vpop.f32.mrb[0].mxu0
        %8820 = vdwg.mxu0
        %v8821 = vxor.u32 %v8744, 2147483648
        %v8822 = vxor.u32 %v8747, 2147483648
        %v8823 = vxor.u32 %v8752, 2147483648
        %v8824 = vxor.u32 %v8755, 2147483648
        %v8825 = vxor.u32 %v8760, 2147483648
        %v8826 = vxor.u32 %v8763, 2147483648
        %v8827 = vxor.u32 %v8768, 2147483648
        %v8828 = vxor.u32 %v8771, 2147483648
        %v8829 = vxor.u32 %v8776, 2147483648
        %v8830 = vxor.u32 %v8779, 2147483648
        %v8831 = vxor.u32 %v8784, 2147483648
        %v8832 = vxor.u32 %v8787, 2147483648
        %v8833 = vxor.u32 %v8792, 2147483648
        %v8834 = vxor.u32 %v8795, 2147483648
        %v8835 = vxor.u32 %v8800, 2147483648
        %v8836 = vxor.u32 %v8803, 2147483648
        %v8837 = vxor.u32 %v8808, 2147483648
        %v8838 = vxor.u32 %v8811, 2147483648
        %v8839 = vxor.u32 %v8816, 2147483648
        %v8840 = vmul.f32 %v8821, 1.442695
        %v8841 = vpow.pop %v8840
        %v8842 = vmul.f32 %v8822, 1.442695
        %v8843 = vpow.pop %v8842
        %v8844 = vmul.f32 %v8823, 1.442695
        %v8845 = vpow.pop %v8844
        %v8846 = vmul.f32 %v8824, 1.442695
        %v8847 = vpow.pop %v8846
        %v8848 = vmul.f32 %v8825, 1.442695
        %v8849 = vpow.pop %v8848
        %v8850 = vmul.f32 %v8826, 1.442695
        %v8851 = vpow.pop %v8850
        %v8852 = vmul.f32 %v8827, 1.442695
        %v8853 = vpow.pop %v8852
        %v8854 = vmul.f32 %v8828, 1.442695
        %v8855 = vpow.pop %v8854
        %v8856 = vmul.f32 %v8829, 1.442695
        %v8857 = vpow.pop %v8856
        %v8858 = vmul.f32 %v8830, 1.442695
        %v8859 = vpow.pop %v8858
        %v8860 = vmul.f32 %v8831, 1.442695
        %v8861 = vpow.pop %v8860
        %v8862 = vmul.f32 %v8832, 1.442695
        %v8863 = vpow.pop %v8862
        %v8864 = vmul.f32 %v8833, 1.442695
        %v8865 = vpow.pop %v8864
        %v8866 = vmul.f32 %v8834, 1.442695
        %v8867 = vpow.pop %v8866
        %v8868 = vmul.f32 %v8835, 1.442695
        %v8869 = vpow.pop %v8868
        %v8870 = vmul.f32 %v8836, 1.442695
        %v8871 = vpow.pop %v8870
        %v8872 = vmul.f32 %v8837, 1.442695
        %v8873 = vpow.pop %v8872
        %v8874 = vmul.f32 %v8838, 1.442695
        %v8875 = vpow.pop %v8874
        %v8876 = vmul.f32 %v8839, 1.442695
        %v8877 = vpow.pop %v8876
        %v8878 = vadd.f32 %v8841, 1.0
        %v8879 = vadd.f32 %v8843, 1.0
        %v8880 = vadd.f32 %v8845, 1.0
        %v8881 = vadd.f32 %v8847, 1.0
        %v8882 = vadd.f32 %v8849, 1.0
        %v8883 = vadd.f32 %v8851, 1.0
        %v8884 = vadd.f32 %v8853, 1.0
        %v8885 = vadd.f32 %v8855, 1.0
        %v8886 = vadd.f32 %v8857, 1.0
        %v8887 = vadd.f32 %v8859, 1.0
        %v8888 = vadd.f32 %v8861, 1.0
        %v8889 = vadd.f32 %v8863, 1.0
        %v8890 = vadd.f32 %v8865, 1.0
        %v8891 = vadd.f32 %v8867, 1.0
        %v8892 = vadd.f32 %v8869, 1.0
        %v8893 = vadd.f32 %v8871, 1.0
        %v8894 = vadd.f32 %v8873, 1.0
        %v8895 = vadd.f32 %v8875, 1.0
        %v8896 = vadd.f32 %v8877, 1.0
        %v8897 = vrcp.pop %v8878
        %v8898 = vmul.f32 1.0, %v8897
        %v8899 = vrcp.pop %v8879
        %v8900 = vmul.f32 1.0, %v8899
        %v8901 = vrcp.pop %v8880
        %v8902 = vmul.f32 1.0, %v8901
        %v8903 = vrcp.pop %v8881
        %v8904 = vmul.f32 1.0, %v8903
        %v8905 = vrcp.pop %v8882
        %v8906 = vmul.f32 1.0, %v8905
        %v8907 = vrcp.pop %v8883
        %v8908 = vmul.f32 1.0, %v8907
        %v8909 = vrcp.pop %v8884
        %v8910 = vmul.f32 1.0, %v8909
        %v8911 = vrcp.pop %v8885
        %v8912 = vmul.f32 1.0, %v8911
        %v8913 = vrcp.pop %v8886
        %v8914 = vmul.f32 1.0, %v8913
        %v8915 = vrcp.pop %v8887
        %v8916 = vmul.f32 1.0, %v8915
        %v8917 = vrcp.pop %v8888
        %v8918 = vmul.f32 1.0, %v8917
        %v8919 = vrcp.pop %v8889
        %v8920 = vmul.f32 1.0, %v8919
        %v8921 = vrcp.pop %v8890
        %v8922 = vmul.f32 1.0, %v8921
        %v8923 = vrcp.pop %v8891
        %v8924 = vmul.f32 1.0, %v8923
        %v8925 = vrcp.pop %v8892
        %v8926 = vmul.f32 1.0, %v8925
        %v8927 = vrcp.pop %v8893
        %v8928 = vmul.f32 1.0, %v8927
        %v8929 = vrcp.pop %v8894
        %v8930 = vmul.f32 1.0, %v8929
        %v8931 = vrcp.pop %v8895
        %v8932 = vmul.f32 1.0, %v8931
        %v8933 = vrcp.pop %v8896
        %v8934 = vmul.f32 1.0, %v8933
        %8935 = vst [vmem:[%s614] sm:$0xff] %v8898
        %8936 = vst [vmem:[%s614 + $0x8] sm:$0xff] %v8900
        %8937 = vst [vmem:[%s614 + $0x10] sm:$0xff] %v8902
        %8938 = vst [vmem:[%s614 + $0x18] sm:$0xff] %v8904
        %8939 = vst [vmem:[%s614 + $0x20] sm:$0xff] %v8906
        %8940 = vst [vmem:[%s614 + $0x28] sm:$0xff] %v8908
        %8941 = vst [vmem:[%s614 + $0x30] sm:$0xff] %v8910
        %8942 = vst [vmem:[%s614 + $0x38] sm:$0xff] %v8912
        %8943 = vst [vmem:[%s614 + $0x40] sm:$0xff] %v8914
        %8944 = vst [vmem:[%s614 + $0x48] sm:$0xff] %v8916
        %8945 = vst [vmem:[%s614 + $0x50] sm:$0xff] %v8918
        %8946 = vst [vmem:[%s614 + $0x58] sm:$0xff] %v8920
        %8947 = vst [vmem:[%s614 + $0x60] sm:$0xff] %v8922
        %8948 = vst [vmem:[%s614 + $0x68] sm:$0xff] %v8924
        %8949 = vst [vmem:[%s614 + $0x70] sm:$0xff] %v8926
        %8950 = vst [vmem:[%s614 + $0x78] sm:$0xff] %v8928
        %8951 = vst [vmem:[%s614 + $0x80] sm:$0xff] %v8930
        %8952 = vst [vmem:[%s614 + $0x88] sm:$0xff] %v8932
        %8953 = vst [vmem:[%s614 + $0x90] sm:$0xff] %v8934
        %s8954 = sand.u32 %s364, 1
        %s8955 = scalar_lea.sflag [#allocation4], %s8954
        %s8956 = sand.u32 %s364, 1
        %s8957 = smul.addr %s8956, 152
        %s8958 = scalar_lea.vmem [#allocation16], %s8957
        // Predicated region
        $region113: #{tpu_custom_call.1} parent=79 // pred_check
          %p8959 = pneg %p374
        $region114: #{tpu_custom_call.1} parent=79 // pred_check_branch
          %8961 = sbr.rel (%p8959) target = $region116
        $region115: #{tpu_custom_call.1} parent=79 // pred_region
          %s8962 = smul.u32 19, %s36
          %s8964 = ssub.s32 2432, 2432
          %8965 = vsyncadd %s8955, %s8964
          %s8966 = smul.addr %s8962, 128
          %s8967 = scalar_lea.hbm %s15, %s8966
          %s8968 = sshll.u32 %s8958, 4
          %s8969 = int_to_ptr.vmem [resolvable:$true] %s8968
          %8974 = dma.vmem_to_hbm [thread:$0]  %s8969, 2432, %s8967, %s8955, 128, 128, 8
        $region116: #{tpu_custom_call.1} parent=79 // pred_fallthru
          _
      $region80: #{tpu_custom_call.1} parent=5 // pred_fallthru
        _
      %p8975 = scmp.le.s32.totalorder 2, %s31
      // Predicated region
      $region117: #{tpu_custom_call.1} parent=5 // pred_check
        %p8976 = pneg %p8975
      $region118: #{tpu_custom_call.1} parent=5 // pred_check_branch
        %8978 = sbr.rel (%p8976) target = $region120
      $region119: #{tpu_custom_call.1} parent=5 // pred_region
        %s8979 = ssub.s32 %s31, 2
        // Predicated region
        $region121: #{tpu_custom_call.1} parent=119 // pred_check
          %p8980 = pneg %p380
        $region122: #{tpu_custom_call.1} parent=119 // pred_check_branch
          %8982 = sbr.rel (%p8980) target = $region124
        $region123: #{tpu_custom_call.1} parent=119 // pred_region
          %s8983 = sand.u32 %s365, 1
          %s8984 = scalar_lea.sflag [#allocation4], %s8983
          %s8985 = sand.u32 %s365, 1
          %s8986 = smul.addr %s8985, 152
          %s8987 = scalar_lea.vmem [#allocation16], %s8986
          %8988 = dma.done %s8984, 2432
        $region124: #{tpu_custom_call.1} parent=119 // pred_fallthru
          _
      $region120: #{tpu_custom_call.1} parent=5 // pred_fallthru
        _
    $region6: #{tpu_custom_call.1} parent=1 // loop_footer
      %s35 = sadd.s32 1, %s31
    $region7: #{tpu_custom_call.1} parent=1 // loop_footer_branch
      %30 = sbr.rel target = $region3
    $region8: #{tpu_custom_call.1} parent=1 // loop_exit
      _
    %8989 = vsyncpa [#allocation3], 1
    %s8990 = scalar_lea.sflag [#allocation3], 1
    %8991 = vsyncpa %s8990, 1
    %8992 = vsyncpa [#allocation6], 1
    %8993 = vsyncpa [#allocation9], 1
    %8994 = vsyncpa [#allocation12], 1
    %8995 = vsyncpa [#allocation15], 1
    %8996 = vsyncpa [#allocation4], 1
    %s8997 = scalar_lea.sflag [#allocation4], 1
    %8998 = vsyncpa %s8997, 1

</llo_original>
